<compile_context>
chip_gen: v7x
topology: tpu7x:2x2x1
jax: 0.10.0
libtpu: 0.0.40
codegen_flags: <defaults>
</compile_context>

<pallas_src>
import jax
import jax.numpy as jnp
import numpy as np
from jax import lax
from jax.experimental import pallas as pl
from jax.experimental.pallas import tpu as pltpu


def bottleneck_kernel(x_ref, w1_ref, b1_ref, w2_ref, b2_ref, w3_ref, b3_ref,
                      out_ref, pad_ref, col_ref):
    B, H, W, Cin = x_ref.shape
    Cm = w1_ref.shape[1]
    Cout = w3_ref.shape[1]
    Kp = w2_ref.shape[0]          # lane-padded im2col depth (multiple of 128)
    K = 9 * Cm                    # true im2col depth
    rows = B * H * W
    cdt = w1_ref.dtype            # matmul-operand dtype (f32 or bf16)

    # Zero only the 1-pixel halo border of the padded conv2 input (interior is
    # fully overwritten below).  Re-zeroed every step so it stays correct when
    # the parallel batch-block axis is sharded across TensorCores; the stores
    # are tiny compared to the per-step work.
    pad_ref[:, 0:1, :, :] = jnp.zeros((B, 1, W + 2, Cm), pad_ref.dtype)
    pad_ref[:, H + 1:H + 2, :, :] = jnp.zeros((B, 1, W + 2, Cm), pad_ref.dtype)
    pad_ref[:, 1:H + 1, 0:1, :] = jnp.zeros((B, H, 1, Cm), pad_ref.dtype)
    pad_ref[:, 1:H + 1, W + 1:W + 2, :] = jnp.zeros((B, H, 1, Cm), pad_ref.dtype)
    # Zero the K-padding columns of the im2col scratch.  (The matching weight
    # rows are zero, but scratch is uninitialized and garbage*0 could be NaN.)
    if Kp > K:
        col_ref[:, K:] = jnp.zeros((rows, Kp - K), col_ref.dtype)

    # Residual stays live as a value (avoid re-reading x_ref later).
    x2d = x_ref[...].reshape(rows, Cin)

    # ---- conv1 (1x1) + folded bn1 + relu (f32 epilogue) ----------------------
    t1 = jnp.dot(x2d, w1_ref[...], preferred_element_type=jnp.float32)
    t1 = jnp.maximum(t1 + b1_ref[...], 0.0)

    # ---- conv2 (3x3, stride 1, pad 1) as ONE K=Kp matmul + bn2 + relu --------
    # Write t1 into the interior of the zero-haloed scratch, then scatter the
    # nine static-offset taps into the VMEM im2col slab (keeps the im2col
    # operand out of vregs and avoids the old in-register concat relayouts).
    pad_ref[:, 1:H + 1, 1:W + 1, :] = (
        t1.reshape(B, H, W, Cm).astype(pad_ref.dtype))
    for kh in range(3):
        for kw in range(3):
            k = kh * 3 + kw
            col_ref[:, k * Cm:(k + 1) * Cm] = (
                pad_ref[:, kh:kh + H, kw:kw + W, :].reshape(rows, Cm))
    t2 = jnp.dot(col_ref[...], w2_ref[...], preferred_element_type=jnp.float32)
    t2 = jnp.maximum(t2 + b2_ref[...], 0.0)

    # ---- conv3 (1x1) + folded bn3 + identity residual + relu (f32 epilogue) --
    t3 = jnp.dot(t2.astype(cdt), w3_ref[...], preferred_element_type=jnp.float32)
    out = jnp.maximum(t3 + b3_ref[...] + x2d.astype(jnp.float32), 0.0)
    out_ref[...] = out.reshape(B, H, W, Cout).astype(out_ref.dtype)


def fold_bottleneck_params(w1, w2, w3, bn1, bn2, bn3, *,
                           compute_dtype=jnp.float32, eps=1e-5):
    """Fold eval-mode BatchNorms into conv weights; return (w1s,b1,w2s,b2,w3s,b3).

    w1: [Cin, Cm] (1x1), w2: [3,3,Cm,Cm] (HWIO), w3: [Cm, Cout] (1x1).
    bnX = (gamma, beta, running_mean, running_var).
    w2 is flattened to im2col order (kh*3+kw)*Cm + cin and zero-padded along K
    to the next multiple of 128 lanes.
    """
    def fold(gamma, beta, mean, var):
        scale = gamma / jnp.sqrt(var + eps)
        bias = beta - mean * scale
        return scale.astype(jnp.float32), bias.astype(jnp.float32)

    s1, b1 = fold(*bn1)
    s2, b2 = fold(*bn2)
    s3, b3 = fold(*bn3)
    Cm = w1.shape[1]
    K = 9 * Cm
    Kp = ((K + 127) // 128) * 128
    w1s = (w1 * s1[None, :]).astype(compute_dtype)
    w2s = (w2 * s2[None, None, None, :]).reshape(K, Cm)
    if Kp > K:
        w2s = jnp.concatenate([w2s, jnp.zeros((Kp - K, Cm), w2s.dtype)], axis=0)
    w2s = w2s.astype(compute_dtype)
    w3s = (w3 * s3[None, :]).astype(compute_dtype)
    return (w1s, b1.reshape(1, -1), w2s, b2.reshape(1, -1),
            w3s, b3.reshape(1, -1))


def bottleneck_forward(x_nhwc, folded_params, *, block_n=8):
    """x_nhwc: [N, H, W, Cin].  Returns [N, H, W, Cout] in the compute dtype."""
    N, H, W, Cin = x_nhwc.shape
    w1s, b1, w2s, b2, w3s, b3 = folded_params
    Cm = w1s.shape[1]
    Cout = w3s.shape[1]
    Kp = w2s.shape[0]
    cdt = w1s.dtype
    assert Cin == Cout, "identity residual requires in_channels == 4*channels"

    block_n = max(1, min(block_n, N))
    assert N % block_n == 0, "batch must be divisible by block_n"
    num_steps = N // block_n

    # Cast activations to the compute dtype at the HBM boundary (bf16 halves
    # the dominant DMA term once the kernel is batched / memory-bound).
    x_in = x_nhwc.astype(cdt)
    itemsize = jnp.dtype(cdt).itemsize

    def full_spec(a):
        nd = a.ndim
        return pl.BlockSpec(a.shape, lambda n: (0,) * nd)

    flops = 2 * N * H * W * (Cin * Cm + 9 * Cm * Cm + Cm * Cout)
    bytes_accessed = (
        x_in.size * itemsize
        + N * H * W * Cout * itemsize
        + sum(int(np.prod(a.shape)) * a.dtype.itemsize
              for a in (w1s, b1, w2s, b2, w3s, b3)))

    # Scale the scoped-VMEM limit with the block size; cap at 64 MiB so the
    # same setting is safe on v7x (64 MiB physical VMEM per TensorCore).
    block_bytes = (block_n * H * W * (Cin + Cout) * itemsize          # in+out
                   + block_n * (H + 2) * (W + 2) * Cm * itemsize      # halo
                   + block_n * H * W * Kp * itemsize)                 # im2col
    vmem_limit = int(min(64 * 1024 * 1024, max(32 * 1024 * 1024, 4 * block_bytes)))

    grid_spec = pltpu.PrefetchScalarGridSpec(
        num_scalar_prefetch=0,
        grid=(num_steps,),
        in_specs=[
            # TODO(synk): on v5e, if DMA is exposed, add pipeline_mode=pl.Buffered(3).
            pl.BlockSpec((block_n, H, W, Cin), lambda n: (n, 0, 0, 0)),
            full_spec(w1s), full_spec(b1),
            full_spec(w2s), full_spec(b2),
            full_spec(w3s), full_spec(b3),
        ],
        out_specs=pl.BlockSpec((block_n, H, W, Cout), lambda n: (n, 0, 0, 0)),
        scratch_shapes=[
            pltpu.VMEM((block_n, H + 2, W + 2, Cm), cdt),      # conv2 halo
            pltpu.VMEM((block_n * H * W, Kp), cdt),            # im2col slab
        ],
    )
    return pl.pallas_call(
        bottleneck_kernel,
        out_shape=jax.ShapeDtypeStruct((N, H, W, Cout), cdt),
        grid_spec=grid_spec,
        compiler_params=pltpu.CompilerParams(
            dimension_semantics=("parallel",),
            vmem_limit_bytes=vmem_limit),
        cost_estimate=pl.CostEstimate(flops=flops, transcendentals=0,
                                      bytes_accessed=bytes_accessed),
    )(x_in, w1s, b1, w2s, b2, w3s, b3)


def ref_forward(x, w1, w2, w3, bn1, bn2, bn3, eps=1e-5):
    """Pure-JAX NHWC reference of the Bottleneck forward (eval-mode BN)."""
    dn = ('NHWC', 'HWIO', 'NHWC')
    hp = lax.Precision.HIGHEST

    def bn(y, params):
        gamma, beta, mean, var = params
        scale = gamma / jnp.sqrt(var + eps)
        return y * scale + (beta - mean * scale)

    Cin, Cm = w1.shape
    Cout = w3.shape[1]
    y = lax.conv_general_dilated(x, w1.reshape(1, 1, Cin, Cm), (1, 1), 'VALID',
                                 dimension_numbers=dn, precision=hp)
    y = jnp.maximum(bn(y, bn1), 0.0)
    y = lax.conv_general_dilated(y, w2, (1, 1), 'SAME',
                                 dimension_numbers=dn, precision=hp)
    y = jnp.maximum(bn(y, bn2), 0.0)
    y = lax.conv_general_dilated(y, w3.reshape(1, 1, Cm, Cout), (1, 1), 'VALID',
                                 dimension_numbers=dn, precision=hp)
    y = bn(y, bn3)
    return jnp.maximum(y + x, 0.0)  # downsample == None -> identity residual


if __name__ == "__main__":
    # Bottleneck(in_channels=128, channels=32): Cout = 4*32 = 128 == Cin.
    N, H, W = 16, 8, 8                       # 16 images -> 2 grid steps of 8
    in_channels, channels, expansion = 128, 32, 4
    Cm, Cout = channels, channels * expansion

    keys = jax.random.split(jax.random.PRNGKey(0), 16)

    # Conv weights (PyTorch OIHW re-expressed for NHWC matmuls / HWIO conv).
    w1 = (jax.random.normal(keys[0], (in_channels, Cm)) * 0.1).astype(jnp.float32)
    w2 = (jax.random.normal(keys[1], (3, 3, Cm, Cm)) * 0.1).astype(jnp.float32)
    w3 = (jax.random.normal(keys[2], (Cm, Cout)) * 0.1).astype(jnp.float32)

    def bn_params(kg, kb, km, kv, c):
        gamma = jax.random.uniform(kg, (c,), minval=0.5, maxval=1.5)
        beta = jax.random.normal(kb, (c,)) * 0.1
        mean = jax.random.normal(km, (c,)) * 0.1
        var = jax.random.uniform(kv, (c,), minval=0.5, maxval=1.5)
        return (gamma.astype(jnp.float32), beta.astype(jnp.float32),
                mean.astype(jnp.float32), var.astype(jnp.float32))

    bn1 = bn_params(keys[3], keys[4], keys[5], keys[6], Cm)
    bn2 = bn_params(keys[7], keys[8], keys[9], keys[10], Cm)
    bn3 = bn_params(keys[11], keys[12], keys[13], keys[14], Cout)

    # Input in PyTorch NCHW convention, transposed to NHWC for the kernel.
    x_nchw = jax.random.normal(keys[15], (N, in_channels, H, W), dtype=jnp.float32)
    x_nhwc = jnp.transpose(x_nchw, (0, 2, 3, 1))

    ref = jax.block_until_ready(ref_forward(x_nhwc, w1, w2, w3, bn1, bn2, bn3))

    # f32 activation/matmul path (tight tolerance).
    params_f32 = fold_bottleneck_params(w1, w2, w3, bn1, bn2, bn3,
                                        compute_dtype=jnp.float32)
    out_f32 = jax.block_until_ready(
        bottleneck_forward(x_nhwc, params_f32, block_n=8))
    np.testing.assert_allclose(np.asarray(out_f32), np.asarray(ref),
                               rtol=1e-3, atol=1e-3)

    # bf16 activations + matmul operands at the HBM boundary (f32 epilogues).
    params_bf16 = fold_bottleneck_params(w1, w2, w3, bn1, bn2, bn3,
                                         compute_dtype=jnp.bfloat16)
    out_bf16 = jax.block_until_ready(
        bottleneck_forward(x_nhwc, params_bf16, block_n=8))
    np.testing.assert_allclose(np.asarray(out_bf16.astype(jnp.float32)),
                               np.asarray(ref), rtol=5e-2, atol=5e-2)

    print("KERNEL_OK")
</pallas_src>

<mosaic_0001>
module attributes {stable_mosaic.version = 11 : i64} {
  func.func @bottleneck_kernel(%arg0: i32, %arg1: memref<8x8x8x128xf32, #tpu.memory_space<vmem>>, %arg2: memref<128x32xf32, #tpu.memory_space<vmem>>, %arg3: memref<1x32xf32, #tpu.memory_space<vmem>>, %arg4: memref<384x32xf32, #tpu.memory_space<vmem>>, %arg5: memref<1x32xf32, #tpu.memory_space<vmem>>, %arg6: memref<32x128xf32, #tpu.memory_space<vmem>>, %arg7: memref<1x128xf32, #tpu.memory_space<vmem>>, %arg8: memref<8x8x8x128xf32, #tpu.memory_space<vmem>>, %arg9: memref<8x10x10x32xf32, #tpu.memory_space<vmem>>, %arg10: memref<512x384xf32, #tpu.memory_space<vmem>>) attributes {dimension_semantics = [#tpu.dimension_semantics<parallel>], iteration_bounds = array<i64: 2>, scalar_prefetch = 0 : i64, scratch_operands = 2 : i64, tpu.core_type = #tpu.core_type<tc>, window_params = [{transform_indices = @transform_0, window_bounds = array<i64: 8, 8, 8, 128>}, {pipeline_mode = #tpu.pipeline_mode<synchronous>, transform_indices = @transform_1, window_bounds = array<i64: 128, 32>}, {pipeline_mode = #tpu.pipeline_mode<synchronous>, transform_indices = @transform_2, window_bounds = array<i64: 1, 32>}, {pipeline_mode = #tpu.pipeline_mode<synchronous>, transform_indices = @transform_3, window_bounds = array<i64: 384, 32>}, {pipeline_mode = #tpu.pipeline_mode<synchronous>, transform_indices = @transform_4, window_bounds = array<i64: 1, 32>}, {pipeline_mode = #tpu.pipeline_mode<synchronous>, transform_indices = @transform_5, window_bounds = array<i64: 32, 128>}, {pipeline_mode = #tpu.pipeline_mode<synchronous>, transform_indices = @transform_6, window_bounds = array<i64: 1, 128>}, {transform_indices = @transform_7, window_bounds = array<i64: 8, 8, 8, 128>}]} {
    %cst = arith.constant 0.000000e+00 : f32
    %0 = vector.broadcast %cst : f32 to vector<8x1x10x32xf32>
    %c0 = arith.constant 0 : index
    %c0_0 = arith.constant 0 : index
    %c0_1 = arith.constant 0 : index
    %c0_2 = arith.constant 0 : index
    %1 = vector.load %arg9[%c0, %c0_0, %c0_1, %c0_2] : memref<8x10x10x32xf32, #tpu.memory_space<vmem>>, vector<8x1x10x32xf32>
    tpu.vector_store %arg9[%c0, %c0_0, %c0_1, %c0_2], %0 {strides = array<i32>} : memref<8x10x10x32xf32, #tpu.memory_space<vmem>>, vector<8x1x10x32xf32>,
    %cst_3 = arith.constant 0.000000e+00 : f32
    %2 = vector.broadcast %cst_3 : f32 to vector<8x1x10x32xf32>
    %c0_4 = arith.constant 0 : index
    %c9 = arith.constant 9 : index
    %c0_5 = arith.constant 0 : index
    %c0_6 = arith.constant 0 : index
    %3 = vector.load %arg9[%c0_4, %c9, %c0_5, %c0_6] : memref<8x10x10x32xf32, #tpu.memory_space<vmem>>, vector<8x1x10x32xf32>
    tpu.vector_store %arg9[%c0_4, %c9, %c0_5, %c0_6], %2 {strides = array<i32>} : memref<8x10x10x32xf32, #tpu.memory_space<vmem>>, vector<8x1x10x32xf32>,
    %cst_7 = arith.constant 0.000000e+00 : f32
    %4 = vector.broadcast %cst_7 : f32 to vector<8x8x1x32xf32>
    %c0_8 = arith.constant 0 : index
    %c1 = arith.constant 1 : index
    %c0_9 = arith.constant 0 : index
    %c0_10 = arith.constant 0 : index
    %5 = vector.load %arg9[%c0_8, %c1, %c0_9, %c0_10] : memref<8x10x10x32xf32, #tpu.memory_space<vmem>>, vector<8x8x1x32xf32>
    tpu.vector_store %arg9[%c0_8, %c1, %c0_9, %c0_10], %4 {strides = array<i32>} : memref<8x10x10x32xf32, #tpu.memory_space<vmem>>, vector<8x8x1x32xf32>,
    %cst_11 = arith.constant 0.000000e+00 : f32
    %6 = vector.broadcast %cst_11 : f32 to vector<8x8x1x32xf32>
    %c0_12 = arith.constant 0 : index
    %c1_13 = arith.constant 1 : index
    %c9_14 = arith.constant 9 : index
    %c0_15 = arith.constant 0 : index
    %7 = vector.load %arg9[%c0_12, %c1_13, %c9_14, %c0_15] : memref<8x10x10x32xf32, #tpu.memory_space<vmem>>, vector<8x8x1x32xf32>
    tpu.vector_store %arg9[%c0_12, %c1_13, %c9_14, %c0_15], %6 {strides = array<i32>} : memref<8x10x10x32xf32, #tpu.memory_space<vmem>>, vector<8x8x1x32xf32>,
    %cst_16 = arith.constant 0.000000e+00 : f32
    %8 = vector.broadcast %cst_16 : f32 to vector<512x96xf32>
    %c0_17 = arith.constant 0 : index
    %c288 = arith.constant 288 : index
    %9 = vector.load %arg10[%c0_17, %c288] : memref<512x384xf32, #tpu.memory_space<vmem>>, vector<512x96xf32>
    tpu.vector_store %arg10[%c0_17, %c288], %8 {strides = array<i32>} : memref<512x384xf32, #tpu.memory_space<vmem>>, vector<512x96xf32>,
    %c0_18 = arith.constant 0 : index
    %c0_19 = arith.constant 0 : index
    %c0_20 = arith.constant 0 : index
    %c0_21 = arith.constant 0 : index
    %10 = vector.load %arg1[%c0_18, %c0_19, %c0_20, %c0_21] : memref<8x8x8x128xf32, #tpu.memory_space<vmem>>, vector<8x8x8x128xf32>
    %11 = vector.shape_cast %10 : vector<8x8x8x128xf32> to vector<512x128xf32>
    %c0_22 = arith.constant 0 : index
    %c0_23 = arith.constant 0 : index
    %12 = vector.load %arg2[%c0_22, %c0_23] : memref<128x32xf32, #tpu.memory_space<vmem>>, vector<128x32xf32>
    %cst_24 = arith.constant dense<0.000000e+00> : vector<512x32xf32>
    %13 = tpu.matmul %11, %12, %cst_24 {dimension_numbers = #tpu.dot_dimension_numbers<[1], [0], [0], [1], [0, 0, 1, 1], [], []>} : vector<512x128xf32>, vector<128x32xf32>, vector<512x32xf32> -> vector<512x32xf32>
    %c0_25 = arith.constant 0 : index
    %c0_26 = arith.constant 0 : index
    %14 = vector.load %arg3[%c0_25, %c0_26] : memref<1x32xf32, #tpu.memory_space<vmem>>, vector<1x32xf32>
    %15 = vector.broadcast %14 : vector<1x32xf32> to vector<512x32xf32>
    %16 = arith.addf %13, %15 : vector<512x32xf32>
    %cst_27 = arith.constant 0.000000e+00 : f32
    %17 = vector.broadcast %cst_27 : f32 to vector<512x32xf32>
    %18 = arith.maximumf %16, %17 : vector<512x32xf32>
    %19 = vector.shape_cast %18 : vector<512x32xf32> to vector<8x8x8x32xf32>
    %c0_28 = arith.constant 0 : index
    %c1_29 = arith.constant 1 : index
    %c1_30 = arith.constant 1 : index
    %c0_31 = arith.constant 0 : index
    %20 = vector.load %arg9[%c0_28, %c1_29, %c1_30, %c0_31] : memref<8x10x10x32xf32, #tpu.memory_space<vmem>>, vector<8x8x8x32xf32>
    tpu.vector_store %arg9[%c0_28, %c1_29, %c1_30, %c0_31], %19 {strides = array<i32>} : memref<8x10x10x32xf32, #tpu.memory_space<vmem>>, vector<8x8x8x32xf32>,
    %c0_32 = arith.constant 0 : index
    %c0_33 = arith.constant 0 : index
    %c0_34 = arith.constant 0 : index
    %c0_35 = arith.constant 0 : index
    %21 = vector.load %arg9[%c0_32, %c0_33, %c0_34, %c0_35] : memref<8x10x10x32xf32, #tpu.memory_space<vmem>>, vector<8x8x8x32xf32>
    %22 = vector.shape_cast %21 : vector<8x8x8x32xf32> to vector<512x32xf32>
    %c0_36 = arith.constant 0 : index
    %c0_37 = arith.constant 0 : index
    %23 = vector.load %arg10[%c0_36, %c0_37] : memref<512x384xf32, #tpu.memory_space<vmem>>, vector<512x32xf32>
    tpu.vector_store %arg10[%c0_36, %c0_37], %22 {strides = array<i32>} : memref<512x384xf32, #tpu.memory_space<vmem>>, vector<512x32xf32>,
    %c0_38 = arith.constant 0 : index
    %c0_39 = arith.constant 0 : index
    %c1_40 = arith.constant 1 : index
    %c0_41 = arith.constant 0 : index
    %24 = vector.load %arg9[%c0_38, %c0_39, %c1_40, %c0_41] : memref<8x10x10x32xf32, #tpu.memory_space<vmem>>, vector<8x8x8x32xf32>
    %25 = vector.shape_cast %24 : vector<8x8x8x32xf32> to vector<512x32xf32>
    %c0_42 = arith.constant 0 : index
    %c32 = arith.constant 32 : index
    %26 = vector.load %arg10[%c0_42, %c32] : memref<512x384xf32, #tpu.memory_space<vmem>>, vector<512x32xf32>
    tpu.vector_store %arg10[%c0_42, %c32], %25 {strides = array<i32>} : memref<512x384xf32, #tpu.memory_space<vmem>>, vector<512x32xf32>,
    %c0_43 = arith.constant 0 : index
    %c0_44 = arith.constant 0 : index
    %c2 = arith.constant 2 : index
    %c0_45 = arith.constant 0 : index
    %27 = vector.load %arg9[%c0_43, %c0_44, %c2, %c0_45] : memref<8x10x10x32xf32, #tpu.memory_space<vmem>>, vector<8x8x8x32xf32>
    %28 = vector.shape_cast %27 : vector<8x8x8x32xf32> to vector<512x32xf32>
    %c0_46 = arith.constant 0 : index
    %c64 = arith.constant 64 : index
    %29 = vector.load %arg10[%c0_46, %c64] : memref<512x384xf32, #tpu.memory_space<vmem>>, vector<512x32xf32>
    tpu.vector_store %arg10[%c0_46, %c64], %28 {strides = array<i32>} : memref<512x384xf32, #tpu.memory_space<vmem>>, vector<512x32xf32>,
    %c0_47 = arith.constant 0 : index
    %c1_48 = arith.constant 1 : index
    %c0_49 = arith.constant 0 : index
    %c0_50 = arith.constant 0 : index
    %30 = vector.load %arg9[%c0_47, %c1_48, %c0_49, %c0_50] : memref<8x10x10x32xf32, #tpu.memory_space<vmem>>, vector<8x8x8x32xf32>
    %31 = vector.shape_cast %30 : vector<8x8x8x32xf32> to vector<512x32xf32>
    %c0_51 = arith.constant 0 : index
    %c96 = arith.constant 96 : index
    %32 = vector.load %arg10[%c0_51, %c96] : memref<512x384xf32, #tpu.memory_space<vmem>>, vector<512x32xf32>
    tpu.vector_store %arg10[%c0_51, %c96], %31 {strides = array<i32>} : memref<512x384xf32, #tpu.memory_space<vmem>>, vector<512x32xf32>,
    %c0_52 = arith.constant 0 : index
    %c1_53 = arith.constant 1 : index
    %c1_54 = arith.constant 1 : index
    %c0_55 = arith.constant 0 : index
    %33 = vector.load %arg9[%c0_52, %c1_53, %c1_54, %c0_55] : memref<8x10x10x32xf32, #tpu.memory_space<vmem>>, vector<8x8x8x32xf32>
    %34 = vector.shape_cast %33 : vector<8x8x8x32xf32> to vector<512x32xf32>
    %c0_56 = arith.constant 0 : index
    %c128 = arith.constant 128 : index
    %35 = vector.load %arg10[%c0_56, %c128] : memref<512x384xf32, #tpu.memory_space<vmem>>, vector<512x32xf32>
    tpu.vector_store %arg10[%c0_56, %c128], %34 {strides = array<i32>} : memref<512x384xf32, #tpu.memory_space<vmem>>, vector<512x32xf32>,
    %c0_57 = arith.constant 0 : index
    %c1_58 = arith.constant 1 : index
    %c2_59 = arith.constant 2 : index
    %c0_60 = arith.constant 0 : index
    %36 = vector.load %arg9[%c0_57, %c1_58, %c2_59, %c0_60] : memref<8x10x10x32xf32, #tpu.memory_space<vmem>>, vector<8x8x8x32xf32>
    %37 = vector.shape_cast %36 : vector<8x8x8x32xf32> to vector<512x32xf32>
    %c0_61 = arith.constant 0 : index
    %c160 = arith.constant 160 : index
    %38 = vector.load %arg10[%c0_61, %c160] : memref<512x384xf32, #tpu.memory_space<vmem>>, vector<512x32xf32>
    tpu.vector_store %arg10[%c0_61, %c160], %37 {strides = array<i32>} : memref<512x384xf32, #tpu.memory_space<vmem>>, vector<512x32xf32>,
    %c0_62 = arith.constant 0 : index
    %c2_63 = arith.constant 2 : index
    %c0_64 = arith.constant 0 : index
    %c0_65 = arith.constant 0 : index
    %39 = vector.load %arg9[%c0_62, %c2_63, %c0_64, %c0_65] : memref<8x10x10x32xf32, #tpu.memory_space<vmem>>, vector<8x8x8x32xf32>
    %40 = vector.shape_cast %39 : vector<8x8x8x32xf32> to vector<512x32xf32>
    %c0_66 = arith.constant 0 : index
    %c192 = arith.constant 192 : index
    %41 = vector.load %arg10[%c0_66, %c192] : memref<512x384xf32, #tpu.memory_space<vmem>>, vector<512x32xf32>
    tpu.vector_store %arg10[%c0_66, %c192], %40 {strides = array<i32>} : memref<512x384xf32, #tpu.memory_space<vmem>>, vector<512x32xf32>,
    %c0_67 = arith.constant 0 : index
    %c2_68 = arith.constant 2 : index
    %c1_69 = arith.constant 1 : index
    %c0_70 = arith.constant 0 : index
    %42 = vector.load %arg9[%c0_67, %c2_68, %c1_69, %c0_70] : memref<8x10x10x32xf32, #tpu.memory_space<vmem>>, vector<8x8x8x32xf32>
    %43 = vector.shape_cast %42 : vector<8x8x8x32xf32> to vector<512x32xf32>
    %c0_71 = arith.constant 0 : index
    %c224 = arith.constant 224 : index
    %44 = vector.load %arg10[%c0_71, %c224] : memref<512x384xf32, #tpu.memory_space<vmem>>, vector<512x32xf32>
    tpu.vector_store %arg10[%c0_71, %c224], %43 {strides = array<i32>} : memref<512x384xf32, #tpu.memory_space<vmem>>, vector<512x32xf32>,
    %c0_72 = arith.constant 0 : index
    %c2_73 = arith.constant 2 : index
    %c2_74 = arith.constant 2 : index
    %c0_75 = arith.constant 0 : index
    %45 = vector.load %arg9[%c0_72, %c2_73, %c2_74, %c0_75] : memref<8x10x10x32xf32, #tpu.memory_space<vmem>>, vector<8x8x8x32xf32>
    %46 = vector.shape_cast %45 : vector<8x8x8x32xf32> to vector<512x32xf32>
    %c0_76 = arith.constant 0 : index
    %c256 = arith.constant 256 : index
    %47 = vector.load %arg10[%c0_76, %c256] : memref<512x384xf32, #tpu.memory_space<vmem>>, vector<512x32xf32>
    tpu.vector_store %arg10[%c0_76, %c256], %46 {strides = array<i32>} : memref<512x384xf32, #tpu.memory_space<vmem>>, vector<512x32xf32>,
    %c0_77 = arith.constant 0 : index
    %c0_78 = arith.constant 0 : index
    %48 = vector.load %arg10[%c0_77, %c0_78] : memref<512x384xf32, #tpu.memory_space<vmem>>, vector<512x384xf32>
    %c0_79 = arith.constant 0 : index
    %c0_80 = arith.constant 0 : index
    %49 = vector.load %arg4[%c0_79, %c0_80] : memref<384x32xf32, #tpu.memory_space<vmem>>, vector<384x32xf32>
    %cst_81 = arith.constant dense<0.000000e+00> : vector<512x32xf32>
    %50 = tpu.matmul %48, %49, %cst_81 {dimension_numbers = #tpu.dot_dimension_numbers<[1], [0], [0], [1], [0, 0, 1, 1], [], []>} : vector<512x384xf32>, vector<384x32xf32>, vector<512x32xf32> -> vector<512x32xf32>
    %c0_82 = arith.constant 0 : index
    %c0_83 = arith.constant 0 : index
    %51 = vector.load %arg5[%c0_82, %c0_83] : memref<1x32xf32, #tpu.memory_space<vmem>>, vector<1x32xf32>
    %52 = vector.broadcast %51 : vector<1x32xf32> to vector<512x32xf32>
    %53 = arith.addf %50, %52 : vector<512x32xf32>
    %cst_84 = arith.constant 0.000000e+00 : f32
    %54 = vector.broadcast %cst_84 : f32 to vector<512x32xf32>
    %55 = arith.maximumf %53, %54 : vector<512x32xf32>
    %c0_85 = arith.constant 0 : index
    %c0_86 = arith.constant 0 : index
    %56 = vector.load %arg6[%c0_85, %c0_86] : memref<32x128xf32, #tpu.memory_space<vmem>>, vector<32x128xf32>
    %cst_87 = arith.constant dense<0.000000e+00> : vector<512x128xf32>
    %57 = tpu.matmul %55, %56, %cst_87 {dimension_numbers = #tpu.dot_dimension_numbers<[1], [0], [0], [1], [0, 0, 1, 1], [], []>} : vector<512x32xf32>, vector<32x128xf32>, vector<512x128xf32> -> vector<512x128xf32>
    %c0_88 = arith.constant 0 : index
    %c0_89 = arith.constant 0 : index
    %58 = vector.load %arg7[%c0_88, %c0_89] : memref<1x128xf32, #tpu.memory_space<vmem>>, vector<1x128xf32>
    %59 = vector.broadcast %58 : vector<1x128xf32> to vector<512x128xf32>
    %60 = arith.addf %57, %59 : vector<512x128xf32>
    %61 = arith.addf %60, %11 : vector<512x128xf32>
    %cst_90 = arith.constant 0.000000e+00 : f32
    %62 = vector.broadcast %cst_90 : f32 to vector<512x128xf32>
    %63 = arith.maximumf %61, %62 : vector<512x128xf32>
    %64 = vector.shape_cast %63 : vector<512x128xf32> to vector<8x8x8x128xf32>
    %c0_91 = arith.constant 0 : index
    %c0_92 = arith.constant 0 : index
    %c0_93 = arith.constant 0 : index
    %c0_94 = arith.constant 0 : index
    %65 = vector.load %arg8[%c0_91, %c0_92, %c0_93, %c0_94] : memref<8x8x8x128xf32, #tpu.memory_space<vmem>>, vector<8x8x8x128xf32>
    tpu.vector_store %arg8[%c0_91, %c0_92, %c0_93, %c0_94], %64 {strides = array<i32>} : memref<8x8x8x128xf32, #tpu.memory_space<vmem>>, vector<8x8x8x128xf32>,
    return
  }
  func.func @transform_0(%arg0: i32) -> (i32, i32, i32, i32) {
    %c0_i32 = arith.constant 0 : i32
    %c0_i32_0 = arith.constant 0 : i32
    %c0_i32_1 = arith.constant 0 : i32
    %c0_i32_2 = arith.constant 0 : i32
    return %arg0, %c0_i32, %c0_i32_0, %c0_i32_1 : i32, i32, i32, i32
  }
  func.func @transform_1(%arg0: i32) -> (i32, i32) {
    %c0_i32 = arith.constant 0 : i32
    %c0_i32_0 = arith.constant 0 : i32
    %c0_i32_1 = arith.constant 0 : i32
    return %c0_i32, %c0_i32_0 : i32, i32
  }
  func.func @transform_2(%arg0: i32) -> (i32, i32) {
    %c0_i32 = arith.constant 0 : i32
    %c0_i32_0 = arith.constant 0 : i32
    %c0_i32_1 = arith.constant 0 : i32
    return %c0_i32, %c0_i32_0 : i32, i32
  }
  func.func @transform_3(%arg0: i32) -> (i32, i32) {
    %c0_i32 = arith.constant 0 : i32
    %c0_i32_0 = arith.constant 0 : i32
    %c0_i32_1 = arith.constant 0 : i32
    return %c0_i32, %c0_i32_0 : i32, i32
  }
  func.func @transform_4(%arg0: i32) -> (i32, i32) {
    %c0_i32 = arith.constant 0 : i32
    %c0_i32_0 = arith.constant 0 : i32
    %c0_i32_1 = arith.constant 0 : i32
    return %c0_i32, %c0_i32_0 : i32, i32
  }
  func.func @transform_5(%arg0: i32) -> (i32, i32) {
    %c0_i32 = arith.constant 0 : i32
    %c0_i32_0 = arith.constant 0 : i32
    %c0_i32_1 = arith.constant 0 : i32
    return %c0_i32, %c0_i32_0 : i32, i32
  }
  func.func @transform_6(%arg0: i32) -> (i32, i32) {
    %c0_i32 = arith.constant 0 : i32
    %c0_i32_0 = arith.constant 0 : i32
    %c0_i32_1 = arith.constant 0 : i32
    return %c0_i32, %c0_i32_0 : i32, i32
  }
  func.func @transform_7(%arg0: i32) -> (i32, i32, i32, i32) {
    %c0_i32 = arith.constant 0 : i32
    %c0_i32_0 = arith.constant 0 : i32
    %c0_i32_1 = arith.constant 0 : i32
    %c0_i32_2 = arith.constant 0 : i32
    return %arg0, %c0_i32, %c0_i32_0, %c0_i32_1 : i32, i32, i32, i32
  }
}

</mosaic_0001>

<llo_original>
// kernel: tpu_custom_call.1
$region0: #{tpu_custom_call.1}
  #allocation0 [shape = 'u32[]', space=smem, size = 0x4, offset = 0x4, fixed_abs, tag = 'smem constant byte address 0x4 - core index']
  #allocation1 [shape = 'u32[144,128]{1,0:T(1,128)}', space=vmem, size = 0x12000, scoped, tag = 'internal scratch']
  #allocation2 [shape = 'f32[8,10,10,32]{3,2,1,0:T(8,128)}', space=vmem, size = 0xa0000, scoped, tag = 'scratch operand']
  #allocation3 [shape = 'f32[512,384]{1,0:T(8,128)}', space=vmem, size = 0xc0000, scoped, tag = 'scratch operand']
  %s0 = inlined_call_operand.hbm [shape: f32[16,8,8,128], index: 0, kind: input, shape index: {}]
  %s1 = inlined_call_operand.vmem [shape: f32[128,32], index: 1, kind: input, shape index: {}]
  %s2 = inlined_call_operand.vmem [shape: f32[1,32], index: 2, kind: input, shape index: {}]
  %s3 = inlined_call_operand.vmem [shape: f32[384,32], index: 3, kind: input, shape index: {}]
  %s4 = inlined_call_operand.vmem [shape: f32[1,32], index: 4, kind: input, shape index: {}]
  %s5 = inlined_call_operand.vmem [shape: f32[32,128], index: 5, kind: input, shape index: {}]
  %s6 = inlined_call_operand.vmem [shape: f32[1,128], index: 6, kind: input, shape index: {}]
  %s7 = inlined_call_operand.hbm [shape: f32[16,8,8,128], index: 7, kind: output, shape index: {}]
  %s8 = sld [smem:[#allocation0]]
  $region65: #{tpu_custom_call.1} parent=0
    _
  %s10 = ssub.s32 1, %s8
  %s11 = scalar_select 0, %s10, %s8
  $region1: #{tpu_custom_call.1} parent=0
    #allocation4 [shape = 'u8[524288]{0}', space=vmem, size = 0x80000, scoped, tag = 'input window, operand 0']
    #allocation5 [shape = 's32[2]{0}', space=sflag, size = 0x8, scoped, tag = 'scoped memory for tpu_custom_call.1']
    #allocation6 [shape = 's32[2]{0}', space=sflag, size = 0x8, scoped, tag = 'scoped memory for tpu_custom_call.1']
    #allocation7 [shape = 'u8[524288]{0}', space=vmem, size = 0x80000, scoped, tag = 'output window, operand 0']
    %12 = vsyncpa [#allocation5], 0
    %s13 = scalar_lea.sflag [#allocation5], 1
    %14 = vsyncpa %s13, 0
    %15 = vsyncpa [#allocation6], 0
    %s16 = scalar_lea.sflag [#allocation6], 1
    %17 = vsyncpa %s16, 0
    loop: start=0, step=1, limit=4
    $region2: #{tpu_custom_call.1} parent=1 // loop_pre_header
      _
    $region3: #{tpu_custom_call.1} parent=1 // loop_header
      %s19 = sphi 0, %s23
      %p20 = scmp.ge.s32.totalorder %s19, 4
      %s29 = sphi 0, %s31
      %s32 = sphi 0, %s29
      %s33 = sphi 0, %s32
      %s49 = sphi 0, %s33
      %s53 = sphi 0, %s53
      %s55 = sphi 0, %s53
      %s56 = sphi 0, %s55
      %s70 = sphi 0, %s56
      %s74 = sphi 0, %s74
      %s76 = sphi 0, %s74
      %s77 = sphi 0, %s76
      %s91 = sphi 0, %s77
      %s95 = sphi 0, %s95
      %s97 = sphi 0, %s95
      %s98 = sphi 0, %s97
      %s112 = sphi 0, %s98
      %s116 = sphi 0, %s116
      %s118 = sphi 0, %s116
      %s119 = sphi 0, %s118
      %s133 = sphi 0, %s119
      %s137 = sphi 0, %s137
      %s139 = sphi 0, %s137
      %s140 = sphi 0, %s139
      %s154 = sphi 0, %s140
      %s158 = sphi 0, %s158
      %s160 = sphi 0, %s158
      %s161 = sphi 0, %s160
      %s175 = sphi 0, %s161
      %s181 = sphi 0, %s183
      %s184 = sphi 0, %s181
      %s185 = sphi 0, %s184
      %s201 = sphi 0, %s185
    $region4: #{tpu_custom_call.1} parent=1 // loop_header_branch
      %22 = sbr.rel (%p20) target = $region8
    $region5: #{tpu_custom_call.1} parent=1 // loop_body
      %s24 = ssub.s32 %s19, 1
      %s25 = ssub.s32 %s19, 2
      %s26 = sadd.s32 %s19, 1
      %s27 = ssub.s32 %s19, %s26
      %p28 = scmp.eq.s32.totalorder %s27, 0
      %s30 = sadd.s32 %s29, 1
      %s31 = scalar_select %p28, %s29, %s30
      %p34 = pneg %p28
      %p35 = scmp.eq.s32.totalorder %s19, 1
      %p36 = por %p34, %p35
      %p37 = scmp.ne.s32.totalorder %s29, %s32
      %p38 = scmp.eq.s32.totalorder %s19, 0
      %p39 = por %p37, %p38
      %p40 = scmp.ne.s32.totalorder %s29, %s32
      %p41 = scmp.eq.s32.totalorder %s24, 1
      %p42 = por %p40, %p41
      %p43 = scmp.ne.s32.totalorder %s32, %s33
      %p44 = scmp.eq.s32.totalorder %s24, 0
      %p45 = por %p43, %p44
      %p46 = scmp.ne.s32.totalorder %s32, %s33
      %p47 = scmp.eq.s32.totalorder %s25, 1
      %p48 = por %p46, %p47
      %p50 = scmp.ne.s32.totalorder %s33, %s49
      %p51 = scmp.eq.s32.totalorder %s25, 0
      %p52 = por %p50, %p51
      %s54 = sadd.s32 %s53, 1
      %p57 = scmp.eq.s32.totalorder %s19, 1
      %p58 = scmp.ne.s32.totalorder %s53, %s55
      %p59 = scmp.eq.s32.totalorder %s19, 0
      %p60 = por %p58, %p59
      %p61 = scmp.ne.s32.totalorder %s53, %s55
      %p62 = scmp.eq.s32.totalorder %s24, 1
      %p63 = por %p61, %p62
      %p64 = scmp.ne.s32.totalorder %s55, %s56
      %p65 = scmp.eq.s32.totalorder %s24, 0
      %p66 = por %p64, %p65
      %p67 = scmp.ne.s32.totalorder %s55, %s56
      %p68 = scmp.eq.s32.totalorder %s25, 1
      %p69 = por %p67, %p68
      %p71 = scmp.ne.s32.totalorder %s56, %s70
      %p72 = scmp.eq.s32.totalorder %s25, 0
      %p73 = por %p71, %p72
      %s75 = sadd.s32 %s74, 1
      %p78 = scmp.eq.s32.totalorder %s19, 1
      %p79 = scmp.ne.s32.totalorder %s74, %s76
      %p80 = scmp.eq.s32.totalorder %s19, 0
      %p81 = por %p79, %p80
      %p82 = scmp.ne.s32.totalorder %s74, %s76
      %p83 = scmp.eq.s32.totalorder %s24, 1
      %p84 = por %p82, %p83
      %p85 = scmp.ne.s32.totalorder %s76, %s77
      %p86 = scmp.eq.s32.totalorder %s24, 0
      %p87 = por %p85, %p86
      %p88 = scmp.ne.s32.totalorder %s76, %s77
      %p89 = scmp.eq.s32.totalorder %s25, 1
      %p90 = por %p88, %p89
      %p92 = scmp.ne.s32.totalorder %s77, %s91
      %p93 = scmp.eq.s32.totalorder %s25, 0
      %p94 = por %p92, %p93
      %s96 = sadd.s32 %s95, 1
      %p99 = scmp.eq.s32.totalorder %s19, 1
      %p100 = scmp.ne.s32.totalorder %s95, %s97
      %p101 = scmp.eq.s32.totalorder %s19, 0
      %p102 = por %p100, %p101
      %p103 = scmp.ne.s32.totalorder %s95, %s97
      %p104 = scmp.eq.s32.totalorder %s24, 1
      %p105 = por %p103, %p104
      %p106 = scmp.ne.s32.totalorder %s97, %s98
      %p107 = scmp.eq.s32.totalorder %s24, 0
      %p108 = por %p106, %p107
      %p109 = scmp.ne.s32.totalorder %s97, %s98
      %p110 = scmp.eq.s32.totalorder %s25, 1
      %p111 = por %p109, %p110
      %p113 = scmp.ne.s32.totalorder %s98, %s112
      %p114 = scmp.eq.s32.totalorder %s25, 0
      %p115 = por %p113, %p114
      %s117 = sadd.s32 %s116, 1
      %p120 = scmp.eq.s32.totalorder %s19, 1
      %p121 = scmp.ne.s32.totalorder %s116, %s118
      %p122 = scmp.eq.s32.totalorder %s19, 0
      %p123 = por %p121, %p122
      %p124 = scmp.ne.s32.totalorder %s116, %s118
      %p125 = scmp.eq.s32.totalorder %s24, 1
      %p126 = por %p124, %p125
      %p127 = scmp.ne.s32.totalorder %s118, %s119
      %p128 = scmp.eq.s32.totalorder %s24, 0
      %p129 = por %p127, %p128
      %p130 = scmp.ne.s32.totalorder %s118, %s119
      %p131 = scmp.eq.s32.totalorder %s25, 1
      %p132 = por %p130, %p131
      %p134 = scmp.ne.s32.totalorder %s119, %s133
      %p135 = scmp.eq.s32.totalorder %s25, 0
      %p136 = por %p134, %p135
      %s138 = sadd.s32 %s137, 1
      %p141 = scmp.eq.s32.totalorder %s19, 1
      %p142 = scmp.ne.s32.totalorder %s137, %s139
      %p143 = scmp.eq.s32.totalorder %s19, 0
      %p144 = por %p142, %p143
      %p145 = scmp.ne.s32.totalorder %s137, %s139
      %p146 = scmp.eq.s32.totalorder %s24, 1
      %p147 = por %p145, %p146
      %p148 = scmp.ne.s32.totalorder %s139, %s140
      %p149 = scmp.eq.s32.totalorder %s24, 0
      %p150 = por %p148, %p149
      %p151 = scmp.ne.s32.totalorder %s139, %s140
      %p152 = scmp.eq.s32.totalorder %s25, 1
      %p153 = por %p151, %p152
      %p155 = scmp.ne.s32.totalorder %s140, %s154
      %p156 = scmp.eq.s32.totalorder %s25, 0
      %p157 = por %p155, %p156
      %s159 = sadd.s32 %s158, 1
      %p162 = scmp.eq.s32.totalorder %s19, 1
      %p163 = scmp.ne.s32.totalorder %s158, %s160
      %p164 = scmp.eq.s32.totalorder %s19, 0
      %p165 = por %p163, %p164
      %p166 = scmp.ne.s32.totalorder %s158, %s160
      %p167 = scmp.eq.s32.totalorder %s24, 1
      %p168 = por %p166, %p167
      %p169 = scmp.ne.s32.totalorder %s160, %s161
      %p170 = scmp.eq.s32.totalorder %s24, 0
      %p171 = por %p169, %p170
      %p172 = scmp.ne.s32.totalorder %s160, %s161
      %p173 = scmp.eq.s32.totalorder %s25, 1
      %p174 = por %p172, %p173
      %p176 = scmp.ne.s32.totalorder %s161, %s175
      %p177 = scmp.eq.s32.totalorder %s25, 0
      %p178 = por %p176, %p177
      %s179 = ssub.s32 %s19, %s26
      %p180 = scmp.eq.s32.totalorder %s179, 0
      %s182 = sadd.s32 %s181, 1
      %s183 = scalar_select %p180, %s181, %s182
      %p186 = pneg %p180
      %p187 = scmp.eq.s32.totalorder %s19, 1
      %p188 = por %p186, %p187
      %p189 = scmp.ne.s32.totalorder %s181, %s184
      %p190 = scmp.eq.s32.totalorder %s19, 0
      %p191 = por %p189, %p190
      %p192 = scmp.ne.s32.totalorder %s181, %s184
      %p193 = scmp.eq.s32.totalorder %s24, 1
      %p194 = por %p192, %p193
      %p195 = scmp.ne.s32.totalorder %s184, %s185
      %p196 = scmp.eq.s32.totalorder %s24, 0
      %p197 = por %p195, %p196
      %p198 = scmp.ne.s32.totalorder %s184, %s185
      %p199 = scmp.eq.s32.totalorder %s25, 1
      %p200 = por %p198, %p199
      %p202 = scmp.ne.s32.totalorder %s185, %s201
      %p203 = scmp.eq.s32.totalorder %s25, 0
      %p204 = por %p202, %p203
      %p205 = scmp.le.s32.totalorder 1, %s19
      %p206 = scmp.lt.s32.totalorder %s19, 3
      %p207 = pnand %p205, %p206
      %p208 = pneg %p207
      // Predicated region
      $region9: #{tpu_custom_call.1} parent=5 // pred_check
        _
      $region10: #{tpu_custom_call.1} parent=5 // pred_check_branch
        %210 = sbr.rel (%p207) target = $region12
      $region11: #{tpu_custom_call.1} parent=5 // pred_region
        %s211 = ssub.s32 %s19, 1
        // Predicated region
        $region13: #{tpu_custom_call.1} parent=11 // pred_check
          %p212 = pneg %p66
        $region14: #{tpu_custom_call.1} parent=11 // pred_check_branch
          %214 = sbr.rel (%p212) target = $region16
        $region15: #{tpu_custom_call.1} parent=11 // pred_region
          _
        $region16: #{tpu_custom_call.1} parent=11 // pred_fallthru
          _
        // Predicated region
        $region17: #{tpu_custom_call.1} parent=11 // pred_check
          %p215 = pneg %p87
        $region18: #{tpu_custom_call.1} parent=11 // pred_check_branch
          %217 = sbr.rel (%p215) target = $region20
        $region19: #{tpu_custom_call.1} parent=11 // pred_region
          _
        $region20: #{tpu_custom_call.1} parent=11 // pred_fallthru
          _
        // Predicated region
        $region21: #{tpu_custom_call.1} parent=11 // pred_check
          %p218 = pneg %p108
        $region22: #{tpu_custom_call.1} parent=11 // pred_check_branch
          %220 = sbr.rel (%p218) target = $region24
        $region23: #{tpu_custom_call.1} parent=11 // pred_region
          _
        $region24: #{tpu_custom_call.1} parent=11 // pred_fallthru
          _
        // Predicated region
        $region25: #{tpu_custom_call.1} parent=11 // pred_check
          %p221 = pneg %p129
        $region26: #{tpu_custom_call.1} parent=11 // pred_check_branch
          %223 = sbr.rel (%p221) target = $region28
        $region27: #{tpu_custom_call.1} parent=11 // pred_region
          _
        $region28: #{tpu_custom_call.1} parent=11 // pred_fallthru
          _
        // Predicated region
        $region29: #{tpu_custom_call.1} parent=11 // pred_check
          %p224 = pneg %p150
        $region30: #{tpu_custom_call.1} parent=11 // pred_check_branch
          %226 = sbr.rel (%p224) target = $region32
        $region31: #{tpu_custom_call.1} parent=11 // pred_region
          _
        $region32: #{tpu_custom_call.1} parent=11 // pred_fallthru
          _
        // Predicated region
        $region33: #{tpu_custom_call.1} parent=11 // pred_check
          %p227 = pneg %p171
        $region34: #{tpu_custom_call.1} parent=11 // pred_check_branch
          %229 = sbr.rel (%p227) target = $region36
        $region35: #{tpu_custom_call.1} parent=11 // pred_region
          _
        $region36: #{tpu_custom_call.1} parent=11 // pred_fallthru
          _
      $region12: #{tpu_custom_call.1} parent=5 // pred_fallthru
        _
      %p230 = scmp.lt.s32.totalorder %s19, 2
      // Predicated region
      $region37: #{tpu_custom_call.1} parent=5 // pred_check
        %p231 = pneg %p230
      $region38: #{tpu_custom_call.1} parent=5 // pred_check_branch
        %233 = sbr.rel (%p231) target = $region40
      $region39: #{tpu_custom_call.1} parent=5 // pred_region
        // Predicated region
        $region41: #{tpu_custom_call.1} parent=39 // pred_check
          %p234 = pneg %p39
        $region42: #{tpu_custom_call.1} parent=39 // pred_check_branch
          %236 = sbr.rel (%p234) target = $region44
        $region43: #{tpu_custom_call.1} parent=39 // pred_region
          %s237 = sand.u32 %s29, 1
          %s238 = scalar_lea.sflag [#allocation5], %s237
          %s239 = sand.u32 %s29, 1
          %s240 = smul.addr %s239, 512
          %s241 = scalar_lea.vmem [#allocation4], %s240
          %s242 = smul.u32 8, %s19
          %s244 = ssub.s32 8192, 8192
          %245 = vsyncadd %s238, %s244
          %s246 = smul.addr %s242, 8
          %s247 = smul.addr %s246, 128
          %s248 = scalar_lea.hbm %s0, %s247
          %s249 = sshll.u32 %s241, 4
          %s250 = int_to_ptr.vmem [resolvable:$true] %s249
          %255 = dma.hbm_to_vmem [thread:$0]  %s248, 8192, %s250, %s238, 128, 128, 8
        $region44: #{tpu_custom_call.1} parent=39 // pred_fallthru
          _
      $region40: #{tpu_custom_call.1} parent=5 // pred_fallthru
        _
      %p256 = scmp.le.s32.totalorder 1, %s19
      %p257 = scmp.lt.s32.totalorder %s19, 3
      %p258 = pnand %p256, %p257
      %p259 = pneg %p258
      // Predicated region
      $region45: #{tpu_custom_call.1} parent=5 // pred_check
        _
      $region46: #{tpu_custom_call.1} parent=5 // pred_check_branch
        %261 = sbr.rel (%p258) target = $region48
      $region47: #{tpu_custom_call.1} parent=5 // pred_region
        %s262 = ssub.s32 %s19, 1
        %s263 = sand.u32 %s32, 1
        %s264 = scalar_lea.sflag [#allocation5], %s263
        %s265 = sand.u32 %s32, 1
        %s266 = smul.addr %s265, 512
        %s267 = scalar_lea.vmem [#allocation4], %s266
        // Predicated region
        $region49: #{tpu_custom_call.1} parent=47 // pred_check
          %p268 = pneg %p45
        $region50: #{tpu_custom_call.1} parent=47 // pred_check_branch
          %270 = sbr.rel (%p268) target = $region52
        $region51: #{tpu_custom_call.1} parent=47 // pred_region
          %271 = dma.done %s264, 8192
        $region52: #{tpu_custom_call.1} parent=47 // pred_fallthru
          _
        %s272 = sand.u32 %s32, 1
        %s273 = scalar_lea.sflag [#allocation5], %s272
        %s274 = sand.u32 %s32, 1
        %s275 = smul.addr %s274, 512
        %s276 = scalar_lea.vmem [#allocation4], %s275
        %p277 = pneg %p45
        %p278 = pneg %p42
        %p279 = pneg %p66
        %p280 = pneg %p63
        %p281 = pneg %p87
        %p282 = pneg %p84
        %p283 = pneg %p108
        %p284 = pneg %p105
        %p285 = pneg %p129
        %p286 = pneg %p126
        %p287 = pneg %p150
        %p288 = pneg %p147
        %p289 = pneg %p171
        %p290 = pneg %p168
        %p291 = pneg %p197
        %p292 = pneg %p194
        %s293 = sand.u32 %s184, 1
        %s294 = scalar_lea.sflag [#allocation6], %s293
        %s295 = sand.u32 %s184, 1
        %s296 = smul.addr %s295, 512
        %s297 = scalar_lea.vmem [#allocation7], %s296
        %s298 = smul.u32 8, %s24
        %s299 = smul.u32 8, %s24
        %vm300 = vcmask 261120
        %301 = vst.msk [vmem:[#allocation2] sm:$0xff] %vm300, 0.0
        %vm302 = vcmask 254976
        %303 = vst.msk [vmem:[#allocation2 + $0x8] sm:$0x3] %vm302, 0.0
        %304 = vst.msk [vmem:[#allocation2 + $0xa0] sm:$0xff] %vm300, 0.0
        %305 = vst.msk [vmem:[#allocation2 + $0xa8] sm:$0x3] %vm302, 0.0
        %306 = vst.msk [vmem:[#allocation2 + $0x140] sm:$0xff] %vm300, 0.0
        %307 = vst.msk [vmem:[#allocation2 + $0x148] sm:$0x3] %vm302, 0.0
        %308 = vst.msk [vmem:[#allocation2 + $0x1e0] sm:$0xff] %vm300, 0.0
        %309 = vst.msk [vmem:[#allocation2 + $0x1e8] sm:$0x3] %vm302, 0.0
        %310 = vst.msk [vmem:[#allocation2 + $0x280] sm:$0xff] %vm300, 0.0
        %311 = vst.msk [vmem:[#allocation2 + $0x288] sm:$0x3] %vm302, 0.0
        %312 = vst.msk [vmem:[#allocation2 + $0x320] sm:$0xff] %vm300, 0.0
        %313 = vst.msk [vmem:[#allocation2 + $0x328] sm:$0x3] %vm302, 0.0
        %314 = vst.msk [vmem:[#allocation2 + $0x3c0] sm:$0xff] %vm300, 0.0
        %315 = vst.msk [vmem:[#allocation2 + $0x3c8] sm:$0x3] %vm302, 0.0
        %316 = vst.msk [vmem:[#allocation2 + $0x460] sm:$0xff] %vm300, 0.0
        %317 = vst.msk [vmem:[#allocation2 + $0x468] sm:$0x3] %vm302, 0.0
        %s318 = scalar_lea.vmem [#allocation2], 144
        %319 = vst.msk [vmem:[%s318] sm:$0xff] %vm300, 0.0
        %320 = vst.msk [vmem:[%s318 + $0x8] sm:$0x3] %vm302, 0.0
        %321 = vst.msk [vmem:[%s318 + $0xa0] sm:$0xff] %vm300, 0.0
        %322 = vst.msk [vmem:[%s318 + $0xa8] sm:$0x3] %vm302, 0.0
        %323 = vst.msk [vmem:[%s318 + $0x140] sm:$0xff] %vm300, 0.0
        %324 = vst.msk [vmem:[%s318 + $0x148] sm:$0x3] %vm302, 0.0
        %325 = vst.msk [vmem:[%s318 + $0x1e0] sm:$0xff] %vm300, 0.0
        %326 = vst.msk [vmem:[%s318 + $0x1e8] sm:$0x3] %vm302, 0.0
        %327 = vst.msk [vmem:[%s318 + $0x280] sm:$0xff] %vm300, 0.0
        %328 = vst.msk [vmem:[%s318 + $0x288] sm:$0x3] %vm302, 0.0
        %329 = vst.msk [vmem:[%s318 + $0x320] sm:$0xff] %vm300, 0.0
        %330 = vst.msk [vmem:[%s318 + $0x328] sm:$0x3] %vm302, 0.0
        %331 = vst.msk [vmem:[%s318 + $0x3c0] sm:$0xff] %vm300, 0.0
        %332 = vst.msk [vmem:[%s318 + $0x3c8] sm:$0x3] %vm302, 0.0
        %333 = vst.msk [vmem:[%s318 + $0x460] sm:$0xff] %vm300, 0.0
        %334 = vst.msk [vmem:[%s318 + $0x468] sm:$0x3] %vm302, 0.0
        %s335 = scalar_lea.vmem [#allocation2], 16
        %vm336 = vcmask 253952
        %337 = vst.msk [vmem:[%s335] sm:$0x1] %vm336, 0.0
        %338 = vst.msk [vmem:[%s335 + $0x10] sm:$0x1] %vm336, 0.0
        %339 = vst.msk [vmem:[%s335 + $0x20] sm:$0x1] %vm336, 0.0
        %340 = vst.msk [vmem:[%s335 + $0x30] sm:$0x1] %vm336, 0.0
        %341 = vst.msk [vmem:[%s335 + $0x40] sm:$0x1] %vm336, 0.0
        %342 = vst.msk [vmem:[%s335 + $0x50] sm:$0x1] %vm336, 0.0
        %343 = vst.msk [vmem:[%s335 + $0x60] sm:$0x1] %vm336, 0.0
        %344 = vst.msk [vmem:[%s335 + $0x70] sm:$0x1] %vm336, 0.0
        %345 = vst.msk [vmem:[%s335 + $0xa0] sm:$0x1] %vm336, 0.0
        %346 = vst.msk [vmem:[%s335 + $0xb0] sm:$0x1] %vm336, 0.0
        %347 = vst.msk [vmem:[%s335 + $0xc0] sm:$0x1] %vm336, 0.0
        %348 = vst.msk [vmem:[%s335 + $0xd0] sm:$0x1] %vm336, 0.0
        %349 = vst.msk [vmem:[%s335 + $0xe0] sm:$0x1] %vm336, 0.0
        %350 = vst.msk [vmem:[%s335 + $0xf0] sm:$0x1] %vm336, 0.0
        %351 = vst.msk [vmem:[%s335 + $0x100] sm:$0x1] %vm336, 0.0
        %352 = vst.msk [vmem:[%s335 + $0x110] sm:$0x1] %vm336, 0.0
        %353 = vst.msk [vmem:[%s335 + $0x140] sm:$0x1] %vm336, 0.0
        %354 = vst.msk [vmem:[%s335 + $0x150] sm:$0x1] %vm336, 0.0
        %355 = vst.msk [vmem:[%s335 + $0x160] sm:$0x1] %vm336, 0.0
        %356 = vst.msk [vmem:[%s335 + $0x170] sm:$0x1] %vm336, 0.0
        %357 = vst.msk [vmem:[%s335 + $0x180] sm:$0x1] %vm336, 0.0
        %358 = vst.msk [vmem:[%s335 + $0x190] sm:$0x1] %vm336, 0.0
        %359 = vst.msk [vmem:[%s335 + $0x1a0] sm:$0x1] %vm336, 0.0
        %360 = vst.msk [vmem:[%s335 + $0x1b0] sm:$0x1] %vm336, 0.0
        %361 = vst.msk [vmem:[%s335 + $0x1e0] sm:$0x1] %vm336, 0.0
        %362 = vst.msk [vmem:[%s335 + $0x1f0] sm:$0x1] %vm336, 0.0
        %363 = vst.msk [vmem:[%s335 + $0x200] sm:$0x1] %vm336, 0.0
        %364 = vst.msk [vmem:[%s335 + $0x210] sm:$0x1] %vm336, 0.0
        %365 = vst.msk [vmem:[%s335 + $0x220] sm:$0x1] %vm336, 0.0
        %366 = vst.msk [vmem:[%s335 + $0x230] sm:$0x1] %vm336, 0.0
        %367 = vst.msk [vmem:[%s335 + $0x240] sm:$0x1] %vm336, 0.0
        %368 = vst.msk [vmem:[%s335 + $0x250] sm:$0x1] %vm336, 0.0
        %369 = vst.msk [vmem:[%s335 + $0x280] sm:$0x1] %vm336, 0.0
        %370 = vst.msk [vmem:[%s335 + $0x290] sm:$0x1] %vm336, 0.0
        %371 = vst.msk [vmem:[%s335 + $0x2a0] sm:$0x1] %vm336, 0.0
        %372 = vst.msk [vmem:[%s335 + $0x2b0] sm:$0x1] %vm336, 0.0
        %373 = vst.msk [vmem:[%s335 + $0x2c0] sm:$0x1] %vm336, 0.0
        %374 = vst.msk [vmem:[%s335 + $0x2d0] sm:$0x1] %vm336, 0.0
        %375 = vst.msk [vmem:[%s335 + $0x2e0] sm:$0x1] %vm336, 0.0
        %376 = vst.msk [vmem:[%s335 + $0x2f0] sm:$0x1] %vm336, 0.0
        %377 = vst.msk [vmem:[%s335 + $0x320] sm:$0x1] %vm336, 0.0
        %378 = vst.msk [vmem:[%s335 + $0x330] sm:$0x1] %vm336, 0.0
        %379 = vst.msk [vmem:[%s335 + $0x340] sm:$0x1] %vm336, 0.0
        %380 = vst.msk [vmem:[%s335 + $0x350] sm:$0x1] %vm336, 0.0
        %381 = vst.msk [vmem:[%s335 + $0x360] sm:$0x1] %vm336, 0.0
        %382 = vst.msk [vmem:[%s335 + $0x370] sm:$0x1] %vm336, 0.0
        %383 = vst.msk [vmem:[%s335 + $0x380] sm:$0x1] %vm336, 0.0
        %384 = vst.msk [vmem:[%s335 + $0x390] sm:$0x1] %vm336, 0.0
        %385 = vst.msk [vmem:[%s335 + $0x3c0] sm:$0x1] %vm336, 0.0
        %386 = vst.msk [vmem:[%s335 + $0x3d0] sm:$0x1] %vm336, 0.0
        %387 = vst.msk [vmem:[%s335 + $0x3e0] sm:$0x1] %vm336, 0.0
        %388 = vst.msk [vmem:[%s335 + $0x3f0] sm:$0x1] %vm336, 0.0
        %389 = vst.msk [vmem:[%s335 + $0x400] sm:$0x1] %vm336, 0.0
        %390 = vst.msk [vmem:[%s335 + $0x410] sm:$0x1] %vm336, 0.0
        %391 = vst.msk [vmem:[%s335 + $0x420] sm:$0x1] %vm336, 0.0
        %392 = vst.msk [vmem:[%s335 + $0x430] sm:$0x1] %vm336, 0.0
        %393 = vst.msk [vmem:[%s335 + $0x460] sm:$0x1] %vm336, 0.0
        %394 = vst.msk [vmem:[%s335 + $0x470] sm:$0x1] %vm336, 0.0
        %395 = vst.msk [vmem:[%s335 + $0x480] sm:$0x1] %vm336, 0.0
        %396 = vst.msk [vmem:[%s335 + $0x490] sm:$0x1] %vm336, 0.0
        %397 = vst.msk [vmem:[%s335 + $0x4a0] sm:$0x1] %vm336, 0.0
        %398 = vst.msk [vmem:[%s335 + $0x4b0] sm:$0x1] %vm336, 0.0
        %399 = vst.msk [vmem:[%s335 + $0x4c0] sm:$0x1] %vm336, 0.0
        %400 = vst.msk [vmem:[%s335 + $0x4d0] sm:$0x1] %vm336, 0.0
        %401 = vst.msk [vmem:[%s335 + $0x9] sm:$0x1] %vm336, 0.0
        %402 = vst.msk [vmem:[%s335 + $0x19] sm:$0x1] %vm336, 0.0
        %403 = vst.msk [vmem:[%s335 + $0x29] sm:$0x1] %vm336, 0.0
        %404 = vst.msk [vmem:[%s335 + $0x39] sm:$0x1] %vm336, 0.0
        %405 = vst.msk [vmem:[%s335 + $0x49] sm:$0x1] %vm336, 0.0
        %406 = vst.msk [vmem:[%s335 + $0x59] sm:$0x1] %vm336, 0.0
        %407 = vst.msk [vmem:[%s335 + $0x69] sm:$0x1] %vm336, 0.0
        %408 = vst.msk [vmem:[%s335 + $0x79] sm:$0x1] %vm336, 0.0
        %409 = vst.msk [vmem:[%s335 + $0xa9] sm:$0x1] %vm336, 0.0
        %410 = vst.msk [vmem:[%s335 + $0xb9] sm:$0x1] %vm336, 0.0
        %411 = vst.msk [vmem:[%s335 + $0xc9] sm:$0x1] %vm336, 0.0
        %412 = vst.msk [vmem:[%s335 + $0xd9] sm:$0x1] %vm336, 0.0
        %413 = vst.msk [vmem:[%s335 + $0xe9] sm:$0x1] %vm336, 0.0
        %414 = vst.msk [vmem:[%s335 + $0xf9] sm:$0x1] %vm336, 0.0
        %415 = vst.msk [vmem:[%s335 + $0x109] sm:$0x1] %vm336, 0.0
        %416 = vst.msk [vmem:[%s335 + $0x119] sm:$0x1] %vm336, 0.0
        %417 = vst.msk [vmem:[%s335 + $0x149] sm:$0x1] %vm336, 0.0
        %418 = vst.msk [vmem:[%s335 + $0x159] sm:$0x1] %vm336, 0.0
        %419 = vst.msk [vmem:[%s335 + $0x169] sm:$0x1] %vm336, 0.0
        %420 = vst.msk [vmem:[%s335 + $0x179] sm:$0x1] %vm336, 0.0
        %421 = vst.msk [vmem:[%s335 + $0x189] sm:$0x1] %vm336, 0.0
        %422 = vst.msk [vmem:[%s335 + $0x199] sm:$0x1] %vm336, 0.0
        %423 = vst.msk [vmem:[%s335 + $0x1a9] sm:$0x1] %vm336, 0.0
        %424 = vst.msk [vmem:[%s335 + $0x1b9] sm:$0x1] %vm336, 0.0
        %425 = vst.msk [vmem:[%s335 + $0x1e9] sm:$0x1] %vm336, 0.0
        %426 = vst.msk [vmem:[%s335 + $0x1f9] sm:$0x1] %vm336, 0.0
        %427 = vst.msk [vmem:[%s335 + $0x209] sm:$0x1] %vm336, 0.0
        %428 = vst.msk [vmem:[%s335 + $0x219] sm:$0x1] %vm336, 0.0
        %429 = vst.msk [vmem:[%s335 + $0x229] sm:$0x1] %vm336, 0.0
        %430 = vst.msk [vmem:[%s335 + $0x239] sm:$0x1] %vm336, 0.0
        %431 = vst.msk [vmem:[%s335 + $0x249] sm:$0x1] %vm336, 0.0
        %432 = vst.msk [vmem:[%s335 + $0x259] sm:$0x1] %vm336, 0.0
        %433 = vst.msk [vmem:[%s335 + $0x289] sm:$0x1] %vm336, 0.0
        %434 = vst.msk [vmem:[%s335 + $0x299] sm:$0x1] %vm336, 0.0
        %435 = vst.msk [vmem:[%s335 + $0x2a9] sm:$0x1] %vm336, 0.0
        %436 = vst.msk [vmem:[%s335 + $0x2b9] sm:$0x1] %vm336, 0.0
        %437 = vst.msk [vmem:[%s335 + $0x2c9] sm:$0x1] %vm336, 0.0
        %438 = vst.msk [vmem:[%s335 + $0x2d9] sm:$0x1] %vm336, 0.0
        %439 = vst.msk [vmem:[%s335 + $0x2e9] sm:$0x1] %vm336, 0.0
        %440 = vst.msk [vmem:[%s335 + $0x2f9] sm:$0x1] %vm336, 0.0
        %441 = vst.msk [vmem:[%s335 + $0x329] sm:$0x1] %vm336, 0.0
        %442 = vst.msk [vmem:[%s335 + $0x339] sm:$0x1] %vm336, 0.0
        %443 = vst.msk [vmem:[%s335 + $0x349] sm:$0x1] %vm336, 0.0
        %444 = vst.msk [vmem:[%s335 + $0x359] sm:$0x1] %vm336, 0.0
        %445 = vst.msk [vmem:[%s335 + $0x369] sm:$0x1] %vm336, 0.0
        %446 = vst.msk [vmem:[%s335 + $0x379] sm:$0x1] %vm336, 0.0
        %447 = vst.msk [vmem:[%s335 + $0x389] sm:$0x1] %vm336, 0.0
        %448 = vst.msk [vmem:[%s335 + $0x399] sm:$0x1] %vm336, 0.0
        %449 = vst.msk [vmem:[%s335 + $0x3c9] sm:$0x1] %vm336, 0.0
        %450 = vst.msk [vmem:[%s335 + $0x3d9] sm:$0x1] %vm336, 0.0
        %451 = vst.msk [vmem:[%s335 + $0x3e9] sm:$0x1] %vm336, 0.0
        %452 = vst.msk [vmem:[%s335 + $0x3f9] sm:$0x1] %vm336, 0.0
        %453 = vst.msk [vmem:[%s335 + $0x409] sm:$0x1] %vm336, 0.0
        %454 = vst.msk [vmem:[%s335 + $0x419] sm:$0x1] %vm336, 0.0
        %455 = vst.msk [vmem:[%s335 + $0x429] sm:$0x1] %vm336, 0.0
        %456 = vst.msk [vmem:[%s335 + $0x439] sm:$0x1] %vm336, 0.0
        %457 = vst.msk [vmem:[%s335 + $0x469] sm:$0x1] %vm336, 0.0
        %458 = vst.msk [vmem:[%s335 + $0x479] sm:$0x1] %vm336, 0.0
        %459 = vst.msk [vmem:[%s335 + $0x489] sm:$0x1] %vm336, 0.0
        %460 = vst.msk [vmem:[%s335 + $0x499] sm:$0x1] %vm336, 0.0
        %461 = vst.msk [vmem:[%s335 + $0x4a9] sm:$0x1] %vm336, 0.0
        %462 = vst.msk [vmem:[%s335 + $0x4b9] sm:$0x1] %vm336, 0.0
        %463 = vst.msk [vmem:[%s335 + $0x4c9] sm:$0x1] %vm336, 0.0
        %464 = vst.msk [vmem:[%s335 + $0x4d9] sm:$0x1] %vm336, 0.0
        %vm465 = vcmask 1047808
        %466 = vst.msk [vmem:[#allocation3 + $0x10] sm:$0xff] %vm465, 0.0
        %467 = vst.msk [vmem:[#allocation3 + $0x28] sm:$0xff] %vm465, 0.0
        %468 = vst.msk [vmem:[#allocation3 + $0x40] sm:$0xff] %vm465, 0.0
        %469 = vst.msk [vmem:[#allocation3 + $0x58] sm:$0xff] %vm465, 0.0
        %470 = vst.msk [vmem:[#allocation3 + $0x70] sm:$0xff] %vm465, 0.0
        %471 = vst.msk [vmem:[#allocation3 + $0x88] sm:$0xff] %vm465, 0.0
        %472 = vst.msk [vmem:[#allocation3 + $0xa0] sm:$0xff] %vm465, 0.0
        %473 = vst.msk [vmem:[#allocation3 + $0xb8] sm:$0xff] %vm465, 0.0
        %474 = vst.msk [vmem:[#allocation3 + $0xd0] sm:$0xff] %vm465, 0.0
        %475 = vst.msk [vmem:[#allocation3 + $0xe8] sm:$0xff] %vm465, 0.0
        %476 = vst.msk [vmem:[#allocation3 + $0x100] sm:$0xff] %vm465, 0.0
        %477 = vst.msk [vmem:[#allocation3 + $0x118] sm:$0xff] %vm465, 0.0
        %478 = vst.msk [vmem:[#allocation3 + $0x130] sm:$0xff] %vm465, 0.0
        %479 = vst.msk [vmem:[#allocation3 + $0x148] sm:$0xff] %vm465, 0.0
        %480 = vst.msk [vmem:[#allocation3 + $0x160] sm:$0xff] %vm465, 0.0
        %481 = vst.msk [vmem:[#allocation3 + $0x178] sm:$0xff] %vm465, 0.0
        %482 = vst.msk [vmem:[#allocation3 + $0x190] sm:$0xff] %vm465, 0.0
        %483 = vst.msk [vmem:[#allocation3 + $0x1a8] sm:$0xff] %vm465, 0.0
        %484 = vst.msk [vmem:[#allocation3 + $0x1c0] sm:$0xff] %vm465, 0.0
        %485 = vst.msk [vmem:[#allocation3 + $0x1d8] sm:$0xff] %vm465, 0.0
        %486 = vst.msk [vmem:[#allocation3 + $0x1f0] sm:$0xff] %vm465, 0.0
        %487 = vst.msk [vmem:[#allocation3 + $0x208] sm:$0xff] %vm465, 0.0
        %488 = vst.msk [vmem:[#allocation3 + $0x220] sm:$0xff] %vm465, 0.0
        %489 = vst.msk [vmem:[#allocation3 + $0x238] sm:$0xff] %vm465, 0.0
        %490 = vst.msk [vmem:[#allocation3 + $0x250] sm:$0xff] %vm465, 0.0
        %491 = vst.msk [vmem:[#allocation3 + $0x268] sm:$0xff] %vm465, 0.0
        %492 = vst.msk [vmem:[#allocation3 + $0x280] sm:$0xff] %vm465, 0.0
        %493 = vst.msk [vmem:[#allocation3 + $0x298] sm:$0xff] %vm465, 0.0
        %494 = vst.msk [vmem:[#allocation3 + $0x2b0] sm:$0xff] %vm465, 0.0
        %495 = vst.msk [vmem:[#allocation3 + $0x2c8] sm:$0xff] %vm465, 0.0
        %496 = vst.msk [vmem:[#allocation3 + $0x2e0] sm:$0xff] %vm465, 0.0
        %497 = vst.msk [vmem:[#allocation3 + $0x2f8] sm:$0xff] %vm465, 0.0
        %498 = vst.msk [vmem:[#allocation3 + $0x310] sm:$0xff] %vm465, 0.0
        %499 = vst.msk [vmem:[#allocation3 + $0x328] sm:$0xff] %vm465, 0.0
        %500 = vst.msk [vmem:[#allocation3 + $0x340] sm:$0xff] %vm465, 0.0
        %501 = vst.msk [vmem:[#allocation3 + $0x358] sm:$0xff] %vm465, 0.0
        %502 = vst.msk [vmem:[#allocation3 + $0x370] sm:$0xff] %vm465, 0.0
        %503 = vst.msk [vmem:[#allocation3 + $0x388] sm:$0xff] %vm465, 0.0
        %504 = vst.msk [vmem:[#allocation3 + $0x3a0] sm:$0xff] %vm465, 0.0
        %505 = vst.msk [vmem:[#allocation3 + $0x3b8] sm:$0xff] %vm465, 0.0
        %506 = vst.msk [vmem:[#allocation3 + $0x3d0] sm:$0xff] %vm465, 0.0
        %507 = vst.msk [vmem:[#allocation3 + $0x3e8] sm:$0xff] %vm465, 0.0
        %508 = vst.msk [vmem:[#allocation3 + $0x400] sm:$0xff] %vm465, 0.0
        %509 = vst.msk [vmem:[#allocation3 + $0x418] sm:$0xff] %vm465, 0.0
        %510 = vst.msk [vmem:[#allocation3 + $0x430] sm:$0xff] %vm465, 0.0
        %511 = vst.msk [vmem:[#allocation3 + $0x448] sm:$0xff] %vm465, 0.0
        %512 = vst.msk [vmem:[#allocation3 + $0x460] sm:$0xff] %vm465, 0.0
        %513 = vst.msk [vmem:[#allocation3 + $0x478] sm:$0xff] %vm465, 0.0
        %514 = vst.msk [vmem:[#allocation3 + $0x490] sm:$0xff] %vm465, 0.0
        %515 = vst.msk [vmem:[#allocation3 + $0x4a8] sm:$0xff] %vm465, 0.0
        %516 = vst.msk [vmem:[#allocation3 + $0x4c0] sm:$0xff] %vm465, 0.0
        %517 = vst.msk [vmem:[#allocation3 + $0x4d8] sm:$0xff] %vm465, 0.0
        %518 = vst.msk [vmem:[#allocation3 + $0x4f0] sm:$0xff] %vm465, 0.0
        %519 = vst.msk [vmem:[#allocation3 + $0x508] sm:$0xff] %vm465, 0.0
        %520 = vst.msk [vmem:[#allocation3 + $0x520] sm:$0xff] %vm465, 0.0
        %521 = vst.msk [vmem:[#allocation3 + $0x538] sm:$0xff] %vm465, 0.0
        %522 = vst.msk [vmem:[#allocation3 + $0x550] sm:$0xff] %vm465, 0.0
        %523 = vst.msk [vmem:[#allocation3 + $0x568] sm:$0xff] %vm465, 0.0
        %524 = vst.msk [vmem:[#allocation3 + $0x580] sm:$0xff] %vm465, 0.0
        %525 = vst.msk [vmem:[#allocation3 + $0x598] sm:$0xff] %vm465, 0.0
        %526 = vst.msk [vmem:[#allocation3 + $0x5b0] sm:$0xff] %vm465, 0.0
        %527 = vst.msk [vmem:[#allocation3 + $0x5c8] sm:$0xff] %vm465, 0.0
        %528 = vst.msk [vmem:[#allocation3 + $0x5e0] sm:$0xff] %vm465, 0.0
        %529 = vst.msk [vmem:[#allocation3 + $0x5f8] sm:$0xff] %vm465, 0.0
        %v530 = vld [vmem:[%s267] sm:$0xff]
        %v531 = vld [vmem:[%s267 + $0x8] sm:$0xff]
        %v532 = vld [vmem:[%s267 + $0x10] sm:$0xff]
        %v533 = vld [vmem:[%s267 + $0x18] sm:$0xff]
        %v534 = vld [vmem:[%s267 + $0x20] sm:$0xff]
        %v535 = vld [vmem:[%s267 + $0x28] sm:$0xff]
        %v536 = vld [vmem:[%s267 + $0x30] sm:$0xff]
        %v537 = vld [vmem:[%s267 + $0x38] sm:$0xff]
        %v538 = vld [vmem:[%s267 + $0x40] sm:$0xff]
        %v539 = vld [vmem:[%s267 + $0x48] sm:$0xff]
        %v540 = vld [vmem:[%s267 + $0x50] sm:$0xff]
        %v541 = vld [vmem:[%s267 + $0x58] sm:$0xff]
        %v542 = vld [vmem:[%s267 + $0x60] sm:$0xff]
        %v543 = vld [vmem:[%s267 + $0x68] sm:$0xff]
        %v544 = vld [vmem:[%s267 + $0x70] sm:$0xff]
        %v545 = vld [vmem:[%s267 + $0x78] sm:$0xff]
        %v546 = vld [vmem:[%s267 + $0x80] sm:$0xff]
        %v547 = vld [vmem:[%s267 + $0x88] sm:$0xff]
        %v548 = vld [vmem:[%s267 + $0x90] sm:$0xff]
        %v549 = vld [vmem:[%s267 + $0x98] sm:$0xff]
        %v550 = vld [vmem:[%s267 + $0xa0] sm:$0xff]
        %v551 = vld [vmem:[%s267 + $0xa8] sm:$0xff]
        %v552 = vld [vmem:[%s267 + $0xb0] sm:$0xff]
        %v553 = vld [vmem:[%s267 + $0xb8] sm:$0xff]
        %v554 = vld [vmem:[%s267 + $0xc0] sm:$0xff]
        %v555 = vld [vmem:[%s267 + $0xc8] sm:$0xff]
        %v556 = vld [vmem:[%s267 + $0xd0] sm:$0xff]
        %v557 = vld [vmem:[%s267 + $0xd8] sm:$0xff]
        %v558 = vld [vmem:[%s267 + $0xe0] sm:$0xff]
        %v559 = vld [vmem:[%s267 + $0xe8] sm:$0xff]
        %v560 = vld [vmem:[%s267 + $0xf0] sm:$0xff]
        %v561 = vld [vmem:[%s267 + $0xf8] sm:$0xff]
        %v562 = vld [vmem:[%s267 + $0x100] sm:$0xff]
        %v563 = vld [vmem:[%s267 + $0x108] sm:$0xff]
        %v564 = vld [vmem:[%s267 + $0x110] sm:$0xff]
        %v565 = vld [vmem:[%s267 + $0x118] sm:$0xff]
        %v566 = vld [vmem:[%s267 + $0x120] sm:$0xff]
        %v567 = vld [vmem:[%s267 + $0x128] sm:$0xff]
        %v568 = vld [vmem:[%s267 + $0x130] sm:$0xff]
        %v569 = vld [vmem:[%s267 + $0x138] sm:$0xff]
        %v570 = vld [vmem:[%s267 + $0x140] sm:$0xff]
        %v571 = vld [vmem:[%s267 + $0x148] sm:$0xff]
        %v572 = vld [vmem:[%s267 + $0x150] sm:$0xff]
        %v573 = vld [vmem:[%s267 + $0x158] sm:$0xff]
        %v574 = vld [vmem:[%s267 + $0x160] sm:$0xff]
        %v575 = vld [vmem:[%s267 + $0x168] sm:$0xff]
        %v576 = vld [vmem:[%s267 + $0x170] sm:$0xff]
        %v577 = vld [vmem:[%s267 + $0x178] sm:$0xff]
        %v578 = vld [vmem:[%s267 + $0x180] sm:$0xff]
        %v579 = vld [vmem:[%s267 + $0x188] sm:$0xff]
        %v580 = vld [vmem:[%s267 + $0x190] sm:$0xff]
        %v581 = vld [vmem:[%s267 + $0x198] sm:$0xff]
        %v582 = vld [vmem:[%s267 + $0x1a0] sm:$0xff]
        %v583 = vld [vmem:[%s267 + $0x1a8] sm:$0xff]
        %v584 = vld [vmem:[%s267 + $0x1b0] sm:$0xff]
        %v585 = vld [vmem:[%s267 + $0x1b8] sm:$0xff]
        %v586 = vld [vmem:[%s267 + $0x1c0] sm:$0xff]
        %v587 = vld [vmem:[%s267 + $0x1c8] sm:$0xff]
        %v588 = vld [vmem:[%s267 + $0x1d0] sm:$0xff]
        %v589 = vld [vmem:[%s267 + $0x1d8] sm:$0xff]
        %v590 = vld [vmem:[%s267 + $0x1e0] sm:$0xff]
        %v591 = vld [vmem:[%s267 + $0x1e8] sm:$0xff]
        %v592 = vld [vmem:[%s267 + $0x1f0] sm:$0xff]
        %v593 = vld [vmem:[%s267 + $0x1f8] sm:$0xff]
        %v594 = vld [vmem:[%s1] sm:$0xff]
        %v595 = vld [vmem:[%s1 + $0x8] sm:$0xff]
        %v596 = vld [vmem:[%s1 + $0x10] sm:$0xff]
        %v597 = vld [vmem:[%s1 + $0x18] sm:$0xff]
        %v598 = vld [vmem:[%s1 + $0x20] sm:$0xff]
        %v599 = vld [vmem:[%s1 + $0x28] sm:$0xff]
        %v600 = vld [vmem:[%s1 + $0x30] sm:$0xff]
        %v601 = vld [vmem:[%s1 + $0x38] sm:$0xff]
        %v602 = vld [vmem:[%s1 + $0x40] sm:$0xff]
        %v603 = vld [vmem:[%s1 + $0x48] sm:$0xff]
        %v604 = vld [vmem:[%s1 + $0x50] sm:$0xff]
        %v605 = vld [vmem:[%s1 + $0x58] sm:$0xff]
        %v606 = vld [vmem:[%s1 + $0x60] sm:$0xff]
        %v607 = vld [vmem:[%s1 + $0x68] sm:$0xff]
        %v608 = vld [vmem:[%s1 + $0x70] sm:$0xff]
        %v609 = vld [vmem:[%s1 + $0x78] sm:$0xff]
        %v610 = vld [vmem:[%s2] sm:$0x1]
        %v612 = vlaneseq
        %v613 = vshrl.u32 %v612, 7
        %v614 = vsub.s32 0, %v613
        %v615 = vrot.slane %v610, %v614
        %617 = vmatprep.subr.mxu0 0.0
        %618 = vmatpush1.msra.mxu0 %v594
        %619 = vmatprep.subr.mxu0 0.0
        %620 = vmatpush1.msra.mxu0 %v595
        %621 = vmatprep.subr.mxu0 0.0
        %622 = vmatpush1.msra.mxu0 %v596
        %623 = vmatprep.subr.mxu0 0.0
        %624 = vmatpush1.msra.mxu0 %v597
        %625 = vmatprep.subr.mxu0 0.0
        %626 = vmatpush1.msra.mxu0 %v598
        %627 = vmatprep.subr.mxu0 0.0
        %628 = vmatpush1.msra.mxu0 %v599
        %629 = vmatprep.subr.mxu0 0.0
        %630 = vmatpush1.msra.mxu0 %v600
        %631 = vmatprep.subr.mxu0 0.0
        %632 = vmatpush1.msra.mxu0 %v601
        %633 = vmatprep.subr.mxu0 0.0
        %634 = vmatpush1.msra.mxu0 %v602
        %635 = vmatprep.subr.mxu0 0.0
        %636 = vmatpush1.msra.mxu0 %v603
        %637 = vmatprep.subr.mxu0 0.0
        %638 = vmatpush1.msra.mxu0 %v604
        %639 = vmatprep.subr.mxu0 0.0
        %640 = vmatpush1.msra.mxu0 %v605
        %641 = vmatprep.subr.mxu0 0.0
        %642 = vmatpush1.msra.mxu0 %v606
        %643 = vmatprep.subr.mxu0 0.0
        %644 = vmatpush1.msra.mxu0 %v607
        %645 = vmatprep.subr.mxu0 0.0
        %646 = vmatpush1.msra.mxu0 %v608
        %647 = vmatprep.subr.mxu0 0.0
        %648 = vmatpush1.msra.mxu0 %v609
        %649 = vmatprep.subr.mxu0 0.0
        %650 = vmatpush1.msra.mxu0 0.0
        %651 = vmatprep.subr.mxu0 0.0
        %652 = vmatpush1.msra.mxu0 0.0
        %653 = vmatprep.subr.mxu0 0.0
        %654 = vmatpush1.msra.mxu0 0.0
        %655 = vmatprep.subr.mxu0 0.0
        %656 = vmatpush1.msra.mxu0 0.0
        %657 = vmatprep.subr.mxu0 0.0
        %658 = vmatpush1.msra.mxu0 0.0
        %659 = vmatprep.subr.mxu0 0.0
        %660 = vmatpush1.msra.mxu0 0.0
        %661 = vmatprep.subr.mxu0 0.0
        %662 = vmatpush1.msra.mxu0 0.0
        %663 = vmatprep.subr.mxu0 0.0
        %664 = vmatpush1.msra.mxu0 0.0
        %665 = vmatprep.subr.mxu0 0.0
        %666 = vmatpush1.msra.mxu0 0.0
        %667 = vmatprep.subr.mxu0 0.0
        %668 = vmatpush1.msra.mxu0 0.0
        %669 = vmatprep.subr.mxu0 0.0
        %670 = vmatpush1.msra.mxu0 0.0
        %671 = vmatprep.subr.mxu0 0.0
        %672 = vmatpush1.msra.mxu0 0.0
        %673 = vmatprep.subr.mxu0 0.0
        %674 = vmatpush1.msra.mxu0 0.0
        %675 = vmatprep.subr.mxu0 0.0
        %676 = vmatpush1.msra.mxu0 0.0
        %677 = vmatprep.subr.mxu0 0.0
        %678 = vmatpush1.msra.mxu0 0.0
        %679 = vmatprep.subr.mxu0 0.0
        %680 = vmatpush1.msra.mxu0 0.0
        %681 = vmatprep.mubr.f32.mxu0 0.0
        %682 = vmatmul.mubr.f32.gmra.mrb[0].mxu0 %v530
        %v683 = vpop.f32.mrb[0].mxu0
        %v684 = vadd.f32 %v615, %v683
        %v685 = vpop.f32.mrb[0].mxu0
        %686 = vmatprep.mubr.f32.mxu0 0.0
        %687 = vmatmul.mubr.f32.gmra.mrb[0].mxu0 %v531
        %v688 = vpop.f32.mrb[0].mxu0
        %v689 = vadd.f32 %v615, %v688
        %v690 = vpop.f32.mrb[0].mxu0
        %691 = vmatprep.mubr.f32.mxu0 0.0
        %692 = vmatmul.mubr.f32.gmra.mrb[0].mxu0 %v532
        %v693 = vpop.f32.mrb[0].mxu0
        %v694 = vadd.f32 %v615, %v693
        %v695 = vpop.f32.mrb[0].mxu0
        %696 = vmatprep.mubr.f32.mxu0 0.0
        %697 = vmatmul.mubr.f32.gmra.mrb[0].mxu0 %v533
        %v698 = vpop.f32.mrb[0].mxu0
        %v699 = vadd.f32 %v615, %v698
        %v700 = vpop.f32.mrb[0].mxu0
        %701 = vmatprep.mubr.f32.mxu0 0.0
        %702 = vmatmul.mubr.f32.gmra.mrb[0].mxu0 %v534
        %v703 = vpop.f32.mrb[0].mxu0
        %v704 = vadd.f32 %v615, %v703
        %v705 = vpop.f32.mrb[0].mxu0
        %706 = vmatprep.mubr.f32.mxu0 0.0
        %707 = vmatmul.mubr.f32.gmra.mrb[0].mxu0 %v535
        %v708 = vpop.f32.mrb[0].mxu0
        %v709 = vadd.f32 %v615, %v708
        %v710 = vpop.f32.mrb[0].mxu0
        %711 = vmatprep.mubr.f32.mxu0 0.0
        %712 = vmatmul.mubr.f32.gmra.mrb[0].mxu0 %v536
        %v713 = vpop.f32.mrb[0].mxu0
        %v714 = vadd.f32 %v615, %v713
        %v715 = vpop.f32.mrb[0].mxu0
        %716 = vmatprep.mubr.f32.mxu0 0.0
        %717 = vmatmul.mubr.f32.gmra.mrb[0].mxu0 %v537
        %v718 = vpop.f32.mrb[0].mxu0
        %v719 = vadd.f32 %v615, %v718
        %v720 = vpop.f32.mrb[0].mxu0
        %721 = vmatprep.mubr.f32.mxu0 0.0
        %722 = vmatmul.mubr.f32.gmra.mrb[0].mxu0 %v538
        %v723 = vpop.f32.mrb[0].mxu0
        %v724 = vadd.f32 %v615, %v723
        %v725 = vpop.f32.mrb[0].mxu0
        %726 = vmatprep.mubr.f32.mxu0 0.0
        %727 = vmatmul.mubr.f32.gmra.mrb[0].mxu0 %v539
        %v728 = vpop.f32.mrb[0].mxu0
        %v729 = vadd.f32 %v615, %v728
        %v730 = vpop.f32.mrb[0].mxu0
        %731 = vmatprep.mubr.f32.mxu0 0.0
        %732 = vmatmul.mubr.f32.gmra.mrb[0].mxu0 %v540
        %v733 = vpop.f32.mrb[0].mxu0
        %v734 = vadd.f32 %v615, %v733
        %v735 = vpop.f32.mrb[0].mxu0
        %736 = vmatprep.mubr.f32.mxu0 0.0
        %737 = vmatmul.mubr.f32.gmra.mrb[0].mxu0 %v541
        %v738 = vpop.f32.mrb[0].mxu0
        %v739 = vadd.f32 %v615, %v738
        %v740 = vpop.f32.mrb[0].mxu0
        %741 = vmatprep.mubr.f32.mxu0 0.0
        %742 = vmatmul.mubr.f32.gmra.mrb[0].mxu0 %v542
        %v743 = vpop.f32.mrb[0].mxu0
        %v744 = vadd.f32 %v615, %v743
        %v745 = vpop.f32.mrb[0].mxu0
        %746 = vmatprep.mubr.f32.mxu0 0.0
        %747 = vmatmul.mubr.f32.gmra.mrb[0].mxu0 %v543
        %v748 = vpop.f32.mrb[0].mxu0
        %v749 = vadd.f32 %v615, %v748
        %v750 = vpop.f32.mrb[0].mxu0
        %751 = vmatprep.mubr.f32.mxu0 0.0
        %752 = vmatmul.mubr.f32.gmra.mrb[0].mxu0 %v544
        %v753 = vpop.f32.mrb[0].mxu0
        %v754 = vadd.f32 %v615, %v753
        %v755 = vpop.f32.mrb[0].mxu0
        %756 = vmatprep.mubr.f32.mxu0 0.0
        %757 = vmatmul.mubr.f32.gmra.mrb[0].mxu0 %v545
        %v758 = vpop.f32.mrb[0].mxu0
        %v759 = vadd.f32 %v615, %v758
        %v760 = vpop.f32.mrb[0].mxu0
        %761 = vmatprep.mubr.f32.mxu0 0.0
        %762 = vmatmul.mubr.f32.gmra.mrb[0].mxu0 %v546
        %v763 = vpop.f32.mrb[0].mxu0
        %v764 = vadd.f32 %v615, %v763
        %v765 = vpop.f32.mrb[0].mxu0
        %766 = vmatprep.mubr.f32.mxu0 0.0
        %767 = vmatmul.mubr.f32.gmra.mrb[0].mxu0 %v547
        %v768 = vpop.f32.mrb[0].mxu0
        %v769 = vadd.f32 %v615, %v768
        %v770 = vpop.f32.mrb[0].mxu0
        %771 = vmatprep.mubr.f32.mxu0 0.0
        %772 = vmatmul.mubr.f32.gmra.mrb[0].mxu0 %v548
        %v773 = vpop.f32.mrb[0].mxu0
        %v774 = vadd.f32 %v615, %v773
        %v775 = vpop.f32.mrb[0].mxu0
        %776 = vmatprep.mubr.f32.mxu0 0.0
        %777 = vmatmul.mubr.f32.gmra.mrb[0].mxu0 %v549
        %v778 = vpop.f32.mrb[0].mxu0
        %v779 = vadd.f32 %v615, %v778
        %v780 = vpop.f32.mrb[0].mxu0
        %781 = vmatprep.mubr.f32.mxu0 0.0
        %782 = vmatmul.mubr.f32.gmra.mrb[0].mxu0 %v550
        %v783 = vpop.f32.mrb[0].mxu0
        %v784 = vadd.f32 %v615, %v783
        %v785 = vpop.f32.mrb[0].mxu0
        %786 = vmatprep.mubr.f32.mxu0 0.0
        %787 = vmatmul.mubr.f32.gmra.mrb[0].mxu0 %v551
        %v788 = vpop.f32.mrb[0].mxu0
        %v789 = vadd.f32 %v615, %v788
        %v790 = vpop.f32.mrb[0].mxu0
        %791 = vmatprep.mubr.f32.mxu0 0.0
        %792 = vmatmul.mubr.f32.gmra.mrb[0].mxu0 %v552
        %v793 = vpop.f32.mrb[0].mxu0
        %v794 = vadd.f32 %v615, %v793
        %v795 = vpop.f32.mrb[0].mxu0
        %796 = vmatprep.mubr.f32.mxu0 0.0
        %797 = vmatmul.mubr.f32.gmra.mrb[0].mxu0 %v553
        %v798 = vpop.f32.mrb[0].mxu0
        %v799 = vadd.f32 %v615, %v798
        %v800 = vpop.f32.mrb[0].mxu0
        %801 = vmatprep.mubr.f32.mxu0 0.0
        %802 = vmatmul.mubr.f32.gmra.mrb[0].mxu0 %v554
        %v803 = vpop.f32.mrb[0].mxu0
        %v804 = vadd.f32 %v615, %v803
        %v805 = vpop.f32.mrb[0].mxu0
        %806 = vmatprep.mubr.f32.mxu0 0.0
        %807 = vmatmul.mubr.f32.gmra.mrb[0].mxu0 %v555
        %v808 = vpop.f32.mrb[0].mxu0
        %v809 = vadd.f32 %v615, %v808
        %v810 = vpop.f32.mrb[0].mxu0
        %811 = vmatprep.mubr.f32.mxu0 0.0
        %812 = vmatmul.mubr.f32.gmra.mrb[0].mxu0 %v556
        %v813 = vpop.f32.mrb[0].mxu0
        %v814 = vadd.f32 %v615, %v813
        %v815 = vpop.f32.mrb[0].mxu0
        %816 = vmatprep.mubr.f32.mxu0 0.0
        %817 = vmatmul.mubr.f32.gmra.mrb[0].mxu0 %v557
        %v818 = vpop.f32.mrb[0].mxu0
        %v819 = vadd.f32 %v615, %v818
        %v820 = vpop.f32.mrb[0].mxu0
        %821 = vmatprep.mubr.f32.mxu0 0.0
        %822 = vmatmul.mubr.f32.gmra.mrb[0].mxu0 %v558
        %v823 = vpop.f32.mrb[0].mxu0
        %v824 = vadd.f32 %v615, %v823
        %v825 = vpop.f32.mrb[0].mxu0
        %826 = vmatprep.mubr.f32.mxu0 0.0
        %827 = vmatmul.mubr.f32.gmra.mrb[0].mxu0 %v559
        %v828 = vpop.f32.mrb[0].mxu0
        %v829 = vadd.f32 %v615, %v828
        %v830 = vpop.f32.mrb[0].mxu0
        %831 = vmatprep.mubr.f32.mxu0 0.0
        %832 = vmatmul.mubr.f32.gmra.mrb[0].mxu0 %v560
        %v833 = vpop.f32.mrb[0].mxu0
        %v834 = vadd.f32 %v615, %v833
        %v835 = vpop.f32.mrb[0].mxu0
        %836 = vmatprep.mubr.f32.mxu0 0.0
        %837 = vmatmul.mubr.f32.gmra.mrb[0].mxu0 %v561
        %v838 = vpop.f32.mrb[0].mxu0
        %v839 = vadd.f32 %v615, %v838
        %v840 = vpop.f32.mrb[0].mxu0
        %841 = vmatprep.mubr.f32.mxu0 0.0
        %842 = vmatmul.mubr.f32.gmra.mrb[0].mxu0 %v562
        %v843 = vpop.f32.mrb[0].mxu0
        %v844 = vadd.f32 %v615, %v843
        %v845 = vpop.f32.mrb[0].mxu0
        %846 = vmatprep.mubr.f32.mxu0 0.0
        %847 = vmatmul.mubr.f32.gmra.mrb[0].mxu0 %v563
        %v848 = vpop.f32.mrb[0].mxu0
        %v849 = vadd.f32 %v615, %v848
        %v850 = vpop.f32.mrb[0].mxu0
        %851 = vmatprep.mubr.f32.mxu0 0.0
        %852 = vmatmul.mubr.f32.gmra.mrb[0].mxu0 %v564
        %v853 = vpop.f32.mrb[0].mxu0
        %v854 = vadd.f32 %v615, %v853
        %v855 = vpop.f32.mrb[0].mxu0
        %856 = vmatprep.mubr.f32.mxu0 0.0
        %857 = vmatmul.mubr.f32.gmra.mrb[0].mxu0 %v565
        %v858 = vpop.f32.mrb[0].mxu0
        %v859 = vadd.f32 %v615, %v858
        %v860 = vpop.f32.mrb[0].mxu0
        %861 = vmatprep.mubr.f32.mxu0 0.0
        %862 = vmatmul.mubr.f32.gmra.mrb[0].mxu0 %v566
        %v863 = vpop.f32.mrb[0].mxu0
        %v864 = vadd.f32 %v615, %v863
        %v865 = vpop.f32.mrb[0].mxu0
        %866 = vmatprep.mubr.f32.mxu0 0.0
        %867 = vmatmul.mubr.f32.gmra.mrb[0].mxu0 %v567
        %v868 = vpop.f32.mrb[0].mxu0
        %v869 = vadd.f32 %v615, %v868
        %v870 = vpop.f32.mrb[0].mxu0
        %871 = vmatprep.mubr.f32.mxu0 0.0
        %872 = vmatmul.mubr.f32.gmra.mrb[0].mxu0 %v568
        %v873 = vpop.f32.mrb[0].mxu0
        %v874 = vadd.f32 %v615, %v873
        %v875 = vpop.f32.mrb[0].mxu0
        %876 = vmatprep.mubr.f32.mxu0 0.0
        %877 = vmatmul.mubr.f32.gmra.mrb[0].mxu0 %v569
        %v878 = vpop.f32.mrb[0].mxu0
        %v879 = vadd.f32 %v615, %v878
        %v880 = vpop.f32.mrb[0].mxu0
        %881 = vmatprep.mubr.f32.mxu0 0.0
        %882 = vmatmul.mubr.f32.gmra.mrb[0].mxu0 %v570
        %v883 = vpop.f32.mrb[0].mxu0
        %v884 = vadd.f32 %v615, %v883
        %v885 = vpop.f32.mrb[0].mxu0
        %886 = vmatprep.mubr.f32.mxu0 0.0
        %887 = vmatmul.mubr.f32.gmra.mrb[0].mxu0 %v571
        %v888 = vpop.f32.mrb[0].mxu0
        %v889 = vadd.f32 %v615, %v888
        %v890 = vpop.f32.mrb[0].mxu0
        %891 = vmatprep.mubr.f32.mxu0 0.0
        %892 = vmatmul.mubr.f32.gmra.mrb[0].mxu0 %v572
        %v893 = vpop.f32.mrb[0].mxu0
        %v894 = vadd.f32 %v615, %v893
        %v895 = vpop.f32.mrb[0].mxu0
        %896 = vmatprep.mubr.f32.mxu0 0.0
        %897 = vmatmul.mubr.f32.gmra.mrb[0].mxu0 %v573
        %v898 = vpop.f32.mrb[0].mxu0
        %v899 = vadd.f32 %v615, %v898
        %v900 = vpop.f32.mrb[0].mxu0
        %901 = vmatprep.mubr.f32.mxu0 0.0
        %902 = vmatmul.mubr.f32.gmra.mrb[0].mxu0 %v574
        %v903 = vpop.f32.mrb[0].mxu0
        %v904 = vadd.f32 %v615, %v903
        %v905 = vpop.f32.mrb[0].mxu0
        %906 = vmatprep.mubr.f32.mxu0 0.0
        %907 = vmatmul.mubr.f32.gmra.mrb[0].mxu0 %v575
        %v908 = vpop.f32.mrb[0].mxu0
        %v909 = vadd.f32 %v615, %v908
        %v910 = vpop.f32.mrb[0].mxu0
        %911 = vmatprep.mubr.f32.mxu0 0.0
        %912 = vmatmul.mubr.f32.gmra.mrb[0].mxu0 %v576
        %v913 = vpop.f32.mrb[0].mxu0
        %v914 = vadd.f32 %v615, %v913
        %v915 = vpop.f32.mrb[0].mxu0
        %916 = vmatprep.mubr.f32.mxu0 0.0
        %917 = vmatmul.mubr.f32.gmra.mrb[0].mxu0 %v577
        %v918 = vpop.f32.mrb[0].mxu0
        %v919 = vadd.f32 %v615, %v918
        %v920 = vpop.f32.mrb[0].mxu0
        %921 = vmatprep.mubr.f32.mxu0 0.0
        %922 = vmatmul.mubr.f32.gmra.mrb[0].mxu0 %v578
        %v923 = vpop.f32.mrb[0].mxu0
        %v924 = vadd.f32 %v615, %v923
        %v925 = vpop.f32.mrb[0].mxu0
        %926 = vmatprep.mubr.f32.mxu0 0.0
        %927 = vmatmul.mubr.f32.gmra.mrb[0].mxu0 %v579
        %v928 = vpop.f32.mrb[0].mxu0
        %v929 = vadd.f32 %v615, %v928
        %v930 = vpop.f32.mrb[0].mxu0
        %931 = vmatprep.mubr.f32.mxu0 0.0
        %932 = vmatmul.mubr.f32.gmra.mrb[0].mxu0 %v580
        %v933 = vpop.f32.mrb[0].mxu0
        %v934 = vadd.f32 %v615, %v933
        %v935 = vpop.f32.mrb[0].mxu0
        %936 = vmatprep.mubr.f32.mxu0 0.0
        %937 = vmatmul.mubr.f32.gmra.mrb[0].mxu0 %v581
        %v938 = vpop.f32.mrb[0].mxu0
        %v939 = vadd.f32 %v615, %v938
        %v940 = vpop.f32.mrb[0].mxu0
        %941 = vmatprep.mubr.f32.mxu0 0.0
        %942 = vmatmul.mubr.f32.gmra.mrb[0].mxu0 %v582
        %v943 = vpop.f32.mrb[0].mxu0
        %v944 = vadd.f32 %v615, %v943
        %v945 = vpop.f32.mrb[0].mxu0
        %946 = vmatprep.mubr.f32.mxu0 0.0
        %947 = vmatmul.mubr.f32.gmra.mrb[0].mxu0 %v583
        %v948 = vpop.f32.mrb[0].mxu0
        %v949 = vadd.f32 %v615, %v948
        %v950 = vpop.f32.mrb[0].mxu0
        %951 = vmatprep.mubr.f32.mxu0 0.0
        %952 = vmatmul.mubr.f32.gmra.mrb[0].mxu0 %v584
        %v953 = vpop.f32.mrb[0].mxu0
        %v954 = vadd.f32 %v615, %v953
        %v955 = vpop.f32.mrb[0].mxu0
        %956 = vmatprep.mubr.f32.mxu0 0.0
        %957 = vmatmul.mubr.f32.gmra.mrb[0].mxu0 %v585
        %v958 = vpop.f32.mrb[0].mxu0
        %v959 = vadd.f32 %v615, %v958
        %v960 = vpop.f32.mrb[0].mxu0
        %961 = vmatprep.mubr.f32.mxu0 0.0
        %962 = vmatmul.mubr.f32.gmra.mrb[0].mxu0 %v586
        %v963 = vpop.f32.mrb[0].mxu0
        %v964 = vadd.f32 %v615, %v963
        %v965 = vpop.f32.mrb[0].mxu0
        %966 = vmatprep.mubr.f32.mxu0 0.0
        %967 = vmatmul.mubr.f32.gmra.mrb[0].mxu0 %v587
        %v968 = vpop.f32.mrb[0].mxu0
        %v969 = vadd.f32 %v615, %v968
        %v970 = vpop.f32.mrb[0].mxu0
        %971 = vmatprep.mubr.f32.mxu0 0.0
        %972 = vmatmul.mubr.f32.gmra.mrb[0].mxu0 %v588
        %v973 = vpop.f32.mrb[0].mxu0
        %v974 = vadd.f32 %v615, %v973
        %v975 = vpop.f32.mrb[0].mxu0
        %976 = vmatprep.mubr.f32.mxu0 0.0
        %977 = vmatmul.mubr.f32.gmra.mrb[0].mxu0 %v589
        %v978 = vpop.f32.mrb[0].mxu0
        %v979 = vadd.f32 %v615, %v978
        %v980 = vpop.f32.mrb[0].mxu0
        %981 = vmatprep.mubr.f32.mxu0 0.0
        %982 = vmatmul.mubr.f32.gmra.mrb[0].mxu0 %v590
        %v983 = vpop.f32.mrb[0].mxu0
        %v984 = vadd.f32 %v615, %v983
        %v985 = vpop.f32.mrb[0].mxu0
        %986 = vmatprep.mubr.f32.mxu0 0.0
        %987 = vmatmul.mubr.f32.gmra.mrb[0].mxu0 %v591
        %v988 = vpop.f32.mrb[0].mxu0
        %v989 = vadd.f32 %v615, %v988
        %v990 = vpop.f32.mrb[0].mxu0
        %991 = vmatprep.mubr.f32.mxu0 0.0
        %992 = vmatmul.mubr.f32.gmra.mrb[0].mxu0 %v592
        %v993 = vpop.f32.mrb[0].mxu0
        %v994 = vadd.f32 %v615, %v993
        %v995 = vpop.f32.mrb[0].mxu0
        %996 = vmatprep.mubr.f32.mxu0 0.0
        %997 = vmatmul.mubr.f32.gmra.mrb[0].mxu0 %v593
        %v998 = vpop.f32.mrb[0].mxu0
        %v999 = vadd.f32 %v615, %v998
        %v1000 = vpop.f32.mrb[0].mxu0
        %1001 = vdwg.mxu0
        %v1002 = vmax.f32 %v684, 0.0
        %v1003 = vmax.f32 %v689, 0.0
        %v1004 = vmax.f32 %v694, 0.0
        %v1005 = vmax.f32 %v699, 0.0
        %v1006 = vmax.f32 %v704, 0.0
        %v1007 = vmax.f32 %v709, 0.0
        %v1008 = vmax.f32 %v714, 0.0
        %v1009 = vmax.f32 %v719, 0.0
        %v1010 = vmax.f32 %v724, 0.0
        %v1011 = vmax.f32 %v729, 0.0
        %v1012 = vmax.f32 %v734, 0.0
        %v1013 = vmax.f32 %v739, 0.0
        %v1014 = vmax.f32 %v744, 0.0
        %v1015 = vmax.f32 %v749, 0.0
        %v1016 = vmax.f32 %v754, 0.0
        %v1017 = vmax.f32 %v759, 0.0
        %v1018 = vmax.f32 %v764, 0.0
        %v1019 = vmax.f32 %v769, 0.0
        %v1020 = vmax.f32 %v774, 0.0
        %v1021 = vmax.f32 %v779, 0.0
        %v1022 = vmax.f32 %v784, 0.0
        %v1023 = vmax.f32 %v789, 0.0
        %v1024 = vmax.f32 %v794, 0.0
        %v1025 = vmax.f32 %v799, 0.0
        %v1026 = vmax.f32 %v804, 0.0
        %v1027 = vmax.f32 %v809, 0.0
        %v1028 = vmax.f32 %v814, 0.0
        %v1029 = vmax.f32 %v819, 0.0
        %v1030 = vmax.f32 %v824, 0.0
        %v1031 = vmax.f32 %v829, 0.0
        %v1032 = vmax.f32 %v834, 0.0
        %v1033 = vmax.f32 %v839, 0.0
        %v1034 = vmax.f32 %v844, 0.0
        %v1035 = vmax.f32 %v849, 0.0
        %v1036 = vmax.f32 %v854, 0.0
        %v1037 = vmax.f32 %v859, 0.0
        %v1038 = vmax.f32 %v864, 0.0
        %v1039 = vmax.f32 %v869, 0.0
        %v1040 = vmax.f32 %v874, 0.0
        %v1041 = vmax.f32 %v879, 0.0
        %v1042 = vmax.f32 %v884, 0.0
        %v1043 = vmax.f32 %v889, 0.0
        %v1044 = vmax.f32 %v894, 0.0
        %v1045 = vmax.f32 %v899, 0.0
        %v1046 = vmax.f32 %v904, 0.0
        %v1047 = vmax.f32 %v909, 0.0
        %v1048 = vmax.f32 %v914, 0.0
        %v1049 = vmax.f32 %v919, 0.0
        %v1050 = vmax.f32 %v924, 0.0
        %v1051 = vmax.f32 %v929, 0.0
        %v1052 = vmax.f32 %v934, 0.0
        %v1053 = vmax.f32 %v939, 0.0
        %v1054 = vmax.f32 %v944, 0.0
        %v1055 = vmax.f32 %v949, 0.0
        %v1056 = vmax.f32 %v954, 0.0
        %v1057 = vmax.f32 %v959, 0.0
        %v1058 = vmax.f32 %v964, 0.0
        %v1059 = vmax.f32 %v969, 0.0
        %v1060 = vmax.f32 %v974, 0.0
        %v1061 = vmax.f32 %v979, 0.0
        %v1062 = vmax.f32 %v984, 0.0
        %v1063 = vmax.f32 %v989, 0.0
        %v1064 = vmax.f32 %v994, 0.0
        %v1065 = vmax.f32 %v999, 0.0
        %1066 = vst.msk [vmem:[%s335 + $0x1] sm:$0xff] %vm300, %v1002
        %1067 = vst.msk [vmem:[%s335 + $0x11] sm:$0xff] %vm300, %v1003
        %1068 = vst.msk [vmem:[%s335 + $0x21] sm:$0xff] %vm300, %v1004
        %1069 = vst.msk [vmem:[%s335 + $0x31] sm:$0xff] %vm300, %v1005
        %1070 = vst.msk [vmem:[%s335 + $0x41] sm:$0xff] %vm300, %v1006
        %1071 = vst.msk [vmem:[%s335 + $0x51] sm:$0xff] %vm300, %v1007
        %1072 = vst.msk [vmem:[%s335 + $0x61] sm:$0xff] %vm300, %v1008
        %1073 = vst.msk [vmem:[%s335 + $0x71] sm:$0xff] %vm300, %v1009
        %1074 = vst.msk [vmem:[%s335 + $0xa1] sm:$0xff] %vm300, %v1010
        %1075 = vst.msk [vmem:[%s335 + $0xb1] sm:$0xff] %vm300, %v1011
        %1076 = vst.msk [vmem:[%s335 + $0xc1] sm:$0xff] %vm300, %v1012
        %1077 = vst.msk [vmem:[%s335 + $0xd1] sm:$0xff] %vm300, %v1013
        %1078 = vst.msk [vmem:[%s335 + $0xe1] sm:$0xff] %vm300, %v1014
        %1079 = vst.msk [vmem:[%s335 + $0xf1] sm:$0xff] %vm300, %v1015
        %1080 = vst.msk [vmem:[%s335 + $0x101] sm:$0xff] %vm300, %v1016
        %1081 = vst.msk [vmem:[%s335 + $0x111] sm:$0xff] %vm300, %v1017
        %1082 = vst.msk [vmem:[%s335 + $0x141] sm:$0xff] %vm300, %v1018
        %1083 = vst.msk [vmem:[%s335 + $0x151] sm:$0xff] %vm300, %v1019
        %1084 = vst.msk [vmem:[%s335 + $0x161] sm:$0xff] %vm300, %v1020
        %1085 = vst.msk [vmem:[%s335 + $0x171] sm:$0xff] %vm300, %v1021
        %1086 = vst.msk [vmem:[%s335 + $0x181] sm:$0xff] %vm300, %v1022
        %1087 = vst.msk [vmem:[%s335 + $0x191] sm:$0xff] %vm300, %v1023
        %1088 = vst.msk [vmem:[%s335 + $0x1a1] sm:$0xff] %vm300, %v1024
        %1089 = vst.msk [vmem:[%s335 + $0x1b1] sm:$0xff] %vm300, %v1025
        %1090 = vst.msk [vmem:[%s335 + $0x1e1] sm:$0xff] %vm300, %v1026
        %1091 = vst.msk [vmem:[%s335 + $0x1f1] sm:$0xff] %vm300, %v1027
        %1092 = vst.msk [vmem:[%s335 + $0x201] sm:$0xff] %vm300, %v1028
        %1093 = vst.msk [vmem:[%s335 + $0x211] sm:$0xff] %vm300, %v1029
        %1094 = vst.msk [vmem:[%s335 + $0x221] sm:$0xff] %vm300, %v1030
        %1095 = vst.msk [vmem:[%s335 + $0x231] sm:$0xff] %vm300, %v1031
        %1096 = vst.msk [vmem:[%s335 + $0x241] sm:$0xff] %vm300, %v1032
        %1097 = vst.msk [vmem:[%s335 + $0x251] sm:$0xff] %vm300, %v1033
        %1098 = vst.msk [vmem:[%s335 + $0x281] sm:$0xff] %vm300, %v1034
        %1099 = vst.msk [vmem:[%s335 + $0x291] sm:$0xff] %vm300, %v1035
        %1100 = vst.msk [vmem:[%s335 + $0x2a1] sm:$0xff] %vm300, %v1036
        %1101 = vst.msk [vmem:[%s335 + $0x2b1] sm:$0xff] %vm300, %v1037
        %1102 = vst.msk [vmem:[%s335 + $0x2c1] sm:$0xff] %vm300, %v1038
        %1103 = vst.msk [vmem:[%s335 + $0x2d1] sm:$0xff] %vm300, %v1039
        %1104 = vst.msk [vmem:[%s335 + $0x2e1] sm:$0xff] %vm300, %v1040
        %1105 = vst.msk [vmem:[%s335 + $0x2f1] sm:$0xff] %vm300, %v1041
        %1106 = vst.msk [vmem:[%s335 + $0x321] sm:$0xff] %vm300, %v1042
        %1107 = vst.msk [vmem:[%s335 + $0x331] sm:$0xff] %vm300, %v1043
        %1108 = vst.msk [vmem:[%s335 + $0x341] sm:$0xff] %vm300, %v1044
        %1109 = vst.msk [vmem:[%s335 + $0x351] sm:$0xff] %vm300, %v1045
        %1110 = vst.msk [vmem:[%s335 + $0x361] sm:$0xff] %vm300, %v1046
        %1111 = vst.msk [vmem:[%s335 + $0x371] sm:$0xff] %vm300, %v1047
        %1112 = vst.msk [vmem:[%s335 + $0x381] sm:$0xff] %vm300, %v1048
        %1113 = vst.msk [vmem:[%s335 + $0x391] sm:$0xff] %vm300, %v1049
        %1114 = vst.msk [vmem:[%s335 + $0x3c1] sm:$0xff] %vm300, %v1050
        %1115 = vst.msk [vmem:[%s335 + $0x3d1] sm:$0xff] %vm300, %v1051
        %1116 = vst.msk [vmem:[%s335 + $0x3e1] sm:$0xff] %vm300, %v1052
        %1117 = vst.msk [vmem:[%s335 + $0x3f1] sm:$0xff] %vm300, %v1053
        %1118 = vst.msk [vmem:[%s335 + $0x401] sm:$0xff] %vm300, %v1054
        %1119 = vst.msk [vmem:[%s335 + $0x411] sm:$0xff] %vm300, %v1055
        %1120 = vst.msk [vmem:[%s335 + $0x421] sm:$0xff] %vm300, %v1056
        %1121 = vst.msk [vmem:[%s335 + $0x431] sm:$0xff] %vm300, %v1057
        %1122 = vst.msk [vmem:[%s335 + $0x461] sm:$0xff] %vm300, %v1058
        %1123 = vst.msk [vmem:[%s335 + $0x471] sm:$0xff] %vm300, %v1059
        %1124 = vst.msk [vmem:[%s335 + $0x481] sm:$0xff] %vm300, %v1060
        %1125 = vst.msk [vmem:[%s335 + $0x491] sm:$0xff] %vm300, %v1061
        %1126 = vst.msk [vmem:[%s335 + $0x4a1] sm:$0xff] %vm300, %v1062
        %1127 = vst.msk [vmem:[%s335 + $0x4b1] sm:$0xff] %vm300, %v1063
        %1128 = vst.msk [vmem:[%s335 + $0x4c1] sm:$0xff] %vm300, %v1064
        %1129 = vst.msk [vmem:[%s335 + $0x4d1] sm:$0xff] %vm300, %v1065
        %v1130 = vld [vmem:[#allocation2] sm:$0xff]
        %v1131 = vld [vmem:[#allocation2 + $0x10] sm:$0xff]
        %v1132 = vld [vmem:[#allocation2 + $0x20] sm:$0xff]
        %v1133 = vld [vmem:[#allocation2 + $0x30] sm:$0xff]
        %v1134 = vld [vmem:[#allocation2 + $0x40] sm:$0xff]
        %v1135 = vld [vmem:[#allocation2 + $0x50] sm:$0xff]
        %v1136 = vld [vmem:[#allocation2 + $0x60] sm:$0xff]
        %v1137 = vld [vmem:[#allocation2 + $0x70] sm:$0xff]
        %v1138 = vld [vmem:[#allocation2 + $0xa0] sm:$0xff]
        %v1139 = vld [vmem:[#allocation2 + $0xb0] sm:$0xff]
        %v1140 = vld [vmem:[#allocation2 + $0xc0] sm:$0xff]
        %v1141 = vld [vmem:[#allocation2 + $0xd0] sm:$0xff]
        %v1142 = vld [vmem:[#allocation2 + $0xe0] sm:$0xff]
        %v1143 = vld [vmem:[#allocation2 + $0xf0] sm:$0xff]
        %v1144 = vld [vmem:[#allocation2 + $0x100] sm:$0xff]
        %v1145 = vld [vmem:[#allocation2 + $0x110] sm:$0xff]
        %v1146 = vld [vmem:[#allocation2 + $0x140] sm:$0xff]
        %v1147 = vld [vmem:[#allocation2 + $0x150] sm:$0xff]
        %v1148 = vld [vmem:[#allocation2 + $0x160] sm:$0xff]
        %v1149 = vld [vmem:[#allocation2 + $0x170] sm:$0xff]
        %v1150 = vld [vmem:[#allocation2 + $0x180] sm:$0xff]
        %v1151 = vld [vmem:[#allocation2 + $0x190] sm:$0xff]
        %v1152 = vld [vmem:[#allocation2 + $0x1a0] sm:$0xff]
        %v1153 = vld [vmem:[#allocation2 + $0x1b0] sm:$0xff]
        %v1154 = vld [vmem:[#allocation2 + $0x1e0] sm:$0xff]
        %v1155 = vld [vmem:[#allocation2 + $0x1f0] sm:$0xff]
        %v1156 = vld [vmem:[#allocation2 + $0x200] sm:$0xff]
        %v1157 = vld [vmem:[#allocation2 + $0x210] sm:$0xff]
        %v1158 = vld [vmem:[#allocation2 + $0x220] sm:$0xff]
        %v1159 = vld [vmem:[#allocation2 + $0x230] sm:$0xff]
        %v1160 = vld [vmem:[#allocation2 + $0x240] sm:$0xff]
        %v1161 = vld [vmem:[#allocation2 + $0x250] sm:$0xff]
        %v1162 = vld [vmem:[#allocation2 + $0x280] sm:$0xff]
        %v1163 = vld [vmem:[#allocation2 + $0x290] sm:$0xff]
        %v1164 = vld [vmem:[#allocation2 + $0x2a0] sm:$0xff]
        %v1165 = vld [vmem:[#allocation2 + $0x2b0] sm:$0xff]
        %v1166 = vld [vmem:[#allocation2 + $0x2c0] sm:$0xff]
        %v1167 = vld [vmem:[#allocation2 + $0x2d0] sm:$0xff]
        %v1168 = vld [vmem:[#allocation2 + $0x2e0] sm:$0xff]
        %v1169 = vld [vmem:[#allocation2 + $0x2f0] sm:$0xff]
        %v1170 = vld [vmem:[#allocation2 + $0x320] sm:$0xff]
        %v1171 = vld [vmem:[#allocation2 + $0x330] sm:$0xff]
        %v1172 = vld [vmem:[#allocation2 + $0x340] sm:$0xff]
        %v1173 = vld [vmem:[#allocation2 + $0x350] sm:$0xff]
        %v1174 = vld [vmem:[#allocation2 + $0x360] sm:$0xff]
        %v1175 = vld [vmem:[#allocation2 + $0x370] sm:$0xff]
        %v1176 = vld [vmem:[#allocation2 + $0x380] sm:$0xff]
        %v1177 = vld [vmem:[#allocation2 + $0x390] sm:$0xff]
        %v1178 = vld [vmem:[#allocation2 + $0x3c0] sm:$0xff]
        %v1179 = vld [vmem:[#allocation2 + $0x3d0] sm:$0xff]
        %v1180 = vld [vmem:[#allocation2 + $0x3e0] sm:$0xff]
        %v1181 = vld [vmem:[#allocation2 + $0x3f0] sm:$0xff]
        %v1182 = vld [vmem:[#allocation2 + $0x400] sm:$0xff]
        %v1183 = vld [vmem:[#allocation2 + $0x410] sm:$0xff]
        %v1184 = vld [vmem:[#allocation2 + $0x420] sm:$0xff]
        %v1185 = vld [vmem:[#allocation2 + $0x430] sm:$0xff]
        %v1186 = vld [vmem:[#allocation2 + $0x460] sm:$0xff]
        %v1187 = vld [vmem:[#allocation2 + $0x470] sm:$0xff]
        %v1188 = vld [vmem:[#allocation2 + $0x480] sm:$0xff]
        %v1189 = vld [vmem:[#allocation2 + $0x490] sm:$0xff]
        %v1190 = vld [vmem:[#allocation2 + $0x4a0] sm:$0xff]
        %v1191 = vld [vmem:[#allocation2 + $0x4b0] sm:$0xff]
        %v1192 = vld [vmem:[#allocation2 + $0x4c0] sm:$0xff]
        %v1193 = vld [vmem:[#allocation2 + $0x4d0] sm:$0xff]
        %1194 = vst.msk [vmem:[#allocation3] sm:$0xff] %vm300, %v1130
        %1195 = vst.msk [vmem:[#allocation3 + $0x18] sm:$0xff] %vm300, %v1131
        %1196 = vst.msk [vmem:[#allocation3 + $0x30] sm:$0xff] %vm300, %v1132
        %1197 = vst.msk [vmem:[#allocation3 + $0x48] sm:$0xff] %vm300, %v1133
        %1198 = vst.msk [vmem:[#allocation3 + $0x60] sm:$0xff] %vm300, %v1134
        %1199 = vst.msk [vmem:[#allocation3 + $0x78] sm:$0xff] %vm300, %v1135
        %1200 = vst.msk [vmem:[#allocation3 + $0x90] sm:$0xff] %vm300, %v1136
        %1201 = vst.msk [vmem:[#allocation3 + $0xa8] sm:$0xff] %vm300, %v1137
        %1202 = vst.msk [vmem:[#allocation3 + $0xc0] sm:$0xff] %vm300, %v1138
        %1203 = vst.msk [vmem:[#allocation3 + $0xd8] sm:$0xff] %vm300, %v1139
        %1204 = vst.msk [vmem:[#allocation3 + $0xf0] sm:$0xff] %vm300, %v1140
        %1205 = vst.msk [vmem:[#allocation3 + $0x108] sm:$0xff] %vm300, %v1141
        %1206 = vst.msk [vmem:[#allocation3 + $0x120] sm:$0xff] %vm300, %v1142
        %1207 = vst.msk [vmem:[#allocation3 + $0x138] sm:$0xff] %vm300, %v1143
        %1208 = vst.msk [vmem:[#allocation3 + $0x150] sm:$0xff] %vm300, %v1144
        %1209 = vst.msk [vmem:[#allocation3 + $0x168] sm:$0xff] %vm300, %v1145
        %1210 = vst.msk [vmem:[#allocation3 + $0x180] sm:$0xff] %vm300, %v1146
        %1211 = vst.msk [vmem:[#allocation3 + $0x198] sm:$0xff] %vm300, %v1147
        %1212 = vst.msk [vmem:[#allocation3 + $0x1b0] sm:$0xff] %vm300, %v1148
        %1213 = vst.msk [vmem:[#allocation3 + $0x1c8] sm:$0xff] %vm300, %v1149
        %1214 = vst.msk [vmem:[#allocation3 + $0x1e0] sm:$0xff] %vm300, %v1150
        %1215 = vst.msk [vmem:[#allocation3 + $0x1f8] sm:$0xff] %vm300, %v1151
        %1216 = vst.msk [vmem:[#allocation3 + $0x210] sm:$0xff] %vm300, %v1152
        %1217 = vst.msk [vmem:[#allocation3 + $0x228] sm:$0xff] %vm300, %v1153
        %1218 = vst.msk [vmem:[#allocation3 + $0x240] sm:$0xff] %vm300, %v1154
        %1219 = vst.msk [vmem:[#allocation3 + $0x258] sm:$0xff] %vm300, %v1155
        %1220 = vst.msk [vmem:[#allocation3 + $0x270] sm:$0xff] %vm300, %v1156
        %1221 = vst.msk [vmem:[#allocation3 + $0x288] sm:$0xff] %vm300, %v1157
        %1222 = vst.msk [vmem:[#allocation3 + $0x2a0] sm:$0xff] %vm300, %v1158
        %1223 = vst.msk [vmem:[#allocation3 + $0x2b8] sm:$0xff] %vm300, %v1159
        %1224 = vst.msk [vmem:[#allocation3 + $0x2d0] sm:$0xff] %vm300, %v1160
        %1225 = vst.msk [vmem:[#allocation3 + $0x2e8] sm:$0xff] %vm300, %v1161
        %1226 = vst.msk [vmem:[#allocation3 + $0x300] sm:$0xff] %vm300, %v1162
        %1227 = vst.msk [vmem:[#allocation3 + $0x318] sm:$0xff] %vm300, %v1163
        %1228 = vst.msk [vmem:[#allocation3 + $0x330] sm:$0xff] %vm300, %v1164
        %1229 = vst.msk [vmem:[#allocation3 + $0x348] sm:$0xff] %vm300, %v1165
        %1230 = vst.msk [vmem:[#allocation3 + $0x360] sm:$0xff] %vm300, %v1166
        %1231 = vst.msk [vmem:[#allocation3 + $0x378] sm:$0xff] %vm300, %v1167
        %1232 = vst.msk [vmem:[#allocation3 + $0x390] sm:$0xff] %vm300, %v1168
        %1233 = vst.msk [vmem:[#allocation3 + $0x3a8] sm:$0xff] %vm300, %v1169
        %1234 = vst.msk [vmem:[#allocation3 + $0x3c0] sm:$0xff] %vm300, %v1170
        %1235 = vst.msk [vmem:[#allocation3 + $0x3d8] sm:$0xff] %vm300, %v1171
        %1236 = vst.msk [vmem:[#allocation3 + $0x3f0] sm:$0xff] %vm300, %v1172
        %1237 = vst.msk [vmem:[#allocation3 + $0x408] sm:$0xff] %vm300, %v1173
        %1238 = vst.msk [vmem:[#allocation3 + $0x420] sm:$0xff] %vm300, %v1174
        %1239 = vst.msk [vmem:[#allocation3 + $0x438] sm:$0xff] %vm300, %v1175
        %1240 = vst.msk [vmem:[#allocation3 + $0x450] sm:$0xff] %vm300, %v1176
        %1241 = vst.msk [vmem:[#allocation3 + $0x468] sm:$0xff] %vm300, %v1177
        %1242 = vst.msk [vmem:[#allocation3 + $0x480] sm:$0xff] %vm300, %v1178
        %1243 = vst.msk [vmem:[#allocation3 + $0x498] sm:$0xff] %vm300, %v1179
        %1244 = vst.msk [vmem:[#allocation3 + $0x4b0] sm:$0xff] %vm300, %v1180
        %1245 = vst.msk [vmem:[#allocation3 + $0x4c8] sm:$0xff] %vm300, %v1181
        %1246 = vst.msk [vmem:[#allocation3 + $0x4e0] sm:$0xff] %vm300, %v1182
        %1247 = vst.msk [vmem:[#allocation3 + $0x4f8] sm:$0xff] %vm300, %v1183
        %1248 = vst.msk [vmem:[#allocation3 + $0x510] sm:$0xff] %vm300, %v1184
        %1249 = vst.msk [vmem:[#allocation3 + $0x528] sm:$0xff] %vm300, %v1185
        %1250 = vst.msk [vmem:[#allocation3 + $0x540] sm:$0xff] %vm300, %v1186
        %1251 = vst.msk [vmem:[#allocation3 + $0x558] sm:$0xff] %vm300, %v1187
        %1252 = vst.msk [vmem:[#allocation3 + $0x570] sm:$0xff] %vm300, %v1188
        %1253 = vst.msk [vmem:[#allocation3 + $0x588] sm:$0xff] %vm300, %v1189
        %1254 = vst.msk [vmem:[#allocation3 + $0x5a0] sm:$0xff] %vm300, %v1190
        %1255 = vst.msk [vmem:[#allocation3 + $0x5b8] sm:$0xff] %vm300, %v1191
        %1256 = vst.msk [vmem:[#allocation3 + $0x5d0] sm:$0xff] %vm300, %v1192
        %1257 = vst.msk [vmem:[#allocation3 + $0x5e8] sm:$0xff] %vm300, %v1193
        %v1258 = vld [vmem:[#allocation2 + $0x1] sm:$0xff]
        %v1259 = vld [vmem:[#allocation2 + $0x11] sm:$0xff]
        %v1260 = vld [vmem:[#allocation2 + $0x21] sm:$0xff]
        %v1261 = vld [vmem:[#allocation2 + $0x31] sm:$0xff]
        %v1262 = vld [vmem:[#allocation2 + $0x41] sm:$0xff]
        %v1263 = vld [vmem:[#allocation2 + $0x51] sm:$0xff]
        %v1264 = vld [vmem:[#allocation2 + $0x61] sm:$0xff]
        %v1265 = vld [vmem:[#allocation2 + $0x71] sm:$0xff]
        %v1266 = vld [vmem:[#allocation2 + $0xa1] sm:$0xff]
        %v1267 = vld [vmem:[#allocation2 + $0xb1] sm:$0xff]
        %v1268 = vld [vmem:[#allocation2 + $0xc1] sm:$0xff]
        %v1269 = vld [vmem:[#allocation2 + $0xd1] sm:$0xff]
        %v1270 = vld [vmem:[#allocation2 + $0xe1] sm:$0xff]
        %v1271 = vld [vmem:[#allocation2 + $0xf1] sm:$0xff]
        %v1272 = vld [vmem:[#allocation2 + $0x101] sm:$0xff]
        %v1273 = vld [vmem:[#allocation2 + $0x111] sm:$0xff]
        %v1274 = vld [vmem:[#allocation2 + $0x141] sm:$0xff]
        %v1275 = vld [vmem:[#allocation2 + $0x151] sm:$0xff]
        %v1276 = vld [vmem:[#allocation2 + $0x161] sm:$0xff]
        %v1277 = vld [vmem:[#allocation2 + $0x171] sm:$0xff]
        %v1278 = vld [vmem:[#allocation2 + $0x181] sm:$0xff]
        %v1279 = vld [vmem:[#allocation2 + $0x191] sm:$0xff]
        %v1280 = vld [vmem:[#allocation2 + $0x1a1] sm:$0xff]
        %v1281 = vld [vmem:[#allocation2 + $0x1b1] sm:$0xff]
        %v1282 = vld [vmem:[#allocation2 + $0x1e1] sm:$0xff]
        %v1283 = vld [vmem:[#allocation2 + $0x1f1] sm:$0xff]
        %v1284 = vld [vmem:[#allocation2 + $0x201] sm:$0xff]
        %v1285 = vld [vmem:[#allocation2 + $0x211] sm:$0xff]
        %v1286 = vld [vmem:[#allocation2 + $0x221] sm:$0xff]
        %v1287 = vld [vmem:[#allocation2 + $0x231] sm:$0xff]
        %v1288 = vld [vmem:[#allocation2 + $0x241] sm:$0xff]
        %v1289 = vld [vmem:[#allocation2 + $0x251] sm:$0xff]
        %v1290 = vld [vmem:[#allocation2 + $0x281] sm:$0xff]
        %v1291 = vld [vmem:[#allocation2 + $0x291] sm:$0xff]
        %v1292 = vld [vmem:[#allocation2 + $0x2a1] sm:$0xff]
        %v1293 = vld [vmem:[#allocation2 + $0x2b1] sm:$0xff]
        %v1294 = vld [vmem:[#allocation2 + $0x2c1] sm:$0xff]
        %v1295 = vld [vmem:[#allocation2 + $0x2d1] sm:$0xff]
        %v1296 = vld [vmem:[#allocation2 + $0x2e1] sm:$0xff]
        %v1297 = vld [vmem:[#allocation2 + $0x2f1] sm:$0xff]
        %v1298 = vld [vmem:[#allocation2 + $0x321] sm:$0xff]
        %v1299 = vld [vmem:[#allocation2 + $0x331] sm:$0xff]
        %v1300 = vld [vmem:[#allocation2 + $0x341] sm:$0xff]
        %v1301 = vld [vmem:[#allocation2 + $0x351] sm:$0xff]
        %v1302 = vld [vmem:[#allocation2 + $0x361] sm:$0xff]
        %v1303 = vld [vmem:[#allocation2 + $0x371] sm:$0xff]
        %v1304 = vld [vmem:[#allocation2 + $0x381] sm:$0xff]
        %v1305 = vld [vmem:[#allocation2 + $0x391] sm:$0xff]
        %v1306 = vld [vmem:[#allocation2 + $0x3c1] sm:$0xff]
        %v1307 = vld [vmem:[#allocation2 + $0x3d1] sm:$0xff]
        %v1308 = vld [vmem:[#allocation2 + $0x3e1] sm:$0xff]
        %v1309 = vld [vmem:[#allocation2 + $0x3f1] sm:$0xff]
        %v1310 = vld [vmem:[#allocation2 + $0x401] sm:$0xff]
        %v1311 = vld [vmem:[#allocation2 + $0x411] sm:$0xff]
        %v1312 = vld [vmem:[#allocation2 + $0x421] sm:$0xff]
        %v1313 = vld [vmem:[#allocation2 + $0x431] sm:$0xff]
        %v1314 = vld [vmem:[#allocation2 + $0x461] sm:$0xff]
        %v1315 = vld [vmem:[#allocation2 + $0x471] sm:$0xff]
        %v1316 = vld [vmem:[#allocation2 + $0x481] sm:$0xff]
        %v1317 = vld [vmem:[#allocation2 + $0x491] sm:$0xff]
        %v1318 = vld [vmem:[#allocation2 + $0x4a1] sm:$0xff]
        %v1319 = vld [vmem:[#allocation2 + $0x4b1] sm:$0xff]
        %v1320 = vld [vmem:[#allocation2 + $0x4c1] sm:$0xff]
        %v1321 = vld [vmem:[#allocation2 + $0x4d1] sm:$0xff]
        %1386 = vrot.lane.b32.xlu0 %v1258, 32
        %v1387 = vpop.permute.xlu0 %1386
        %1388 = vrot.lane.b32.xlu0 %v1259, 32
        %v1389 = vpop.permute.xlu0 %1388
        %1390 = vrot.lane.b32.xlu0 %v1260, 32
        %v1391 = vpop.permute.xlu0 %1390
        %1392 = vrot.lane.b32.xlu0 %v1261, 32
        %v1393 = vpop.permute.xlu0 %1392
        %1394 = vrot.lane.b32.xlu0 %v1262, 32
        %v1395 = vpop.permute.xlu0 %1394
        %1396 = vrot.lane.b32.xlu0 %v1263, 32
        %v1397 = vpop.permute.xlu0 %1396
        %1398 = vrot.lane.b32.xlu0 %v1264, 32
        %v1399 = vpop.permute.xlu0 %1398
        %1400 = vrot.lane.b32.xlu0 %v1265, 32
        %v1401 = vpop.permute.xlu0 %1400
        %1402 = vrot.lane.b32.xlu0 %v1266, 32
        %v1403 = vpop.permute.xlu0 %1402
        %1404 = vrot.lane.b32.xlu0 %v1267, 32
        %v1405 = vpop.permute.xlu0 %1404
        %1406 = vrot.lane.b32.xlu0 %v1268, 32
        %v1407 = vpop.permute.xlu0 %1406
        %1408 = vrot.lane.b32.xlu0 %v1269, 32
        %v1409 = vpop.permute.xlu0 %1408
        %1410 = vrot.lane.b32.xlu0 %v1270, 32
        %v1411 = vpop.permute.xlu0 %1410
        %1412 = vrot.lane.b32.xlu0 %v1271, 32
        %v1413 = vpop.permute.xlu0 %1412
        %1414 = vrot.lane.b32.xlu0 %v1272, 32
        %v1415 = vpop.permute.xlu0 %1414
        %1416 = vrot.lane.b32.xlu0 %v1273, 32
        %v1417 = vpop.permute.xlu0 %1416
        %1418 = vrot.lane.b32.xlu0 %v1274, 32
        %v1419 = vpop.permute.xlu0 %1418
        %1420 = vrot.lane.b32.xlu0 %v1275, 32
        %v1421 = vpop.permute.xlu0 %1420
        %1422 = vrot.lane.b32.xlu0 %v1276, 32
        %v1423 = vpop.permute.xlu0 %1422
        %1424 = vrot.lane.b32.xlu0 %v1277, 32
        %v1425 = vpop.permute.xlu0 %1424
        %1426 = vrot.lane.b32.xlu0 %v1278, 32
        %v1427 = vpop.permute.xlu0 %1426
        %1428 = vrot.lane.b32.xlu0 %v1279, 32
        %v1429 = vpop.permute.xlu0 %1428
        %1430 = vrot.lane.b32.xlu0 %v1280, 32
        %v1431 = vpop.permute.xlu0 %1430
        %1432 = vrot.lane.b32.xlu0 %v1281, 32
        %v1433 = vpop.permute.xlu0 %1432
        %1434 = vrot.lane.b32.xlu0 %v1282, 32
        %v1435 = vpop.permute.xlu0 %1434
        %1436 = vrot.lane.b32.xlu0 %v1283, 32
        %v1437 = vpop.permute.xlu0 %1436
        %1438 = vrot.lane.b32.xlu0 %v1284, 32
        %v1439 = vpop.permute.xlu0 %1438
        %1440 = vrot.lane.b32.xlu0 %v1285, 32
        %v1441 = vpop.permute.xlu0 %1440
        %1442 = vrot.lane.b32.xlu0 %v1286, 32
        %v1443 = vpop.permute.xlu0 %1442
        %1444 = vrot.lane.b32.xlu0 %v1287, 32
        %v1445 = vpop.permute.xlu0 %1444
        %1446 = vrot.lane.b32.xlu0 %v1288, 32
        %v1447 = vpop.permute.xlu0 %1446
        %1448 = vrot.lane.b32.xlu0 %v1289, 32
        %v1449 = vpop.permute.xlu0 %1448
        %1450 = vrot.lane.b32.xlu0 %v1290, 32
        %v1451 = vpop.permute.xlu0 %1450
        %1452 = vrot.lane.b32.xlu0 %v1291, 32
        %v1453 = vpop.permute.xlu0 %1452
        %1454 = vrot.lane.b32.xlu0 %v1292, 32
        %v1455 = vpop.permute.xlu0 %1454
        %1456 = vrot.lane.b32.xlu0 %v1293, 32
        %v1457 = vpop.permute.xlu0 %1456
        %1458 = vrot.lane.b32.xlu0 %v1294, 32
        %v1459 = vpop.permute.xlu0 %1458
        %1460 = vrot.lane.b32.xlu0 %v1295, 32
        %v1461 = vpop.permute.xlu0 %1460
        %1462 = vrot.lane.b32.xlu0 %v1296, 32
        %v1463 = vpop.permute.xlu0 %1462
        %1464 = vrot.lane.b32.xlu0 %v1297, 32
        %v1465 = vpop.permute.xlu0 %1464
        %1466 = vrot.lane.b32.xlu0 %v1298, 32
        %v1467 = vpop.permute.xlu0 %1466
        %1468 = vrot.lane.b32.xlu0 %v1299, 32
        %v1469 = vpop.permute.xlu0 %1468
        %1470 = vrot.lane.b32.xlu0 %v1300, 32
        %v1471 = vpop.permute.xlu0 %1470
        %1472 = vrot.lane.b32.xlu0 %v1301, 32
        %v1473 = vpop.permute.xlu0 %1472
        %1474 = vrot.lane.b32.xlu0 %v1302, 32
        %v1475 = vpop.permute.xlu0 %1474
        %1476 = vrot.lane.b32.xlu0 %v1303, 32
        %v1477 = vpop.permute.xlu0 %1476
        %1478 = vrot.lane.b32.xlu0 %v1304, 32
        %v1479 = vpop.permute.xlu0 %1478
        %1480 = vrot.lane.b32.xlu0 %v1305, 32
        %v1481 = vpop.permute.xlu0 %1480
        %1482 = vrot.lane.b32.xlu0 %v1306, 32
        %v1483 = vpop.permute.xlu0 %1482
        %1484 = vrot.lane.b32.xlu0 %v1307, 32
        %v1485 = vpop.permute.xlu0 %1484
        %1486 = vrot.lane.b32.xlu0 %v1308, 32
        %v1487 = vpop.permute.xlu0 %1486
        %1488 = vrot.lane.b32.xlu0 %v1309, 32
        %v1489 = vpop.permute.xlu0 %1488
        %1490 = vrot.lane.b32.xlu0 %v1310, 32
        %v1491 = vpop.permute.xlu0 %1490
        %1492 = vrot.lane.b32.xlu0 %v1311, 32
        %v1493 = vpop.permute.xlu0 %1492
        %1494 = vrot.lane.b32.xlu0 %v1312, 32
        %v1495 = vpop.permute.xlu0 %1494
        %1496 = vrot.lane.b32.xlu0 %v1313, 32
        %v1497 = vpop.permute.xlu0 %1496
        %1498 = vrot.lane.b32.xlu0 %v1314, 32
        %v1499 = vpop.permute.xlu0 %1498
        %1500 = vrot.lane.b32.xlu0 %v1315, 32
        %v1501 = vpop.permute.xlu0 %1500
        %1502 = vrot.lane.b32.xlu0 %v1316, 32
        %v1503 = vpop.permute.xlu0 %1502
        %1504 = vrot.lane.b32.xlu0 %v1317, 32
        %v1505 = vpop.permute.xlu0 %1504
        %1506 = vrot.lane.b32.xlu0 %v1318, 32
        %v1507 = vpop.permute.xlu0 %1506
        %1508 = vrot.lane.b32.xlu0 %v1319, 32
        %v1509 = vpop.permute.xlu0 %1508
        %1510 = vrot.lane.b32.xlu0 %v1320, 32
        %v1511 = vpop.permute.xlu0 %1510
        %1512 = vrot.lane.b32.xlu0 %v1321, 32
        %v1513 = vpop.permute.xlu0 %1512
        %vm1578 = vcmask 523520
        %1579 = vst.msk [vmem:[#allocation3] sm:$0xff] %vm1578, %v1387
        %1580 = vst.msk [vmem:[#allocation3 + $0x18] sm:$0xff] %vm1578, %v1389
        %1581 = vst.msk [vmem:[#allocation3 + $0x30] sm:$0xff] %vm1578, %v1391
        %1582 = vst.msk [vmem:[#allocation3 + $0x48] sm:$0xff] %vm1578, %v1393
        %1583 = vst.msk [vmem:[#allocation3 + $0x60] sm:$0xff] %vm1578, %v1395
        %1584 = vst.msk [vmem:[#allocation3 + $0x78] sm:$0xff] %vm1578, %v1397
        %1585 = vst.msk [vmem:[#allocation3 + $0x90] sm:$0xff] %vm1578, %v1399
        %1586 = vst.msk [vmem:[#allocation3 + $0xa8] sm:$0xff] %vm1578, %v1401
        %1587 = vst.msk [vmem:[#allocation3 + $0xc0] sm:$0xff] %vm1578, %v1403
        %1588 = vst.msk [vmem:[#allocation3 + $0xd8] sm:$0xff] %vm1578, %v1405
        %1589 = vst.msk [vmem:[#allocation3 + $0xf0] sm:$0xff] %vm1578, %v1407
        %1590 = vst.msk [vmem:[#allocation3 + $0x108] sm:$0xff] %vm1578, %v1409
        %1591 = vst.msk [vmem:[#allocation3 + $0x120] sm:$0xff] %vm1578, %v1411
        %1592 = vst.msk [vmem:[#allocation3 + $0x138] sm:$0xff] %vm1578, %v1413
        %1593 = vst.msk [vmem:[#allocation3 + $0x150] sm:$0xff] %vm1578, %v1415
        %1594 = vst.msk [vmem:[#allocation3 + $0x168] sm:$0xff] %vm1578, %v1417
        %1595 = vst.msk [vmem:[#allocation3 + $0x180] sm:$0xff] %vm1578, %v1419
        %1596 = vst.msk [vmem:[#allocation3 + $0x198] sm:$0xff] %vm1578, %v1421
        %1597 = vst.msk [vmem:[#allocation3 + $0x1b0] sm:$0xff] %vm1578, %v1423
        %1598 = vst.msk [vmem:[#allocation3 + $0x1c8] sm:$0xff] %vm1578, %v1425
        %1599 = vst.msk [vmem:[#allocation3 + $0x1e0] sm:$0xff] %vm1578, %v1427
        %1600 = vst.msk [vmem:[#allocation3 + $0x1f8] sm:$0xff] %vm1578, %v1429
        %1601 = vst.msk [vmem:[#allocation3 + $0x210] sm:$0xff] %vm1578, %v1431
        %1602 = vst.msk [vmem:[#allocation3 + $0x228] sm:$0xff] %vm1578, %v1433
        %1603 = vst.msk [vmem:[#allocation3 + $0x240] sm:$0xff] %vm1578, %v1435
        %1604 = vst.msk [vmem:[#allocation3 + $0x258] sm:$0xff] %vm1578, %v1437
        %1605 = vst.msk [vmem:[#allocation3 + $0x270] sm:$0xff] %vm1578, %v1439
        %1606 = vst.msk [vmem:[#allocation3 + $0x288] sm:$0xff] %vm1578, %v1441
        %1607 = vst.msk [vmem:[#allocation3 + $0x2a0] sm:$0xff] %vm1578, %v1443
        %1608 = vst.msk [vmem:[#allocation3 + $0x2b8] sm:$0xff] %vm1578, %v1445
        %1609 = vst.msk [vmem:[#allocation3 + $0x2d0] sm:$0xff] %vm1578, %v1447
        %1610 = vst.msk [vmem:[#allocation3 + $0x2e8] sm:$0xff] %vm1578, %v1449
        %1611 = vst.msk [vmem:[#allocation3 + $0x300] sm:$0xff] %vm1578, %v1451
        %1612 = vst.msk [vmem:[#allocation3 + $0x318] sm:$0xff] %vm1578, %v1453
        %1613 = vst.msk [vmem:[#allocation3 + $0x330] sm:$0xff] %vm1578, %v1455
        %1614 = vst.msk [vmem:[#allocation3 + $0x348] sm:$0xff] %vm1578, %v1457
        %1615 = vst.msk [vmem:[#allocation3 + $0x360] sm:$0xff] %vm1578, %v1459
        %1616 = vst.msk [vmem:[#allocation3 + $0x378] sm:$0xff] %vm1578, %v1461
        %1617 = vst.msk [vmem:[#allocation3 + $0x390] sm:$0xff] %vm1578, %v1463
        %1618 = vst.msk [vmem:[#allocation3 + $0x3a8] sm:$0xff] %vm1578, %v1465
        %1619 = vst.msk [vmem:[#allocation3 + $0x3c0] sm:$0xff] %vm1578, %v1467
        %1620 = vst.msk [vmem:[#allocation3 + $0x3d8] sm:$0xff] %vm1578, %v1469
        %1621 = vst.msk [vmem:[#allocation3 + $0x3f0] sm:$0xff] %vm1578, %v1471
        %1622 = vst.msk [vmem:[#allocation3 + $0x408] sm:$0xff] %vm1578, %v1473
        %1623 = vst.msk [vmem:[#allocation3 + $0x420] sm:$0xff] %vm1578, %v1475
        %1624 = vst.msk [vmem:[#allocation3 + $0x438] sm:$0xff] %vm1578, %v1477
        %1625 = vst.msk [vmem:[#allocation3 + $0x450] sm:$0xff] %vm1578, %v1479
        %1626 = vst.msk [vmem:[#allocation3 + $0x468] sm:$0xff] %vm1578, %v1481
        %1627 = vst.msk [vmem:[#allocation3 + $0x480] sm:$0xff] %vm1578, %v1483
        %1628 = vst.msk [vmem:[#allocation3 + $0x498] sm:$0xff] %vm1578, %v1485
        %1629 = vst.msk [vmem:[#allocation3 + $0x4b0] sm:$0xff] %vm1578, %v1487
        %1630 = vst.msk [vmem:[#allocation3 + $0x4c8] sm:$0xff] %vm1578, %v1489
        %1631 = vst.msk [vmem:[#allocation3 + $0x4e0] sm:$0xff] %vm1578, %v1491
        %1632 = vst.msk [vmem:[#allocation3 + $0x4f8] sm:$0xff] %vm1578, %v1493
        %1633 = vst.msk [vmem:[#allocation3 + $0x510] sm:$0xff] %vm1578, %v1495
        %1634 = vst.msk [vmem:[#allocation3 + $0x528] sm:$0xff] %vm1578, %v1497
        %1635 = vst.msk [vmem:[#allocation3 + $0x540] sm:$0xff] %vm1578, %v1499
        %1636 = vst.msk [vmem:[#allocation3 + $0x558] sm:$0xff] %vm1578, %v1501
        %1637 = vst.msk [vmem:[#allocation3 + $0x570] sm:$0xff] %vm1578, %v1503
        %1638 = vst.msk [vmem:[#allocation3 + $0x588] sm:$0xff] %vm1578, %v1505
        %1639 = vst.msk [vmem:[#allocation3 + $0x5a0] sm:$0xff] %vm1578, %v1507
        %1640 = vst.msk [vmem:[#allocation3 + $0x5b8] sm:$0xff] %vm1578, %v1509
        %1641 = vst.msk [vmem:[#allocation3 + $0x5d0] sm:$0xff] %vm1578, %v1511
        %1642 = vst.msk [vmem:[#allocation3 + $0x5e8] sm:$0xff] %vm1578, %v1513
        %v1643 = vld [vmem:[#allocation2 + $0x2] sm:$0xff]
        %v1644 = vld [vmem:[#allocation2 + $0x12] sm:$0xff]
        %v1645 = vld [vmem:[#allocation2 + $0x22] sm:$0xff]
        %v1646 = vld [vmem:[#allocation2 + $0x32] sm:$0xff]
        %v1647 = vld [vmem:[#allocation2 + $0x42] sm:$0xff]
        %v1648 = vld [vmem:[#allocation2 + $0x52] sm:$0xff]
        %v1649 = vld [vmem:[#allocation2 + $0x62] sm:$0xff]
        %v1650 = vld [vmem:[#allocation2 + $0x72] sm:$0xff]
        %v1651 = vld [vmem:[#allocation2 + $0xa2] sm:$0xff]
        %v1652 = vld [vmem:[#allocation2 + $0xb2] sm:$0xff]
        %v1653 = vld [vmem:[#allocation2 + $0xc2] sm:$0xff]
        %v1654 = vld [vmem:[#allocation2 + $0xd2] sm:$0xff]
        %v1655 = vld [vmem:[#allocation2 + $0xe2] sm:$0xff]
        %v1656 = vld [vmem:[#allocation2 + $0xf2] sm:$0xff]
        %v1657 = vld [vmem:[#allocation2 + $0x102] sm:$0xff]
        %v1658 = vld [vmem:[#allocation2 + $0x112] sm:$0xff]
        %v1659 = vld [vmem:[#allocation2 + $0x142] sm:$0xff]
        %v1660 = vld [vmem:[#allocation2 + $0x152] sm:$0xff]
        %v1661 = vld [vmem:[#allocation2 + $0x162] sm:$0xff]
        %v1662 = vld [vmem:[#allocation2 + $0x172] sm:$0xff]
        %v1663 = vld [vmem:[#allocation2 + $0x182] sm:$0xff]
        %v1664 = vld [vmem:[#allocation2 + $0x192] sm:$0xff]
        %v1665 = vld [vmem:[#allocation2 + $0x1a2] sm:$0xff]
        %v1666 = vld [vmem:[#allocation2 + $0x1b2] sm:$0xff]
        %v1667 = vld [vmem:[#allocation2 + $0x1e2] sm:$0xff]
        %v1668 = vld [vmem:[#allocation2 + $0x1f2] sm:$0xff]
        %v1669 = vld [vmem:[#allocation2 + $0x202] sm:$0xff]
        %v1670 = vld [vmem:[#allocation2 + $0x212] sm:$0xff]
        %v1671 = vld [vmem:[#allocation2 + $0x222] sm:$0xff]
        %v1672 = vld [vmem:[#allocation2 + $0x232] sm:$0xff]
        %v1673 = vld [vmem:[#allocation2 + $0x242] sm:$0xff]
        %v1674 = vld [vmem:[#allocation2 + $0x252] sm:$0xff]
        %v1675 = vld [vmem:[#allocation2 + $0x282] sm:$0xff]
        %v1676 = vld [vmem:[#allocation2 + $0x292] sm:$0xff]
        %v1677 = vld [vmem:[#allocation2 + $0x2a2] sm:$0xff]
        %v1678 = vld [vmem:[#allocation2 + $0x2b2] sm:$0xff]
        %v1679 = vld [vmem:[#allocation2 + $0x2c2] sm:$0xff]
        %v1680 = vld [vmem:[#allocation2 + $0x2d2] sm:$0xff]
        %v1681 = vld [vmem:[#allocation2 + $0x2e2] sm:$0xff]
        %v1682 = vld [vmem:[#allocation2 + $0x2f2] sm:$0xff]
        %v1683 = vld [vmem:[#allocation2 + $0x322] sm:$0xff]
        %v1684 = vld [vmem:[#allocation2 + $0x332] sm:$0xff]
        %v1685 = vld [vmem:[#allocation2 + $0x342] sm:$0xff]
        %v1686 = vld [vmem:[#allocation2 + $0x352] sm:$0xff]
        %v1687 = vld [vmem:[#allocation2 + $0x362] sm:$0xff]
        %v1688 = vld [vmem:[#allocation2 + $0x372] sm:$0xff]
        %v1689 = vld [vmem:[#allocation2 + $0x382] sm:$0xff]
        %v1690 = vld [vmem:[#allocation2 + $0x392] sm:$0xff]
        %v1691 = vld [vmem:[#allocation2 + $0x3c2] sm:$0xff]
        %v1692 = vld [vmem:[#allocation2 + $0x3d2] sm:$0xff]
        %v1693 = vld [vmem:[#allocation2 + $0x3e2] sm:$0xff]
        %v1694 = vld [vmem:[#allocation2 + $0x3f2] sm:$0xff]
        %v1695 = vld [vmem:[#allocation2 + $0x402] sm:$0xff]
        %v1696 = vld [vmem:[#allocation2 + $0x412] sm:$0xff]
        %v1697 = vld [vmem:[#allocation2 + $0x422] sm:$0xff]
        %v1698 = vld [vmem:[#allocation2 + $0x432] sm:$0xff]
        %v1699 = vld [vmem:[#allocation2 + $0x462] sm:$0xff]
        %v1700 = vld [vmem:[#allocation2 + $0x472] sm:$0xff]
        %v1701 = vld [vmem:[#allocation2 + $0x482] sm:$0xff]
        %v1702 = vld [vmem:[#allocation2 + $0x492] sm:$0xff]
        %v1703 = vld [vmem:[#allocation2 + $0x4a2] sm:$0xff]
        %v1704 = vld [vmem:[#allocation2 + $0x4b2] sm:$0xff]
        %v1705 = vld [vmem:[#allocation2 + $0x4c2] sm:$0xff]
        %v1706 = vld [vmem:[#allocation2 + $0x4d2] sm:$0xff]
        %1771 = vrot.lane.b32.xlu0 %v1643, 64
        %v1772 = vpop.permute.xlu0 %1771
        %1773 = vrot.lane.b32.xlu0 %v1644, 64
        %v1774 = vpop.permute.xlu0 %1773
        %1775 = vrot.lane.b32.xlu0 %v1645, 64
        %v1776 = vpop.permute.xlu0 %1775
        %1777 = vrot.lane.b32.xlu0 %v1646, 64
        %v1778 = vpop.permute.xlu0 %1777
        %1779 = vrot.lane.b32.xlu0 %v1647, 64
        %v1780 = vpop.permute.xlu0 %1779
        %1781 = vrot.lane.b32.xlu0 %v1648, 64
        %v1782 = vpop.permute.xlu0 %1781
        %1783 = vrot.lane.b32.xlu0 %v1649, 64
        %v1784 = vpop.permute.xlu0 %1783
        %1785 = vrot.lane.b32.xlu0 %v1650, 64
        %v1786 = vpop.permute.xlu0 %1785
        %1787 = vrot.lane.b32.xlu0 %v1651, 64
        %v1788 = vpop.permute.xlu0 %1787
        %1789 = vrot.lane.b32.xlu0 %v1652, 64
        %v1790 = vpop.permute.xlu0 %1789
        %1791 = vrot.lane.b32.xlu0 %v1653, 64
        %v1792 = vpop.permute.xlu0 %1791
        %1793 = vrot.lane.b32.xlu0 %v1654, 64
        %v1794 = vpop.permute.xlu0 %1793
        %1795 = vrot.lane.b32.xlu0 %v1655, 64
        %v1796 = vpop.permute.xlu0 %1795
        %1797 = vrot.lane.b32.xlu0 %v1656, 64
        %v1798 = vpop.permute.xlu0 %1797
        %1799 = vrot.lane.b32.xlu0 %v1657, 64
        %v1800 = vpop.permute.xlu0 %1799
        %1801 = vrot.lane.b32.xlu0 %v1658, 64
        %v1802 = vpop.permute.xlu0 %1801
        %1803 = vrot.lane.b32.xlu0 %v1659, 64
        %v1804 = vpop.permute.xlu0 %1803
        %1805 = vrot.lane.b32.xlu0 %v1660, 64
        %v1806 = vpop.permute.xlu0 %1805
        %1807 = vrot.lane.b32.xlu0 %v1661, 64
        %v1808 = vpop.permute.xlu0 %1807
        %1809 = vrot.lane.b32.xlu0 %v1662, 64
        %v1810 = vpop.permute.xlu0 %1809
        %1811 = vrot.lane.b32.xlu0 %v1663, 64
        %v1812 = vpop.permute.xlu0 %1811
        %1813 = vrot.lane.b32.xlu0 %v1664, 64
        %v1814 = vpop.permute.xlu0 %1813
        %1815 = vrot.lane.b32.xlu0 %v1665, 64
        %v1816 = vpop.permute.xlu0 %1815
        %1817 = vrot.lane.b32.xlu0 %v1666, 64
        %v1818 = vpop.permute.xlu0 %1817
        %1819 = vrot.lane.b32.xlu0 %v1667, 64
        %v1820 = vpop.permute.xlu0 %1819
        %1821 = vrot.lane.b32.xlu0 %v1668, 64
        %v1822 = vpop.permute.xlu0 %1821
        %1823 = vrot.lane.b32.xlu0 %v1669, 64
        %v1824 = vpop.permute.xlu0 %1823
        %1825 = vrot.lane.b32.xlu0 %v1670, 64
        %v1826 = vpop.permute.xlu0 %1825
        %1827 = vrot.lane.b32.xlu0 %v1671, 64
        %v1828 = vpop.permute.xlu0 %1827
        %1829 = vrot.lane.b32.xlu0 %v1672, 64
        %v1830 = vpop.permute.xlu0 %1829
        %1831 = vrot.lane.b32.xlu0 %v1673, 64
        %v1832 = vpop.permute.xlu0 %1831
        %1833 = vrot.lane.b32.xlu0 %v1674, 64
        %v1834 = vpop.permute.xlu0 %1833
        %1835 = vrot.lane.b32.xlu0 %v1675, 64
        %v1836 = vpop.permute.xlu0 %1835
        %1837 = vrot.lane.b32.xlu0 %v1676, 64
        %v1838 = vpop.permute.xlu0 %1837
        %1839 = vrot.lane.b32.xlu0 %v1677, 64
        %v1840 = vpop.permute.xlu0 %1839
        %1841 = vrot.lane.b32.xlu0 %v1678, 64
        %v1842 = vpop.permute.xlu0 %1841
        %1843 = vrot.lane.b32.xlu0 %v1679, 64
        %v1844 = vpop.permute.xlu0 %1843
        %1845 = vrot.lane.b32.xlu0 %v1680, 64
        %v1846 = vpop.permute.xlu0 %1845
        %1847 = vrot.lane.b32.xlu0 %v1681, 64
        %v1848 = vpop.permute.xlu0 %1847
        %1849 = vrot.lane.b32.xlu0 %v1682, 64
        %v1850 = vpop.permute.xlu0 %1849
        %1851 = vrot.lane.b32.xlu0 %v1683, 64
        %v1852 = vpop.permute.xlu0 %1851
        %1853 = vrot.lane.b32.xlu0 %v1684, 64
        %v1854 = vpop.permute.xlu0 %1853
        %1855 = vrot.lane.b32.xlu0 %v1685, 64
        %v1856 = vpop.permute.xlu0 %1855
        %1857 = vrot.lane.b32.xlu0 %v1686, 64
        %v1858 = vpop.permute.xlu0 %1857
        %1859 = vrot.lane.b32.xlu0 %v1687, 64
        %v1860 = vpop.permute.xlu0 %1859
        %1861 = vrot.lane.b32.xlu0 %v1688, 64
        %v1862 = vpop.permute.xlu0 %1861
        %1863 = vrot.lane.b32.xlu0 %v1689, 64
        %v1864 = vpop.permute.xlu0 %1863
        %1865 = vrot.lane.b32.xlu0 %v1690, 64
        %v1866 = vpop.permute.xlu0 %1865
        %1867 = vrot.lane.b32.xlu0 %v1691, 64
        %v1868 = vpop.permute.xlu0 %1867
        %1869 = vrot.lane.b32.xlu0 %v1692, 64
        %v1870 = vpop.permute.xlu0 %1869
        %1871 = vrot.lane.b32.xlu0 %v1693, 64
        %v1872 = vpop.permute.xlu0 %1871
        %1873 = vrot.lane.b32.xlu0 %v1694, 64
        %v1874 = vpop.permute.xlu0 %1873
        %1875 = vrot.lane.b32.xlu0 %v1695, 64
        %v1876 = vpop.permute.xlu0 %1875
        %1877 = vrot.lane.b32.xlu0 %v1696, 64
        %v1878 = vpop.permute.xlu0 %1877
        %1879 = vrot.lane.b32.xlu0 %v1697, 64
        %v1880 = vpop.permute.xlu0 %1879
        %1881 = vrot.lane.b32.xlu0 %v1698, 64
        %v1882 = vpop.permute.xlu0 %1881
        %1883 = vrot.lane.b32.xlu0 %v1699, 64
        %v1884 = vpop.permute.xlu0 %1883
        %1885 = vrot.lane.b32.xlu0 %v1700, 64
        %v1886 = vpop.permute.xlu0 %1885
        %1887 = vrot.lane.b32.xlu0 %v1701, 64
        %v1888 = vpop.permute.xlu0 %1887
        %1889 = vrot.lane.b32.xlu0 %v1702, 64
        %v1890 = vpop.permute.xlu0 %1889
        %1891 = vrot.lane.b32.xlu0 %v1703, 64
        %v1892 = vpop.permute.xlu0 %1891
        %1893 = vrot.lane.b32.xlu0 %v1704, 64
        %v1894 = vpop.permute.xlu0 %1893
        %1895 = vrot.lane.b32.xlu0 %v1705, 64
        %v1896 = vpop.permute.xlu0 %1895
        %1897 = vrot.lane.b32.xlu0 %v1706, 64
        %v1898 = vpop.permute.xlu0 %1897
        %vm1963 = vcmask 785920
        %1964 = vst.msk [vmem:[#allocation3] sm:$0xff] %vm1963, %v1772
        %1965 = vst.msk [vmem:[#allocation3 + $0x18] sm:$0xff] %vm1963, %v1774
        %1966 = vst.msk [vmem:[#allocation3 + $0x30] sm:$0xff] %vm1963, %v1776
        %1967 = vst.msk [vmem:[#allocation3 + $0x48] sm:$0xff] %vm1963, %v1778
        %1968 = vst.msk [vmem:[#allocation3 + $0x60] sm:$0xff] %vm1963, %v1780
        %1969 = vst.msk [vmem:[#allocation3 + $0x78] sm:$0xff] %vm1963, %v1782
        %1970 = vst.msk [vmem:[#allocation3 + $0x90] sm:$0xff] %vm1963, %v1784
        %1971 = vst.msk [vmem:[#allocation3 + $0xa8] sm:$0xff] %vm1963, %v1786
        %1972 = vst.msk [vmem:[#allocation3 + $0xc0] sm:$0xff] %vm1963, %v1788
        %1973 = vst.msk [vmem:[#allocation3 + $0xd8] sm:$0xff] %vm1963, %v1790
        %1974 = vst.msk [vmem:[#allocation3 + $0xf0] sm:$0xff] %vm1963, %v1792
        %1975 = vst.msk [vmem:[#allocation3 + $0x108] sm:$0xff] %vm1963, %v1794
        %1976 = vst.msk [vmem:[#allocation3 + $0x120] sm:$0xff] %vm1963, %v1796
        %1977 = vst.msk [vmem:[#allocation3 + $0x138] sm:$0xff] %vm1963, %v1798
        %1978 = vst.msk [vmem:[#allocation3 + $0x150] sm:$0xff] %vm1963, %v1800
        %1979 = vst.msk [vmem:[#allocation3 + $0x168] sm:$0xff] %vm1963, %v1802
        %1980 = vst.msk [vmem:[#allocation3 + $0x180] sm:$0xff] %vm1963, %v1804
        %1981 = vst.msk [vmem:[#allocation3 + $0x198] sm:$0xff] %vm1963, %v1806
        %1982 = vst.msk [vmem:[#allocation3 + $0x1b0] sm:$0xff] %vm1963, %v1808
        %1983 = vst.msk [vmem:[#allocation3 + $0x1c8] sm:$0xff] %vm1963, %v1810
        %1984 = vst.msk [vmem:[#allocation3 + $0x1e0] sm:$0xff] %vm1963, %v1812
        %1985 = vst.msk [vmem:[#allocation3 + $0x1f8] sm:$0xff] %vm1963, %v1814
        %1986 = vst.msk [vmem:[#allocation3 + $0x210] sm:$0xff] %vm1963, %v1816
        %1987 = vst.msk [vmem:[#allocation3 + $0x228] sm:$0xff] %vm1963, %v1818
        %1988 = vst.msk [vmem:[#allocation3 + $0x240] sm:$0xff] %vm1963, %v1820
        %1989 = vst.msk [vmem:[#allocation3 + $0x258] sm:$0xff] %vm1963, %v1822
        %1990 = vst.msk [vmem:[#allocation3 + $0x270] sm:$0xff] %vm1963, %v1824
        %1991 = vst.msk [vmem:[#allocation3 + $0x288] sm:$0xff] %vm1963, %v1826
        %1992 = vst.msk [vmem:[#allocation3 + $0x2a0] sm:$0xff] %vm1963, %v1828
        %1993 = vst.msk [vmem:[#allocation3 + $0x2b8] sm:$0xff] %vm1963, %v1830
        %1994 = vst.msk [vmem:[#allocation3 + $0x2d0] sm:$0xff] %vm1963, %v1832
        %1995 = vst.msk [vmem:[#allocation3 + $0x2e8] sm:$0xff] %vm1963, %v1834
        %1996 = vst.msk [vmem:[#allocation3 + $0x300] sm:$0xff] %vm1963, %v1836
        %1997 = vst.msk [vmem:[#allocation3 + $0x318] sm:$0xff] %vm1963, %v1838
        %1998 = vst.msk [vmem:[#allocation3 + $0x330] sm:$0xff] %vm1963, %v1840
        %1999 = vst.msk [vmem:[#allocation3 + $0x348] sm:$0xff] %vm1963, %v1842
        %2000 = vst.msk [vmem:[#allocation3 + $0x360] sm:$0xff] %vm1963, %v1844
        %2001 = vst.msk [vmem:[#allocation3 + $0x378] sm:$0xff] %vm1963, %v1846
        %2002 = vst.msk [vmem:[#allocation3 + $0x390] sm:$0xff] %vm1963, %v1848
        %2003 = vst.msk [vmem:[#allocation3 + $0x3a8] sm:$0xff] %vm1963, %v1850
        %2004 = vst.msk [vmem:[#allocation3 + $0x3c0] sm:$0xff] %vm1963, %v1852
        %2005 = vst.msk [vmem:[#allocation3 + $0x3d8] sm:$0xff] %vm1963, %v1854
        %2006 = vst.msk [vmem:[#allocation3 + $0x3f0] sm:$0xff] %vm1963, %v1856
        %2007 = vst.msk [vmem:[#allocation3 + $0x408] sm:$0xff] %vm1963, %v1858
        %2008 = vst.msk [vmem:[#allocation3 + $0x420] sm:$0xff] %vm1963, %v1860
        %2009 = vst.msk [vmem:[#allocation3 + $0x438] sm:$0xff] %vm1963, %v1862
        %2010 = vst.msk [vmem:[#allocation3 + $0x450] sm:$0xff] %vm1963, %v1864
        %2011 = vst.msk [vmem:[#allocation3 + $0x468] sm:$0xff] %vm1963, %v1866
        %2012 = vst.msk [vmem:[#allocation3 + $0x480] sm:$0xff] %vm1963, %v1868
        %2013 = vst.msk [vmem:[#allocation3 + $0x498] sm:$0xff] %vm1963, %v1870
        %2014 = vst.msk [vmem:[#allocation3 + $0x4b0] sm:$0xff] %vm1963, %v1872
        %2015 = vst.msk [vmem:[#allocation3 + $0x4c8] sm:$0xff] %vm1963, %v1874
        %2016 = vst.msk [vmem:[#allocation3 + $0x4e0] sm:$0xff] %vm1963, %v1876
        %2017 = vst.msk [vmem:[#allocation3 + $0x4f8] sm:$0xff] %vm1963, %v1878
        %2018 = vst.msk [vmem:[#allocation3 + $0x510] sm:$0xff] %vm1963, %v1880
        %2019 = vst.msk [vmem:[#allocation3 + $0x528] sm:$0xff] %vm1963, %v1882
        %2020 = vst.msk [vmem:[#allocation3 + $0x540] sm:$0xff] %vm1963, %v1884
        %2021 = vst.msk [vmem:[#allocation3 + $0x558] sm:$0xff] %vm1963, %v1886
        %2022 = vst.msk [vmem:[#allocation3 + $0x570] sm:$0xff] %vm1963, %v1888
        %2023 = vst.msk [vmem:[#allocation3 + $0x588] sm:$0xff] %vm1963, %v1890
        %2024 = vst.msk [vmem:[#allocation3 + $0x5a0] sm:$0xff] %vm1963, %v1892
        %2025 = vst.msk [vmem:[#allocation3 + $0x5b8] sm:$0xff] %vm1963, %v1894
        %2026 = vst.msk [vmem:[#allocation3 + $0x5d0] sm:$0xff] %vm1963, %v1896
        %2027 = vst.msk [vmem:[#allocation3 + $0x5e8] sm:$0xff] %vm1963, %v1898
        %v2028 = vld [vmem:[%s335] sm:$0xff]
        %v2029 = vld [vmem:[%s335 + $0x10] sm:$0xff]
        %v2030 = vld [vmem:[%s335 + $0x20] sm:$0xff]
        %v2031 = vld [vmem:[%s335 + $0x30] sm:$0xff]
        %v2032 = vld [vmem:[%s335 + $0x40] sm:$0xff]
        %v2033 = vld [vmem:[%s335 + $0x50] sm:$0xff]
        %v2034 = vld [vmem:[%s335 + $0x60] sm:$0xff]
        %v2035 = vld [vmem:[%s335 + $0x70] sm:$0xff]
        %v2036 = vld [vmem:[%s335 + $0xa0] sm:$0xff]
        %v2037 = vld [vmem:[%s335 + $0xb0] sm:$0xff]
        %v2038 = vld [vmem:[%s335 + $0xc0] sm:$0xff]
        %v2039 = vld [vmem:[%s335 + $0xd0] sm:$0xff]
        %v2040 = vld [vmem:[%s335 + $0xe0] sm:$0xff]
        %v2041 = vld [vmem:[%s335 + $0xf0] sm:$0xff]
        %v2042 = vld [vmem:[%s335 + $0x100] sm:$0xff]
        %v2043 = vld [vmem:[%s335 + $0x110] sm:$0xff]
        %v2044 = vld [vmem:[%s335 + $0x140] sm:$0xff]
        %v2045 = vld [vmem:[%s335 + $0x150] sm:$0xff]
        %v2046 = vld [vmem:[%s335 + $0x160] sm:$0xff]
        %v2047 = vld [vmem:[%s335 + $0x170] sm:$0xff]
        %v2048 = vld [vmem:[%s335 + $0x180] sm:$0xff]
        %v2049 = vld [vmem:[%s335 + $0x190] sm:$0xff]
        %v2050 = vld [vmem:[%s335 + $0x1a0] sm:$0xff]
        %v2051 = vld [vmem:[%s335 + $0x1b0] sm:$0xff]
        %v2052 = vld [vmem:[%s335 + $0x1e0] sm:$0xff]
        %v2053 = vld [vmem:[%s335 + $0x1f0] sm:$0xff]
        %v2054 = vld [vmem:[%s335 + $0x200] sm:$0xff]
        %v2055 = vld [vmem:[%s335 + $0x210] sm:$0xff]
        %v2056 = vld [vmem:[%s335 + $0x220] sm:$0xff]
        %v2057 = vld [vmem:[%s335 + $0x230] sm:$0xff]
        %v2058 = vld [vmem:[%s335 + $0x240] sm:$0xff]
        %v2059 = vld [vmem:[%s335 + $0x250] sm:$0xff]
        %v2060 = vld [vmem:[%s335 + $0x280] sm:$0xff]
        %v2061 = vld [vmem:[%s335 + $0x290] sm:$0xff]
        %v2062 = vld [vmem:[%s335 + $0x2a0] sm:$0xff]
        %v2063 = vld [vmem:[%s335 + $0x2b0] sm:$0xff]
        %v2064 = vld [vmem:[%s335 + $0x2c0] sm:$0xff]
        %v2065 = vld [vmem:[%s335 + $0x2d0] sm:$0xff]
        %v2066 = vld [vmem:[%s335 + $0x2e0] sm:$0xff]
        %v2067 = vld [vmem:[%s335 + $0x2f0] sm:$0xff]
        %v2068 = vld [vmem:[%s335 + $0x320] sm:$0xff]
        %v2069 = vld [vmem:[%s335 + $0x330] sm:$0xff]
        %v2070 = vld [vmem:[%s335 + $0x340] sm:$0xff]
        %v2071 = vld [vmem:[%s335 + $0x350] sm:$0xff]
        %v2072 = vld [vmem:[%s335 + $0x360] sm:$0xff]
        %v2073 = vld [vmem:[%s335 + $0x370] sm:$0xff]
        %v2074 = vld [vmem:[%s335 + $0x380] sm:$0xff]
        %v2075 = vld [vmem:[%s335 + $0x390] sm:$0xff]
        %v2076 = vld [vmem:[%s335 + $0x3c0] sm:$0xff]
        %v2077 = vld [vmem:[%s335 + $0x3d0] sm:$0xff]
        %v2078 = vld [vmem:[%s335 + $0x3e0] sm:$0xff]
        %v2079 = vld [vmem:[%s335 + $0x3f0] sm:$0xff]
        %v2080 = vld [vmem:[%s335 + $0x400] sm:$0xff]
        %v2081 = vld [vmem:[%s335 + $0x410] sm:$0xff]
        %v2082 = vld [vmem:[%s335 + $0x420] sm:$0xff]
        %v2083 = vld [vmem:[%s335 + $0x430] sm:$0xff]
        %v2084 = vld [vmem:[%s335 + $0x460] sm:$0xff]
        %v2085 = vld [vmem:[%s335 + $0x470] sm:$0xff]
        %v2086 = vld [vmem:[%s335 + $0x480] sm:$0xff]
        %v2087 = vld [vmem:[%s335 + $0x490] sm:$0xff]
        %v2088 = vld [vmem:[%s335 + $0x4a0] sm:$0xff]
        %v2089 = vld [vmem:[%s335 + $0x4b0] sm:$0xff]
        %v2090 = vld [vmem:[%s335 + $0x4c0] sm:$0xff]
        %v2091 = vld [vmem:[%s335 + $0x4d0] sm:$0xff]
        %2156 = vrot.lane.b32.xlu0 %v2028, 96
        %v2157 = vpop.permute.xlu0 %2156
        %2158 = vrot.lane.b32.xlu0 %v2029, 96
        %v2159 = vpop.permute.xlu0 %2158
        %2160 = vrot.lane.b32.xlu0 %v2030, 96
        %v2161 = vpop.permute.xlu0 %2160
        %2162 = vrot.lane.b32.xlu0 %v2031, 96
        %v2163 = vpop.permute.xlu0 %2162
        %2164 = vrot.lane.b32.xlu0 %v2032, 96
        %v2165 = vpop.permute.xlu0 %2164
        %2166 = vrot.lane.b32.xlu0 %v2033, 96
        %v2167 = vpop.permute.xlu0 %2166
        %2168 = vrot.lane.b32.xlu0 %v2034, 96
        %v2169 = vpop.permute.xlu0 %2168
        %2170 = vrot.lane.b32.xlu0 %v2035, 96
        %v2171 = vpop.permute.xlu0 %2170
        %2172 = vrot.lane.b32.xlu0 %v2036, 96
        %v2173 = vpop.permute.xlu0 %2172
        %2174 = vrot.lane.b32.xlu0 %v2037, 96
        %v2175 = vpop.permute.xlu0 %2174
        %2176 = vrot.lane.b32.xlu0 %v2038, 96
        %v2177 = vpop.permute.xlu0 %2176
        %2178 = vrot.lane.b32.xlu0 %v2039, 96
        %v2179 = vpop.permute.xlu0 %2178
        %2180 = vrot.lane.b32.xlu0 %v2040, 96
        %v2181 = vpop.permute.xlu0 %2180
        %2182 = vrot.lane.b32.xlu0 %v2041, 96
        %v2183 = vpop.permute.xlu0 %2182
        %2184 = vrot.lane.b32.xlu0 %v2042, 96
        %v2185 = vpop.permute.xlu0 %2184
        %2186 = vrot.lane.b32.xlu0 %v2043, 96
        %v2187 = vpop.permute.xlu0 %2186
        %2188 = vrot.lane.b32.xlu0 %v2044, 96
        %v2189 = vpop.permute.xlu0 %2188
        %2190 = vrot.lane.b32.xlu0 %v2045, 96
        %v2191 = vpop.permute.xlu0 %2190
        %2192 = vrot.lane.b32.xlu0 %v2046, 96
        %v2193 = vpop.permute.xlu0 %2192
        %2194 = vrot.lane.b32.xlu0 %v2047, 96
        %v2195 = vpop.permute.xlu0 %2194
        %2196 = vrot.lane.b32.xlu0 %v2048, 96
        %v2197 = vpop.permute.xlu0 %2196
        %2198 = vrot.lane.b32.xlu0 %v2049, 96
        %v2199 = vpop.permute.xlu0 %2198
        %2200 = vrot.lane.b32.xlu0 %v2050, 96
        %v2201 = vpop.permute.xlu0 %2200
        %2202 = vrot.lane.b32.xlu0 %v2051, 96
        %v2203 = vpop.permute.xlu0 %2202
        %2204 = vrot.lane.b32.xlu0 %v2052, 96
        %v2205 = vpop.permute.xlu0 %2204
        %2206 = vrot.lane.b32.xlu0 %v2053, 96
        %v2207 = vpop.permute.xlu0 %2206
        %2208 = vrot.lane.b32.xlu0 %v2054, 96
        %v2209 = vpop.permute.xlu0 %2208
        %2210 = vrot.lane.b32.xlu0 %v2055, 96
        %v2211 = vpop.permute.xlu0 %2210
        %2212 = vrot.lane.b32.xlu0 %v2056, 96
        %v2213 = vpop.permute.xlu0 %2212
        %2214 = vrot.lane.b32.xlu0 %v2057, 96
        %v2215 = vpop.permute.xlu0 %2214
        %2216 = vrot.lane.b32.xlu0 %v2058, 96
        %v2217 = vpop.permute.xlu0 %2216
        %2218 = vrot.lane.b32.xlu0 %v2059, 96
        %v2219 = vpop.permute.xlu0 %2218
        %2220 = vrot.lane.b32.xlu0 %v2060, 96
        %v2221 = vpop.permute.xlu0 %2220
        %2222 = vrot.lane.b32.xlu0 %v2061, 96
        %v2223 = vpop.permute.xlu0 %2222
        %2224 = vrot.lane.b32.xlu0 %v2062, 96
        %v2225 = vpop.permute.xlu0 %2224
        %2226 = vrot.lane.b32.xlu0 %v2063, 96
        %v2227 = vpop.permute.xlu0 %2226
        %2228 = vrot.lane.b32.xlu0 %v2064, 96
        %v2229 = vpop.permute.xlu0 %2228
        %2230 = vrot.lane.b32.xlu0 %v2065, 96
        %v2231 = vpop.permute.xlu0 %2230
        %2232 = vrot.lane.b32.xlu0 %v2066, 96
        %v2233 = vpop.permute.xlu0 %2232
        %2234 = vrot.lane.b32.xlu0 %v2067, 96
        %v2235 = vpop.permute.xlu0 %2234
        %2236 = vrot.lane.b32.xlu0 %v2068, 96
        %v2237 = vpop.permute.xlu0 %2236
        %2238 = vrot.lane.b32.xlu0 %v2069, 96
        %v2239 = vpop.permute.xlu0 %2238
        %2240 = vrot.lane.b32.xlu0 %v2070, 96
        %v2241 = vpop.permute.xlu0 %2240
        %2242 = vrot.lane.b32.xlu0 %v2071, 96
        %v2243 = vpop.permute.xlu0 %2242
        %2244 = vrot.lane.b32.xlu0 %v2072, 96
        %v2245 = vpop.permute.xlu0 %2244
        %2246 = vrot.lane.b32.xlu0 %v2073, 96
        %v2247 = vpop.permute.xlu0 %2246
        %2248 = vrot.lane.b32.xlu0 %v2074, 96
        %v2249 = vpop.permute.xlu0 %2248
        %2250 = vrot.lane.b32.xlu0 %v2075, 96
        %v2251 = vpop.permute.xlu0 %2250
        %2252 = vrot.lane.b32.xlu0 %v2076, 96
        %v2253 = vpop.permute.xlu0 %2252
        %2254 = vrot.lane.b32.xlu0 %v2077, 96
        %v2255 = vpop.permute.xlu0 %2254
        %2256 = vrot.lane.b32.xlu0 %v2078, 96
        %v2257 = vpop.permute.xlu0 %2256
        %2258 = vrot.lane.b32.xlu0 %v2079, 96
        %v2259 = vpop.permute.xlu0 %2258
        %2260 = vrot.lane.b32.xlu0 %v2080, 96
        %v2261 = vpop.permute.xlu0 %2260
        %2262 = vrot.lane.b32.xlu0 %v2081, 96
        %v2263 = vpop.permute.xlu0 %2262
        %2264 = vrot.lane.b32.xlu0 %v2082, 96
        %v2265 = vpop.permute.xlu0 %2264
        %2266 = vrot.lane.b32.xlu0 %v2083, 96
        %v2267 = vpop.permute.xlu0 %2266
        %2268 = vrot.lane.b32.xlu0 %v2084, 96
        %v2269 = vpop.permute.xlu0 %2268
        %2270 = vrot.lane.b32.xlu0 %v2085, 96
        %v2271 = vpop.permute.xlu0 %2270
        %2272 = vrot.lane.b32.xlu0 %v2086, 96
        %v2273 = vpop.permute.xlu0 %2272
        %2274 = vrot.lane.b32.xlu0 %v2087, 96
        %v2275 = vpop.permute.xlu0 %2274
        %2276 = vrot.lane.b32.xlu0 %v2088, 96
        %v2277 = vpop.permute.xlu0 %2276
        %2278 = vrot.lane.b32.xlu0 %v2089, 96
        %v2279 = vpop.permute.xlu0 %2278
        %2280 = vrot.lane.b32.xlu0 %v2090, 96
        %v2281 = vpop.permute.xlu0 %2280
        %2282 = vrot.lane.b32.xlu0 %v2091, 96
        %v2283 = vpop.permute.xlu0 %2282
        %vm2348 = vcmask 1048320
        %2349 = vst.msk [vmem:[#allocation3] sm:$0xff] %vm2348, %v2157
        %2350 = vst.msk [vmem:[#allocation3 + $0x18] sm:$0xff] %vm2348, %v2159
        %2351 = vst.msk [vmem:[#allocation3 + $0x30] sm:$0xff] %vm2348, %v2161
        %2352 = vst.msk [vmem:[#allocation3 + $0x48] sm:$0xff] %vm2348, %v2163
        %2353 = vst.msk [vmem:[#allocation3 + $0x60] sm:$0xff] %vm2348, %v2165
        %2354 = vst.msk [vmem:[#allocation3 + $0x78] sm:$0xff] %vm2348, %v2167
        %2355 = vst.msk [vmem:[#allocation3 + $0x90] sm:$0xff] %vm2348, %v2169
        %2356 = vst.msk [vmem:[#allocation3 + $0xa8] sm:$0xff] %vm2348, %v2171
        %2357 = vst.msk [vmem:[#allocation3 + $0xc0] sm:$0xff] %vm2348, %v2173
        %2358 = vst.msk [vmem:[#allocation3 + $0xd8] sm:$0xff] %vm2348, %v2175
        %2359 = vst.msk [vmem:[#allocation3 + $0xf0] sm:$0xff] %vm2348, %v2177
        %2360 = vst.msk [vmem:[#allocation3 + $0x108] sm:$0xff] %vm2348, %v2179
        %2361 = vst.msk [vmem:[#allocation3 + $0x120] sm:$0xff] %vm2348, %v2181
        %2362 = vst.msk [vmem:[#allocation3 + $0x138] sm:$0xff] %vm2348, %v2183
        %2363 = vst.msk [vmem:[#allocation3 + $0x150] sm:$0xff] %vm2348, %v2185
        %2364 = vst.msk [vmem:[#allocation3 + $0x168] sm:$0xff] %vm2348, %v2187
        %2365 = vst.msk [vmem:[#allocation3 + $0x180] sm:$0xff] %vm2348, %v2189
        %2366 = vst.msk [vmem:[#allocation3 + $0x198] sm:$0xff] %vm2348, %v2191
        %2367 = vst.msk [vmem:[#allocation3 + $0x1b0] sm:$0xff] %vm2348, %v2193
        %2368 = vst.msk [vmem:[#allocation3 + $0x1c8] sm:$0xff] %vm2348, %v2195
        %2369 = vst.msk [vmem:[#allocation3 + $0x1e0] sm:$0xff] %vm2348, %v2197
        %2370 = vst.msk [vmem:[#allocation3 + $0x1f8] sm:$0xff] %vm2348, %v2199
        %2371 = vst.msk [vmem:[#allocation3 + $0x210] sm:$0xff] %vm2348, %v2201
        %2372 = vst.msk [vmem:[#allocation3 + $0x228] sm:$0xff] %vm2348, %v2203
        %2373 = vst.msk [vmem:[#allocation3 + $0x240] sm:$0xff] %vm2348, %v2205
        %2374 = vst.msk [vmem:[#allocation3 + $0x258] sm:$0xff] %vm2348, %v2207
        %2375 = vst.msk [vmem:[#allocation3 + $0x270] sm:$0xff] %vm2348, %v2209
        %2376 = vst.msk [vmem:[#allocation3 + $0x288] sm:$0xff] %vm2348, %v2211
        %2377 = vst.msk [vmem:[#allocation3 + $0x2a0] sm:$0xff] %vm2348, %v2213
        %2378 = vst.msk [vmem:[#allocation3 + $0x2b8] sm:$0xff] %vm2348, %v2215
        %2379 = vst.msk [vmem:[#allocation3 + $0x2d0] sm:$0xff] %vm2348, %v2217
        %2380 = vst.msk [vmem:[#allocation3 + $0x2e8] sm:$0xff] %vm2348, %v2219
        %2381 = vst.msk [vmem:[#allocation3 + $0x300] sm:$0xff] %vm2348, %v2221
        %2382 = vst.msk [vmem:[#allocation3 + $0x318] sm:$0xff] %vm2348, %v2223
        %2383 = vst.msk [vmem:[#allocation3 + $0x330] sm:$0xff] %vm2348, %v2225
        %2384 = vst.msk [vmem:[#allocation3 + $0x348] sm:$0xff] %vm2348, %v2227
        %2385 = vst.msk [vmem:[#allocation3 + $0x360] sm:$0xff] %vm2348, %v2229
        %2386 = vst.msk [vmem:[#allocation3 + $0x378] sm:$0xff] %vm2348, %v2231
        %2387 = vst.msk [vmem:[#allocation3 + $0x390] sm:$0xff] %vm2348, %v2233
        %2388 = vst.msk [vmem:[#allocation3 + $0x3a8] sm:$0xff] %vm2348, %v2235
        %2389 = vst.msk [vmem:[#allocation3 + $0x3c0] sm:$0xff] %vm2348, %v2237
        %2390 = vst.msk [vmem:[#allocation3 + $0x3d8] sm:$0xff] %vm2348, %v2239
        %2391 = vst.msk [vmem:[#allocation3 + $0x3f0] sm:$0xff] %vm2348, %v2241
        %2392 = vst.msk [vmem:[#allocation3 + $0x408] sm:$0xff] %vm2348, %v2243
        %2393 = vst.msk [vmem:[#allocation3 + $0x420] sm:$0xff] %vm2348, %v2245
        %2394 = vst.msk [vmem:[#allocation3 + $0x438] sm:$0xff] %vm2348, %v2247
        %2395 = vst.msk [vmem:[#allocation3 + $0x450] sm:$0xff] %vm2348, %v2249
        %2396 = vst.msk [vmem:[#allocation3 + $0x468] sm:$0xff] %vm2348, %v2251
        %2397 = vst.msk [vmem:[#allocation3 + $0x480] sm:$0xff] %vm2348, %v2253
        %2398 = vst.msk [vmem:[#allocation3 + $0x498] sm:$0xff] %vm2348, %v2255
        %2399 = vst.msk [vmem:[#allocation3 + $0x4b0] sm:$0xff] %vm2348, %v2257
        %2400 = vst.msk [vmem:[#allocation3 + $0x4c8] sm:$0xff] %vm2348, %v2259
        %2401 = vst.msk [vmem:[#allocation3 + $0x4e0] sm:$0xff] %vm2348, %v2261
        %2402 = vst.msk [vmem:[#allocation3 + $0x4f8] sm:$0xff] %vm2348, %v2263
        %2403 = vst.msk [vmem:[#allocation3 + $0x510] sm:$0xff] %vm2348, %v2265
        %2404 = vst.msk [vmem:[#allocation3 + $0x528] sm:$0xff] %vm2348, %v2267
        %2405 = vst.msk [vmem:[#allocation3 + $0x540] sm:$0xff] %vm2348, %v2269
        %2406 = vst.msk [vmem:[#allocation3 + $0x558] sm:$0xff] %vm2348, %v2271
        %2407 = vst.msk [vmem:[#allocation3 + $0x570] sm:$0xff] %vm2348, %v2273
        %2408 = vst.msk [vmem:[#allocation3 + $0x588] sm:$0xff] %vm2348, %v2275
        %2409 = vst.msk [vmem:[#allocation3 + $0x5a0] sm:$0xff] %vm2348, %v2277
        %2410 = vst.msk [vmem:[#allocation3 + $0x5b8] sm:$0xff] %vm2348, %v2279
        %2411 = vst.msk [vmem:[#allocation3 + $0x5d0] sm:$0xff] %vm2348, %v2281
        %2412 = vst.msk [vmem:[#allocation3 + $0x5e8] sm:$0xff] %vm2348, %v2283
        %v2413 = vld [vmem:[%s335 + $0x1] sm:$0xff]
        %v2414 = vld [vmem:[%s335 + $0x11] sm:$0xff]
        %v2415 = vld [vmem:[%s335 + $0x21] sm:$0xff]
        %v2416 = vld [vmem:[%s335 + $0x31] sm:$0xff]
        %v2417 = vld [vmem:[%s335 + $0x41] sm:$0xff]
        %v2418 = vld [vmem:[%s335 + $0x51] sm:$0xff]
        %v2419 = vld [vmem:[%s335 + $0x61] sm:$0xff]
        %v2420 = vld [vmem:[%s335 + $0x71] sm:$0xff]
        %v2421 = vld [vmem:[%s335 + $0xa1] sm:$0xff]
        %v2422 = vld [vmem:[%s335 + $0xb1] sm:$0xff]
        %v2423 = vld [vmem:[%s335 + $0xc1] sm:$0xff]
        %v2424 = vld [vmem:[%s335 + $0xd1] sm:$0xff]
        %v2425 = vld [vmem:[%s335 + $0xe1] sm:$0xff]
        %v2426 = vld [vmem:[%s335 + $0xf1] sm:$0xff]
        %v2427 = vld [vmem:[%s335 + $0x101] sm:$0xff]
        %v2428 = vld [vmem:[%s335 + $0x111] sm:$0xff]
        %v2429 = vld [vmem:[%s335 + $0x141] sm:$0xff]
        %v2430 = vld [vmem:[%s335 + $0x151] sm:$0xff]
        %v2431 = vld [vmem:[%s335 + $0x161] sm:$0xff]
        %v2432 = vld [vmem:[%s335 + $0x171] sm:$0xff]
        %v2433 = vld [vmem:[%s335 + $0x181] sm:$0xff]
        %v2434 = vld [vmem:[%s335 + $0x191] sm:$0xff]
        %v2435 = vld [vmem:[%s335 + $0x1a1] sm:$0xff]
        %v2436 = vld [vmem:[%s335 + $0x1b1] sm:$0xff]
        %v2437 = vld [vmem:[%s335 + $0x1e1] sm:$0xff]
        %v2438 = vld [vmem:[%s335 + $0x1f1] sm:$0xff]
        %v2439 = vld [vmem:[%s335 + $0x201] sm:$0xff]
        %v2440 = vld [vmem:[%s335 + $0x211] sm:$0xff]
        %v2441 = vld [vmem:[%s335 + $0x221] sm:$0xff]
        %v2442 = vld [vmem:[%s335 + $0x231] sm:$0xff]
        %v2443 = vld [vmem:[%s335 + $0x241] sm:$0xff]
        %v2444 = vld [vmem:[%s335 + $0x251] sm:$0xff]
        %v2445 = vld [vmem:[%s335 + $0x281] sm:$0xff]
        %v2446 = vld [vmem:[%s335 + $0x291] sm:$0xff]
        %v2447 = vld [vmem:[%s335 + $0x2a1] sm:$0xff]
        %v2448 = vld [vmem:[%s335 + $0x2b1] sm:$0xff]
        %v2449 = vld [vmem:[%s335 + $0x2c1] sm:$0xff]
        %v2450 = vld [vmem:[%s335 + $0x2d1] sm:$0xff]
        %v2451 = vld [vmem:[%s335 + $0x2e1] sm:$0xff]
        %v2452 = vld [vmem:[%s335 + $0x2f1] sm:$0xff]
        %v2453 = vld [vmem:[%s335 + $0x321] sm:$0xff]
        %v2454 = vld [vmem:[%s335 + $0x331] sm:$0xff]
        %v2455 = vld [vmem:[%s335 + $0x341] sm:$0xff]
        %v2456 = vld [vmem:[%s335 + $0x351] sm:$0xff]
        %v2457 = vld [vmem:[%s335 + $0x361] sm:$0xff]
        %v2458 = vld [vmem:[%s335 + $0x371] sm:$0xff]
        %v2459 = vld [vmem:[%s335 + $0x381] sm:$0xff]
        %v2460 = vld [vmem:[%s335 + $0x391] sm:$0xff]
        %v2461 = vld [vmem:[%s335 + $0x3c1] sm:$0xff]
        %v2462 = vld [vmem:[%s335 + $0x3d1] sm:$0xff]
        %v2463 = vld [vmem:[%s335 + $0x3e1] sm:$0xff]
        %v2464 = vld [vmem:[%s335 + $0x3f1] sm:$0xff]
        %v2465 = vld [vmem:[%s335 + $0x401] sm:$0xff]
        %v2466 = vld [vmem:[%s335 + $0x411] sm:$0xff]
        %v2467 = vld [vmem:[%s335 + $0x421] sm:$0xff]
        %v2468 = vld [vmem:[%s335 + $0x431] sm:$0xff]
        %v2469 = vld [vmem:[%s335 + $0x461] sm:$0xff]
        %v2470 = vld [vmem:[%s335 + $0x471] sm:$0xff]
        %v2471 = vld [vmem:[%s335 + $0x481] sm:$0xff]
        %v2472 = vld [vmem:[%s335 + $0x491] sm:$0xff]
        %v2473 = vld [vmem:[%s335 + $0x4a1] sm:$0xff]
        %v2474 = vld [vmem:[%s335 + $0x4b1] sm:$0xff]
        %v2475 = vld [vmem:[%s335 + $0x4c1] sm:$0xff]
        %v2476 = vld [vmem:[%s335 + $0x4d1] sm:$0xff]
        %2477 = vst.msk [vmem:[#allocation3 + $0x8] sm:$0xff] %vm300, %v2413
        %2478 = vst.msk [vmem:[#allocation3 + $0x20] sm:$0xff] %vm300, %v2414
        %2479 = vst.msk [vmem:[#allocation3 + $0x38] sm:$0xff] %vm300, %v2415
        %2480 = vst.msk [vmem:[#allocation3 + $0x50] sm:$0xff] %vm300, %v2416
        %2481 = vst.msk [vmem:[#allocation3 + $0x68] sm:$0xff] %vm300, %v2417
        %2482 = vst.msk [vmem:[#allocation3 + $0x80] sm:$0xff] %vm300, %v2418
        %2483 = vst.msk [vmem:[#allocation3 + $0x98] sm:$0xff] %vm300, %v2419
        %2484 = vst.msk [vmem:[#allocation3 + $0xb0] sm:$0xff] %vm300, %v2420
        %2485 = vst.msk [vmem:[#allocation3 + $0xc8] sm:$0xff] %vm300, %v2421
        %2486 = vst.msk [vmem:[#allocation3 + $0xe0] sm:$0xff] %vm300, %v2422
        %2487 = vst.msk [vmem:[#allocation3 + $0xf8] sm:$0xff] %vm300, %v2423
        %2488 = vst.msk [vmem:[#allocation3 + $0x110] sm:$0xff] %vm300, %v2424
        %2489 = vst.msk [vmem:[#allocation3 + $0x128] sm:$0xff] %vm300, %v2425
        %2490 = vst.msk [vmem:[#allocation3 + $0x140] sm:$0xff] %vm300, %v2426
        %2491 = vst.msk [vmem:[#allocation3 + $0x158] sm:$0xff] %vm300, %v2427
        %2492 = vst.msk [vmem:[#allocation3 + $0x170] sm:$0xff] %vm300, %v2428
        %2493 = vst.msk [vmem:[#allocation3 + $0x188] sm:$0xff] %vm300, %v2429
        %2494 = vst.msk [vmem:[#allocation3 + $0x1a0] sm:$0xff] %vm300, %v2430
        %2495 = vst.msk [vmem:[#allocation3 + $0x1b8] sm:$0xff] %vm300, %v2431
        %2496 = vst.msk [vmem:[#allocation3 + $0x1d0] sm:$0xff] %vm300, %v2432
        %2497 = vst.msk [vmem:[#allocation3 + $0x1e8] sm:$0xff] %vm300, %v2433
        %2498 = vst.msk [vmem:[#allocation3 + $0x200] sm:$0xff] %vm300, %v2434
        %2499 = vst.msk [vmem:[#allocation3 + $0x218] sm:$0xff] %vm300, %v2435
        %2500 = vst.msk [vmem:[#allocation3 + $0x230] sm:$0xff] %vm300, %v2436
        %2501 = vst.msk [vmem:[#allocation3 + $0x248] sm:$0xff] %vm300, %v2437
        %2502 = vst.msk [vmem:[#allocation3 + $0x260] sm:$0xff] %vm300, %v2438
        %2503 = vst.msk [vmem:[#allocation3 + $0x278] sm:$0xff] %vm300, %v2439
        %2504 = vst.msk [vmem:[#allocation3 + $0x290] sm:$0xff] %vm300, %v2440
        %2505 = vst.msk [vmem:[#allocation3 + $0x2a8] sm:$0xff] %vm300, %v2441
        %2506 = vst.msk [vmem:[#allocation3 + $0x2c0] sm:$0xff] %vm300, %v2442
        %2507 = vst.msk [vmem:[#allocation3 + $0x2d8] sm:$0xff] %vm300, %v2443
        %2508 = vst.msk [vmem:[#allocation3 + $0x2f0] sm:$0xff] %vm300, %v2444
        %2509 = vst.msk [vmem:[#allocation3 + $0x308] sm:$0xff] %vm300, %v2445
        %2510 = vst.msk [vmem:[#allocation3 + $0x320] sm:$0xff] %vm300, %v2446
        %2511 = vst.msk [vmem:[#allocation3 + $0x338] sm:$0xff] %vm300, %v2447
        %2512 = vst.msk [vmem:[#allocation3 + $0x350] sm:$0xff] %vm300, %v2448
        %2513 = vst.msk [vmem:[#allocation3 + $0x368] sm:$0xff] %vm300, %v2449
        %2514 = vst.msk [vmem:[#allocation3 + $0x380] sm:$0xff] %vm300, %v2450
        %2515 = vst.msk [vmem:[#allocation3 + $0x398] sm:$0xff] %vm300, %v2451
        %2516 = vst.msk [vmem:[#allocation3 + $0x3b0] sm:$0xff] %vm300, %v2452
        %2517 = vst.msk [vmem:[#allocation3 + $0x3c8] sm:$0xff] %vm300, %v2453
        %2518 = vst.msk [vmem:[#allocation3 + $0x3e0] sm:$0xff] %vm300, %v2454
        %2519 = vst.msk [vmem:[#allocation3 + $0x3f8] sm:$0xff] %vm300, %v2455
        %2520 = vst.msk [vmem:[#allocation3 + $0x410] sm:$0xff] %vm300, %v2456
        %2521 = vst.msk [vmem:[#allocation3 + $0x428] sm:$0xff] %vm300, %v2457
        %2522 = vst.msk [vmem:[#allocation3 + $0x440] sm:$0xff] %vm300, %v2458
        %2523 = vst.msk [vmem:[#allocation3 + $0x458] sm:$0xff] %vm300, %v2459
        %2524 = vst.msk [vmem:[#allocation3 + $0x470] sm:$0xff] %vm300, %v2460
        %2525 = vst.msk [vmem:[#allocation3 + $0x488] sm:$0xff] %vm300, %v2461
        %2526 = vst.msk [vmem:[#allocation3 + $0x4a0] sm:$0xff] %vm300, %v2462
        %2527 = vst.msk [vmem:[#allocation3 + $0x4b8] sm:$0xff] %vm300, %v2463
        %2528 = vst.msk [vmem:[#allocation3 + $0x4d0] sm:$0xff] %vm300, %v2464
        %2529 = vst.msk [vmem:[#allocation3 + $0x4e8] sm:$0xff] %vm300, %v2465
        %2530 = vst.msk [vmem:[#allocation3 + $0x500] sm:$0xff] %vm300, %v2466
        %2531 = vst.msk [vmem:[#allocation3 + $0x518] sm:$0xff] %vm300, %v2467
        %2532 = vst.msk [vmem:[#allocation3 + $0x530] sm:$0xff] %vm300, %v2468
        %2533 = vst.msk [vmem:[#allocation3 + $0x548] sm:$0xff] %vm300, %v2469
        %2534 = vst.msk [vmem:[#allocation3 + $0x560] sm:$0xff] %vm300, %v2470
        %2535 = vst.msk [vmem:[#allocation3 + $0x578] sm:$0xff] %vm300, %v2471
        %2536 = vst.msk [vmem:[#allocation3 + $0x590] sm:$0xff] %vm300, %v2472
        %2537 = vst.msk [vmem:[#allocation3 + $0x5a8] sm:$0xff] %vm300, %v2473
        %2538 = vst.msk [vmem:[#allocation3 + $0x5c0] sm:$0xff] %vm300, %v2474
        %2539 = vst.msk [vmem:[#allocation3 + $0x5d8] sm:$0xff] %vm300, %v2475
        %2540 = vst.msk [vmem:[#allocation3 + $0x5f0] sm:$0xff] %vm300, %v2476
        %v2541 = vld [vmem:[%s335 + $0x2] sm:$0xff]
        %v2542 = vld [vmem:[%s335 + $0x12] sm:$0xff]
        %v2543 = vld [vmem:[%s335 + $0x22] sm:$0xff]
        %v2544 = vld [vmem:[%s335 + $0x32] sm:$0xff]
        %v2545 = vld [vmem:[%s335 + $0x42] sm:$0xff]
        %v2546 = vld [vmem:[%s335 + $0x52] sm:$0xff]
        %v2547 = vld [vmem:[%s335 + $0x62] sm:$0xff]
        %v2548 = vld [vmem:[%s335 + $0x72] sm:$0xff]
        %v2549 = vld [vmem:[%s335 + $0xa2] sm:$0xff]
        %v2550 = vld [vmem:[%s335 + $0xb2] sm:$0xff]
        %v2551 = vld [vmem:[%s335 + $0xc2] sm:$0xff]
        %v2552 = vld [vmem:[%s335 + $0xd2] sm:$0xff]
        %v2553 = vld [vmem:[%s335 + $0xe2] sm:$0xff]
        %v2554 = vld [vmem:[%s335 + $0xf2] sm:$0xff]
        %v2555 = vld [vmem:[%s335 + $0x102] sm:$0xff]
        %v2556 = vld [vmem:[%s335 + $0x112] sm:$0xff]
        %v2557 = vld [vmem:[%s335 + $0x142] sm:$0xff]
        %v2558 = vld [vmem:[%s335 + $0x152] sm:$0xff]
        %v2559 = vld [vmem:[%s335 + $0x162] sm:$0xff]
        %v2560 = vld [vmem:[%s335 + $0x172] sm:$0xff]
        %v2561 = vld [vmem:[%s335 + $0x182] sm:$0xff]
        %v2562 = vld [vmem:[%s335 + $0x192] sm:$0xff]
        %v2563 = vld [vmem:[%s335 + $0x1a2] sm:$0xff]
        %v2564 = vld [vmem:[%s335 + $0x1b2] sm:$0xff]
        %v2565 = vld [vmem:[%s335 + $0x1e2] sm:$0xff]
        %v2566 = vld [vmem:[%s335 + $0x1f2] sm:$0xff]
        %v2567 = vld [vmem:[%s335 + $0x202] sm:$0xff]
        %v2568 = vld [vmem:[%s335 + $0x212] sm:$0xff]
        %v2569 = vld [vmem:[%s335 + $0x222] sm:$0xff]
        %v2570 = vld [vmem:[%s335 + $0x232] sm:$0xff]
        %v2571 = vld [vmem:[%s335 + $0x242] sm:$0xff]
        %v2572 = vld [vmem:[%s335 + $0x252] sm:$0xff]
        %v2573 = vld [vmem:[%s335 + $0x282] sm:$0xff]
        %v2574 = vld [vmem:[%s335 + $0x292] sm:$0xff]
        %v2575 = vld [vmem:[%s335 + $0x2a2] sm:$0xff]
        %v2576 = vld [vmem:[%s335 + $0x2b2] sm:$0xff]
        %v2577 = vld [vmem:[%s335 + $0x2c2] sm:$0xff]
        %v2578 = vld [vmem:[%s335 + $0x2d2] sm:$0xff]
        %v2579 = vld [vmem:[%s335 + $0x2e2] sm:$0xff]
        %v2580 = vld [vmem:[%s335 + $0x2f2] sm:$0xff]
        %v2581 = vld [vmem:[%s335 + $0x322] sm:$0xff]
        %v2582 = vld [vmem:[%s335 + $0x332] sm:$0xff]
        %v2583 = vld [vmem:[%s335 + $0x342] sm:$0xff]
        %v2584 = vld [vmem:[%s335 + $0x352] sm:$0xff]
        %v2585 = vld [vmem:[%s335 + $0x362] sm:$0xff]
        %v2586 = vld [vmem:[%s335 + $0x372] sm:$0xff]
        %v2587 = vld [vmem:[%s335 + $0x382] sm:$0xff]
        %v2588 = vld [vmem:[%s335 + $0x392] sm:$0xff]
        %v2589 = vld [vmem:[%s335 + $0x3c2] sm:$0xff]
        %v2590 = vld [vmem:[%s335 + $0x3d2] sm:$0xff]
        %v2591 = vld [vmem:[%s335 + $0x3e2] sm:$0xff]
        %v2592 = vld [vmem:[%s335 + $0x3f2] sm:$0xff]
        %v2593 = vld [vmem:[%s335 + $0x402] sm:$0xff]
        %v2594 = vld [vmem:[%s335 + $0x412] sm:$0xff]
        %v2595 = vld [vmem:[%s335 + $0x422] sm:$0xff]
        %v2596 = vld [vmem:[%s335 + $0x432] sm:$0xff]
        %v2597 = vld [vmem:[%s335 + $0x462] sm:$0xff]
        %v2598 = vld [vmem:[%s335 + $0x472] sm:$0xff]
        %v2599 = vld [vmem:[%s335 + $0x482] sm:$0xff]
        %v2600 = vld [vmem:[%s335 + $0x492] sm:$0xff]
        %v2601 = vld [vmem:[%s335 + $0x4a2] sm:$0xff]
        %v2602 = vld [vmem:[%s335 + $0x4b2] sm:$0xff]
        %v2603 = vld [vmem:[%s335 + $0x4c2] sm:$0xff]
        %v2604 = vld [vmem:[%s335 + $0x4d2] sm:$0xff]
        %2669 = vrot.lane.b32.xlu0 %v2541, 32
        %v2670 = vpop.permute.xlu0 %2669
        %2671 = vrot.lane.b32.xlu0 %v2542, 32
        %v2672 = vpop.permute.xlu0 %2671
        %2673 = vrot.lane.b32.xlu0 %v2543, 32
        %v2674 = vpop.permute.xlu0 %2673
        %2675 = vrot.lane.b32.xlu0 %v2544, 32
        %v2676 = vpop.permute.xlu0 %2675
        %2677 = vrot.lane.b32.xlu0 %v2545, 32
        %v2678 = vpop.permute.xlu0 %2677
        %2679 = vrot.lane.b32.xlu0 %v2546, 32
        %v2680 = vpop.permute.xlu0 %2679
        %2681 = vrot.lane.b32.xlu0 %v2547, 32
        %v2682 = vpop.permute.xlu0 %2681
        %2683 = vrot.lane.b32.xlu0 %v2548, 32
        %v2684 = vpop.permute.xlu0 %2683
        %2685 = vrot.lane.b32.xlu0 %v2549, 32
        %v2686 = vpop.permute.xlu0 %2685
        %2687 = vrot.lane.b32.xlu0 %v2550, 32
        %v2688 = vpop.permute.xlu0 %2687
        %2689 = vrot.lane.b32.xlu0 %v2551, 32
        %v2690 = vpop.permute.xlu0 %2689
        %2691 = vrot.lane.b32.xlu0 %v2552, 32
        %v2692 = vpop.permute.xlu0 %2691
        %2693 = vrot.lane.b32.xlu0 %v2553, 32
        %v2694 = vpop.permute.xlu0 %2693
        %2695 = vrot.lane.b32.xlu0 %v2554, 32
        %v2696 = vpop.permute.xlu0 %2695
        %2697 = vrot.lane.b32.xlu0 %v2555, 32
        %v2698 = vpop.permute.xlu0 %2697
        %2699 = vrot.lane.b32.xlu0 %v2556, 32
        %v2700 = vpop.permute.xlu0 %2699
        %2701 = vrot.lane.b32.xlu0 %v2557, 32
        %v2702 = vpop.permute.xlu0 %2701
        %2703 = vrot.lane.b32.xlu0 %v2558, 32
        %v2704 = vpop.permute.xlu0 %2703
        %2705 = vrot.lane.b32.xlu0 %v2559, 32
        %v2706 = vpop.permute.xlu0 %2705
        %2707 = vrot.lane.b32.xlu0 %v2560, 32
        %v2708 = vpop.permute.xlu0 %2707
        %2709 = vrot.lane.b32.xlu0 %v2561, 32
        %v2710 = vpop.permute.xlu0 %2709
        %2711 = vrot.lane.b32.xlu0 %v2562, 32
        %v2712 = vpop.permute.xlu0 %2711
        %2713 = vrot.lane.b32.xlu0 %v2563, 32
        %v2714 = vpop.permute.xlu0 %2713
        %2715 = vrot.lane.b32.xlu0 %v2564, 32
        %v2716 = vpop.permute.xlu0 %2715
        %2717 = vrot.lane.b32.xlu0 %v2565, 32
        %v2718 = vpop.permute.xlu0 %2717
        %2719 = vrot.lane.b32.xlu0 %v2566, 32
        %v2720 = vpop.permute.xlu0 %2719
        %2721 = vrot.lane.b32.xlu0 %v2567, 32
        %v2722 = vpop.permute.xlu0 %2721
        %2723 = vrot.lane.b32.xlu0 %v2568, 32
        %v2724 = vpop.permute.xlu0 %2723
        %2725 = vrot.lane.b32.xlu0 %v2569, 32
        %v2726 = vpop.permute.xlu0 %2725
        %2727 = vrot.lane.b32.xlu0 %v2570, 32
        %v2728 = vpop.permute.xlu0 %2727
        %2729 = vrot.lane.b32.xlu0 %v2571, 32
        %v2730 = vpop.permute.xlu0 %2729
        %2731 = vrot.lane.b32.xlu0 %v2572, 32
        %v2732 = vpop.permute.xlu0 %2731
        %2733 = vrot.lane.b32.xlu0 %v2573, 32
        %v2734 = vpop.permute.xlu0 %2733
        %2735 = vrot.lane.b32.xlu0 %v2574, 32
        %v2736 = vpop.permute.xlu0 %2735
        %2737 = vrot.lane.b32.xlu0 %v2575, 32
        %v2738 = vpop.permute.xlu0 %2737
        %2739 = vrot.lane.b32.xlu0 %v2576, 32
        %v2740 = vpop.permute.xlu0 %2739
        %2741 = vrot.lane.b32.xlu0 %v2577, 32
        %v2742 = vpop.permute.xlu0 %2741
        %2743 = vrot.lane.b32.xlu0 %v2578, 32
        %v2744 = vpop.permute.xlu0 %2743
        %2745 = vrot.lane.b32.xlu0 %v2579, 32
        %v2746 = vpop.permute.xlu0 %2745
        %2747 = vrot.lane.b32.xlu0 %v2580, 32
        %v2748 = vpop.permute.xlu0 %2747
        %2749 = vrot.lane.b32.xlu0 %v2581, 32
        %v2750 = vpop.permute.xlu0 %2749
        %2751 = vrot.lane.b32.xlu0 %v2582, 32
        %v2752 = vpop.permute.xlu0 %2751
        %2753 = vrot.lane.b32.xlu0 %v2583, 32
        %v2754 = vpop.permute.xlu0 %2753
        %2755 = vrot.lane.b32.xlu0 %v2584, 32
        %v2756 = vpop.permute.xlu0 %2755
        %2757 = vrot.lane.b32.xlu0 %v2585, 32
        %v2758 = vpop.permute.xlu0 %2757
        %2759 = vrot.lane.b32.xlu0 %v2586, 32
        %v2760 = vpop.permute.xlu0 %2759
        %2761 = vrot.lane.b32.xlu0 %v2587, 32
        %v2762 = vpop.permute.xlu0 %2761
        %2763 = vrot.lane.b32.xlu0 %v2588, 32
        %v2764 = vpop.permute.xlu0 %2763
        %2765 = vrot.lane.b32.xlu0 %v2589, 32
        %v2766 = vpop.permute.xlu0 %2765
        %2767 = vrot.lane.b32.xlu0 %v2590, 32
        %v2768 = vpop.permute.xlu0 %2767
        %2769 = vrot.lane.b32.xlu0 %v2591, 32
        %v2770 = vpop.permute.xlu0 %2769
        %2771 = vrot.lane.b32.xlu0 %v2592, 32
        %v2772 = vpop.permute.xlu0 %2771
        %2773 = vrot.lane.b32.xlu0 %v2593, 32
        %v2774 = vpop.permute.xlu0 %2773
        %2775 = vrot.lane.b32.xlu0 %v2594, 32
        %v2776 = vpop.permute.xlu0 %2775
        %2777 = vrot.lane.b32.xlu0 %v2595, 32
        %v2778 = vpop.permute.xlu0 %2777
        %2779 = vrot.lane.b32.xlu0 %v2596, 32
        %v2780 = vpop.permute.xlu0 %2779
        %2781 = vrot.lane.b32.xlu0 %v2597, 32
        %v2782 = vpop.permute.xlu0 %2781
        %2783 = vrot.lane.b32.xlu0 %v2598, 32
        %v2784 = vpop.permute.xlu0 %2783
        %2785 = vrot.lane.b32.xlu0 %v2599, 32
        %v2786 = vpop.permute.xlu0 %2785
        %2787 = vrot.lane.b32.xlu0 %v2600, 32
        %v2788 = vpop.permute.xlu0 %2787
        %2789 = vrot.lane.b32.xlu0 %v2601, 32
        %v2790 = vpop.permute.xlu0 %2789
        %2791 = vrot.lane.b32.xlu0 %v2602, 32
        %v2792 = vpop.permute.xlu0 %2791
        %2793 = vrot.lane.b32.xlu0 %v2603, 32
        %v2794 = vpop.permute.xlu0 %2793
        %2795 = vrot.lane.b32.xlu0 %v2604, 32
        %v2796 = vpop.permute.xlu0 %2795
        %2861 = vst.msk [vmem:[#allocation3 + $0x8] sm:$0xff] %vm1578, %v2670
        %2862 = vst.msk [vmem:[#allocation3 + $0x20] sm:$0xff] %vm1578, %v2672
        %2863 = vst.msk [vmem:[#allocation3 + $0x38] sm:$0xff] %vm1578, %v2674
        %2864 = vst.msk [vmem:[#allocation3 + $0x50] sm:$0xff] %vm1578, %v2676
        %2865 = vst.msk [vmem:[#allocation3 + $0x68] sm:$0xff] %vm1578, %v2678
        %2866 = vst.msk [vmem:[#allocation3 + $0x80] sm:$0xff] %vm1578, %v2680
        %2867 = vst.msk [vmem:[#allocation3 + $0x98] sm:$0xff] %vm1578, %v2682
        %2868 = vst.msk [vmem:[#allocation3 + $0xb0] sm:$0xff] %vm1578, %v2684
        %2869 = vst.msk [vmem:[#allocation3 + $0xc8] sm:$0xff] %vm1578, %v2686
        %2870 = vst.msk [vmem:[#allocation3 + $0xe0] sm:$0xff] %vm1578, %v2688
        %2871 = vst.msk [vmem:[#allocation3 + $0xf8] sm:$0xff] %vm1578, %v2690
        %2872 = vst.msk [vmem:[#allocation3 + $0x110] sm:$0xff] %vm1578, %v2692
        %2873 = vst.msk [vmem:[#allocation3 + $0x128] sm:$0xff] %vm1578, %v2694
        %2874 = vst.msk [vmem:[#allocation3 + $0x140] sm:$0xff] %vm1578, %v2696
        %2875 = vst.msk [vmem:[#allocation3 + $0x158] sm:$0xff] %vm1578, %v2698
        %2876 = vst.msk [vmem:[#allocation3 + $0x170] sm:$0xff] %vm1578, %v2700
        %2877 = vst.msk [vmem:[#allocation3 + $0x188] sm:$0xff] %vm1578, %v2702
        %2878 = vst.msk [vmem:[#allocation3 + $0x1a0] sm:$0xff] %vm1578, %v2704
        %2879 = vst.msk [vmem:[#allocation3 + $0x1b8] sm:$0xff] %vm1578, %v2706
        %2880 = vst.msk [vmem:[#allocation3 + $0x1d0] sm:$0xff] %vm1578, %v2708
        %2881 = vst.msk [vmem:[#allocation3 + $0x1e8] sm:$0xff] %vm1578, %v2710
        %2882 = vst.msk [vmem:[#allocation3 + $0x200] sm:$0xff] %vm1578, %v2712
        %2883 = vst.msk [vmem:[#allocation3 + $0x218] sm:$0xff] %vm1578, %v2714
        %2884 = vst.msk [vmem:[#allocation3 + $0x230] sm:$0xff] %vm1578, %v2716
        %2885 = vst.msk [vmem:[#allocation3 + $0x248] sm:$0xff] %vm1578, %v2718
        %2886 = vst.msk [vmem:[#allocation3 + $0x260] sm:$0xff] %vm1578, %v2720
        %2887 = vst.msk [vmem:[#allocation3 + $0x278] sm:$0xff] %vm1578, %v2722
        %2888 = vst.msk [vmem:[#allocation3 + $0x290] sm:$0xff] %vm1578, %v2724
        %2889 = vst.msk [vmem:[#allocation3 + $0x2a8] sm:$0xff] %vm1578, %v2726
        %2890 = vst.msk [vmem:[#allocation3 + $0x2c0] sm:$0xff] %vm1578, %v2728
        %2891 = vst.msk [vmem:[#allocation3 + $0x2d8] sm:$0xff] %vm1578, %v2730
        %2892 = vst.msk [vmem:[#allocation3 + $0x2f0] sm:$0xff] %vm1578, %v2732
        %2893 = vst.msk [vmem:[#allocation3 + $0x308] sm:$0xff] %vm1578, %v2734
        %2894 = vst.msk [vmem:[#allocation3 + $0x320] sm:$0xff] %vm1578, %v2736
        %2895 = vst.msk [vmem:[#allocation3 + $0x338] sm:$0xff] %vm1578, %v2738
        %2896 = vst.msk [vmem:[#allocation3 + $0x350] sm:$0xff] %vm1578, %v2740
        %2897 = vst.msk [vmem:[#allocation3 + $0x368] sm:$0xff] %vm1578, %v2742
        %2898 = vst.msk [vmem:[#allocation3 + $0x380] sm:$0xff] %vm1578, %v2744
        %2899 = vst.msk [vmem:[#allocation3 + $0x398] sm:$0xff] %vm1578, %v2746
        %2900 = vst.msk [vmem:[#allocation3 + $0x3b0] sm:$0xff] %vm1578, %v2748
        %2901 = vst.msk [vmem:[#allocation3 + $0x3c8] sm:$0xff] %vm1578, %v2750
        %2902 = vst.msk [vmem:[#allocation3 + $0x3e0] sm:$0xff] %vm1578, %v2752
        %2903 = vst.msk [vmem:[#allocation3 + $0x3f8] sm:$0xff] %vm1578, %v2754
        %2904 = vst.msk [vmem:[#allocation3 + $0x410] sm:$0xff] %vm1578, %v2756
        %2905 = vst.msk [vmem:[#allocation3 + $0x428] sm:$0xff] %vm1578, %v2758
        %2906 = vst.msk [vmem:[#allocation3 + $0x440] sm:$0xff] %vm1578, %v2760
        %2907 = vst.msk [vmem:[#allocation3 + $0x458] sm:$0xff] %vm1578, %v2762
        %2908 = vst.msk [vmem:[#allocation3 + $0x470] sm:$0xff] %vm1578, %v2764
        %2909 = vst.msk [vmem:[#allocation3 + $0x488] sm:$0xff] %vm1578, %v2766
        %2910 = vst.msk [vmem:[#allocation3 + $0x4a0] sm:$0xff] %vm1578, %v2768
        %2911 = vst.msk [vmem:[#allocation3 + $0x4b8] sm:$0xff] %vm1578, %v2770
        %2912 = vst.msk [vmem:[#allocation3 + $0x4d0] sm:$0xff] %vm1578, %v2772
        %2913 = vst.msk [vmem:[#allocation3 + $0x4e8] sm:$0xff] %vm1578, %v2774
        %2914 = vst.msk [vmem:[#allocation3 + $0x500] sm:$0xff] %vm1578, %v2776
        %2915 = vst.msk [vmem:[#allocation3 + $0x518] sm:$0xff] %vm1578, %v2778
        %2916 = vst.msk [vmem:[#allocation3 + $0x530] sm:$0xff] %vm1578, %v2780
        %2917 = vst.msk [vmem:[#allocation3 + $0x548] sm:$0xff] %vm1578, %v2782
        %2918 = vst.msk [vmem:[#allocation3 + $0x560] sm:$0xff] %vm1578, %v2784
        %2919 = vst.msk [vmem:[#allocation3 + $0x578] sm:$0xff] %vm1578, %v2786
        %2920 = vst.msk [vmem:[#allocation3 + $0x590] sm:$0xff] %vm1578, %v2788
        %2921 = vst.msk [vmem:[#allocation3 + $0x5a8] sm:$0xff] %vm1578, %v2790
        %2922 = vst.msk [vmem:[#allocation3 + $0x5c0] sm:$0xff] %vm1578, %v2792
        %2923 = vst.msk [vmem:[#allocation3 + $0x5d8] sm:$0xff] %vm1578, %v2794
        %2924 = vst.msk [vmem:[#allocation3 + $0x5f0] sm:$0xff] %vm1578, %v2796
        %s2925 = scalar_lea.vmem [#allocation2], 32
        %v2926 = vld [vmem:[%s2925] sm:$0xff]
        %v2927 = vld [vmem:[%s2925 + $0x10] sm:$0xff]
        %v2928 = vld [vmem:[%s2925 + $0x20] sm:$0xff]
        %v2929 = vld [vmem:[%s2925 + $0x30] sm:$0xff]
        %v2930 = vld [vmem:[%s2925 + $0x40] sm:$0xff]
        %v2931 = vld [vmem:[%s2925 + $0x50] sm:$0xff]
        %v2932 = vld [vmem:[%s2925 + $0x60] sm:$0xff]
        %v2933 = vld [vmem:[%s2925 + $0x70] sm:$0xff]
        %v2934 = vld [vmem:[%s2925 + $0xa0] sm:$0xff]
        %v2935 = vld [vmem:[%s2925 + $0xb0] sm:$0xff]
        %v2936 = vld [vmem:[%s2925 + $0xc0] sm:$0xff]
        %v2937 = vld [vmem:[%s2925 + $0xd0] sm:$0xff]
        %v2938 = vld [vmem:[%s2925 + $0xe0] sm:$0xff]
        %v2939 = vld [vmem:[%s2925 + $0xf0] sm:$0xff]
        %v2940 = vld [vmem:[%s2925 + $0x100] sm:$0xff]
        %v2941 = vld [vmem:[%s2925 + $0x110] sm:$0xff]
        %v2942 = vld [vmem:[%s2925 + $0x140] sm:$0xff]
        %v2943 = vld [vmem:[%s2925 + $0x150] sm:$0xff]
        %v2944 = vld [vmem:[%s2925 + $0x160] sm:$0xff]
        %v2945 = vld [vmem:[%s2925 + $0x170] sm:$0xff]
        %v2946 = vld [vmem:[%s2925 + $0x180] sm:$0xff]
        %v2947 = vld [vmem:[%s2925 + $0x190] sm:$0xff]
        %v2948 = vld [vmem:[%s2925 + $0x1a0] sm:$0xff]
        %v2949 = vld [vmem:[%s2925 + $0x1b0] sm:$0xff]
        %v2950 = vld [vmem:[%s2925 + $0x1e0] sm:$0xff]
        %v2951 = vld [vmem:[%s2925 + $0x1f0] sm:$0xff]
        %v2952 = vld [vmem:[%s2925 + $0x200] sm:$0xff]
        %v2953 = vld [vmem:[%s2925 + $0x210] sm:$0xff]
        %v2954 = vld [vmem:[%s2925 + $0x220] sm:$0xff]
        %v2955 = vld [vmem:[%s2925 + $0x230] sm:$0xff]
        %v2956 = vld [vmem:[%s2925 + $0x240] sm:$0xff]
        %v2957 = vld [vmem:[%s2925 + $0x250] sm:$0xff]
        %v2958 = vld [vmem:[%s2925 + $0x280] sm:$0xff]
        %v2959 = vld [vmem:[%s2925 + $0x290] sm:$0xff]
        %v2960 = vld [vmem:[%s2925 + $0x2a0] sm:$0xff]
        %v2961 = vld [vmem:[%s2925 + $0x2b0] sm:$0xff]
        %v2962 = vld [vmem:[%s2925 + $0x2c0] sm:$0xff]
        %v2963 = vld [vmem:[%s2925 + $0x2d0] sm:$0xff]
        %v2964 = vld [vmem:[%s2925 + $0x2e0] sm:$0xff]
        %v2965 = vld [vmem:[%s2925 + $0x2f0] sm:$0xff]
        %v2966 = vld [vmem:[%s2925 + $0x320] sm:$0xff]
        %v2967 = vld [vmem:[%s2925 + $0x330] sm:$0xff]
        %v2968 = vld [vmem:[%s2925 + $0x340] sm:$0xff]
        %v2969 = vld [vmem:[%s2925 + $0x350] sm:$0xff]
        %v2970 = vld [vmem:[%s2925 + $0x360] sm:$0xff]
        %v2971 = vld [vmem:[%s2925 + $0x370] sm:$0xff]
        %v2972 = vld [vmem:[%s2925 + $0x380] sm:$0xff]
        %v2973 = vld [vmem:[%s2925 + $0x390] sm:$0xff]
        %v2974 = vld [vmem:[%s2925 + $0x3c0] sm:$0xff]
        %v2975 = vld [vmem:[%s2925 + $0x3d0] sm:$0xff]
        %v2976 = vld [vmem:[%s2925 + $0x3e0] sm:$0xff]
        %v2977 = vld [vmem:[%s2925 + $0x3f0] sm:$0xff]
        %v2978 = vld [vmem:[%s2925 + $0x400] sm:$0xff]
        %v2979 = vld [vmem:[%s2925 + $0x410] sm:$0xff]
        %v2980 = vld [vmem:[%s2925 + $0x420] sm:$0xff]
        %v2981 = vld [vmem:[%s2925 + $0x430] sm:$0xff]
        %v2982 = vld [vmem:[%s2925 + $0x460] sm:$0xff]
        %v2983 = vld [vmem:[%s2925 + $0x470] sm:$0xff]
        %v2984 = vld [vmem:[%s2925 + $0x480] sm:$0xff]
        %v2985 = vld [vmem:[%s2925 + $0x490] sm:$0xff]
        %v2986 = vld [vmem:[%s2925 + $0x4a0] sm:$0xff]
        %v2987 = vld [vmem:[%s2925 + $0x4b0] sm:$0xff]
        %v2988 = vld [vmem:[%s2925 + $0x4c0] sm:$0xff]
        %v2989 = vld [vmem:[%s2925 + $0x4d0] sm:$0xff]
        %3054 = vrot.lane.b32.xlu0 %v2926, 64
        %v3055 = vpop.permute.xlu0 %3054
        %3056 = vrot.lane.b32.xlu0 %v2927, 64
        %v3057 = vpop.permute.xlu0 %3056
        %3058 = vrot.lane.b32.xlu0 %v2928, 64
        %v3059 = vpop.permute.xlu0 %3058
        %3060 = vrot.lane.b32.xlu0 %v2929, 64
        %v3061 = vpop.permute.xlu0 %3060
        %3062 = vrot.lane.b32.xlu0 %v2930, 64
        %v3063 = vpop.permute.xlu0 %3062
        %3064 = vrot.lane.b32.xlu0 %v2931, 64
        %v3065 = vpop.permute.xlu0 %3064
        %3066 = vrot.lane.b32.xlu0 %v2932, 64
        %v3067 = vpop.permute.xlu0 %3066
        %3068 = vrot.lane.b32.xlu0 %v2933, 64
        %v3069 = vpop.permute.xlu0 %3068
        %3070 = vrot.lane.b32.xlu0 %v2934, 64
        %v3071 = vpop.permute.xlu0 %3070
        %3072 = vrot.lane.b32.xlu0 %v2935, 64
        %v3073 = vpop.permute.xlu0 %3072
        %3074 = vrot.lane.b32.xlu0 %v2936, 64
        %v3075 = vpop.permute.xlu0 %3074
        %3076 = vrot.lane.b32.xlu0 %v2937, 64
        %v3077 = vpop.permute.xlu0 %3076
        %3078 = vrot.lane.b32.xlu0 %v2938, 64
        %v3079 = vpop.permute.xlu0 %3078
        %3080 = vrot.lane.b32.xlu0 %v2939, 64
        %v3081 = vpop.permute.xlu0 %3080
        %3082 = vrot.lane.b32.xlu0 %v2940, 64
        %v3083 = vpop.permute.xlu0 %3082
        %3084 = vrot.lane.b32.xlu0 %v2941, 64
        %v3085 = vpop.permute.xlu0 %3084
        %3086 = vrot.lane.b32.xlu0 %v2942, 64
        %v3087 = vpop.permute.xlu0 %3086
        %3088 = vrot.lane.b32.xlu0 %v2943, 64
        %v3089 = vpop.permute.xlu0 %3088
        %3090 = vrot.lane.b32.xlu0 %v2944, 64
        %v3091 = vpop.permute.xlu0 %3090
        %3092 = vrot.lane.b32.xlu0 %v2945, 64
        %v3093 = vpop.permute.xlu0 %3092
        %3094 = vrot.lane.b32.xlu0 %v2946, 64
        %v3095 = vpop.permute.xlu0 %3094
        %3096 = vrot.lane.b32.xlu0 %v2947, 64
        %v3097 = vpop.permute.xlu0 %3096
        %3098 = vrot.lane.b32.xlu0 %v2948, 64
        %v3099 = vpop.permute.xlu0 %3098
        %3100 = vrot.lane.b32.xlu0 %v2949, 64
        %v3101 = vpop.permute.xlu0 %3100
        %3102 = vrot.lane.b32.xlu0 %v2950, 64
        %v3103 = vpop.permute.xlu0 %3102
        %3104 = vrot.lane.b32.xlu0 %v2951, 64
        %v3105 = vpop.permute.xlu0 %3104
        %3106 = vrot.lane.b32.xlu0 %v2952, 64
        %v3107 = vpop.permute.xlu0 %3106
        %3108 = vrot.lane.b32.xlu0 %v2953, 64
        %v3109 = vpop.permute.xlu0 %3108
        %3110 = vrot.lane.b32.xlu0 %v2954, 64
        %v3111 = vpop.permute.xlu0 %3110
        %3112 = vrot.lane.b32.xlu0 %v2955, 64
        %v3113 = vpop.permute.xlu0 %3112
        %3114 = vrot.lane.b32.xlu0 %v2956, 64
        %v3115 = vpop.permute.xlu0 %3114
        %3116 = vrot.lane.b32.xlu0 %v2957, 64
        %v3117 = vpop.permute.xlu0 %3116
        %3118 = vrot.lane.b32.xlu0 %v2958, 64
        %v3119 = vpop.permute.xlu0 %3118
        %3120 = vrot.lane.b32.xlu0 %v2959, 64
        %v3121 = vpop.permute.xlu0 %3120
        %3122 = vrot.lane.b32.xlu0 %v2960, 64
        %v3123 = vpop.permute.xlu0 %3122
        %3124 = vrot.lane.b32.xlu0 %v2961, 64
        %v3125 = vpop.permute.xlu0 %3124
        %3126 = vrot.lane.b32.xlu0 %v2962, 64
        %v3127 = vpop.permute.xlu0 %3126
        %3128 = vrot.lane.b32.xlu0 %v2963, 64
        %v3129 = vpop.permute.xlu0 %3128
        %3130 = vrot.lane.b32.xlu0 %v2964, 64
        %v3131 = vpop.permute.xlu0 %3130
        %3132 = vrot.lane.b32.xlu0 %v2965, 64
        %v3133 = vpop.permute.xlu0 %3132
        %3134 = vrot.lane.b32.xlu0 %v2966, 64
        %v3135 = vpop.permute.xlu0 %3134
        %3136 = vrot.lane.b32.xlu0 %v2967, 64
        %v3137 = vpop.permute.xlu0 %3136
        %3138 = vrot.lane.b32.xlu0 %v2968, 64
        %v3139 = vpop.permute.xlu0 %3138
        %3140 = vrot.lane.b32.xlu0 %v2969, 64
        %v3141 = vpop.permute.xlu0 %3140
        %3142 = vrot.lane.b32.xlu0 %v2970, 64
        %v3143 = vpop.permute.xlu0 %3142
        %3144 = vrot.lane.b32.xlu0 %v2971, 64
        %v3145 = vpop.permute.xlu0 %3144
        %3146 = vrot.lane.b32.xlu0 %v2972, 64
        %v3147 = vpop.permute.xlu0 %3146
        %3148 = vrot.lane.b32.xlu0 %v2973, 64
        %v3149 = vpop.permute.xlu0 %3148
        %3150 = vrot.lane.b32.xlu0 %v2974, 64
        %v3151 = vpop.permute.xlu0 %3150
        %3152 = vrot.lane.b32.xlu0 %v2975, 64
        %v3153 = vpop.permute.xlu0 %3152
        %3154 = vrot.lane.b32.xlu0 %v2976, 64
        %v3155 = vpop.permute.xlu0 %3154
        %3156 = vrot.lane.b32.xlu0 %v2977, 64
        %v3157 = vpop.permute.xlu0 %3156
        %3158 = vrot.lane.b32.xlu0 %v2978, 64
        %v3159 = vpop.permute.xlu0 %3158
        %3160 = vrot.lane.b32.xlu0 %v2979, 64
        %v3161 = vpop.permute.xlu0 %3160
        %3162 = vrot.lane.b32.xlu0 %v2980, 64
        %v3163 = vpop.permute.xlu0 %3162
        %3164 = vrot.lane.b32.xlu0 %v2981, 64
        %v3165 = vpop.permute.xlu0 %3164
        %3166 = vrot.lane.b32.xlu0 %v2982, 64
        %v3167 = vpop.permute.xlu0 %3166
        %3168 = vrot.lane.b32.xlu0 %v2983, 64
        %v3169 = vpop.permute.xlu0 %3168
        %3170 = vrot.lane.b32.xlu0 %v2984, 64
        %v3171 = vpop.permute.xlu0 %3170
        %3172 = vrot.lane.b32.xlu0 %v2985, 64
        %v3173 = vpop.permute.xlu0 %3172
        %3174 = vrot.lane.b32.xlu0 %v2986, 64
        %v3175 = vpop.permute.xlu0 %3174
        %3176 = vrot.lane.b32.xlu0 %v2987, 64
        %v3177 = vpop.permute.xlu0 %3176
        %3178 = vrot.lane.b32.xlu0 %v2988, 64
        %v3179 = vpop.permute.xlu0 %3178
        %3180 = vrot.lane.b32.xlu0 %v2989, 64
        %v3181 = vpop.permute.xlu0 %3180
        %3246 = vst.msk [vmem:[#allocation3 + $0x8] sm:$0xff] %vm1963, %v3055
        %3247 = vst.msk [vmem:[#allocation3 + $0x20] sm:$0xff] %vm1963, %v3057
        %3248 = vst.msk [vmem:[#allocation3 + $0x38] sm:$0xff] %vm1963, %v3059
        %3249 = vst.msk [vmem:[#allocation3 + $0x50] sm:$0xff] %vm1963, %v3061
        %3250 = vst.msk [vmem:[#allocation3 + $0x68] sm:$0xff] %vm1963, %v3063
        %3251 = vst.msk [vmem:[#allocation3 + $0x80] sm:$0xff] %vm1963, %v3065
        %3252 = vst.msk [vmem:[#allocation3 + $0x98] sm:$0xff] %vm1963, %v3067
        %3253 = vst.msk [vmem:[#allocation3 + $0xb0] sm:$0xff] %vm1963, %v3069
        %3254 = vst.msk [vmem:[#allocation3 + $0xc8] sm:$0xff] %vm1963, %v3071
        %3255 = vst.msk [vmem:[#allocation3 + $0xe0] sm:$0xff] %vm1963, %v3073
        %3256 = vst.msk [vmem:[#allocation3 + $0xf8] sm:$0xff] %vm1963, %v3075
        %3257 = vst.msk [vmem:[#allocation3 + $0x110] sm:$0xff] %vm1963, %v3077
        %3258 = vst.msk [vmem:[#allocation3 + $0x128] sm:$0xff] %vm1963, %v3079
        %3259 = vst.msk [vmem:[#allocation3 + $0x140] sm:$0xff] %vm1963, %v3081
        %3260 = vst.msk [vmem:[#allocation3 + $0x158] sm:$0xff] %vm1963, %v3083
        %3261 = vst.msk [vmem:[#allocation3 + $0x170] sm:$0xff] %vm1963, %v3085
        %3262 = vst.msk [vmem:[#allocation3 + $0x188] sm:$0xff] %vm1963, %v3087
        %3263 = vst.msk [vmem:[#allocation3 + $0x1a0] sm:$0xff] %vm1963, %v3089
        %3264 = vst.msk [vmem:[#allocation3 + $0x1b8] sm:$0xff] %vm1963, %v3091
        %3265 = vst.msk [vmem:[#allocation3 + $0x1d0] sm:$0xff] %vm1963, %v3093
        %3266 = vst.msk [vmem:[#allocation3 + $0x1e8] sm:$0xff] %vm1963, %v3095
        %3267 = vst.msk [vmem:[#allocation3 + $0x200] sm:$0xff] %vm1963, %v3097
        %3268 = vst.msk [vmem:[#allocation3 + $0x218] sm:$0xff] %vm1963, %v3099
        %3269 = vst.msk [vmem:[#allocation3 + $0x230] sm:$0xff] %vm1963, %v3101
        %3270 = vst.msk [vmem:[#allocation3 + $0x248] sm:$0xff] %vm1963, %v3103
        %3271 = vst.msk [vmem:[#allocation3 + $0x260] sm:$0xff] %vm1963, %v3105
        %3272 = vst.msk [vmem:[#allocation3 + $0x278] sm:$0xff] %vm1963, %v3107
        %3273 = vst.msk [vmem:[#allocation3 + $0x290] sm:$0xff] %vm1963, %v3109
        %3274 = vst.msk [vmem:[#allocation3 + $0x2a8] sm:$0xff] %vm1963, %v3111
        %3275 = vst.msk [vmem:[#allocation3 + $0x2c0] sm:$0xff] %vm1963, %v3113
        %3276 = vst.msk [vmem:[#allocation3 + $0x2d8] sm:$0xff] %vm1963, %v3115
        %3277 = vst.msk [vmem:[#allocation3 + $0x2f0] sm:$0xff] %vm1963, %v3117
        %3278 = vst.msk [vmem:[#allocation3 + $0x308] sm:$0xff] %vm1963, %v3119
        %3279 = vst.msk [vmem:[#allocation3 + $0x320] sm:$0xff] %vm1963, %v3121
        %3280 = vst.msk [vmem:[#allocation3 + $0x338] sm:$0xff] %vm1963, %v3123
        %3281 = vst.msk [vmem:[#allocation3 + $0x350] sm:$0xff] %vm1963, %v3125
        %3282 = vst.msk [vmem:[#allocation3 + $0x368] sm:$0xff] %vm1963, %v3127
        %3283 = vst.msk [vmem:[#allocation3 + $0x380] sm:$0xff] %vm1963, %v3129
        %3284 = vst.msk [vmem:[#allocation3 + $0x398] sm:$0xff] %vm1963, %v3131
        %3285 = vst.msk [vmem:[#allocation3 + $0x3b0] sm:$0xff] %vm1963, %v3133
        %3286 = vst.msk [vmem:[#allocation3 + $0x3c8] sm:$0xff] %vm1963, %v3135
        %3287 = vst.msk [vmem:[#allocation3 + $0x3e0] sm:$0xff] %vm1963, %v3137
        %3288 = vst.msk [vmem:[#allocation3 + $0x3f8] sm:$0xff] %vm1963, %v3139
        %3289 = vst.msk [vmem:[#allocation3 + $0x410] sm:$0xff] %vm1963, %v3141
        %3290 = vst.msk [vmem:[#allocation3 + $0x428] sm:$0xff] %vm1963, %v3143
        %3291 = vst.msk [vmem:[#allocation3 + $0x440] sm:$0xff] %vm1963, %v3145
        %3292 = vst.msk [vmem:[#allocation3 + $0x458] sm:$0xff] %vm1963, %v3147
        %3293 = vst.msk [vmem:[#allocation3 + $0x470] sm:$0xff] %vm1963, %v3149
        %3294 = vst.msk [vmem:[#allocation3 + $0x488] sm:$0xff] %vm1963, %v3151
        %3295 = vst.msk [vmem:[#allocation3 + $0x4a0] sm:$0xff] %vm1963, %v3153
        %3296 = vst.msk [vmem:[#allocation3 + $0x4b8] sm:$0xff] %vm1963, %v3155
        %3297 = vst.msk [vmem:[#allocation3 + $0x4d0] sm:$0xff] %vm1963, %v3157
        %3298 = vst.msk [vmem:[#allocation3 + $0x4e8] sm:$0xff] %vm1963, %v3159
        %3299 = vst.msk [vmem:[#allocation3 + $0x500] sm:$0xff] %vm1963, %v3161
        %3300 = vst.msk [vmem:[#allocation3 + $0x518] sm:$0xff] %vm1963, %v3163
        %3301 = vst.msk [vmem:[#allocation3 + $0x530] sm:$0xff] %vm1963, %v3165
        %3302 = vst.msk [vmem:[#allocation3 + $0x548] sm:$0xff] %vm1963, %v3167
        %3303 = vst.msk [vmem:[#allocation3 + $0x560] sm:$0xff] %vm1963, %v3169
        %3304 = vst.msk [vmem:[#allocation3 + $0x578] sm:$0xff] %vm1963, %v3171
        %3305 = vst.msk [vmem:[#allocation3 + $0x590] sm:$0xff] %vm1963, %v3173
        %3306 = vst.msk [vmem:[#allocation3 + $0x5a8] sm:$0xff] %vm1963, %v3175
        %3307 = vst.msk [vmem:[#allocation3 + $0x5c0] sm:$0xff] %vm1963, %v3177
        %3308 = vst.msk [vmem:[#allocation3 + $0x5d8] sm:$0xff] %vm1963, %v3179
        %3309 = vst.msk [vmem:[#allocation3 + $0x5f0] sm:$0xff] %vm1963, %v3181
        %v3310 = vld [vmem:[%s2925 + $0x1] sm:$0xff]
        %v3311 = vld [vmem:[%s2925 + $0x11] sm:$0xff]
        %v3312 = vld [vmem:[%s2925 + $0x21] sm:$0xff]
        %v3313 = vld [vmem:[%s2925 + $0x31] sm:$0xff]
        %v3314 = vld [vmem:[%s2925 + $0x41] sm:$0xff]
        %v3315 = vld [vmem:[%s2925 + $0x51] sm:$0xff]
        %v3316 = vld [vmem:[%s2925 + $0x61] sm:$0xff]
        %v3317 = vld [vmem:[%s2925 + $0x71] sm:$0xff]
        %v3318 = vld [vmem:[%s2925 + $0xa1] sm:$0xff]
        %v3319 = vld [vmem:[%s2925 + $0xb1] sm:$0xff]
        %v3320 = vld [vmem:[%s2925 + $0xc1] sm:$0xff]
        %v3321 = vld [vmem:[%s2925 + $0xd1] sm:$0xff]
        %v3322 = vld [vmem:[%s2925 + $0xe1] sm:$0xff]
        %v3323 = vld [vmem:[%s2925 + $0xf1] sm:$0xff]
        %v3324 = vld [vmem:[%s2925 + $0x101] sm:$0xff]
        %v3325 = vld [vmem:[%s2925 + $0x111] sm:$0xff]
        %v3326 = vld [vmem:[%s2925 + $0x141] sm:$0xff]
        %v3327 = vld [vmem:[%s2925 + $0x151] sm:$0xff]
        %v3328 = vld [vmem:[%s2925 + $0x161] sm:$0xff]
        %v3329 = vld [vmem:[%s2925 + $0x171] sm:$0xff]
        %v3330 = vld [vmem:[%s2925 + $0x181] sm:$0xff]
        %v3331 = vld [vmem:[%s2925 + $0x191] sm:$0xff]
        %v3332 = vld [vmem:[%s2925 + $0x1a1] sm:$0xff]
        %v3333 = vld [vmem:[%s2925 + $0x1b1] sm:$0xff]
        %v3334 = vld [vmem:[%s2925 + $0x1e1] sm:$0xff]
        %v3335 = vld [vmem:[%s2925 + $0x1f1] sm:$0xff]
        %v3336 = vld [vmem:[%s2925 + $0x201] sm:$0xff]
        %v3337 = vld [vmem:[%s2925 + $0x211] sm:$0xff]
        %v3338 = vld [vmem:[%s2925 + $0x221] sm:$0xff]
        %v3339 = vld [vmem:[%s2925 + $0x231] sm:$0xff]
        %v3340 = vld [vmem:[%s2925 + $0x241] sm:$0xff]
        %v3341 = vld [vmem:[%s2925 + $0x251] sm:$0xff]
        %v3342 = vld [vmem:[%s2925 + $0x281] sm:$0xff]
        %v3343 = vld [vmem:[%s2925 + $0x291] sm:$0xff]
        %v3344 = vld [vmem:[%s2925 + $0x2a1] sm:$0xff]
        %v3345 = vld [vmem:[%s2925 + $0x2b1] sm:$0xff]
        %v3346 = vld [vmem:[%s2925 + $0x2c1] sm:$0xff]
        %v3347 = vld [vmem:[%s2925 + $0x2d1] sm:$0xff]
        %v3348 = vld [vmem:[%s2925 + $0x2e1] sm:$0xff]
        %v3349 = vld [vmem:[%s2925 + $0x2f1] sm:$0xff]
        %v3350 = vld [vmem:[%s2925 + $0x321] sm:$0xff]
        %v3351 = vld [vmem:[%s2925 + $0x331] sm:$0xff]
        %v3352 = vld [vmem:[%s2925 + $0x341] sm:$0xff]
        %v3353 = vld [vmem:[%s2925 + $0x351] sm:$0xff]
        %v3354 = vld [vmem:[%s2925 + $0x361] sm:$0xff]
        %v3355 = vld [vmem:[%s2925 + $0x371] sm:$0xff]
        %v3356 = vld [vmem:[%s2925 + $0x381] sm:$0xff]
        %v3357 = vld [vmem:[%s2925 + $0x391] sm:$0xff]
        %v3358 = vld [vmem:[%s2925 + $0x3c1] sm:$0xff]
        %v3359 = vld [vmem:[%s2925 + $0x3d1] sm:$0xff]
        %v3360 = vld [vmem:[%s2925 + $0x3e1] sm:$0xff]
        %v3361 = vld [vmem:[%s2925 + $0x3f1] sm:$0xff]
        %v3362 = vld [vmem:[%s2925 + $0x401] sm:$0xff]
        %v3363 = vld [vmem:[%s2925 + $0x411] sm:$0xff]
        %v3364 = vld [vmem:[%s2925 + $0x421] sm:$0xff]
        %v3365 = vld [vmem:[%s2925 + $0x431] sm:$0xff]
        %v3366 = vld [vmem:[%s2925 + $0x461] sm:$0xff]
        %v3367 = vld [vmem:[%s2925 + $0x471] sm:$0xff]
        %v3368 = vld [vmem:[%s2925 + $0x481] sm:$0xff]
        %v3369 = vld [vmem:[%s2925 + $0x491] sm:$0xff]
        %v3370 = vld [vmem:[%s2925 + $0x4a1] sm:$0xff]
        %v3371 = vld [vmem:[%s2925 + $0x4b1] sm:$0xff]
        %v3372 = vld [vmem:[%s2925 + $0x4c1] sm:$0xff]
        %v3373 = vld [vmem:[%s2925 + $0x4d1] sm:$0xff]
        %3438 = vrot.lane.b32.xlu0 %v3310, 96
        %v3439 = vpop.permute.xlu0 %3438
        %3440 = vrot.lane.b32.xlu0 %v3311, 96
        %v3441 = vpop.permute.xlu0 %3440
        %3442 = vrot.lane.b32.xlu0 %v3312, 96
        %v3443 = vpop.permute.xlu0 %3442
        %3444 = vrot.lane.b32.xlu0 %v3313, 96
        %v3445 = vpop.permute.xlu0 %3444
        %3446 = vrot.lane.b32.xlu0 %v3314, 96
        %v3447 = vpop.permute.xlu0 %3446
        %3448 = vrot.lane.b32.xlu0 %v3315, 96
        %v3449 = vpop.permute.xlu0 %3448
        %3450 = vrot.lane.b32.xlu0 %v3316, 96
        %v3451 = vpop.permute.xlu0 %3450
        %3452 = vrot.lane.b32.xlu0 %v3317, 96
        %v3453 = vpop.permute.xlu0 %3452
        %3454 = vrot.lane.b32.xlu0 %v3318, 96
        %v3455 = vpop.permute.xlu0 %3454
        %3456 = vrot.lane.b32.xlu0 %v3319, 96
        %v3457 = vpop.permute.xlu0 %3456
        %3458 = vrot.lane.b32.xlu0 %v3320, 96
        %v3459 = vpop.permute.xlu0 %3458
        %3460 = vrot.lane.b32.xlu0 %v3321, 96
        %v3461 = vpop.permute.xlu0 %3460
        %3462 = vrot.lane.b32.xlu0 %v3322, 96
        %v3463 = vpop.permute.xlu0 %3462
        %3464 = vrot.lane.b32.xlu0 %v3323, 96
        %v3465 = vpop.permute.xlu0 %3464
        %3466 = vrot.lane.b32.xlu0 %v3324, 96
        %v3467 = vpop.permute.xlu0 %3466
        %3468 = vrot.lane.b32.xlu0 %v3325, 96
        %v3469 = vpop.permute.xlu0 %3468
        %3470 = vrot.lane.b32.xlu0 %v3326, 96
        %v3471 = vpop.permute.xlu0 %3470
        %3472 = vrot.lane.b32.xlu0 %v3327, 96
        %v3473 = vpop.permute.xlu0 %3472
        %3474 = vrot.lane.b32.xlu0 %v3328, 96
        %v3475 = vpop.permute.xlu0 %3474
        %3476 = vrot.lane.b32.xlu0 %v3329, 96
        %v3477 = vpop.permute.xlu0 %3476
        %3478 = vrot.lane.b32.xlu0 %v3330, 96
        %v3479 = vpop.permute.xlu0 %3478
        %3480 = vrot.lane.b32.xlu0 %v3331, 96
        %v3481 = vpop.permute.xlu0 %3480
        %3482 = vrot.lane.b32.xlu0 %v3332, 96
        %v3483 = vpop.permute.xlu0 %3482
        %3484 = vrot.lane.b32.xlu0 %v3333, 96
        %v3485 = vpop.permute.xlu0 %3484
        %3486 = vrot.lane.b32.xlu0 %v3334, 96
        %v3487 = vpop.permute.xlu0 %3486
        %3488 = vrot.lane.b32.xlu0 %v3335, 96
        %v3489 = vpop.permute.xlu0 %3488
        %3490 = vrot.lane.b32.xlu0 %v3336, 96
        %v3491 = vpop.permute.xlu0 %3490
        %3492 = vrot.lane.b32.xlu0 %v3337, 96
        %v3493 = vpop.permute.xlu0 %3492
        %3494 = vrot.lane.b32.xlu0 %v3338, 96
        %v3495 = vpop.permute.xlu0 %3494
        %3496 = vrot.lane.b32.xlu0 %v3339, 96
        %v3497 = vpop.permute.xlu0 %3496
        %3498 = vrot.lane.b32.xlu0 %v3340, 96
        %v3499 = vpop.permute.xlu0 %3498
        %3500 = vrot.lane.b32.xlu0 %v3341, 96
        %v3501 = vpop.permute.xlu0 %3500
        %3502 = vrot.lane.b32.xlu0 %v3342, 96
        %v3503 = vpop.permute.xlu0 %3502
        %3504 = vrot.lane.b32.xlu0 %v3343, 96
        %v3505 = vpop.permute.xlu0 %3504
        %3506 = vrot.lane.b32.xlu0 %v3344, 96
        %v3507 = vpop.permute.xlu0 %3506
        %3508 = vrot.lane.b32.xlu0 %v3345, 96
        %v3509 = vpop.permute.xlu0 %3508
        %3510 = vrot.lane.b32.xlu0 %v3346, 96
        %v3511 = vpop.permute.xlu0 %3510
        %3512 = vrot.lane.b32.xlu0 %v3347, 96
        %v3513 = vpop.permute.xlu0 %3512
        %3514 = vrot.lane.b32.xlu0 %v3348, 96
        %v3515 = vpop.permute.xlu0 %3514
        %3516 = vrot.lane.b32.xlu0 %v3349, 96
        %v3517 = vpop.permute.xlu0 %3516
        %3518 = vrot.lane.b32.xlu0 %v3350, 96
        %v3519 = vpop.permute.xlu0 %3518
        %3520 = vrot.lane.b32.xlu0 %v3351, 96
        %v3521 = vpop.permute.xlu0 %3520
        %3522 = vrot.lane.b32.xlu0 %v3352, 96
        %v3523 = vpop.permute.xlu0 %3522
        %3524 = vrot.lane.b32.xlu0 %v3353, 96
        %v3525 = vpop.permute.xlu0 %3524
        %3526 = vrot.lane.b32.xlu0 %v3354, 96
        %v3527 = vpop.permute.xlu0 %3526
        %3528 = vrot.lane.b32.xlu0 %v3355, 96
        %v3529 = vpop.permute.xlu0 %3528
        %3530 = vrot.lane.b32.xlu0 %v3356, 96
        %v3531 = vpop.permute.xlu0 %3530
        %3532 = vrot.lane.b32.xlu0 %v3357, 96
        %v3533 = vpop.permute.xlu0 %3532
        %3534 = vrot.lane.b32.xlu0 %v3358, 96
        %v3535 = vpop.permute.xlu0 %3534
        %3536 = vrot.lane.b32.xlu0 %v3359, 96
        %v3537 = vpop.permute.xlu0 %3536
        %3538 = vrot.lane.b32.xlu0 %v3360, 96
        %v3539 = vpop.permute.xlu0 %3538
        %3540 = vrot.lane.b32.xlu0 %v3361, 96
        %v3541 = vpop.permute.xlu0 %3540
        %3542 = vrot.lane.b32.xlu0 %v3362, 96
        %v3543 = vpop.permute.xlu0 %3542
        %3544 = vrot.lane.b32.xlu0 %v3363, 96
        %v3545 = vpop.permute.xlu0 %3544
        %3546 = vrot.lane.b32.xlu0 %v3364, 96
        %v3547 = vpop.permute.xlu0 %3546
        %3548 = vrot.lane.b32.xlu0 %v3365, 96
        %v3549 = vpop.permute.xlu0 %3548
        %3550 = vrot.lane.b32.xlu0 %v3366, 96
        %v3551 = vpop.permute.xlu0 %3550
        %3552 = vrot.lane.b32.xlu0 %v3367, 96
        %v3553 = vpop.permute.xlu0 %3552
        %3554 = vrot.lane.b32.xlu0 %v3368, 96
        %v3555 = vpop.permute.xlu0 %3554
        %3556 = vrot.lane.b32.xlu0 %v3369, 96
        %v3557 = vpop.permute.xlu0 %3556
        %3558 = vrot.lane.b32.xlu0 %v3370, 96
        %v3559 = vpop.permute.xlu0 %3558
        %3560 = vrot.lane.b32.xlu0 %v3371, 96
        %v3561 = vpop.permute.xlu0 %3560
        %3562 = vrot.lane.b32.xlu0 %v3372, 96
        %v3563 = vpop.permute.xlu0 %3562
        %3564 = vrot.lane.b32.xlu0 %v3373, 96
        %v3565 = vpop.permute.xlu0 %3564
        %3630 = vst.msk [vmem:[#allocation3 + $0x8] sm:$0xff] %vm2348, %v3439
        %3631 = vst.msk [vmem:[#allocation3 + $0x20] sm:$0xff] %vm2348, %v3441
        %3632 = vst.msk [vmem:[#allocation3 + $0x38] sm:$0xff] %vm2348, %v3443
        %3633 = vst.msk [vmem:[#allocation3 + $0x50] sm:$0xff] %vm2348, %v3445
        %3634 = vst.msk [vmem:[#allocation3 + $0x68] sm:$0xff] %vm2348, %v3447
        %3635 = vst.msk [vmem:[#allocation3 + $0x80] sm:$0xff] %vm2348, %v3449
        %3636 = vst.msk [vmem:[#allocation3 + $0x98] sm:$0xff] %vm2348, %v3451
        %3637 = vst.msk [vmem:[#allocation3 + $0xb0] sm:$0xff] %vm2348, %v3453
        %3638 = vst.msk [vmem:[#allocation3 + $0xc8] sm:$0xff] %vm2348, %v3455
        %3639 = vst.msk [vmem:[#allocation3 + $0xe0] sm:$0xff] %vm2348, %v3457
        %3640 = vst.msk [vmem:[#allocation3 + $0xf8] sm:$0xff] %vm2348, %v3459
        %3641 = vst.msk [vmem:[#allocation3 + $0x110] sm:$0xff] %vm2348, %v3461
        %3642 = vst.msk [vmem:[#allocation3 + $0x128] sm:$0xff] %vm2348, %v3463
        %3643 = vst.msk [vmem:[#allocation3 + $0x140] sm:$0xff] %vm2348, %v3465
        %3644 = vst.msk [vmem:[#allocation3 + $0x158] sm:$0xff] %vm2348, %v3467
        %3645 = vst.msk [vmem:[#allocation3 + $0x170] sm:$0xff] %vm2348, %v3469
        %3646 = vst.msk [vmem:[#allocation3 + $0x188] sm:$0xff] %vm2348, %v3471
        %3647 = vst.msk [vmem:[#allocation3 + $0x1a0] sm:$0xff] %vm2348, %v3473
        %3648 = vst.msk [vmem:[#allocation3 + $0x1b8] sm:$0xff] %vm2348, %v3475
        %3649 = vst.msk [vmem:[#allocation3 + $0x1d0] sm:$0xff] %vm2348, %v3477
        %3650 = vst.msk [vmem:[#allocation3 + $0x1e8] sm:$0xff] %vm2348, %v3479
        %3651 = vst.msk [vmem:[#allocation3 + $0x200] sm:$0xff] %vm2348, %v3481
        %3652 = vst.msk [vmem:[#allocation3 + $0x218] sm:$0xff] %vm2348, %v3483
        %3653 = vst.msk [vmem:[#allocation3 + $0x230] sm:$0xff] %vm2348, %v3485
        %3654 = vst.msk [vmem:[#allocation3 + $0x248] sm:$0xff] %vm2348, %v3487
        %3655 = vst.msk [vmem:[#allocation3 + $0x260] sm:$0xff] %vm2348, %v3489
        %3656 = vst.msk [vmem:[#allocation3 + $0x278] sm:$0xff] %vm2348, %v3491
        %3657 = vst.msk [vmem:[#allocation3 + $0x290] sm:$0xff] %vm2348, %v3493
        %3658 = vst.msk [vmem:[#allocation3 + $0x2a8] sm:$0xff] %vm2348, %v3495
        %3659 = vst.msk [vmem:[#allocation3 + $0x2c0] sm:$0xff] %vm2348, %v3497
        %3660 = vst.msk [vmem:[#allocation3 + $0x2d8] sm:$0xff] %vm2348, %v3499
        %3661 = vst.msk [vmem:[#allocation3 + $0x2f0] sm:$0xff] %vm2348, %v3501
        %3662 = vst.msk [vmem:[#allocation3 + $0x308] sm:$0xff] %vm2348, %v3503
        %3663 = vst.msk [vmem:[#allocation3 + $0x320] sm:$0xff] %vm2348, %v3505
        %3664 = vst.msk [vmem:[#allocation3 + $0x338] sm:$0xff] %vm2348, %v3507
        %3665 = vst.msk [vmem:[#allocation3 + $0x350] sm:$0xff] %vm2348, %v3509
        %3666 = vst.msk [vmem:[#allocation3 + $0x368] sm:$0xff] %vm2348, %v3511
        %3667 = vst.msk [vmem:[#allocation3 + $0x380] sm:$0xff] %vm2348, %v3513
        %3668 = vst.msk [vmem:[#allocation3 + $0x398] sm:$0xff] %vm2348, %v3515
        %3669 = vst.msk [vmem:[#allocation3 + $0x3b0] sm:$0xff] %vm2348, %v3517
        %3670 = vst.msk [vmem:[#allocation3 + $0x3c8] sm:$0xff] %vm2348, %v3519
        %3671 = vst.msk [vmem:[#allocation3 + $0x3e0] sm:$0xff] %vm2348, %v3521
        %3672 = vst.msk [vmem:[#allocation3 + $0x3f8] sm:$0xff] %vm2348, %v3523
        %3673 = vst.msk [vmem:[#allocation3 + $0x410] sm:$0xff] %vm2348, %v3525
        %3674 = vst.msk [vmem:[#allocation3 + $0x428] sm:$0xff] %vm2348, %v3527
        %3675 = vst.msk [vmem:[#allocation3 + $0x440] sm:$0xff] %vm2348, %v3529
        %3676 = vst.msk [vmem:[#allocation3 + $0x458] sm:$0xff] %vm2348, %v3531
        %3677 = vst.msk [vmem:[#allocation3 + $0x470] sm:$0xff] %vm2348, %v3533
        %3678 = vst.msk [vmem:[#allocation3 + $0x488] sm:$0xff] %vm2348, %v3535
        %3679 = vst.msk [vmem:[#allocation3 + $0x4a0] sm:$0xff] %vm2348, %v3537
        %3680 = vst.msk [vmem:[#allocation3 + $0x4b8] sm:$0xff] %vm2348, %v3539
        %3681 = vst.msk [vmem:[#allocation3 + $0x4d0] sm:$0xff] %vm2348, %v3541
        %3682 = vst.msk [vmem:[#allocation3 + $0x4e8] sm:$0xff] %vm2348, %v3543
        %3683 = vst.msk [vmem:[#allocation3 + $0x500] sm:$0xff] %vm2348, %v3545
        %3684 = vst.msk [vmem:[#allocation3 + $0x518] sm:$0xff] %vm2348, %v3547
        %3685 = vst.msk [vmem:[#allocation3 + $0x530] sm:$0xff] %vm2348, %v3549
        %3686 = vst.msk [vmem:[#allocation3 + $0x548] sm:$0xff] %vm2348, %v3551
        %3687 = vst.msk [vmem:[#allocation3 + $0x560] sm:$0xff] %vm2348, %v3553
        %3688 = vst.msk [vmem:[#allocation3 + $0x578] sm:$0xff] %vm2348, %v3555
        %3689 = vst.msk [vmem:[#allocation3 + $0x590] sm:$0xff] %vm2348, %v3557
        %3690 = vst.msk [vmem:[#allocation3 + $0x5a8] sm:$0xff] %vm2348, %v3559
        %3691 = vst.msk [vmem:[#allocation3 + $0x5c0] sm:$0xff] %vm2348, %v3561
        %3692 = vst.msk [vmem:[#allocation3 + $0x5d8] sm:$0xff] %vm2348, %v3563
        %3693 = vst.msk [vmem:[#allocation3 + $0x5f0] sm:$0xff] %vm2348, %v3565
        %v3694 = vld [vmem:[%s2925 + $0x2] sm:$0xff]
        %v3695 = vld [vmem:[%s2925 + $0x12] sm:$0xff]
        %v3696 = vld [vmem:[%s2925 + $0x22] sm:$0xff]
        %v3697 = vld [vmem:[%s2925 + $0x32] sm:$0xff]
        %v3698 = vld [vmem:[%s2925 + $0x42] sm:$0xff]
        %v3699 = vld [vmem:[%s2925 + $0x52] sm:$0xff]
        %v3700 = vld [vmem:[%s2925 + $0x62] sm:$0xff]
        %v3701 = vld [vmem:[%s2925 + $0x72] sm:$0xff]
        %v3702 = vld [vmem:[%s2925 + $0xa2] sm:$0xff]
        %v3703 = vld [vmem:[%s2925 + $0xb2] sm:$0xff]
        %v3704 = vld [vmem:[%s2925 + $0xc2] sm:$0xff]
        %v3705 = vld [vmem:[%s2925 + $0xd2] sm:$0xff]
        %v3706 = vld [vmem:[%s2925 + $0xe2] sm:$0xff]
        %v3707 = vld [vmem:[%s2925 + $0xf2] sm:$0xff]
        %v3708 = vld [vmem:[%s2925 + $0x102] sm:$0xff]
        %v3709 = vld [vmem:[%s2925 + $0x112] sm:$0xff]
        %v3710 = vld [vmem:[%s2925 + $0x142] sm:$0xff]
        %v3711 = vld [vmem:[%s2925 + $0x152] sm:$0xff]
        %v3712 = vld [vmem:[%s2925 + $0x162] sm:$0xff]
        %v3713 = vld [vmem:[%s2925 + $0x172] sm:$0xff]
        %v3714 = vld [vmem:[%s2925 + $0x182] sm:$0xff]
        %v3715 = vld [vmem:[%s2925 + $0x192] sm:$0xff]
        %v3716 = vld [vmem:[%s2925 + $0x1a2] sm:$0xff]
        %v3717 = vld [vmem:[%s2925 + $0x1b2] sm:$0xff]
        %v3718 = vld [vmem:[%s2925 + $0x1e2] sm:$0xff]
        %v3719 = vld [vmem:[%s2925 + $0x1f2] sm:$0xff]
        %v3720 = vld [vmem:[%s2925 + $0x202] sm:$0xff]
        %v3721 = vld [vmem:[%s2925 + $0x212] sm:$0xff]
        %v3722 = vld [vmem:[%s2925 + $0x222] sm:$0xff]
        %v3723 = vld [vmem:[%s2925 + $0x232] sm:$0xff]
        %v3724 = vld [vmem:[%s2925 + $0x242] sm:$0xff]
        %v3725 = vld [vmem:[%s2925 + $0x252] sm:$0xff]
        %v3726 = vld [vmem:[%s2925 + $0x282] sm:$0xff]
        %v3727 = vld [vmem:[%s2925 + $0x292] sm:$0xff]
        %v3728 = vld [vmem:[%s2925 + $0x2a2] sm:$0xff]
        %v3729 = vld [vmem:[%s2925 + $0x2b2] sm:$0xff]
        %v3730 = vld [vmem:[%s2925 + $0x2c2] sm:$0xff]
        %v3731 = vld [vmem:[%s2925 + $0x2d2] sm:$0xff]
        %v3732 = vld [vmem:[%s2925 + $0x2e2] sm:$0xff]
        %v3733 = vld [vmem:[%s2925 + $0x2f2] sm:$0xff]
        %v3734 = vld [vmem:[%s2925 + $0x322] sm:$0xff]
        %v3735 = vld [vmem:[%s2925 + $0x332] sm:$0xff]
        %v3736 = vld [vmem:[%s2925 + $0x342] sm:$0xff]
        %v3737 = vld [vmem:[%s2925 + $0x352] sm:$0xff]
        %v3738 = vld [vmem:[%s2925 + $0x362] sm:$0xff]
        %v3739 = vld [vmem:[%s2925 + $0x372] sm:$0xff]
        %v3740 = vld [vmem:[%s2925 + $0x382] sm:$0xff]
        %v3741 = vld [vmem:[%s2925 + $0x392] sm:$0xff]
        %v3742 = vld [vmem:[%s2925 + $0x3c2] sm:$0xff]
        %v3743 = vld [vmem:[%s2925 + $0x3d2] sm:$0xff]
        %v3744 = vld [vmem:[%s2925 + $0x3e2] sm:$0xff]
        %v3745 = vld [vmem:[%s2925 + $0x3f2] sm:$0xff]
        %v3746 = vld [vmem:[%s2925 + $0x402] sm:$0xff]
        %v3747 = vld [vmem:[%s2925 + $0x412] sm:$0xff]
        %v3748 = vld [vmem:[%s2925 + $0x422] sm:$0xff]
        %v3749 = vld [vmem:[%s2925 + $0x432] sm:$0xff]
        %v3750 = vld [vmem:[%s2925 + $0x462] sm:$0xff]
        %v3751 = vld [vmem:[%s2925 + $0x472] sm:$0xff]
        %v3752 = vld [vmem:[%s2925 + $0x482] sm:$0xff]
        %v3753 = vld [vmem:[%s2925 + $0x492] sm:$0xff]
        %v3754 = vld [vmem:[%s2925 + $0x4a2] sm:$0xff]
        %v3755 = vld [vmem:[%s2925 + $0x4b2] sm:$0xff]
        %v3756 = vld [vmem:[%s2925 + $0x4c2] sm:$0xff]
        %v3757 = vld [vmem:[%s2925 + $0x4d2] sm:$0xff]
        %3758 = vst.msk [vmem:[#allocation3 + $0x10] sm:$0xff] %vm300, %v3694
        %3759 = vst.msk [vmem:[#allocation3 + $0x28] sm:$0xff] %vm300, %v3695
        %3760 = vst.msk [vmem:[#allocation3 + $0x40] sm:$0xff] %vm300, %v3696
        %3761 = vst.msk [vmem:[#allocation3 + $0x58] sm:$0xff] %vm300, %v3697
        %3762 = vst.msk [vmem:[#allocation3 + $0x70] sm:$0xff] %vm300, %v3698
        %3763 = vst.msk [vmem:[#allocation3 + $0x88] sm:$0xff] %vm300, %v3699
        %3764 = vst.msk [vmem:[#allocation3 + $0xa0] sm:$0xff] %vm300, %v3700
        %3765 = vst.msk [vmem:[#allocation3 + $0xb8] sm:$0xff] %vm300, %v3701
        %3766 = vst.msk [vmem:[#allocation3 + $0xd0] sm:$0xff] %vm300, %v3702
        %3767 = vst.msk [vmem:[#allocation3 + $0xe8] sm:$0xff] %vm300, %v3703
        %3768 = vst.msk [vmem:[#allocation3 + $0x100] sm:$0xff] %vm300, %v3704
        %3769 = vst.msk [vmem:[#allocation3 + $0x118] sm:$0xff] %vm300, %v3705
        %3770 = vst.msk [vmem:[#allocation3 + $0x130] sm:$0xff] %vm300, %v3706
        %3771 = vst.msk [vmem:[#allocation3 + $0x148] sm:$0xff] %vm300, %v3707
        %3772 = vst.msk [vmem:[#allocation3 + $0x160] sm:$0xff] %vm300, %v3708
        %3773 = vst.msk [vmem:[#allocation3 + $0x178] sm:$0xff] %vm300, %v3709
        %3774 = vst.msk [vmem:[#allocation3 + $0x190] sm:$0xff] %vm300, %v3710
        %3775 = vst.msk [vmem:[#allocation3 + $0x1a8] sm:$0xff] %vm300, %v3711
        %3776 = vst.msk [vmem:[#allocation3 + $0x1c0] sm:$0xff] %vm300, %v3712
        %3777 = vst.msk [vmem:[#allocation3 + $0x1d8] sm:$0xff] %vm300, %v3713
        %3778 = vst.msk [vmem:[#allocation3 + $0x1f0] sm:$0xff] %vm300, %v3714
        %3779 = vst.msk [vmem:[#allocation3 + $0x208] sm:$0xff] %vm300, %v3715
        %3780 = vst.msk [vmem:[#allocation3 + $0x220] sm:$0xff] %vm300, %v3716
        %3781 = vst.msk [vmem:[#allocation3 + $0x238] sm:$0xff] %vm300, %v3717
        %3782 = vst.msk [vmem:[#allocation3 + $0x250] sm:$0xff] %vm300, %v3718
        %3783 = vst.msk [vmem:[#allocation3 + $0x268] sm:$0xff] %vm300, %v3719
        %3784 = vst.msk [vmem:[#allocation3 + $0x280] sm:$0xff] %vm300, %v3720
        %3785 = vst.msk [vmem:[#allocation3 + $0x298] sm:$0xff] %vm300, %v3721
        %3786 = vst.msk [vmem:[#allocation3 + $0x2b0] sm:$0xff] %vm300, %v3722
        %3787 = vst.msk [vmem:[#allocation3 + $0x2c8] sm:$0xff] %vm300, %v3723
        %3788 = vst.msk [vmem:[#allocation3 + $0x2e0] sm:$0xff] %vm300, %v3724
        %3789 = vst.msk [vmem:[#allocation3 + $0x2f8] sm:$0xff] %vm300, %v3725
        %3790 = vst.msk [vmem:[#allocation3 + $0x310] sm:$0xff] %vm300, %v3726
        %3791 = vst.msk [vmem:[#allocation3 + $0x328] sm:$0xff] %vm300, %v3727
        %3792 = vst.msk [vmem:[#allocation3 + $0x340] sm:$0xff] %vm300, %v3728
        %3793 = vst.msk [vmem:[#allocation3 + $0x358] sm:$0xff] %vm300, %v3729
        %3794 = vst.msk [vmem:[#allocation3 + $0x370] sm:$0xff] %vm300, %v3730
        %3795 = vst.msk [vmem:[#allocation3 + $0x388] sm:$0xff] %vm300, %v3731
        %3796 = vst.msk [vmem:[#allocation3 + $0x3a0] sm:$0xff] %vm300, %v3732
        %3797 = vst.msk [vmem:[#allocation3 + $0x3b8] sm:$0xff] %vm300, %v3733
        %3798 = vst.msk [vmem:[#allocation3 + $0x3d0] sm:$0xff] %vm300, %v3734
        %3799 = vst.msk [vmem:[#allocation3 + $0x3e8] sm:$0xff] %vm300, %v3735
        %3800 = vst.msk [vmem:[#allocation3 + $0x400] sm:$0xff] %vm300, %v3736
        %3801 = vst.msk [vmem:[#allocation3 + $0x418] sm:$0xff] %vm300, %v3737
        %3802 = vst.msk [vmem:[#allocation3 + $0x430] sm:$0xff] %vm300, %v3738
        %3803 = vst.msk [vmem:[#allocation3 + $0x448] sm:$0xff] %vm300, %v3739
        %3804 = vst.msk [vmem:[#allocation3 + $0x460] sm:$0xff] %vm300, %v3740
        %3805 = vst.msk [vmem:[#allocation3 + $0x478] sm:$0xff] %vm300, %v3741
        %3806 = vst.msk [vmem:[#allocation3 + $0x490] sm:$0xff] %vm300, %v3742
        %3807 = vst.msk [vmem:[#allocation3 + $0x4a8] sm:$0xff] %vm300, %v3743
        %3808 = vst.msk [vmem:[#allocation3 + $0x4c0] sm:$0xff] %vm300, %v3744
        %3809 = vst.msk [vmem:[#allocation3 + $0x4d8] sm:$0xff] %vm300, %v3745
        %3810 = vst.msk [vmem:[#allocation3 + $0x4f0] sm:$0xff] %vm300, %v3746
        %3811 = vst.msk [vmem:[#allocation3 + $0x508] sm:$0xff] %vm300, %v3747
        %3812 = vst.msk [vmem:[#allocation3 + $0x520] sm:$0xff] %vm300, %v3748
        %3813 = vst.msk [vmem:[#allocation3 + $0x538] sm:$0xff] %vm300, %v3749
        %3814 = vst.msk [vmem:[#allocation3 + $0x550] sm:$0xff] %vm300, %v3750
        %3815 = vst.msk [vmem:[#allocation3 + $0x568] sm:$0xff] %vm300, %v3751
        %3816 = vst.msk [vmem:[#allocation3 + $0x580] sm:$0xff] %vm300, %v3752
        %3817 = vst.msk [vmem:[#allocation3 + $0x598] sm:$0xff] %vm300, %v3753
        %3818 = vst.msk [vmem:[#allocation3 + $0x5b0] sm:$0xff] %vm300, %v3754
        %3819 = vst.msk [vmem:[#allocation3 + $0x5c8] sm:$0xff] %vm300, %v3755
        %3820 = vst.msk [vmem:[#allocation3 + $0x5e0] sm:$0xff] %vm300, %v3756
        %3821 = vst.msk [vmem:[#allocation3 + $0x5f8] sm:$0xff] %vm300, %v3757
        %v3822 = vld [vmem:[#allocation3] sm:$0xff]
        %v3823 = vld [vmem:[#allocation3 + $0x8] sm:$0xff]
        %v3824 = vld [vmem:[#allocation3 + $0x10] sm:$0xff]
        %v3825 = vld [vmem:[#allocation3 + $0x18] sm:$0xff]
        %v3826 = vld [vmem:[#allocation3 + $0x20] sm:$0xff]
        %v3827 = vld [vmem:[#allocation3 + $0x28] sm:$0xff]
        %v3828 = vld [vmem:[#allocation3 + $0x30] sm:$0xff]
        %v3829 = vld [vmem:[#allocation3 + $0x38] sm:$0xff]
        %v3830 = vld [vmem:[#allocation3 + $0x40] sm:$0xff]
        %v3831 = vld [vmem:[#allocation3 + $0x48] sm:$0xff]
        %v3832 = vld [vmem:[#allocation3 + $0x50] sm:$0xff]
        %v3833 = vld [vmem:[#allocation3 + $0x58] sm:$0xff]
        %v3834 = vld [vmem:[#allocation3 + $0x60] sm:$0xff]
        %v3835 = vld [vmem:[#allocation3 + $0x68] sm:$0xff]
        %v3836 = vld [vmem:[#allocation3 + $0x70] sm:$0xff]
        %v3837 = vld [vmem:[#allocation3 + $0x78] sm:$0xff]
        %v3838 = vld [vmem:[#allocation3 + $0x80] sm:$0xff]
        %v3839 = vld [vmem:[#allocation3 + $0x88] sm:$0xff]
        %v3840 = vld [vmem:[#allocation3 + $0x90] sm:$0xff]
        %v3841 = vld [vmem:[#allocation3 + $0x98] sm:$0xff]
        %v3842 = vld [vmem:[#allocation3 + $0xa0] sm:$0xff]
        %v3843 = vld [vmem:[#allocation3 + $0xa8] sm:$0xff]
        %v3844 = vld [vmem:[#allocation3 + $0xb0] sm:$0xff]
        %v3845 = vld [vmem:[#allocation3 + $0xb8] sm:$0xff]
        %v3846 = vld [vmem:[#allocation3 + $0xc0] sm:$0xff]
        %v3847 = vld [vmem:[#allocation3 + $0xc8] sm:$0xff]
        %v3848 = vld [vmem:[#allocation3 + $0xd0] sm:$0xff]
        %v3849 = vld [vmem:[#allocation3 + $0xd8] sm:$0xff]
        %v3850 = vld [vmem:[#allocation3 + $0xe0] sm:$0xff]
        %v3851 = vld [vmem:[#allocation3 + $0xe8] sm:$0xff]
        %v3852 = vld [vmem:[#allocation3 + $0xf0] sm:$0xff]
        %v3853 = vld [vmem:[#allocation3 + $0xf8] sm:$0xff]
        %v3854 = vld [vmem:[#allocation3 + $0x100] sm:$0xff]
        %v3855 = vld [vmem:[#allocation3 + $0x108] sm:$0xff]
        %v3856 = vld [vmem:[#allocation3 + $0x110] sm:$0xff]
        %v3857 = vld [vmem:[#allocation3 + $0x118] sm:$0xff]
        %v3858 = vld [vmem:[#allocation3 + $0x120] sm:$0xff]
        %v3859 = vld [vmem:[#allocation3 + $0x128] sm:$0xff]
        %v3860 = vld [vmem:[#allocation3 + $0x130] sm:$0xff]
        %v3861 = vld [vmem:[#allocation3 + $0x138] sm:$0xff]
        %v3862 = vld [vmem:[#allocation3 + $0x140] sm:$0xff]
        %v3863 = vld [vmem:[#allocation3 + $0x148] sm:$0xff]
        %v3864 = vld [vmem:[#allocation3 + $0x150] sm:$0xff]
        %v3865 = vld [vmem:[#allocation3 + $0x158] sm:$0xff]
        %v3866 = vld [vmem:[#allocation3 + $0x160] sm:$0xff]
        %v3867 = vld [vmem:[#allocation3 + $0x168] sm:$0xff]
        %v3868 = vld [vmem:[#allocation3 + $0x170] sm:$0xff]
        %v3869 = vld [vmem:[#allocation3 + $0x178] sm:$0xff]
        %v3870 = vld [vmem:[#allocation3 + $0x180] sm:$0xff]
        %v3871 = vld [vmem:[#allocation3 + $0x188] sm:$0xff]
        %v3872 = vld [vmem:[#allocation3 + $0x190] sm:$0xff]
        %v3873 = vld [vmem:[#allocation3 + $0x198] sm:$0xff]
        %v3874 = vld [vmem:[#allocation3 + $0x1a0] sm:$0xff]
        %v3875 = vld [vmem:[#allocation3 + $0x1a8] sm:$0xff]
        %v3876 = vld [vmem:[#allocation3 + $0x1b0] sm:$0xff]
        %v3877 = vld [vmem:[#allocation3 + $0x1b8] sm:$0xff]
        %v3878 = vld [vmem:[#allocation3 + $0x1c0] sm:$0xff]
        %v3879 = vld [vmem:[#allocation3 + $0x1c8] sm:$0xff]
        %v3880 = vld [vmem:[#allocation3 + $0x1d0] sm:$0xff]
        %v3881 = vld [vmem:[#allocation3 + $0x1d8] sm:$0xff]
        %v3882 = vld [vmem:[#allocation3 + $0x1e0] sm:$0xff]
        %v3883 = vld [vmem:[#allocation3 + $0x1e8] sm:$0xff]
        %v3884 = vld [vmem:[#allocation3 + $0x1f0] sm:$0xff]
        %v3885 = vld [vmem:[#allocation3 + $0x1f8] sm:$0xff]
        %v3886 = vld [vmem:[#allocation3 + $0x200] sm:$0xff]
        %v3887 = vld [vmem:[#allocation3 + $0x208] sm:$0xff]
        %v3888 = vld [vmem:[#allocation3 + $0x210] sm:$0xff]
        %v3889 = vld [vmem:[#allocation3 + $0x218] sm:$0xff]
        %v3890 = vld [vmem:[#allocation3 + $0x220] sm:$0xff]
        %v3891 = vld [vmem:[#allocation3 + $0x228] sm:$0xff]
        %v3892 = vld [vmem:[#allocation3 + $0x230] sm:$0xff]
        %v3893 = vld [vmem:[#allocation3 + $0x238] sm:$0xff]
        %v3894 = vld [vmem:[#allocation3 + $0x240] sm:$0xff]
        %v3895 = vld [vmem:[#allocation3 + $0x248] sm:$0xff]
        %v3896 = vld [vmem:[#allocation3 + $0x250] sm:$0xff]
        %v3897 = vld [vmem:[#allocation3 + $0x258] sm:$0xff]
        %v3898 = vld [vmem:[#allocation3 + $0x260] sm:$0xff]
        %v3899 = vld [vmem:[#allocation3 + $0x268] sm:$0xff]
        %v3900 = vld [vmem:[#allocation3 + $0x270] sm:$0xff]
        %v3901 = vld [vmem:[#allocation3 + $0x278] sm:$0xff]
        %v3902 = vld [vmem:[#allocation3 + $0x280] sm:$0xff]
        %v3903 = vld [vmem:[#allocation3 + $0x288] sm:$0xff]
        %v3904 = vld [vmem:[#allocation3 + $0x290] sm:$0xff]
        %v3905 = vld [vmem:[#allocation3 + $0x298] sm:$0xff]
        %v3906 = vld [vmem:[#allocation3 + $0x2a0] sm:$0xff]
        %v3907 = vld [vmem:[#allocation3 + $0x2a8] sm:$0xff]
        %v3908 = vld [vmem:[#allocation3 + $0x2b0] sm:$0xff]
        %v3909 = vld [vmem:[#allocation3 + $0x2b8] sm:$0xff]
        %v3910 = vld [vmem:[#allocation3 + $0x2c0] sm:$0xff]
        %v3911 = vld [vmem:[#allocation3 + $0x2c8] sm:$0xff]
        %v3912 = vld [vmem:[#allocation3 + $0x2d0] sm:$0xff]
        %v3913 = vld [vmem:[#allocation3 + $0x2d8] sm:$0xff]
        %v3914 = vld [vmem:[#allocation3 + $0x2e0] sm:$0xff]
        %v3915 = vld [vmem:[#allocation3 + $0x2e8] sm:$0xff]
        %v3916 = vld [vmem:[#allocation3 + $0x2f0] sm:$0xff]
        %v3917 = vld [vmem:[#allocation3 + $0x2f8] sm:$0xff]
        %v3918 = vld [vmem:[#allocation3 + $0x300] sm:$0xff]
        %v3919 = vld [vmem:[#allocation3 + $0x308] sm:$0xff]
        %v3920 = vld [vmem:[#allocation3 + $0x310] sm:$0xff]
        %v3921 = vld [vmem:[#allocation3 + $0x318] sm:$0xff]
        %v3922 = vld [vmem:[#allocation3 + $0x320] sm:$0xff]
        %v3923 = vld [vmem:[#allocation3 + $0x328] sm:$0xff]
        %v3924 = vld [vmem:[#allocation3 + $0x330] sm:$0xff]
        %v3925 = vld [vmem:[#allocation3 + $0x338] sm:$0xff]
        %v3926 = vld [vmem:[#allocation3 + $0x340] sm:$0xff]
        %v3927 = vld [vmem:[#allocation3 + $0x348] sm:$0xff]
        %v3928 = vld [vmem:[#allocation3 + $0x350] sm:$0xff]
        %v3929 = vld [vmem:[#allocation3 + $0x358] sm:$0xff]
        %v3930 = vld [vmem:[#allocation3 + $0x360] sm:$0xff]
        %v3931 = vld [vmem:[#allocation3 + $0x368] sm:$0xff]
        %v3932 = vld [vmem:[#allocation3 + $0x370] sm:$0xff]
        %v3933 = vld [vmem:[#allocation3 + $0x378] sm:$0xff]
        %v3934 = vld [vmem:[#allocation3 + $0x380] sm:$0xff]
        %v3935 = vld [vmem:[#allocation3 + $0x388] sm:$0xff]
        %v3936 = vld [vmem:[#allocation3 + $0x390] sm:$0xff]
        %v3937 = vld [vmem:[#allocation3 + $0x398] sm:$0xff]
        %v3938 = vld [vmem:[#allocation3 + $0x3a0] sm:$0xff]
        %v3939 = vld [vmem:[#allocation3 + $0x3a8] sm:$0xff]
        %v3940 = vld [vmem:[#allocation3 + $0x3b0] sm:$0xff]
        %v3941 = vld [vmem:[#allocation3 + $0x3b8] sm:$0xff]
        %v3942 = vld [vmem:[#allocation3 + $0x3c0] sm:$0xff]
        %v3943 = vld [vmem:[#allocation3 + $0x3c8] sm:$0xff]
        %v3944 = vld [vmem:[#allocation3 + $0x3d0] sm:$0xff]
        %v3945 = vld [vmem:[#allocation3 + $0x3d8] sm:$0xff]
        %v3946 = vld [vmem:[#allocation3 + $0x3e0] sm:$0xff]
        %v3947 = vld [vmem:[#allocation3 + $0x3e8] sm:$0xff]
        %v3948 = vld [vmem:[#allocation3 + $0x3f0] sm:$0xff]
        %v3949 = vld [vmem:[#allocation3 + $0x3f8] sm:$0xff]
        %v3950 = vld [vmem:[#allocation3 + $0x400] sm:$0xff]
        %v3951 = vld [vmem:[#allocation3 + $0x408] sm:$0xff]
        %v3952 = vld [vmem:[#allocation3 + $0x410] sm:$0xff]
        %v3953 = vld [vmem:[#allocation3 + $0x418] sm:$0xff]
        %v3954 = vld [vmem:[#allocation3 + $0x420] sm:$0xff]
        %v3955 = vld [vmem:[#allocation3 + $0x428] sm:$0xff]
        %v3956 = vld [vmem:[#allocation3 + $0x430] sm:$0xff]
        %v3957 = vld [vmem:[#allocation3 + $0x438] sm:$0xff]
        %v3958 = vld [vmem:[#allocation3 + $0x440] sm:$0xff]
        %v3959 = vld [vmem:[#allocation3 + $0x448] sm:$0xff]
        %v3960 = vld [vmem:[#allocation3 + $0x450] sm:$0xff]
        %v3961 = vld [vmem:[#allocation3 + $0x458] sm:$0xff]
        %v3962 = vld [vmem:[#allocation3 + $0x460] sm:$0xff]
        %v3963 = vld [vmem:[#allocation3 + $0x468] sm:$0xff]
        %v3964 = vld [vmem:[#allocation3 + $0x470] sm:$0xff]
        %v3965 = vld [vmem:[#allocation3 + $0x478] sm:$0xff]
        %v3966 = vld [vmem:[#allocation3 + $0x480] sm:$0xff]
        %v3967 = vld [vmem:[#allocation3 + $0x488] sm:$0xff]
        %v3968 = vld [vmem:[#allocation3 + $0x490] sm:$0xff]
        %v3969 = vld [vmem:[#allocation3 + $0x498] sm:$0xff]
        %v3970 = vld [vmem:[#allocation3 + $0x4a0] sm:$0xff]
        %v3971 = vld [vmem:[#allocation3 + $0x4a8] sm:$0xff]
        %v3972 = vld [vmem:[#allocation3 + $0x4b0] sm:$0xff]
        %v3973 = vld [vmem:[#allocation3 + $0x4b8] sm:$0xff]
        %v3974 = vld [vmem:[#allocation3 + $0x4c0] sm:$0xff]
        %v3975 = vld [vmem:[#allocation3 + $0x4c8] sm:$0xff]
        %v3976 = vld [vmem:[#allocation3 + $0x4d0] sm:$0xff]
        %v3977 = vld [vmem:[#allocation3 + $0x4d8] sm:$0xff]
        %v3978 = vld [vmem:[#allocation3 + $0x4e0] sm:$0xff]
        %v3979 = vld [vmem:[#allocation3 + $0x4e8] sm:$0xff]
        %v3980 = vld [vmem:[#allocation3 + $0x4f0] sm:$0xff]
        %v3981 = vld [vmem:[#allocation3 + $0x4f8] sm:$0xff]
        %v3982 = vld [vmem:[#allocation3 + $0x500] sm:$0xff]
        %v3983 = vld [vmem:[#allocation3 + $0x508] sm:$0xff]
        %v3984 = vld [vmem:[#allocation3 + $0x510] sm:$0xff]
        %v3985 = vld [vmem:[#allocation3 + $0x518] sm:$0xff]
        %v3986 = vld [vmem:[#allocation3 + $0x520] sm:$0xff]
        %v3987 = vld [vmem:[#allocation3 + $0x528] sm:$0xff]
        %v3988 = vld [vmem:[#allocation3 + $0x530] sm:$0xff]
        %v3989 = vld [vmem:[#allocation3 + $0x538] sm:$0xff]
        %v3990 = vld [vmem:[#allocation3 + $0x540] sm:$0xff]
        %v3991 = vld [vmem:[#allocation3 + $0x548] sm:$0xff]
        %v3992 = vld [vmem:[#allocation3 + $0x550] sm:$0xff]
        %v3993 = vld [vmem:[#allocation3 + $0x558] sm:$0xff]
        %v3994 = vld [vmem:[#allocation3 + $0x560] sm:$0xff]
        %v3995 = vld [vmem:[#allocation3 + $0x568] sm:$0xff]
        %v3996 = vld [vmem:[#allocation3 + $0x570] sm:$0xff]
        %v3997 = vld [vmem:[#allocation3 + $0x578] sm:$0xff]
        %v3998 = vld [vmem:[#allocation3 + $0x580] sm:$0xff]
        %v3999 = vld [vmem:[#allocation3 + $0x588] sm:$0xff]
        %v4000 = vld [vmem:[#allocation3 + $0x590] sm:$0xff]
        %v4001 = vld [vmem:[#allocation3 + $0x598] sm:$0xff]
        %v4002 = vld [vmem:[#allocation3 + $0x5a0] sm:$0xff]
        %v4003 = vld [vmem:[#allocation3 + $0x5a8] sm:$0xff]
        %v4004 = vld [vmem:[#allocation3 + $0x5b0] sm:$0xff]
        %v4005 = vld [vmem:[#allocation3 + $0x5b8] sm:$0xff]
        %v4006 = vld [vmem:[#allocation3 + $0x5c0] sm:$0xff]
        %v4007 = vld [vmem:[#allocation3 + $0x5c8] sm:$0xff]
        %v4008 = vld [vmem:[#allocation3 + $0x5d0] sm:$0xff]
        %v4009 = vld [vmem:[#allocation3 + $0x5d8] sm:$0xff]
        %v4010 = vld [vmem:[#allocation3 + $0x5e0] sm:$0xff]
        %v4011 = vld [vmem:[#allocation3 + $0x5e8] sm:$0xff]
        %v4012 = vld [vmem:[#allocation3 + $0x5f0] sm:$0xff]
        %v4013 = vld [vmem:[#allocation3 + $0x5f8] sm:$0xff]
        %v4014 = vld [vmem:[%s3] sm:$0xff]
        %v4015 = vld [vmem:[%s3 + $0x8] sm:$0xff]
        %v4016 = vld [vmem:[%s3 + $0x10] sm:$0xff]
        %v4017 = vld [vmem:[%s3 + $0x18] sm:$0xff]
        %v4018 = vld [vmem:[%s3 + $0x20] sm:$0xff]
        %v4019 = vld [vmem:[%s3 + $0x28] sm:$0xff]
        %v4020 = vld [vmem:[%s3 + $0x30] sm:$0xff]
        %v4021 = vld [vmem:[%s3 + $0x38] sm:$0xff]
        %v4022 = vld [vmem:[%s3 + $0x40] sm:$0xff]
        %v4023 = vld [vmem:[%s3 + $0x48] sm:$0xff]
        %v4024 = vld [vmem:[%s3 + $0x50] sm:$0xff]
        %v4025 = vld [vmem:[%s3 + $0x58] sm:$0xff]
        %v4026 = vld [vmem:[%s3 + $0x60] sm:$0xff]
        %v4027 = vld [vmem:[%s3 + $0x68] sm:$0xff]
        %v4028 = vld [vmem:[%s3 + $0x70] sm:$0xff]
        %v4029 = vld [vmem:[%s3 + $0x78] sm:$0xff]
        %v4030 = vld [vmem:[%s3 + $0x80] sm:$0xff]
        %v4031 = vld [vmem:[%s3 + $0x88] sm:$0xff]
        %v4032 = vld [vmem:[%s3 + $0x90] sm:$0xff]
        %v4033 = vld [vmem:[%s3 + $0x98] sm:$0xff]
        %v4034 = vld [vmem:[%s3 + $0xa0] sm:$0xff]
        %v4035 = vld [vmem:[%s3 + $0xa8] sm:$0xff]
        %v4036 = vld [vmem:[%s3 + $0xb0] sm:$0xff]
        %v4037 = vld [vmem:[%s3 + $0xb8] sm:$0xff]
        %v4038 = vld [vmem:[%s3 + $0xc0] sm:$0xff]
        %v4039 = vld [vmem:[%s3 + $0xc8] sm:$0xff]
        %v4040 = vld [vmem:[%s3 + $0xd0] sm:$0xff]
        %v4041 = vld [vmem:[%s3 + $0xd8] sm:$0xff]
        %v4042 = vld [vmem:[%s3 + $0xe0] sm:$0xff]
        %v4043 = vld [vmem:[%s3 + $0xe8] sm:$0xff]
        %v4044 = vld [vmem:[%s3 + $0xf0] sm:$0xff]
        %v4045 = vld [vmem:[%s3 + $0xf8] sm:$0xff]
        %v4046 = vld [vmem:[%s3 + $0x100] sm:$0xff]
        %v4047 = vld [vmem:[%s3 + $0x108] sm:$0xff]
        %v4048 = vld [vmem:[%s3 + $0x110] sm:$0xff]
        %v4049 = vld [vmem:[%s3 + $0x118] sm:$0xff]
        %v4050 = vld [vmem:[%s3 + $0x120] sm:$0xff]
        %v4051 = vld [vmem:[%s3 + $0x128] sm:$0xff]
        %v4052 = vld [vmem:[%s3 + $0x130] sm:$0xff]
        %v4053 = vld [vmem:[%s3 + $0x138] sm:$0xff]
        %v4054 = vld [vmem:[%s3 + $0x140] sm:$0xff]
        %v4055 = vld [vmem:[%s3 + $0x148] sm:$0xff]
        %v4056 = vld [vmem:[%s3 + $0x150] sm:$0xff]
        %v4057 = vld [vmem:[%s3 + $0x158] sm:$0xff]
        %v4058 = vld [vmem:[%s3 + $0x160] sm:$0xff]
        %v4059 = vld [vmem:[%s3 + $0x168] sm:$0xff]
        %v4060 = vld [vmem:[%s3 + $0x170] sm:$0xff]
        %v4061 = vld [vmem:[%s3 + $0x178] sm:$0xff]
        %v4062 = vld [vmem:[%s4] sm:$0x1]
        %v4064 = vlaneseq
        %v4065 = vshrl.u32 %v4064, 7
        %v4066 = vsub.s32 0, %v4065
        %v4067 = vrot.slane %v4062, %v4066
        %4069 = vmatprep.subr.mxu0 0.0
        %4070 = vmatpush1.msra.mxu0 %v4014
        %4071 = vmatprep.subr.mxu0 0.0
        %4072 = vmatpush1.msra.mxu0 %v4015
        %4073 = vmatprep.subr.mxu0 0.0
        %4074 = vmatpush1.msra.mxu0 %v4016
        %4075 = vmatprep.subr.mxu0 0.0
        %4076 = vmatpush1.msra.mxu0 %v4017
        %4077 = vmatprep.subr.mxu0 0.0
        %4078 = vmatpush1.msra.mxu0 %v4018
        %4079 = vmatprep.subr.mxu0 0.0
        %4080 = vmatpush1.msra.mxu0 %v4019
        %4081 = vmatprep.subr.mxu0 0.0
        %4082 = vmatpush1.msra.mxu0 %v4020
        %4083 = vmatprep.subr.mxu0 0.0
        %4084 = vmatpush1.msra.mxu0 %v4021
        %4085 = vmatprep.subr.mxu0 0.0
        %4086 = vmatpush1.msra.mxu0 %v4022
        %4087 = vmatprep.subr.mxu0 0.0
        %4088 = vmatpush1.msra.mxu0 %v4023
        %4089 = vmatprep.subr.mxu0 0.0
        %4090 = vmatpush1.msra.mxu0 %v4024
        %4091 = vmatprep.subr.mxu0 0.0
        %4092 = vmatpush1.msra.mxu0 %v4025
        %4093 = vmatprep.subr.mxu0 0.0
        %4094 = vmatpush1.msra.mxu0 %v4026
        %4095 = vmatprep.subr.mxu0 0.0
        %4096 = vmatpush1.msra.mxu0 %v4027
        %4097 = vmatprep.subr.mxu0 0.0
        %4098 = vmatpush1.msra.mxu0 %v4028
        %4099 = vmatprep.subr.mxu0 0.0
        %4100 = vmatpush1.msra.mxu0 %v4029
        %4101 = vmatprep.subr.mxu0 0.0
        %4102 = vmatpush1.msra.mxu0 %v4030
        %4103 = vmatprep.subr.mxu0 0.0
        %4104 = vmatpush1.msra.mxu0 %v4031
        %4105 = vmatprep.subr.mxu0 0.0
        %4106 = vmatpush1.msra.mxu0 %v4032
        %4107 = vmatprep.subr.mxu0 0.0
        %4108 = vmatpush1.msra.mxu0 %v4033
        %4109 = vmatprep.subr.mxu0 0.0
        %4110 = vmatpush1.msra.mxu0 %v4034
        %4111 = vmatprep.subr.mxu0 0.0
        %4112 = vmatpush1.msra.mxu0 %v4035
        %4113 = vmatprep.subr.mxu0 0.0
        %4114 = vmatpush1.msra.mxu0 %v4036
        %4115 = vmatprep.subr.mxu0 0.0
        %4116 = vmatpush1.msra.mxu0 %v4037
        %4117 = vmatprep.subr.mxu0 0.0
        %4118 = vmatpush1.msra.mxu0 %v4038
        %4119 = vmatprep.subr.mxu0 0.0
        %4120 = vmatpush1.msra.mxu0 %v4039
        %4121 = vmatprep.subr.mxu0 0.0
        %4122 = vmatpush1.msra.mxu0 %v4040
        %4123 = vmatprep.subr.mxu0 0.0
        %4124 = vmatpush1.msra.mxu0 %v4041
        %4125 = vmatprep.subr.mxu0 0.0
        %4126 = vmatpush1.msra.mxu0 %v4042
        %4127 = vmatprep.subr.mxu0 0.0
        %4128 = vmatpush1.msra.mxu0 %v4043
        %4129 = vmatprep.subr.mxu0 0.0
        %4130 = vmatpush1.msra.mxu0 %v4044
        %4131 = vmatprep.subr.mxu0 0.0
        %4132 = vmatpush1.msra.mxu0 %v4045
        %4133 = vmatprep.mubr.f32.mxu0 %v3823
        %4134 = vmatmul.mubr.f32.gmra.mrb[0].mxu0 %v3822
        %v4135 = vpop.f32.mrb[0].mxu0
        %v4136 = vadd.f32 %v4067, %v4135
        %v4137 = vpop.f32.mrb[0].mxu0
        %4138 = vmatprep.mubr.f32.mxu0 %v3826
        %4139 = vmatmul.mubr.f32.gmra.mrb[0].mxu0 %v3825
        %v4140 = vpop.f32.mrb[0].mxu0
        %v4141 = vadd.f32 %v4067, %v4140
        %v4142 = vpop.f32.mrb[0].mxu0
        %4143 = vmatprep.mubr.f32.mxu0 %v3829
        %4144 = vmatmul.mubr.f32.gmra.mrb[0].mxu0 %v3828
        %v4145 = vpop.f32.mrb[0].mxu0
        %v4146 = vadd.f32 %v4067, %v4145
        %v4147 = vpop.f32.mrb[0].mxu0
        %4148 = vmatprep.mubr.f32.mxu0 %v3832
        %4149 = vmatmul.mubr.f32.gmra.mrb[0].mxu0 %v3831
        %v4150 = vpop.f32.mrb[0].mxu0
        %v4151 = vadd.f32 %v4067, %v4150
        %v4152 = vpop.f32.mrb[0].mxu0
        %4153 = vmatprep.mubr.f32.mxu0 %v3835
        %4154 = vmatmul.mubr.f32.gmra.mrb[0].mxu0 %v3834
        %v4155 = vpop.f32.mrb[0].mxu0
        %v4156 = vadd.f32 %v4067, %v4155
        %v4157 = vpop.f32.mrb[0].mxu0
        %4158 = vmatprep.mubr.f32.mxu0 %v3838
        %4159 = vmatmul.mubr.f32.gmra.mrb[0].mxu0 %v3837
        %v4160 = vpop.f32.mrb[0].mxu0
        %v4161 = vadd.f32 %v4067, %v4160
        %v4162 = vpop.f32.mrb[0].mxu0
        %4163 = vmatprep.mubr.f32.mxu0 %v3841
        %4164 = vmatmul.mubr.f32.gmra.mrb[0].mxu0 %v3840
        %v4165 = vpop.f32.mrb[0].mxu0
        %v4166 = vadd.f32 %v4067, %v4165
        %v4167 = vpop.f32.mrb[0].mxu0
        %4168 = vmatprep.mubr.f32.mxu0 %v3844
        %4169 = vmatmul.mubr.f32.gmra.mrb[0].mxu0 %v3843
        %v4170 = vpop.f32.mrb[0].mxu0
        %v4171 = vadd.f32 %v4067, %v4170
        %v4172 = vpop.f32.mrb[0].mxu0
        %4173 = vmatprep.mubr.f32.mxu0 %v3847
        %4174 = vmatmul.mubr.f32.gmra.mrb[0].mxu0 %v3846
        %v4175 = vpop.f32.mrb[0].mxu0
        %v4176 = vadd.f32 %v4067, %v4175
        %v4177 = vpop.f32.mrb[0].mxu0
        %4178 = vmatprep.mubr.f32.mxu0 %v3850
        %4179 = vmatmul.mubr.f32.gmra.mrb[0].mxu0 %v3849
        %v4180 = vpop.f32.mrb[0].mxu0
        %v4181 = vadd.f32 %v4067, %v4180
        %v4182 = vpop.f32.mrb[0].mxu0
        %4183 = vmatprep.mubr.f32.mxu0 %v3853
        %4184 = vmatmul.mubr.f32.gmra.mrb[0].mxu0 %v3852
        %v4185 = vpop.f32.mrb[0].mxu0
        %v4186 = vadd.f32 %v4067, %v4185
        %v4187 = vpop.f32.mrb[0].mxu0
        %4188 = vmatprep.mubr.f32.mxu0 %v3856
        %4189 = vmatmul.mubr.f32.gmra.mrb[0].mxu0 %v3855
        %v4190 = vpop.f32.mrb[0].mxu0
        %v4191 = vadd.f32 %v4067, %v4190
        %v4192 = vpop.f32.mrb[0].mxu0
        %4193 = vmatprep.mubr.f32.mxu0 %v3859
        %4194 = vmatmul.mubr.f32.gmra.mrb[0].mxu0 %v3858
        %v4195 = vpop.f32.mrb[0].mxu0
        %v4196 = vadd.f32 %v4067, %v4195
        %v4197 = vpop.f32.mrb[0].mxu0
        %4198 = vmatprep.mubr.f32.mxu0 %v3862
        %4199 = vmatmul.mubr.f32.gmra.mrb[0].mxu0 %v3861
        %v4200 = vpop.f32.mrb[0].mxu0
        %v4201 = vadd.f32 %v4067, %v4200
        %v4202 = vpop.f32.mrb[0].mxu0
        %4203 = vmatprep.mubr.f32.mxu0 %v3865
        %4204 = vmatmul.mubr.f32.gmra.mrb[0].mxu0 %v3864
        %v4205 = vpop.f32.mrb[0].mxu0
        %v4206 = vadd.f32 %v4067, %v4205
        %v4207 = vpop.f32.mrb[0].mxu0
        %4208 = vmatprep.mubr.f32.mxu0 %v3868
        %4209 = vmatmul.mubr.f32.gmra.mrb[0].mxu0 %v3867
        %v4210 = vpop.f32.mrb[0].mxu0
        %v4211 = vadd.f32 %v4067, %v4210
        %v4212 = vpop.f32.mrb[0].mxu0
        %4213 = vmatprep.mubr.f32.mxu0 %v3871
        %4214 = vmatmul.mubr.f32.gmra.mrb[0].mxu0 %v3870
        %v4215 = vpop.f32.mrb[0].mxu0
        %v4216 = vadd.f32 %v4067, %v4215
        %v4217 = vpop.f32.mrb[0].mxu0
        %4218 = vmatprep.mubr.f32.mxu0 %v3874
        %4219 = vmatmul.mubr.f32.gmra.mrb[0].mxu0 %v3873
        %v4220 = vpop.f32.mrb[0].mxu0
        %v4221 = vadd.f32 %v4067, %v4220
        %v4222 = vpop.f32.mrb[0].mxu0
        %4223 = vmatprep.mubr.f32.mxu0 %v3877
        %4224 = vmatmul.mubr.f32.gmra.mrb[0].mxu0 %v3876
        %v4225 = vpop.f32.mrb[0].mxu0
        %v4226 = vadd.f32 %v4067, %v4225
        %v4227 = vpop.f32.mrb[0].mxu0
        %4228 = vmatprep.mubr.f32.mxu0 %v3880
        %4229 = vmatmul.mubr.f32.gmra.mrb[0].mxu0 %v3879
        %v4230 = vpop.f32.mrb[0].mxu0
        %v4231 = vadd.f32 %v4067, %v4230
        %v4232 = vpop.f32.mrb[0].mxu0
        %4233 = vmatprep.mubr.f32.mxu0 %v3883
        %4234 = vmatmul.mubr.f32.gmra.mrb[0].mxu0 %v3882
        %v4235 = vpop.f32.mrb[0].mxu0
        %v4236 = vadd.f32 %v4067, %v4235
        %v4237 = vpop.f32.mrb[0].mxu0
        %4238 = vmatprep.mubr.f32.mxu0 %v3886
        %4239 = vmatmul.mubr.f32.gmra.mrb[0].mxu0 %v3885
        %v4240 = vpop.f32.mrb[0].mxu0
        %v4241 = vadd.f32 %v4067, %v4240
        %v4242 = vpop.f32.mrb[0].mxu0
        %4243 = vmatprep.mubr.f32.mxu0 %v3889
        %4244 = vmatmul.mubr.f32.gmra.mrb[0].mxu0 %v3888
        %v4245 = vpop.f32.mrb[0].mxu0
        %v4246 = vadd.f32 %v4067, %v4245
        %v4247 = vpop.f32.mrb[0].mxu0
        %4248 = vmatprep.mubr.f32.mxu0 %v3892
        %4249 = vmatmul.mubr.f32.gmra.mrb[0].mxu0 %v3891
        %v4250 = vpop.f32.mrb[0].mxu0
        %v4251 = vadd.f32 %v4067, %v4250
        %v4252 = vpop.f32.mrb[0].mxu0
        %4253 = vmatprep.mubr.f32.mxu0 %v3895
        %4254 = vmatmul.mubr.f32.gmra.mrb[0].mxu0 %v3894
        %v4255 = vpop.f32.mrb[0].mxu0
        %v4256 = vadd.f32 %v4067, %v4255
        %v4257 = vpop.f32.mrb[0].mxu0
        %4258 = vmatprep.mubr.f32.mxu0 %v3898
        %4259 = vmatmul.mubr.f32.gmra.mrb[0].mxu0 %v3897
        %v4260 = vpop.f32.mrb[0].mxu0
        %v4261 = vadd.f32 %v4067, %v4260
        %v4262 = vpop.f32.mrb[0].mxu0
        %4263 = vmatprep.mubr.f32.mxu0 %v3901
        %4264 = vmatmul.mubr.f32.gmra.mrb[0].mxu0 %v3900
        %v4265 = vpop.f32.mrb[0].mxu0
        %v4266 = vadd.f32 %v4067, %v4265
        %v4267 = vpop.f32.mrb[0].mxu0
        %4268 = vmatprep.mubr.f32.mxu0 %v3904
        %4269 = vmatmul.mubr.f32.gmra.mrb[0].mxu0 %v3903
        %v4270 = vpop.f32.mrb[0].mxu0
        %v4271 = vadd.f32 %v4067, %v4270
        %v4272 = vpop.f32.mrb[0].mxu0
        %4273 = vmatprep.mubr.f32.mxu0 %v3907
        %4274 = vmatmul.mubr.f32.gmra.mrb[0].mxu0 %v3906
        %v4275 = vpop.f32.mrb[0].mxu0
        %v4276 = vadd.f32 %v4067, %v4275
        %v4277 = vpop.f32.mrb[0].mxu0
        %4278 = vmatprep.mubr.f32.mxu0 %v3910
        %4279 = vmatmul.mubr.f32.gmra.mrb[0].mxu0 %v3909
        %v4280 = vpop.f32.mrb[0].mxu0
        %v4281 = vadd.f32 %v4067, %v4280
        %v4282 = vpop.f32.mrb[0].mxu0
        %4283 = vmatprep.mubr.f32.mxu0 %v3913
        %4284 = vmatmul.mubr.f32.gmra.mrb[0].mxu0 %v3912
        %v4285 = vpop.f32.mrb[0].mxu0
        %v4286 = vadd.f32 %v4067, %v4285
        %v4287 = vpop.f32.mrb[0].mxu0
        %4288 = vmatprep.mubr.f32.mxu0 %v3916
        %4289 = vmatmul.mubr.f32.gmra.mrb[0].mxu0 %v3915
        %v4290 = vpop.f32.mrb[0].mxu0
        %v4291 = vadd.f32 %v4067, %v4290
        %v4292 = vpop.f32.mrb[0].mxu0
        %4293 = vmatprep.mubr.f32.mxu0 %v3919
        %4294 = vmatmul.mubr.f32.gmra.mrb[0].mxu0 %v3918
        %v4295 = vpop.f32.mrb[0].mxu0
        %v4296 = vadd.f32 %v4067, %v4295
        %v4297 = vpop.f32.mrb[0].mxu0
        %4298 = vmatprep.mubr.f32.mxu0 %v3922
        %4299 = vmatmul.mubr.f32.gmra.mrb[0].mxu0 %v3921
        %v4300 = vpop.f32.mrb[0].mxu0
        %v4301 = vadd.f32 %v4067, %v4300
        %v4302 = vpop.f32.mrb[0].mxu0
        %4303 = vmatprep.mubr.f32.mxu0 %v3925
        %4304 = vmatmul.mubr.f32.gmra.mrb[0].mxu0 %v3924
        %v4305 = vpop.f32.mrb[0].mxu0
        %v4306 = vadd.f32 %v4067, %v4305
        %v4307 = vpop.f32.mrb[0].mxu0
        %4308 = vmatprep.mubr.f32.mxu0 %v3928
        %4309 = vmatmul.mubr.f32.gmra.mrb[0].mxu0 %v3927
        %v4310 = vpop.f32.mrb[0].mxu0
        %v4311 = vadd.f32 %v4067, %v4310
        %v4312 = vpop.f32.mrb[0].mxu0
        %4313 = vmatprep.mubr.f32.mxu0 %v3931
        %4314 = vmatmul.mubr.f32.gmra.mrb[0].mxu0 %v3930
        %v4315 = vpop.f32.mrb[0].mxu0
        %v4316 = vadd.f32 %v4067, %v4315
        %v4317 = vpop.f32.mrb[0].mxu0
        %4318 = vmatprep.mubr.f32.mxu0 %v3934
        %4319 = vmatmul.mubr.f32.gmra.mrb[0].mxu0 %v3933
        %v4320 = vpop.f32.mrb[0].mxu0
        %v4321 = vadd.f32 %v4067, %v4320
        %v4322 = vpop.f32.mrb[0].mxu0
        %4323 = vmatprep.mubr.f32.mxu0 %v3937
        %4324 = vmatmul.mubr.f32.gmra.mrb[0].mxu0 %v3936
        %v4325 = vpop.f32.mrb[0].mxu0
        %v4326 = vadd.f32 %v4067, %v4325
        %v4327 = vpop.f32.mrb[0].mxu0
        %4328 = vmatprep.mubr.f32.mxu0 %v3940
        %4329 = vmatmul.mubr.f32.gmra.mrb[0].mxu0 %v3939
        %v4330 = vpop.f32.mrb[0].mxu0
        %v4331 = vadd.f32 %v4067, %v4330
        %v4332 = vpop.f32.mrb[0].mxu0
        %4333 = vmatprep.mubr.f32.mxu0 %v3943
        %4334 = vmatmul.mubr.f32.gmra.mrb[0].mxu0 %v3942
        %v4335 = vpop.f32.mrb[0].mxu0
        %v4336 = vadd.f32 %v4067, %v4335
        %v4337 = vpop.f32.mrb[0].mxu0
        %4338 = vmatprep.mubr.f32.mxu0 %v3946
        %4339 = vmatmul.mubr.f32.gmra.mrb[0].mxu0 %v3945
        %v4340 = vpop.f32.mrb[0].mxu0
        %v4341 = vadd.f32 %v4067, %v4340
        %v4342 = vpop.f32.mrb[0].mxu0
        %4343 = vmatprep.mubr.f32.mxu0 %v3949
        %4344 = vmatmul.mubr.f32.gmra.mrb[0].mxu0 %v3948
        %v4345 = vpop.f32.mrb[0].mxu0
        %v4346 = vadd.f32 %v4067, %v4345
        %v4347 = vpop.f32.mrb[0].mxu0
        %4348 = vmatprep.mubr.f32.mxu0 %v3952
        %4349 = vmatmul.mubr.f32.gmra.mrb[0].mxu0 %v3951
        %v4350 = vpop.f32.mrb[0].mxu0
        %v4351 = vadd.f32 %v4067, %v4350
        %v4352 = vpop.f32.mrb[0].mxu0
        %4353 = vmatprep.mubr.f32.mxu0 %v3955
        %4354 = vmatmul.mubr.f32.gmra.mrb[0].mxu0 %v3954
        %v4355 = vpop.f32.mrb[0].mxu0
        %v4356 = vadd.f32 %v4067, %v4355
        %v4357 = vpop.f32.mrb[0].mxu0
        %4358 = vmatprep.mubr.f32.mxu0 %v3958
        %4359 = vmatmul.mubr.f32.gmra.mrb[0].mxu0 %v3957
        %v4360 = vpop.f32.mrb[0].mxu0
        %v4361 = vadd.f32 %v4067, %v4360
        %v4362 = vpop.f32.mrb[0].mxu0
        %4363 = vmatprep.mubr.f32.mxu0 %v3961
        %4364 = vmatmul.mubr.f32.gmra.mrb[0].mxu0 %v3960
        %v4365 = vpop.f32.mrb[0].mxu0
        %v4366 = vadd.f32 %v4067, %v4365
        %v4367 = vpop.f32.mrb[0].mxu0
        %4368 = vmatprep.mubr.f32.mxu0 %v3964
        %4369 = vmatmul.mubr.f32.gmra.mrb[0].mxu0 %v3963
        %v4370 = vpop.f32.mrb[0].mxu0
        %v4371 = vadd.f32 %v4067, %v4370
        %v4372 = vpop.f32.mrb[0].mxu0
        %4373 = vmatprep.mubr.f32.mxu0 %v3967
        %4374 = vmatmul.mubr.f32.gmra.mrb[0].mxu0 %v3966
        %v4375 = vpop.f32.mrb[0].mxu0
        %v4376 = vadd.f32 %v4067, %v4375
        %v4377 = vpop.f32.mrb[0].mxu0
        %4378 = vmatprep.mubr.f32.mxu0 %v3970
        %4379 = vmatmul.mubr.f32.gmra.mrb[0].mxu0 %v3969
        %v4380 = vpop.f32.mrb[0].mxu0
        %v4381 = vadd.f32 %v4067, %v4380
        %v4382 = vpop.f32.mrb[0].mxu0
        %4383 = vmatprep.mubr.f32.mxu0 %v3973
        %4384 = vmatmul.mubr.f32.gmra.mrb[0].mxu0 %v3972
        %v4385 = vpop.f32.mrb[0].mxu0
        %v4386 = vadd.f32 %v4067, %v4385
        %v4387 = vpop.f32.mrb[0].mxu0
        %4388 = vmatprep.mubr.f32.mxu0 %v3976
        %4389 = vmatmul.mubr.f32.gmra.mrb[0].mxu0 %v3975
        %v4390 = vpop.f32.mrb[0].mxu0
        %v4391 = vadd.f32 %v4067, %v4390
        %v4392 = vpop.f32.mrb[0].mxu0
        %4393 = vmatprep.mubr.f32.mxu0 %v3979
        %4394 = vmatmul.mubr.f32.gmra.mrb[0].mxu0 %v3978
        %v4395 = vpop.f32.mrb[0].mxu0
        %v4396 = vadd.f32 %v4067, %v4395
        %v4397 = vpop.f32.mrb[0].mxu0
        %4398 = vmatprep.mubr.f32.mxu0 %v3982
        %4399 = vmatmul.mubr.f32.gmra.mrb[0].mxu0 %v3981
        %v4400 = vpop.f32.mrb[0].mxu0
        %v4401 = vadd.f32 %v4067, %v4400
        %v4402 = vpop.f32.mrb[0].mxu0
        %4403 = vmatprep.mubr.f32.mxu0 %v3985
        %4404 = vmatmul.mubr.f32.gmra.mrb[0].mxu0 %v3984
        %v4405 = vpop.f32.mrb[0].mxu0
        %v4406 = vadd.f32 %v4067, %v4405
        %v4407 = vpop.f32.mrb[0].mxu0
        %4408 = vmatprep.mubr.f32.mxu0 %v3988
        %4409 = vmatmul.mubr.f32.gmra.mrb[0].mxu0 %v3987
        %v4410 = vpop.f32.mrb[0].mxu0
        %v4411 = vadd.f32 %v4067, %v4410
        %v4412 = vpop.f32.mrb[0].mxu0
        %4413 = vmatprep.mubr.f32.mxu0 %v3991
        %4414 = vmatmul.mubr.f32.gmra.mrb[0].mxu0 %v3990
        %v4415 = vpop.f32.mrb[0].mxu0
        %v4416 = vadd.f32 %v4067, %v4415
        %v4417 = vpop.f32.mrb[0].mxu0
        %4418 = vmatprep.mubr.f32.mxu0 %v3994
        %4419 = vmatmul.mubr.f32.gmra.mrb[0].mxu0 %v3993
        %v4420 = vpop.f32.mrb[0].mxu0
        %v4421 = vadd.f32 %v4067, %v4420
        %v4422 = vpop.f32.mrb[0].mxu0
        %4423 = vmatprep.mubr.f32.mxu0 %v3997
        %4424 = vmatmul.mubr.f32.gmra.mrb[0].mxu0 %v3996
        %v4425 = vpop.f32.mrb[0].mxu0
        %v4426 = vadd.f32 %v4067, %v4425
        %v4427 = vpop.f32.mrb[0].mxu0
        %4428 = vmatprep.mubr.f32.mxu0 %v4000
        %4429 = vmatmul.mubr.f32.gmra.mrb[0].mxu0 %v3999
        %v4430 = vpop.f32.mrb[0].mxu0
        %v4431 = vadd.f32 %v4067, %v4430
        %v4432 = vpop.f32.mrb[0].mxu0
        %4433 = vmatprep.mubr.f32.mxu0 %v4003
        %4434 = vmatmul.mubr.f32.gmra.mrb[0].mxu0 %v4002
        %v4435 = vpop.f32.mrb[0].mxu0
        %v4436 = vadd.f32 %v4067, %v4435
        %v4437 = vpop.f32.mrb[0].mxu0
        %4438 = vmatprep.mubr.f32.mxu0 %v4006
        %4439 = vmatmul.mubr.f32.gmra.mrb[0].mxu0 %v4005
        %v4440 = vpop.f32.mrb[0].mxu0
        %v4441 = vadd.f32 %v4067, %v4440
        %v4442 = vpop.f32.mrb[0].mxu0
        %4443 = vmatprep.mubr.f32.mxu0 %v4009
        %4444 = vmatmul.mubr.f32.gmra.mrb[0].mxu0 %v4008
        %v4445 = vpop.f32.mrb[0].mxu0
        %v4446 = vadd.f32 %v4067, %v4445
        %v4447 = vpop.f32.mrb[0].mxu0
        %4448 = vmatprep.mubr.f32.mxu0 %v4012
        %4449 = vmatmul.mubr.f32.gmra.mrb[0].mxu0 %v4011
        %v4450 = vpop.f32.mrb[0].mxu0
        %v4451 = vadd.f32 %v4067, %v4450
        %v4452 = vpop.f32.mrb[0].mxu0
        %4453 = vdwg.mxu0
        %4454 = vmatprep.subr.mxu0 0.0
        %4455 = vmatpush1.msra.mxu0 %v4046
        %4456 = vmatprep.subr.mxu0 0.0
        %4457 = vmatpush1.msra.mxu0 %v4047
        %4458 = vmatprep.subr.mxu0 0.0
        %4459 = vmatpush1.msra.mxu0 %v4048
        %4460 = vmatprep.subr.mxu0 0.0
        %4461 = vmatpush1.msra.mxu0 %v4049
        %4462 = vmatprep.subr.mxu0 0.0
        %4463 = vmatpush1.msra.mxu0 %v4050
        %4464 = vmatprep.subr.mxu0 0.0
        %4465 = vmatpush1.msra.mxu0 %v4051
        %4466 = vmatprep.subr.mxu0 0.0
        %4467 = vmatpush1.msra.mxu0 %v4052
        %4468 = vmatprep.subr.mxu0 0.0
        %4469 = vmatpush1.msra.mxu0 %v4053
        %4470 = vmatprep.subr.mxu0 0.0
        %4471 = vmatpush1.msra.mxu0 %v4054
        %4472 = vmatprep.subr.mxu0 0.0
        %4473 = vmatpush1.msra.mxu0 %v4055
        %4474 = vmatprep.subr.mxu0 0.0
        %4475 = vmatpush1.msra.mxu0 %v4056
        %4476 = vmatprep.subr.mxu0 0.0
        %4477 = vmatpush1.msra.mxu0 %v4057
        %4478 = vmatprep.subr.mxu0 0.0
        %4479 = vmatpush1.msra.mxu0 %v4058
        %4480 = vmatprep.subr.mxu0 0.0
        %4481 = vmatpush1.msra.mxu0 %v4059
        %4482 = vmatprep.subr.mxu0 0.0
        %4483 = vmatpush1.msra.mxu0 %v4060
        %4484 = vmatprep.subr.mxu0 0.0
        %4485 = vmatpush1.msra.mxu0 %v4061
        %4486 = vmatprep.subr.mxu0 0.0
        %4487 = vmatpush1.msra.mxu0 0.0
        %4488 = vmatprep.subr.mxu0 0.0
        %4489 = vmatpush1.msra.mxu0 0.0
        %4490 = vmatprep.subr.mxu0 0.0
        %4491 = vmatpush1.msra.mxu0 0.0
        %4492 = vmatprep.subr.mxu0 0.0
        %4493 = vmatpush1.msra.mxu0 0.0
        %4494 = vmatprep.subr.mxu0 0.0
        %4495 = vmatpush1.msra.mxu0 0.0
        %4496 = vmatprep.subr.mxu0 0.0
        %4497 = vmatpush1.msra.mxu0 0.0
        %4498 = vmatprep.subr.mxu0 0.0
        %4499 = vmatpush1.msra.mxu0 0.0
        %4500 = vmatprep.subr.mxu0 0.0
        %4501 = vmatpush1.msra.mxu0 0.0
        %4502 = vmatprep.subr.mxu0 0.0
        %4503 = vmatpush1.msra.mxu0 0.0
        %4504 = vmatprep.subr.mxu0 0.0
        %4505 = vmatpush1.msra.mxu0 0.0
        %4506 = vmatprep.subr.mxu0 0.0
        %4507 = vmatpush1.msra.mxu0 0.0
        %4508 = vmatprep.subr.mxu0 0.0
        %4509 = vmatpush1.msra.mxu0 0.0
        %4510 = vmatprep.subr.mxu0 0.0
        %4511 = vmatpush1.msra.mxu0 0.0
        %4512 = vmatprep.subr.mxu0 0.0
        %4513 = vmatpush1.msra.mxu0 0.0
        %4514 = vmatprep.subr.mxu0 0.0
        %4515 = vmatpush1.msra.mxu0 0.0
        %4516 = vmatprep.subr.mxu0 0.0
        %4517 = vmatpush1.msra.mxu0 0.0
        %4518 = vmatprep.mubr.f32.mxu0 0.0
        %4519 = vmatmul.mubr.f32.gmra.mrb[0].mxu0 %v3824
        %v4520 = vpop.f32.mrb[0].mxu0
        %v4521 = vadd.f32 %v4136, %v4520
        %v4522 = vpop.f32.mrb[0].mxu0
        %4523 = vmatprep.mubr.f32.mxu0 0.0
        %4524 = vmatmul.mubr.f32.gmra.mrb[0].mxu0 %v3827
        %v4525 = vpop.f32.mrb[0].mxu0
        %v4526 = vadd.f32 %v4141, %v4525
        %v4527 = vpop.f32.mrb[0].mxu0
        %4528 = vmatprep.mubr.f32.mxu0 0.0
        %4529 = vmatmul.mubr.f32.gmra.mrb[0].mxu0 %v3830
        %v4530 = vpop.f32.mrb[0].mxu0
        %v4531 = vadd.f32 %v4146, %v4530
        %v4532 = vpop.f32.mrb[0].mxu0
        %4533 = vmatprep.mubr.f32.mxu0 0.0
        %4534 = vmatmul.mubr.f32.gmra.mrb[0].mxu0 %v3833
        %v4535 = vpop.f32.mrb[0].mxu0
        %v4536 = vadd.f32 %v4151, %v4535
        %v4537 = vpop.f32.mrb[0].mxu0
        %4538 = vmatprep.mubr.f32.mxu0 0.0
        %4539 = vmatmul.mubr.f32.gmra.mrb[0].mxu0 %v3836
        %v4540 = vpop.f32.mrb[0].mxu0
        %v4541 = vadd.f32 %v4156, %v4540
        %v4542 = vpop.f32.mrb[0].mxu0
        %4543 = vmatprep.mubr.f32.mxu0 0.0
        %4544 = vmatmul.mubr.f32.gmra.mrb[0].mxu0 %v3839
        %v4545 = vpop.f32.mrb[0].mxu0
        %v4546 = vadd.f32 %v4161, %v4545
        %v4547 = vpop.f32.mrb[0].mxu0
        %4548 = vmatprep.mubr.f32.mxu0 0.0
        %4549 = vmatmul.mubr.f32.gmra.mrb[0].mxu0 %v3842
        %v4550 = vpop.f32.mrb[0].mxu0
        %v4551 = vadd.f32 %v4166, %v4550
        %v4552 = vpop.f32.mrb[0].mxu0
        %4553 = vmatprep.mubr.f32.mxu0 0.0
        %4554 = vmatmul.mubr.f32.gmra.mrb[0].mxu0 %v3845
        %v4555 = vpop.f32.mrb[0].mxu0
        %v4556 = vadd.f32 %v4171, %v4555
        %v4557 = vpop.f32.mrb[0].mxu0
        %4558 = vmatprep.mubr.f32.mxu0 0.0
        %4559 = vmatmul.mubr.f32.gmra.mrb[0].mxu0 %v3848
        %v4560 = vpop.f32.mrb[0].mxu0
        %v4561 = vadd.f32 %v4176, %v4560
        %v4562 = vpop.f32.mrb[0].mxu0
        %4563 = vmatprep.mubr.f32.mxu0 0.0
        %4564 = vmatmul.mubr.f32.gmra.mrb[0].mxu0 %v3851
        %v4565 = vpop.f32.mrb[0].mxu0
        %v4566 = vadd.f32 %v4181, %v4565
        %v4567 = vpop.f32.mrb[0].mxu0
        %4568 = vmatprep.mubr.f32.mxu0 0.0
        %4569 = vmatmul.mubr.f32.gmra.mrb[0].mxu0 %v3854
        %v4570 = vpop.f32.mrb[0].mxu0
        %v4571 = vadd.f32 %v4186, %v4570
        %v4572 = vpop.f32.mrb[0].mxu0
        %4573 = vmatprep.mubr.f32.mxu0 0.0
        %4574 = vmatmul.mubr.f32.gmra.mrb[0].mxu0 %v3857
        %v4575 = vpop.f32.mrb[0].mxu0
        %v4576 = vadd.f32 %v4191, %v4575
        %v4577 = vpop.f32.mrb[0].mxu0
        %4578 = vmatprep.mubr.f32.mxu0 0.0
        %4579 = vmatmul.mubr.f32.gmra.mrb[0].mxu0 %v3860
        %v4580 = vpop.f32.mrb[0].mxu0
        %v4581 = vadd.f32 %v4196, %v4580
        %v4582 = vpop.f32.mrb[0].mxu0
        %4583 = vmatprep.mubr.f32.mxu0 0.0
        %4584 = vmatmul.mubr.f32.gmra.mrb[0].mxu0 %v3863
        %v4585 = vpop.f32.mrb[0].mxu0
        %v4586 = vadd.f32 %v4201, %v4585
        %v4587 = vpop.f32.mrb[0].mxu0
        %4588 = vmatprep.mubr.f32.mxu0 0.0
        %4589 = vmatmul.mubr.f32.gmra.mrb[0].mxu0 %v3866
        %v4590 = vpop.f32.mrb[0].mxu0
        %v4591 = vadd.f32 %v4206, %v4590
        %v4592 = vpop.f32.mrb[0].mxu0
        %4593 = vmatprep.mubr.f32.mxu0 0.0
        %4594 = vmatmul.mubr.f32.gmra.mrb[0].mxu0 %v3869
        %v4595 = vpop.f32.mrb[0].mxu0
        %v4596 = vadd.f32 %v4211, %v4595
        %v4597 = vpop.f32.mrb[0].mxu0
        %4598 = vmatprep.mubr.f32.mxu0 0.0
        %4599 = vmatmul.mubr.f32.gmra.mrb[0].mxu0 %v3872
        %v4600 = vpop.f32.mrb[0].mxu0
        %v4601 = vadd.f32 %v4216, %v4600
        %v4602 = vpop.f32.mrb[0].mxu0
        %4603 = vmatprep.mubr.f32.mxu0 0.0
        %4604 = vmatmul.mubr.f32.gmra.mrb[0].mxu0 %v3875
        %v4605 = vpop.f32.mrb[0].mxu0
        %v4606 = vadd.f32 %v4221, %v4605
        %v4607 = vpop.f32.mrb[0].mxu0
        %4608 = vmatprep.mubr.f32.mxu0 0.0
        %4609 = vmatmul.mubr.f32.gmra.mrb[0].mxu0 %v3878
        %v4610 = vpop.f32.mrb[0].mxu0
        %v4611 = vadd.f32 %v4226, %v4610
        %v4612 = vpop.f32.mrb[0].mxu0
        %4613 = vmatprep.mubr.f32.mxu0 0.0
        %4614 = vmatmul.mubr.f32.gmra.mrb[0].mxu0 %v3881
        %v4615 = vpop.f32.mrb[0].mxu0
        %v4616 = vadd.f32 %v4231, %v4615
        %v4617 = vpop.f32.mrb[0].mxu0
        %4618 = vmatprep.mubr.f32.mxu0 0.0
        %4619 = vmatmul.mubr.f32.gmra.mrb[0].mxu0 %v3884
        %v4620 = vpop.f32.mrb[0].mxu0
        %v4621 = vadd.f32 %v4236, %v4620
        %v4622 = vpop.f32.mrb[0].mxu0
        %4623 = vmatprep.mubr.f32.mxu0 0.0
        %4624 = vmatmul.mubr.f32.gmra.mrb[0].mxu0 %v3887
        %v4625 = vpop.f32.mrb[0].mxu0
        %v4626 = vadd.f32 %v4241, %v4625
        %v4627 = vpop.f32.mrb[0].mxu0
        %4628 = vmatprep.mubr.f32.mxu0 0.0
        %4629 = vmatmul.mubr.f32.gmra.mrb[0].mxu0 %v3890
        %v4630 = vpop.f32.mrb[0].mxu0
        %v4631 = vadd.f32 %v4246, %v4630
        %v4632 = vpop.f32.mrb[0].mxu0
        %4633 = vmatprep.mubr.f32.mxu0 0.0
        %4634 = vmatmul.mubr.f32.gmra.mrb[0].mxu0 %v3893
        %v4635 = vpop.f32.mrb[0].mxu0
        %v4636 = vadd.f32 %v4251, %v4635
        %v4637 = vpop.f32.mrb[0].mxu0
        %4638 = vmatprep.mubr.f32.mxu0 0.0
        %4639 = vmatmul.mubr.f32.gmra.mrb[0].mxu0 %v3896
        %v4640 = vpop.f32.mrb[0].mxu0
        %v4641 = vadd.f32 %v4256, %v4640
        %v4642 = vpop.f32.mrb[0].mxu0
        %4643 = vmatprep.mubr.f32.mxu0 0.0
        %4644 = vmatmul.mubr.f32.gmra.mrb[0].mxu0 %v3899
        %v4645 = vpop.f32.mrb[0].mxu0
        %v4646 = vadd.f32 %v4261, %v4645
        %v4647 = vpop.f32.mrb[0].mxu0
        %4648 = vmatprep.mubr.f32.mxu0 0.0
        %4649 = vmatmul.mubr.f32.gmra.mrb[0].mxu0 %v3902
        %v4650 = vpop.f32.mrb[0].mxu0
        %v4651 = vadd.f32 %v4266, %v4650
        %v4652 = vpop.f32.mrb[0].mxu0
        %4653 = vmatprep.mubr.f32.mxu0 0.0
        %4654 = vmatmul.mubr.f32.gmra.mrb[0].mxu0 %v3905
        %v4655 = vpop.f32.mrb[0].mxu0
        %v4656 = vadd.f32 %v4271, %v4655
        %v4657 = vpop.f32.mrb[0].mxu0
        %4658 = vmatprep.mubr.f32.mxu0 0.0
        %4659 = vmatmul.mubr.f32.gmra.mrb[0].mxu0 %v3908
        %v4660 = vpop.f32.mrb[0].mxu0
        %v4661 = vadd.f32 %v4276, %v4660
        %v4662 = vpop.f32.mrb[0].mxu0
        %4663 = vmatprep.mubr.f32.mxu0 0.0
        %4664 = vmatmul.mubr.f32.gmra.mrb[0].mxu0 %v3911
        %v4665 = vpop.f32.mrb[0].mxu0
        %v4666 = vadd.f32 %v4281, %v4665
        %v4667 = vpop.f32.mrb[0].mxu0
        %4668 = vmatprep.mubr.f32.mxu0 0.0
        %4669 = vmatmul.mubr.f32.gmra.mrb[0].mxu0 %v3914
        %v4670 = vpop.f32.mrb[0].mxu0
        %v4671 = vadd.f32 %v4286, %v4670
        %v4672 = vpop.f32.mrb[0].mxu0
        %4673 = vmatprep.mubr.f32.mxu0 0.0
        %4674 = vmatmul.mubr.f32.gmra.mrb[0].mxu0 %v3917
        %v4675 = vpop.f32.mrb[0].mxu0
        %v4676 = vadd.f32 %v4291, %v4675
        %v4677 = vpop.f32.mrb[0].mxu0
        %4678 = vmatprep.mubr.f32.mxu0 0.0
        %4679 = vmatmul.mubr.f32.gmra.mrb[0].mxu0 %v3920
        %v4680 = vpop.f32.mrb[0].mxu0
        %v4681 = vadd.f32 %v4296, %v4680
        %v4682 = vpop.f32.mrb[0].mxu0
        %4683 = vmatprep.mubr.f32.mxu0 0.0
        %4684 = vmatmul.mubr.f32.gmra.mrb[0].mxu0 %v3923
        %v4685 = vpop.f32.mrb[0].mxu0
        %v4686 = vadd.f32 %v4301, %v4685
        %v4687 = vpop.f32.mrb[0].mxu0
        %4688 = vmatprep.mubr.f32.mxu0 0.0
        %4689 = vmatmul.mubr.f32.gmra.mrb[0].mxu0 %v3926
        %v4690 = vpop.f32.mrb[0].mxu0
        %v4691 = vadd.f32 %v4306, %v4690
        %v4692 = vpop.f32.mrb[0].mxu0
        %4693 = vmatprep.mubr.f32.mxu0 0.0
        %4694 = vmatmul.mubr.f32.gmra.mrb[0].mxu0 %v3929
        %v4695 = vpop.f32.mrb[0].mxu0
        %v4696 = vadd.f32 %v4311, %v4695
        %v4697 = vpop.f32.mrb[0].mxu0
        %4698 = vmatprep.mubr.f32.mxu0 0.0
        %4699 = vmatmul.mubr.f32.gmra.mrb[0].mxu0 %v3932
        %v4700 = vpop.f32.mrb[0].mxu0
        %v4701 = vadd.f32 %v4316, %v4700
        %v4702 = vpop.f32.mrb[0].mxu0
        %4703 = vmatprep.mubr.f32.mxu0 0.0
        %4704 = vmatmul.mubr.f32.gmra.mrb[0].mxu0 %v3935
        %v4705 = vpop.f32.mrb[0].mxu0
        %v4706 = vadd.f32 %v4321, %v4705
        %v4707 = vpop.f32.mrb[0].mxu0
        %4708 = vmatprep.mubr.f32.mxu0 0.0
        %4709 = vmatmul.mubr.f32.gmra.mrb[0].mxu0 %v3938
        %v4710 = vpop.f32.mrb[0].mxu0
        %v4711 = vadd.f32 %v4326, %v4710
        %v4712 = vpop.f32.mrb[0].mxu0
        %4713 = vmatprep.mubr.f32.mxu0 0.0
        %4714 = vmatmul.mubr.f32.gmra.mrb[0].mxu0 %v3941
        %v4715 = vpop.f32.mrb[0].mxu0
        %v4716 = vadd.f32 %v4331, %v4715
        %v4717 = vpop.f32.mrb[0].mxu0
        %4718 = vmatprep.mubr.f32.mxu0 0.0
        %4719 = vmatmul.mubr.f32.gmra.mrb[0].mxu0 %v3944
        %v4720 = vpop.f32.mrb[0].mxu0
        %v4721 = vadd.f32 %v4336, %v4720
        %v4722 = vpop.f32.mrb[0].mxu0
        %4723 = vmatprep.mubr.f32.mxu0 0.0
        %4724 = vmatmul.mubr.f32.gmra.mrb[0].mxu0 %v3947
        %v4725 = vpop.f32.mrb[0].mxu0
        %v4726 = vadd.f32 %v4341, %v4725
        %v4727 = vpop.f32.mrb[0].mxu0
        %4728 = vmatprep.mubr.f32.mxu0 0.0
        %4729 = vmatmul.mubr.f32.gmra.mrb[0].mxu0 %v3950
        %v4730 = vpop.f32.mrb[0].mxu0
        %v4731 = vadd.f32 %v4346, %v4730
        %v4732 = vpop.f32.mrb[0].mxu0
        %4733 = vmatprep.mubr.f32.mxu0 0.0
        %4734 = vmatmul.mubr.f32.gmra.mrb[0].mxu0 %v3953
        %v4735 = vpop.f32.mrb[0].mxu0
        %v4736 = vadd.f32 %v4351, %v4735
        %v4737 = vpop.f32.mrb[0].mxu0
        %4738 = vmatprep.mubr.f32.mxu0 0.0
        %4739 = vmatmul.mubr.f32.gmra.mrb[0].mxu0 %v3956
        %v4740 = vpop.f32.mrb[0].mxu0
        %v4741 = vadd.f32 %v4356, %v4740
        %v4742 = vpop.f32.mrb[0].mxu0
        %4743 = vmatprep.mubr.f32.mxu0 0.0
        %4744 = vmatmul.mubr.f32.gmra.mrb[0].mxu0 %v3959
        %v4745 = vpop.f32.mrb[0].mxu0
        %v4746 = vadd.f32 %v4361, %v4745
        %v4747 = vpop.f32.mrb[0].mxu0
        %4748 = vmatprep.mubr.f32.mxu0 0.0
        %4749 = vmatmul.mubr.f32.gmra.mrb[0].mxu0 %v3962
        %v4750 = vpop.f32.mrb[0].mxu0
        %v4751 = vadd.f32 %v4366, %v4750
        %v4752 = vpop.f32.mrb[0].mxu0
        %4753 = vmatprep.mubr.f32.mxu0 0.0
        %4754 = vmatmul.mubr.f32.gmra.mrb[0].mxu0 %v3965
        %v4755 = vpop.f32.mrb[0].mxu0
        %v4756 = vadd.f32 %v4371, %v4755
        %v4757 = vpop.f32.mrb[0].mxu0
        %4758 = vmatprep.mubr.f32.mxu0 0.0
        %4759 = vmatmul.mubr.f32.gmra.mrb[0].mxu0 %v3968
        %v4760 = vpop.f32.mrb[0].mxu0
        %v4761 = vadd.f32 %v4376, %v4760
        %v4762 = vpop.f32.mrb[0].mxu0
        %4763 = vmatprep.mubr.f32.mxu0 0.0
        %4764 = vmatmul.mubr.f32.gmra.mrb[0].mxu0 %v3971
        %v4765 = vpop.f32.mrb[0].mxu0
        %v4766 = vadd.f32 %v4381, %v4765
        %v4767 = vpop.f32.mrb[0].mxu0
        %4768 = vmatprep.mubr.f32.mxu0 0.0
        %4769 = vmatmul.mubr.f32.gmra.mrb[0].mxu0 %v3974
        %v4770 = vpop.f32.mrb[0].mxu0
        %v4771 = vadd.f32 %v4386, %v4770
        %v4772 = vpop.f32.mrb[0].mxu0
        %4773 = vmatprep.mubr.f32.mxu0 0.0
        %4774 = vmatmul.mubr.f32.gmra.mrb[0].mxu0 %v3977
        %v4775 = vpop.f32.mrb[0].mxu0
        %v4776 = vadd.f32 %v4391, %v4775
        %v4777 = vpop.f32.mrb[0].mxu0
        %4778 = vmatprep.mubr.f32.mxu0 0.0
        %4779 = vmatmul.mubr.f32.gmra.mrb[0].mxu0 %v3980
        %v4780 = vpop.f32.mrb[0].mxu0
        %v4781 = vadd.f32 %v4396, %v4780
        %v4782 = vpop.f32.mrb[0].mxu0
        %4783 = vmatprep.mubr.f32.mxu0 0.0
        %4784 = vmatmul.mubr.f32.gmra.mrb[0].mxu0 %v3983
        %v4785 = vpop.f32.mrb[0].mxu0
        %v4786 = vadd.f32 %v4401, %v4785
        %v4787 = vpop.f32.mrb[0].mxu0
        %4788 = vmatprep.mubr.f32.mxu0 0.0
        %4789 = vmatmul.mubr.f32.gmra.mrb[0].mxu0 %v3986
        %v4790 = vpop.f32.mrb[0].mxu0
        %v4791 = vadd.f32 %v4406, %v4790
        %v4792 = vpop.f32.mrb[0].mxu0
        %4793 = vmatprep.mubr.f32.mxu0 0.0
        %4794 = vmatmul.mubr.f32.gmra.mrb[0].mxu0 %v3989
        %v4795 = vpop.f32.mrb[0].mxu0
        %v4796 = vadd.f32 %v4411, %v4795
        %v4797 = vpop.f32.mrb[0].mxu0
        %4798 = vmatprep.mubr.f32.mxu0 0.0
        %4799 = vmatmul.mubr.f32.gmra.mrb[0].mxu0 %v3992
        %v4800 = vpop.f32.mrb[0].mxu0
        %v4801 = vadd.f32 %v4416, %v4800
        %v4802 = vpop.f32.mrb[0].mxu0
        %4803 = vmatprep.mubr.f32.mxu0 0.0
        %4804 = vmatmul.mubr.f32.gmra.mrb[0].mxu0 %v3995
        %v4805 = vpop.f32.mrb[0].mxu0
        %v4806 = vadd.f32 %v4421, %v4805
        %v4807 = vpop.f32.mrb[0].mxu0
        %4808 = vmatprep.mubr.f32.mxu0 0.0
        %4809 = vmatmul.mubr.f32.gmra.mrb[0].mxu0 %v3998
        %v4810 = vpop.f32.mrb[0].mxu0
        %v4811 = vadd.f32 %v4426, %v4810
        %v4812 = vpop.f32.mrb[0].mxu0
        %4813 = vmatprep.mubr.f32.mxu0 0.0
        %4814 = vmatmul.mubr.f32.gmra.mrb[0].mxu0 %v4001
        %v4815 = vpop.f32.mrb[0].mxu0
        %v4816 = vadd.f32 %v4431, %v4815
        %v4817 = vpop.f32.mrb[0].mxu0
        %4818 = vmatprep.mubr.f32.mxu0 0.0
        %4819 = vmatmul.mubr.f32.gmra.mrb[0].mxu0 %v4004
        %v4820 = vpop.f32.mrb[0].mxu0
        %v4821 = vadd.f32 %v4436, %v4820
        %v4822 = vpop.f32.mrb[0].mxu0
        %4823 = vmatprep.mubr.f32.mxu0 0.0
        %4824 = vmatmul.mubr.f32.gmra.mrb[0].mxu0 %v4007
        %v4825 = vpop.f32.mrb[0].mxu0
        %v4826 = vadd.f32 %v4441, %v4825
        %v4827 = vpop.f32.mrb[0].mxu0
        %4828 = vmatprep.mubr.f32.mxu0 0.0
        %4829 = vmatmul.mubr.f32.gmra.mrb[0].mxu0 %v4010
        %v4830 = vpop.f32.mrb[0].mxu0
        %v4831 = vadd.f32 %v4446, %v4830
        %v4832 = vpop.f32.mrb[0].mxu0
        %4833 = vmatprep.mubr.f32.mxu0 0.0
        %4834 = vmatmul.mubr.f32.gmra.mrb[0].mxu0 %v4013
        %v4835 = vpop.f32.mrb[0].mxu0
        %v4836 = vadd.f32 %v4451, %v4835
        %v4837 = vpop.f32.mrb[0].mxu0
        %4838 = vdwg.mxu0
        %v4839 = vmax.f32 %v4521, 0.0
        %v4840 = vmax.f32 %v4526, 0.0
        %v4841 = vmax.f32 %v4531, 0.0
        %v4842 = vmax.f32 %v4536, 0.0
        %v4843 = vmax.f32 %v4541, 0.0
        %v4844 = vmax.f32 %v4546, 0.0
        %v4845 = vmax.f32 %v4551, 0.0
        %v4846 = vmax.f32 %v4556, 0.0
        %v4847 = vmax.f32 %v4561, 0.0
        %v4848 = vmax.f32 %v4566, 0.0
        %v4849 = vmax.f32 %v4571, 0.0
        %v4850 = vmax.f32 %v4576, 0.0
        %v4851 = vmax.f32 %v4581, 0.0
        %v4852 = vmax.f32 %v4586, 0.0
        %v4853 = vmax.f32 %v4591, 0.0
        %v4854 = vmax.f32 %v4596, 0.0
        %v4855 = vmax.f32 %v4601, 0.0
        %v4856 = vmax.f32 %v4606, 0.0
        %v4857 = vmax.f32 %v4611, 0.0
        %v4858 = vmax.f32 %v4616, 0.0
        %v4859 = vmax.f32 %v4621, 0.0
        %v4860 = vmax.f32 %v4626, 0.0
        %v4861 = vmax.f32 %v4631, 0.0
        %v4862 = vmax.f32 %v4636, 0.0
        %v4863 = vmax.f32 %v4641, 0.0
        %v4864 = vmax.f32 %v4646, 0.0
        %v4865 = vmax.f32 %v4651, 0.0
        %v4866 = vmax.f32 %v4656, 0.0
        %v4867 = vmax.f32 %v4661, 0.0
        %v4868 = vmax.f32 %v4666, 0.0
        %v4869 = vmax.f32 %v4671, 0.0
        %v4870 = vmax.f32 %v4676, 0.0
        %v4871 = vmax.f32 %v4681, 0.0
        %v4872 = vmax.f32 %v4686, 0.0
        %v4873 = vmax.f32 %v4691, 0.0
        %v4874 = vmax.f32 %v4696, 0.0
        %v4875 = vmax.f32 %v4701, 0.0
        %v4876 = vmax.f32 %v4706, 0.0
        %v4877 = vmax.f32 %v4711, 0.0
        %v4878 = vmax.f32 %v4716, 0.0
        %v4879 = vmax.f32 %v4721, 0.0
        %v4880 = vmax.f32 %v4726, 0.0
        %v4881 = vmax.f32 %v4731, 0.0
        %v4882 = vmax.f32 %v4736, 0.0
        %v4883 = vmax.f32 %v4741, 0.0
        %v4884 = vmax.f32 %v4746, 0.0
        %v4885 = vmax.f32 %v4751, 0.0
        %v4886 = vmax.f32 %v4756, 0.0
        %v4887 = vmax.f32 %v4761, 0.0
        %v4888 = vmax.f32 %v4766, 0.0
        %v4889 = vmax.f32 %v4771, 0.0
        %v4890 = vmax.f32 %v4776, 0.0
        %v4891 = vmax.f32 %v4781, 0.0
        %v4892 = vmax.f32 %v4786, 0.0
        %v4893 = vmax.f32 %v4791, 0.0
        %v4894 = vmax.f32 %v4796, 0.0
        %v4895 = vmax.f32 %v4801, 0.0
        %v4896 = vmax.f32 %v4806, 0.0
        %v4897 = vmax.f32 %v4811, 0.0
        %v4898 = vmax.f32 %v4816, 0.0
        %v4899 = vmax.f32 %v4821, 0.0
        %v4900 = vmax.f32 %v4826, 0.0
        %v4901 = vmax.f32 %v4831, 0.0
        %v4902 = vmax.f32 %v4836, 0.0
        %v4903 = vld [vmem:[%s5] sm:$0xff]
        %v4904 = vld [vmem:[%s5 + $0x8] sm:$0xff]
        %v4905 = vld [vmem:[%s5 + $0x10] sm:$0xff]
        %v4906 = vld [vmem:[%s5 + $0x18] sm:$0xff]
        %v4907 = vld [vmem:[%s6] sm:$0x1]
        %v4909 = vlaneseq
        %v4910 = vshrl.u32 %v4909, 7
        %v4911 = vsub.s32 0, %v4910
        %v4912 = vrot.slane %v4907, %v4911
        %v4915 = vsel %vm300, %v4839, 0
        %v4918 = vsel %vm300, %v4840, 0
        %v4921 = vsel %vm300, %v4841, 0
        %v4924 = vsel %vm300, %v4842, 0
        %v4927 = vsel %vm300, %v4843, 0
        %v4930 = vsel %vm300, %v4844, 0
        %v4933 = vsel %vm300, %v4845, 0
        %v4936 = vsel %vm300, %v4846, 0
        %v4939 = vsel %vm300, %v4847, 0
        %v4942 = vsel %vm300, %v4848, 0
        %v4945 = vsel %vm300, %v4849, 0
        %v4948 = vsel %vm300, %v4850, 0
        %v4951 = vsel %vm300, %v4851, 0
        %v4954 = vsel %vm300, %v4852, 0
        %v4957 = vsel %vm300, %v4853, 0
        %v4960 = vsel %vm300, %v4854, 0
        %v4963 = vsel %vm300, %v4855, 0
        %v4966 = vsel %vm300, %v4856, 0
        %v4969 = vsel %vm300, %v4857, 0
        %v4972 = vsel %vm300, %v4858, 0
        %v4975 = vsel %vm300, %v4859, 0
        %v4978 = vsel %vm300, %v4860, 0
        %v4981 = vsel %vm300, %v4861, 0
        %v4984 = vsel %vm300, %v4862, 0
        %v4987 = vsel %vm300, %v4863, 0
        %v4990 = vsel %vm300, %v4864, 0
        %v4993 = vsel %vm300, %v4865, 0
        %v4996 = vsel %vm300, %v4866, 0
        %v4999 = vsel %vm300, %v4867, 0
        %v5002 = vsel %vm300, %v4868, 0
        %v5005 = vsel %vm300, %v4869, 0
        %v5008 = vsel %vm300, %v4870, 0
        %v5011 = vsel %vm300, %v4871, 0
        %v5014 = vsel %vm300, %v4872, 0
        %v5017 = vsel %vm300, %v4873, 0
        %v5020 = vsel %vm300, %v4874, 0
        %v5023 = vsel %vm300, %v4875, 0
        %v5026 = vsel %vm300, %v4876, 0
        %v5029 = vsel %vm300, %v4877, 0
        %v5032 = vsel %vm300, %v4878, 0
        %v5035 = vsel %vm300, %v4879, 0
        %v5038 = vsel %vm300, %v4880, 0
        %v5041 = vsel %vm300, %v4881, 0
        %v5044 = vsel %vm300, %v4882, 0
        %v5047 = vsel %vm300, %v4883, 0
        %v5050 = vsel %vm300, %v4884, 0
        %v5053 = vsel %vm300, %v4885, 0
        %v5056 = vsel %vm300, %v4886, 0
        %v5059 = vsel %vm300, %v4887, 0
        %v5062 = vsel %vm300, %v4888, 0
        %v5065 = vsel %vm300, %v4889, 0
        %v5068 = vsel %vm300, %v4890, 0
        %v5071 = vsel %vm300, %v4891, 0
        %v5074 = vsel %vm300, %v4892, 0
        %v5077 = vsel %vm300, %v4893, 0
        %v5080 = vsel %vm300, %v4894, 0
        %v5083 = vsel %vm300, %v4895, 0
        %v5086 = vsel %vm300, %v4896, 0
        %v5089 = vsel %vm300, %v4897, 0
        %v5092 = vsel %vm300, %v4898, 0
        %v5095 = vsel %vm300, %v4899, 0
        %v5098 = vsel %vm300, %v4900, 0
        %v5101 = vsel %vm300, %v4901, 0
        %v5104 = vsel %vm300, %v4902, 0
        %5106 = vmatprep.subr.mxu0 0.0
        %5107 = vmatpush1.msra.mxu0 %v4903
        %5108 = vmatprep.subr.mxu0 0.0
        %5109 = vmatpush1.msra.mxu0 %v4904
        %5110 = vmatprep.subr.mxu0 0.0
        %5111 = vmatpush1.msra.mxu0 %v4905
        %5112 = vmatprep.subr.mxu0 0.0
        %5113 = vmatpush1.msra.mxu0 %v4906
        %5114 = vmatprep.subr.mxu0 0.0
        %5115 = vmatpush1.msra.mxu0 0.0
        %5116 = vmatprep.subr.mxu0 0.0
        %5117 = vmatpush1.msra.mxu0 0.0
        %5118 = vmatprep.subr.mxu0 0.0
        %5119 = vmatpush1.msra.mxu0 0.0
        %5120 = vmatprep.subr.mxu0 0.0
        %5121 = vmatpush1.msra.mxu0 0.0
        %5122 = vmatprep.subr.mxu0 0.0
        %5123 = vmatpush1.msra.mxu0 0.0
        %5124 = vmatprep.subr.mxu0 0.0
        %5125 = vmatpush1.msra.mxu0 0.0
        %5126 = vmatprep.subr.mxu0 0.0
        %5127 = vmatpush1.msra.mxu0 0.0
        %5128 = vmatprep.subr.mxu0 0.0
        %5129 = vmatpush1.msra.mxu0 0.0
        %5130 = vmatprep.subr.mxu0 0.0
        %5131 = vmatpush1.msra.mxu0 0.0
        %5132 = vmatprep.subr.mxu0 0.0
        %5133 = vmatpush1.msra.mxu0 0.0
        %5134 = vmatprep.subr.mxu0 0.0
        %5135 = vmatpush1.msra.mxu0 0.0
        %5136 = vmatprep.subr.mxu0 0.0
        %5137 = vmatpush1.msra.mxu0 0.0
        %5138 = vmatprep.subr.mxu0 0.0
        %5139 = vmatpush1.msra.mxu0 0.0
        %5140 = vmatprep.subr.mxu0 0.0
        %5141 = vmatpush1.msra.mxu0 0.0
        %5142 = vmatprep.subr.mxu0 0.0
        %5143 = vmatpush1.msra.mxu0 0.0
        %5144 = vmatprep.subr.mxu0 0.0
        %5145 = vmatpush1.msra.mxu0 0.0
        %5146 = vmatprep.subr.mxu0 0.0
        %5147 = vmatpush1.msra.mxu0 0.0
        %5148 = vmatprep.subr.mxu0 0.0
        %5149 = vmatpush1.msra.mxu0 0.0
        %5150 = vmatprep.subr.mxu0 0.0
        %5151 = vmatpush1.msra.mxu0 0.0
        %5152 = vmatprep.subr.mxu0 0.0
        %5153 = vmatpush1.msra.mxu0 0.0
        %5154 = vmatprep.subr.mxu0 0.0
        %5155 = vmatpush1.msra.mxu0 0.0
        %5156 = vmatprep.subr.mxu0 0.0
        %5157 = vmatpush1.msra.mxu0 0.0
        %5158 = vmatprep.subr.mxu0 0.0
        %5159 = vmatpush1.msra.mxu0 0.0
        %5160 = vmatprep.subr.mxu0 0.0
        %5161 = vmatpush1.msra.mxu0 0.0
        %5162 = vmatprep.subr.mxu0 0.0
        %5163 = vmatpush1.msra.mxu0 0.0
        %5164 = vmatprep.subr.mxu0 0.0
        %5165 = vmatpush1.msra.mxu0 0.0
        %5166 = vmatprep.subr.mxu0 0.0
        %5167 = vmatpush1.msra.mxu0 0.0
        %5168 = vmatprep.subr.mxu0 0.0
        %5169 = vmatpush1.msra.mxu0 0.0
        %5170 = vmatprep.mubr.f32.mxu0 0.0
        %5171 = vmatmul.mubr.f32.gmra.mrb[0].mxu0 %v4915
        %v5172 = vpop.f32.mrb[0].mxu0
        %v5173 = vadd.f32 %v4912, %v5172
        %v5174 = vpop.f32.mrb[0].mxu0
        %5175 = vmatprep.mubr.f32.mxu0 0.0
        %5176 = vmatmul.mubr.f32.gmra.mrb[0].mxu0 %v4918
        %v5177 = vpop.f32.mrb[0].mxu0
        %v5178 = vadd.f32 %v4912, %v5177
        %v5179 = vpop.f32.mrb[0].mxu0
        %5180 = vmatprep.mubr.f32.mxu0 0.0
        %5181 = vmatmul.mubr.f32.gmra.mrb[0].mxu0 %v4921
        %v5182 = vpop.f32.mrb[0].mxu0
        %v5183 = vadd.f32 %v4912, %v5182
        %v5184 = vpop.f32.mrb[0].mxu0
        %5185 = vmatprep.mubr.f32.mxu0 0.0
        %5186 = vmatmul.mubr.f32.gmra.mrb[0].mxu0 %v4924
        %v5187 = vpop.f32.mrb[0].mxu0
        %v5188 = vadd.f32 %v4912, %v5187
        %v5189 = vpop.f32.mrb[0].mxu0
        %5190 = vmatprep.mubr.f32.mxu0 0.0
        %5191 = vmatmul.mubr.f32.gmra.mrb[0].mxu0 %v4927
        %v5192 = vpop.f32.mrb[0].mxu0
        %v5193 = vadd.f32 %v4912, %v5192
        %v5194 = vpop.f32.mrb[0].mxu0
        %5195 = vmatprep.mubr.f32.mxu0 0.0
        %5196 = vmatmul.mubr.f32.gmra.mrb[0].mxu0 %v4930
        %v5197 = vpop.f32.mrb[0].mxu0
        %v5198 = vadd.f32 %v4912, %v5197
        %v5199 = vpop.f32.mrb[0].mxu0
        %5200 = vmatprep.mubr.f32.mxu0 0.0
        %5201 = vmatmul.mubr.f32.gmra.mrb[0].mxu0 %v4933
        %v5202 = vpop.f32.mrb[0].mxu0
        %v5203 = vadd.f32 %v4912, %v5202
        %v5204 = vpop.f32.mrb[0].mxu0
        %5205 = vmatprep.mubr.f32.mxu0 0.0
        %5206 = vmatmul.mubr.f32.gmra.mrb[0].mxu0 %v4936
        %v5207 = vpop.f32.mrb[0].mxu0
        %v5208 = vadd.f32 %v4912, %v5207
        %v5209 = vpop.f32.mrb[0].mxu0
        %5210 = vmatprep.mubr.f32.mxu0 0.0
        %5211 = vmatmul.mubr.f32.gmra.mrb[0].mxu0 %v4939
        %v5212 = vpop.f32.mrb[0].mxu0
        %v5213 = vadd.f32 %v4912, %v5212
        %v5214 = vpop.f32.mrb[0].mxu0
        %5215 = vmatprep.mubr.f32.mxu0 0.0
        %5216 = vmatmul.mubr.f32.gmra.mrb[0].mxu0 %v4942
        %v5217 = vpop.f32.mrb[0].mxu0
        %v5218 = vadd.f32 %v4912, %v5217
        %v5219 = vpop.f32.mrb[0].mxu0
        %5220 = vmatprep.mubr.f32.mxu0 0.0
        %5221 = vmatmul.mubr.f32.gmra.mrb[0].mxu0 %v4945
        %v5222 = vpop.f32.mrb[0].mxu0
        %v5223 = vadd.f32 %v4912, %v5222
        %v5224 = vpop.f32.mrb[0].mxu0
        %5225 = vmatprep.mubr.f32.mxu0 0.0
        %5226 = vmatmul.mubr.f32.gmra.mrb[0].mxu0 %v4948
        %v5227 = vpop.f32.mrb[0].mxu0
        %v5228 = vadd.f32 %v4912, %v5227
        %v5229 = vpop.f32.mrb[0].mxu0
        %5230 = vmatprep.mubr.f32.mxu0 0.0
        %5231 = vmatmul.mubr.f32.gmra.mrb[0].mxu0 %v4951
        %v5232 = vpop.f32.mrb[0].mxu0
        %v5233 = vadd.f32 %v4912, %v5232
        %v5234 = vpop.f32.mrb[0].mxu0
        %5235 = vmatprep.mubr.f32.mxu0 0.0
        %5236 = vmatmul.mubr.f32.gmra.mrb[0].mxu0 %v4954
        %v5237 = vpop.f32.mrb[0].mxu0
        %v5238 = vadd.f32 %v4912, %v5237
        %v5239 = vpop.f32.mrb[0].mxu0
        %5240 = vmatprep.mubr.f32.mxu0 0.0
        %5241 = vmatmul.mubr.f32.gmra.mrb[0].mxu0 %v4957
        %v5242 = vpop.f32.mrb[0].mxu0
        %v5243 = vadd.f32 %v4912, %v5242
        %v5244 = vpop.f32.mrb[0].mxu0
        %5245 = vmatprep.mubr.f32.mxu0 0.0
        %5246 = vmatmul.mubr.f32.gmra.mrb[0].mxu0 %v4960
        %v5247 = vpop.f32.mrb[0].mxu0
        %v5248 = vadd.f32 %v4912, %v5247
        %v5249 = vpop.f32.mrb[0].mxu0
        %5250 = vmatprep.mubr.f32.mxu0 0.0
        %5251 = vmatmul.mubr.f32.gmra.mrb[0].mxu0 %v4963
        %v5252 = vpop.f32.mrb[0].mxu0
        %v5253 = vadd.f32 %v4912, %v5252
        %v5254 = vpop.f32.mrb[0].mxu0
        %5255 = vmatprep.mubr.f32.mxu0 0.0
        %5256 = vmatmul.mubr.f32.gmra.mrb[0].mxu0 %v4966
        %v5257 = vpop.f32.mrb[0].mxu0
        %v5258 = vadd.f32 %v4912, %v5257
        %v5259 = vpop.f32.mrb[0].mxu0
        %5260 = vmatprep.mubr.f32.mxu0 0.0
        %5261 = vmatmul.mubr.f32.gmra.mrb[0].mxu0 %v4969
        %v5262 = vpop.f32.mrb[0].mxu0
        %v5263 = vadd.f32 %v4912, %v5262
        %v5264 = vpop.f32.mrb[0].mxu0
        %5265 = vmatprep.mubr.f32.mxu0 0.0
        %5266 = vmatmul.mubr.f32.gmra.mrb[0].mxu0 %v4972
        %v5267 = vpop.f32.mrb[0].mxu0
        %v5268 = vadd.f32 %v4912, %v5267
        %v5269 = vpop.f32.mrb[0].mxu0
        %5270 = vmatprep.mubr.f32.mxu0 0.0
        %5271 = vmatmul.mubr.f32.gmra.mrb[0].mxu0 %v4975
        %v5272 = vpop.f32.mrb[0].mxu0
        %v5273 = vadd.f32 %v4912, %v5272
        %v5274 = vpop.f32.mrb[0].mxu0
        %5275 = vmatprep.mubr.f32.mxu0 0.0
        %5276 = vmatmul.mubr.f32.gmra.mrb[0].mxu0 %v4978
        %v5277 = vpop.f32.mrb[0].mxu0
        %v5278 = vadd.f32 %v4912, %v5277
        %v5279 = vpop.f32.mrb[0].mxu0
        %5280 = vmatprep.mubr.f32.mxu0 0.0
        %5281 = vmatmul.mubr.f32.gmra.mrb[0].mxu0 %v4981
        %v5282 = vpop.f32.mrb[0].mxu0
        %v5283 = vadd.f32 %v4912, %v5282
        %v5284 = vpop.f32.mrb[0].mxu0
        %5285 = vmatprep.mubr.f32.mxu0 0.0
        %5286 = vmatmul.mubr.f32.gmra.mrb[0].mxu0 %v4984
        %v5287 = vpop.f32.mrb[0].mxu0
        %v5288 = vadd.f32 %v4912, %v5287
        %v5289 = vpop.f32.mrb[0].mxu0
        %5290 = vmatprep.mubr.f32.mxu0 0.0
        %5291 = vmatmul.mubr.f32.gmra.mrb[0].mxu0 %v4987
        %v5292 = vpop.f32.mrb[0].mxu0
        %v5293 = vadd.f32 %v4912, %v5292
        %v5294 = vpop.f32.mrb[0].mxu0
        %5295 = vmatprep.mubr.f32.mxu0 0.0
        %5296 = vmatmul.mubr.f32.gmra.mrb[0].mxu0 %v4990
        %v5297 = vpop.f32.mrb[0].mxu0
        %v5298 = vadd.f32 %v4912, %v5297
        %v5299 = vpop.f32.mrb[0].mxu0
        %5300 = vmatprep.mubr.f32.mxu0 0.0
        %5301 = vmatmul.mubr.f32.gmra.mrb[0].mxu0 %v4993
        %v5302 = vpop.f32.mrb[0].mxu0
        %v5303 = vadd.f32 %v4912, %v5302
        %v5304 = vpop.f32.mrb[0].mxu0
        %5305 = vmatprep.mubr.f32.mxu0 0.0
        %5306 = vmatmul.mubr.f32.gmra.mrb[0].mxu0 %v4996
        %v5307 = vpop.f32.mrb[0].mxu0
        %v5308 = vadd.f32 %v4912, %v5307
        %v5309 = vpop.f32.mrb[0].mxu0
        %5310 = vmatprep.mubr.f32.mxu0 0.0
        %5311 = vmatmul.mubr.f32.gmra.mrb[0].mxu0 %v4999
        %v5312 = vpop.f32.mrb[0].mxu0
        %v5313 = vadd.f32 %v4912, %v5312
        %v5314 = vpop.f32.mrb[0].mxu0
        %5315 = vmatprep.mubr.f32.mxu0 0.0
        %5316 = vmatmul.mubr.f32.gmra.mrb[0].mxu0 %v5002
        %v5317 = vpop.f32.mrb[0].mxu0
        %v5318 = vadd.f32 %v4912, %v5317
        %v5319 = vpop.f32.mrb[0].mxu0
        %5320 = vmatprep.mubr.f32.mxu0 0.0
        %5321 = vmatmul.mubr.f32.gmra.mrb[0].mxu0 %v5005
        %v5322 = vpop.f32.mrb[0].mxu0
        %v5323 = vadd.f32 %v4912, %v5322
        %v5324 = vpop.f32.mrb[0].mxu0
        %5325 = vmatprep.mubr.f32.mxu0 0.0
        %5326 = vmatmul.mubr.f32.gmra.mrb[0].mxu0 %v5008
        %v5327 = vpop.f32.mrb[0].mxu0
        %v5328 = vadd.f32 %v4912, %v5327
        %v5329 = vpop.f32.mrb[0].mxu0
        %5330 = vmatprep.mubr.f32.mxu0 0.0
        %5331 = vmatmul.mubr.f32.gmra.mrb[0].mxu0 %v5011
        %v5332 = vpop.f32.mrb[0].mxu0
        %v5333 = vadd.f32 %v4912, %v5332
        %v5334 = vpop.f32.mrb[0].mxu0
        %5335 = vmatprep.mubr.f32.mxu0 0.0
        %5336 = vmatmul.mubr.f32.gmra.mrb[0].mxu0 %v5014
        %v5337 = vpop.f32.mrb[0].mxu0
        %v5338 = vadd.f32 %v4912, %v5337
        %v5339 = vpop.f32.mrb[0].mxu0
        %5340 = vmatprep.mubr.f32.mxu0 0.0
        %5341 = vmatmul.mubr.f32.gmra.mrb[0].mxu0 %v5017
        %v5342 = vpop.f32.mrb[0].mxu0
        %v5343 = vadd.f32 %v4912, %v5342
        %v5344 = vpop.f32.mrb[0].mxu0
        %5345 = vmatprep.mubr.f32.mxu0 0.0
        %5346 = vmatmul.mubr.f32.gmra.mrb[0].mxu0 %v5020
        %v5347 = vpop.f32.mrb[0].mxu0
        %v5348 = vadd.f32 %v4912, %v5347
        %v5349 = vpop.f32.mrb[0].mxu0
        %5350 = vmatprep.mubr.f32.mxu0 0.0
        %5351 = vmatmul.mubr.f32.gmra.mrb[0].mxu0 %v5023
        %v5352 = vpop.f32.mrb[0].mxu0
        %v5353 = vadd.f32 %v4912, %v5352
        %v5354 = vpop.f32.mrb[0].mxu0
        %5355 = vmatprep.mubr.f32.mxu0 0.0
        %5356 = vmatmul.mubr.f32.gmra.mrb[0].mxu0 %v5026
        %v5357 = vpop.f32.mrb[0].mxu0
        %v5358 = vadd.f32 %v4912, %v5357
        %v5359 = vpop.f32.mrb[0].mxu0
        %5360 = vmatprep.mubr.f32.mxu0 0.0
        %5361 = vmatmul.mubr.f32.gmra.mrb[0].mxu0 %v5029
        %v5362 = vpop.f32.mrb[0].mxu0
        %v5363 = vadd.f32 %v4912, %v5362
        %v5364 = vpop.f32.mrb[0].mxu0
        %5365 = vmatprep.mubr.f32.mxu0 0.0
        %5366 = vmatmul.mubr.f32.gmra.mrb[0].mxu0 %v5032
        %v5367 = vpop.f32.mrb[0].mxu0
        %v5368 = vadd.f32 %v4912, %v5367
        %v5369 = vpop.f32.mrb[0].mxu0
        %5370 = vmatprep.mubr.f32.mxu0 0.0
        %5371 = vmatmul.mubr.f32.gmra.mrb[0].mxu0 %v5035
        %v5372 = vpop.f32.mrb[0].mxu0
        %v5373 = vadd.f32 %v4912, %v5372
        %v5374 = vpop.f32.mrb[0].mxu0
        %5375 = vmatprep.mubr.f32.mxu0 0.0
        %5376 = vmatmul.mubr.f32.gmra.mrb[0].mxu0 %v5038
        %v5377 = vpop.f32.mrb[0].mxu0
        %v5378 = vadd.f32 %v4912, %v5377
        %v5379 = vpop.f32.mrb[0].mxu0
        %5380 = vmatprep.mubr.f32.mxu0 0.0
        %5381 = vmatmul.mubr.f32.gmra.mrb[0].mxu0 %v5041
        %v5382 = vpop.f32.mrb[0].mxu0
        %v5383 = vadd.f32 %v4912, %v5382
        %v5384 = vpop.f32.mrb[0].mxu0
        %5385 = vmatprep.mubr.f32.mxu0 0.0
        %5386 = vmatmul.mubr.f32.gmra.mrb[0].mxu0 %v5044
        %v5387 = vpop.f32.mrb[0].mxu0
        %v5388 = vadd.f32 %v4912, %v5387
        %v5389 = vpop.f32.mrb[0].mxu0
        %5390 = vmatprep.mubr.f32.mxu0 0.0
        %5391 = vmatmul.mubr.f32.gmra.mrb[0].mxu0 %v5047
        %v5392 = vpop.f32.mrb[0].mxu0
        %v5393 = vadd.f32 %v4912, %v5392
        %v5394 = vpop.f32.mrb[0].mxu0
        %5395 = vmatprep.mubr.f32.mxu0 0.0
        %5396 = vmatmul.mubr.f32.gmra.mrb[0].mxu0 %v5050
        %v5397 = vpop.f32.mrb[0].mxu0
        %v5398 = vadd.f32 %v4912, %v5397
        %v5399 = vpop.f32.mrb[0].mxu0
        %5400 = vmatprep.mubr.f32.mxu0 0.0
        %5401 = vmatmul.mubr.f32.gmra.mrb[0].mxu0 %v5053
        %v5402 = vpop.f32.mrb[0].mxu0
        %v5403 = vadd.f32 %v4912, %v5402
        %v5404 = vpop.f32.mrb[0].mxu0
        %5405 = vmatprep.mubr.f32.mxu0 0.0
        %5406 = vmatmul.mubr.f32.gmra.mrb[0].mxu0 %v5056
        %v5407 = vpop.f32.mrb[0].mxu0
        %v5408 = vadd.f32 %v4912, %v5407
        %v5409 = vpop.f32.mrb[0].mxu0
        %5410 = vmatprep.mubr.f32.mxu0 0.0
        %5411 = vmatmul.mubr.f32.gmra.mrb[0].mxu0 %v5059
        %v5412 = vpop.f32.mrb[0].mxu0
        %v5413 = vadd.f32 %v4912, %v5412
        %v5414 = vpop.f32.mrb[0].mxu0
        %5415 = vmatprep.mubr.f32.mxu0 0.0
        %5416 = vmatmul.mubr.f32.gmra.mrb[0].mxu0 %v5062
        %v5417 = vpop.f32.mrb[0].mxu0
        %v5418 = vadd.f32 %v4912, %v5417
        %v5419 = vpop.f32.mrb[0].mxu0
        %5420 = vmatprep.mubr.f32.mxu0 0.0
        %5421 = vmatmul.mubr.f32.gmra.mrb[0].mxu0 %v5065
        %v5422 = vpop.f32.mrb[0].mxu0
        %v5423 = vadd.f32 %v4912, %v5422
        %v5424 = vpop.f32.mrb[0].mxu0
        %5425 = vmatprep.mubr.f32.mxu0 0.0
        %5426 = vmatmul.mubr.f32.gmra.mrb[0].mxu0 %v5068
        %v5427 = vpop.f32.mrb[0].mxu0
        %v5428 = vadd.f32 %v4912, %v5427
        %v5429 = vpop.f32.mrb[0].mxu0
        %5430 = vmatprep.mubr.f32.mxu0 0.0
        %5431 = vmatmul.mubr.f32.gmra.mrb[0].mxu0 %v5071
        %v5432 = vpop.f32.mrb[0].mxu0
        %v5433 = vadd.f32 %v4912, %v5432
        %v5434 = vpop.f32.mrb[0].mxu0
        %5435 = vmatprep.mubr.f32.mxu0 0.0
        %5436 = vmatmul.mubr.f32.gmra.mrb[0].mxu0 %v5074
        %v5437 = vpop.f32.mrb[0].mxu0
        %v5438 = vadd.f32 %v4912, %v5437
        %v5439 = vpop.f32.mrb[0].mxu0
        %5440 = vmatprep.mubr.f32.mxu0 0.0
        %5441 = vmatmul.mubr.f32.gmra.mrb[0].mxu0 %v5077
        %v5442 = vpop.f32.mrb[0].mxu0
        %v5443 = vadd.f32 %v4912, %v5442
        %v5444 = vpop.f32.mrb[0].mxu0
        %5445 = vmatprep.mubr.f32.mxu0 0.0
        %5446 = vmatmul.mubr.f32.gmra.mrb[0].mxu0 %v5080
        %v5447 = vpop.f32.mrb[0].mxu0
        %v5448 = vadd.f32 %v4912, %v5447
        %v5449 = vpop.f32.mrb[0].mxu0
        %5450 = vmatprep.mubr.f32.mxu0 0.0
        %5451 = vmatmul.mubr.f32.gmra.mrb[0].mxu0 %v5083
        %v5452 = vpop.f32.mrb[0].mxu0
        %v5453 = vadd.f32 %v4912, %v5452
        %v5454 = vpop.f32.mrb[0].mxu0
        %5455 = vmatprep.mubr.f32.mxu0 0.0
        %5456 = vmatmul.mubr.f32.gmra.mrb[0].mxu0 %v5086
        %v5457 = vpop.f32.mrb[0].mxu0
        %v5458 = vadd.f32 %v4912, %v5457
        %v5459 = vpop.f32.mrb[0].mxu0
        %5460 = vmatprep.mubr.f32.mxu0 0.0
        %5461 = vmatmul.mubr.f32.gmra.mrb[0].mxu0 %v5089
        %v5462 = vpop.f32.mrb[0].mxu0
        %v5463 = vadd.f32 %v4912, %v5462
        %v5464 = vpop.f32.mrb[0].mxu0
        %5465 = vmatprep.mubr.f32.mxu0 0.0
        %5466 = vmatmul.mubr.f32.gmra.mrb[0].mxu0 %v5092
        %v5467 = vpop.f32.mrb[0].mxu0
        %v5468 = vadd.f32 %v4912, %v5467
        %v5469 = vpop.f32.mrb[0].mxu0
        %5470 = vmatprep.mubr.f32.mxu0 0.0
        %5471 = vmatmul.mubr.f32.gmra.mrb[0].mxu0 %v5095
        %v5472 = vpop.f32.mrb[0].mxu0
        %v5473 = vadd.f32 %v4912, %v5472
        %v5474 = vpop.f32.mrb[0].mxu0
        %5475 = vmatprep.mubr.f32.mxu0 0.0
        %5476 = vmatmul.mubr.f32.gmra.mrb[0].mxu0 %v5098
        %v5477 = vpop.f32.mrb[0].mxu0
        %v5478 = vadd.f32 %v4912, %v5477
        %v5479 = vpop.f32.mrb[0].mxu0
        %5480 = vmatprep.mubr.f32.mxu0 0.0
        %5481 = vmatmul.mubr.f32.gmra.mrb[0].mxu0 %v5101
        %v5482 = vpop.f32.mrb[0].mxu0
        %v5483 = vadd.f32 %v4912, %v5482
        %v5484 = vpop.f32.mrb[0].mxu0
        %5485 = vmatprep.mubr.f32.mxu0 0.0
        %5486 = vmatmul.mubr.f32.gmra.mrb[0].mxu0 %v5104
        %v5487 = vpop.f32.mrb[0].mxu0
        %v5488 = vadd.f32 %v4912, %v5487
        %v5489 = vpop.f32.mrb[0].mxu0
        %5490 = vdwg.mxu0
        %v5491 = vadd.f32 %v5173, %v530
        %v5492 = vadd.f32 %v5178, %v531
        %v5493 = vadd.f32 %v5183, %v532
        %v5494 = vadd.f32 %v5188, %v533
        %v5495 = vadd.f32 %v5193, %v534
        %v5496 = vadd.f32 %v5198, %v535
        %v5497 = vadd.f32 %v5203, %v536
        %v5498 = vadd.f32 %v5208, %v537
        %v5499 = vadd.f32 %v5213, %v538
        %v5500 = vadd.f32 %v5218, %v539
        %v5501 = vadd.f32 %v5223, %v540
        %v5502 = vadd.f32 %v5228, %v541
        %v5503 = vadd.f32 %v5233, %v542
        %v5504 = vadd.f32 %v5238, %v543
        %v5505 = vadd.f32 %v5243, %v544
        %v5506 = vadd.f32 %v5248, %v545
        %v5507 = vadd.f32 %v5253, %v546
        %v5508 = vadd.f32 %v5258, %v547
        %v5509 = vadd.f32 %v5263, %v548
        %v5510 = vadd.f32 %v5268, %v549
        %v5511 = vadd.f32 %v5273, %v550
        %v5512 = vadd.f32 %v5278, %v551
        %v5513 = vadd.f32 %v5283, %v552
        %v5514 = vadd.f32 %v5288, %v553
        %v5515 = vadd.f32 %v5293, %v554
        %v5516 = vadd.f32 %v5298, %v555
        %v5517 = vadd.f32 %v5303, %v556
        %v5518 = vadd.f32 %v5308, %v557
        %v5519 = vadd.f32 %v5313, %v558
        %v5520 = vadd.f32 %v5318, %v559
        %v5521 = vadd.f32 %v5323, %v560
        %v5522 = vadd.f32 %v5328, %v561
        %v5523 = vadd.f32 %v5333, %v562
        %v5524 = vadd.f32 %v5338, %v563
        %v5525 = vadd.f32 %v5343, %v564
        %v5526 = vadd.f32 %v5348, %v565
        %v5527 = vadd.f32 %v5353, %v566
        %v5528 = vadd.f32 %v5358, %v567
        %v5529 = vadd.f32 %v5363, %v568
        %v5530 = vadd.f32 %v5368, %v569
        %v5531 = vadd.f32 %v5373, %v570
        %v5532 = vadd.f32 %v5378, %v571
        %v5533 = vadd.f32 %v5383, %v572
        %v5534 = vadd.f32 %v5388, %v573
        %v5535 = vadd.f32 %v5393, %v574
        %v5536 = vadd.f32 %v5398, %v575
        %v5537 = vadd.f32 %v5403, %v576
        %v5538 = vadd.f32 %v5408, %v577
        %v5539 = vadd.f32 %v5413, %v578
        %v5540 = vadd.f32 %v5418, %v579
        %v5541 = vadd.f32 %v5423, %v580
        %v5542 = vadd.f32 %v5428, %v581
        %v5543 = vadd.f32 %v5433, %v582
        %v5544 = vadd.f32 %v5438, %v583
        %v5545 = vadd.f32 %v5443, %v584
        %v5546 = vadd.f32 %v5448, %v585
        %v5547 = vadd.f32 %v5453, %v586
        %v5548 = vadd.f32 %v5458, %v587
        %v5549 = vadd.f32 %v5463, %v588
        %v5550 = vadd.f32 %v5468, %v589
        %v5551 = vadd.f32 %v5473, %v590
        %v5552 = vadd.f32 %v5478, %v591
        %v5553 = vadd.f32 %v5483, %v592
        %v5554 = vadd.f32 %v5488, %v593
        %v5555 = vmax.f32 %v5491, 0.0
        %v5556 = vmax.f32 %v5492, 0.0
        %v5557 = vmax.f32 %v5493, 0.0
        %v5558 = vmax.f32 %v5494, 0.0
        %v5559 = vmax.f32 %v5495, 0.0
        %v5560 = vmax.f32 %v5496, 0.0
        %v5561 = vmax.f32 %v5497, 0.0
        %v5562 = vmax.f32 %v5498, 0.0
        %v5563 = vmax.f32 %v5499, 0.0
        %v5564 = vmax.f32 %v5500, 0.0
        %v5565 = vmax.f32 %v5501, 0.0
        %v5566 = vmax.f32 %v5502, 0.0
        %v5567 = vmax.f32 %v5503, 0.0
        %v5568 = vmax.f32 %v5504, 0.0
        %v5569 = vmax.f32 %v5505, 0.0
        %v5570 = vmax.f32 %v5506, 0.0
        %v5571 = vmax.f32 %v5507, 0.0
        %v5572 = vmax.f32 %v5508, 0.0
        %v5573 = vmax.f32 %v5509, 0.0
        %v5574 = vmax.f32 %v5510, 0.0
        %v5575 = vmax.f32 %v5511, 0.0
        %v5576 = vmax.f32 %v5512, 0.0
        %v5577 = vmax.f32 %v5513, 0.0
        %v5578 = vmax.f32 %v5514, 0.0
        %v5579 = vmax.f32 %v5515, 0.0
        %v5580 = vmax.f32 %v5516, 0.0
        %v5581 = vmax.f32 %v5517, 0.0
        %v5582 = vmax.f32 %v5518, 0.0
        %v5583 = vmax.f32 %v5519, 0.0
        %v5584 = vmax.f32 %v5520, 0.0
        %v5585 = vmax.f32 %v5521, 0.0
        %v5586 = vmax.f32 %v5522, 0.0
        %v5587 = vmax.f32 %v5523, 0.0
        %v5588 = vmax.f32 %v5524, 0.0
        %v5589 = vmax.f32 %v5525, 0.0
        %v5590 = vmax.f32 %v5526, 0.0
        %v5591 = vmax.f32 %v5527, 0.0
        %v5592 = vmax.f32 %v5528, 0.0
        %v5593 = vmax.f32 %v5529, 0.0
        %v5594 = vmax.f32 %v5530, 0.0
        %v5595 = vmax.f32 %v5531, 0.0
        %v5596 = vmax.f32 %v5532, 0.0
        %v5597 = vmax.f32 %v5533, 0.0
        %v5598 = vmax.f32 %v5534, 0.0
        %v5599 = vmax.f32 %v5535, 0.0
        %v5600 = vmax.f32 %v5536, 0.0
        %v5601 = vmax.f32 %v5537, 0.0
        %v5602 = vmax.f32 %v5538, 0.0
        %v5603 = vmax.f32 %v5539, 0.0
        %v5604 = vmax.f32 %v5540, 0.0
        %v5605 = vmax.f32 %v5541, 0.0
        %v5606 = vmax.f32 %v5542, 0.0
        %v5607 = vmax.f32 %v5543, 0.0
        %v5608 = vmax.f32 %v5544, 0.0
        %v5609 = vmax.f32 %v5545, 0.0
        %v5610 = vmax.f32 %v5546, 0.0
        %v5611 = vmax.f32 %v5547, 0.0
        %v5612 = vmax.f32 %v5548, 0.0
        %v5613 = vmax.f32 %v5549, 0.0
        %v5614 = vmax.f32 %v5550, 0.0
        %v5615 = vmax.f32 %v5551, 0.0
        %v5616 = vmax.f32 %v5552, 0.0
        %v5617 = vmax.f32 %v5553, 0.0
        %v5618 = vmax.f32 %v5554, 0.0
        %5619 = vst [vmem:[%s297] sm:$0xff] %v5555
        %5620 = vst [vmem:[%s297 + $0x8] sm:$0xff] %v5556
        %5621 = vst [vmem:[%s297 + $0x10] sm:$0xff] %v5557
        %5622 = vst [vmem:[%s297 + $0x18] sm:$0xff] %v5558
        %5623 = vst [vmem:[%s297 + $0x20] sm:$0xff] %v5559
        %5624 = vst [vmem:[%s297 + $0x28] sm:$0xff] %v5560
        %5625 = vst [vmem:[%s297 + $0x30] sm:$0xff] %v5561
        %5626 = vst [vmem:[%s297 + $0x38] sm:$0xff] %v5562
        %5627 = vst [vmem:[%s297 + $0x40] sm:$0xff] %v5563
        %5628 = vst [vmem:[%s297 + $0x48] sm:$0xff] %v5564
        %5629 = vst [vmem:[%s297 + $0x50] sm:$0xff] %v5565
        %5630 = vst [vmem:[%s297 + $0x58] sm:$0xff] %v5566
        %5631 = vst [vmem:[%s297 + $0x60] sm:$0xff] %v5567
        %5632 = vst [vmem:[%s297 + $0x68] sm:$0xff] %v5568
        %5633 = vst [vmem:[%s297 + $0x70] sm:$0xff] %v5569
        %5634 = vst [vmem:[%s297 + $0x78] sm:$0xff] %v5570
        %5635 = vst [vmem:[%s297 + $0x80] sm:$0xff] %v5571
        %5636 = vst [vmem:[%s297 + $0x88] sm:$0xff] %v5572
        %5637 = vst [vmem:[%s297 + $0x90] sm:$0xff] %v5573
        %5638 = vst [vmem:[%s297 + $0x98] sm:$0xff] %v5574
        %5639 = vst [vmem:[%s297 + $0xa0] sm:$0xff] %v5575
        %5640 = vst [vmem:[%s297 + $0xa8] sm:$0xff] %v5576
        %5641 = vst [vmem:[%s297 + $0xb0] sm:$0xff] %v5577
        %5642 = vst [vmem:[%s297 + $0xb8] sm:$0xff] %v5578
        %5643 = vst [vmem:[%s297 + $0xc0] sm:$0xff] %v5579
        %5644 = vst [vmem:[%s297 + $0xc8] sm:$0xff] %v5580
        %5645 = vst [vmem:[%s297 + $0xd0] sm:$0xff] %v5581
        %5646 = vst [vmem:[%s297 + $0xd8] sm:$0xff] %v5582
        %5647 = vst [vmem:[%s297 + $0xe0] sm:$0xff] %v5583
        %5648 = vst [vmem:[%s297 + $0xe8] sm:$0xff] %v5584
        %5649 = vst [vmem:[%s297 + $0xf0] sm:$0xff] %v5585
        %5650 = vst [vmem:[%s297 + $0xf8] sm:$0xff] %v5586
        %5651 = vst [vmem:[%s297 + $0x100] sm:$0xff] %v5587
        %5652 = vst [vmem:[%s297 + $0x108] sm:$0xff] %v5588
        %5653 = vst [vmem:[%s297 + $0x110] sm:$0xff] %v5589
        %5654 = vst [vmem:[%s297 + $0x118] sm:$0xff] %v5590
        %5655 = vst [vmem:[%s297 + $0x120] sm:$0xff] %v5591
        %5656 = vst [vmem:[%s297 + $0x128] sm:$0xff] %v5592
        %5657 = vst [vmem:[%s297 + $0x130] sm:$0xff] %v5593
        %5658 = vst [vmem:[%s297 + $0x138] sm:$0xff] %v5594
        %5659 = vst [vmem:[%s297 + $0x140] sm:$0xff] %v5595
        %5660 = vst [vmem:[%s297 + $0x148] sm:$0xff] %v5596
        %5661 = vst [vmem:[%s297 + $0x150] sm:$0xff] %v5597
        %5662 = vst [vmem:[%s297 + $0x158] sm:$0xff] %v5598
        %5663 = vst [vmem:[%s297 + $0x160] sm:$0xff] %v5599
        %5664 = vst [vmem:[%s297 + $0x168] sm:$0xff] %v5600
        %5665 = vst [vmem:[%s297 + $0x170] sm:$0xff] %v5601
        %5666 = vst [vmem:[%s297 + $0x178] sm:$0xff] %v5602
        %5667 = vst [vmem:[%s297 + $0x180] sm:$0xff] %v5603
        %5668 = vst [vmem:[%s297 + $0x188] sm:$0xff] %v5604
        %5669 = vst [vmem:[%s297 + $0x190] sm:$0xff] %v5605
        %5670 = vst [vmem:[%s297 + $0x198] sm:$0xff] %v5606
        %5671 = vst [vmem:[%s297 + $0x1a0] sm:$0xff] %v5607
        %5672 = vst [vmem:[%s297 + $0x1a8] sm:$0xff] %v5608
        %5673 = vst [vmem:[%s297 + $0x1b0] sm:$0xff] %v5609
        %5674 = vst [vmem:[%s297 + $0x1b8] sm:$0xff] %v5610
        %5675 = vst [vmem:[%s297 + $0x1c0] sm:$0xff] %v5611
        %5676 = vst [vmem:[%s297 + $0x1c8] sm:$0xff] %v5612
        %5677 = vst [vmem:[%s297 + $0x1d0] sm:$0xff] %v5613
        %5678 = vst [vmem:[%s297 + $0x1d8] sm:$0xff] %v5614
        %5679 = vst [vmem:[%s297 + $0x1e0] sm:$0xff] %v5615
        %5680 = vst [vmem:[%s297 + $0x1e8] sm:$0xff] %v5616
        %5681 = vst [vmem:[%s297 + $0x1f0] sm:$0xff] %v5617
        %5682 = vst [vmem:[%s297 + $0x1f8] sm:$0xff] %v5618
        %s5683 = sand.u32 %s184, 1
        %s5684 = scalar_lea.sflag [#allocation6], %s5683
        %s5685 = sand.u32 %s184, 1
        %s5686 = smul.addr %s5685, 512
        %s5687 = scalar_lea.vmem [#allocation7], %s5686
        // Predicated region
        $region53: #{tpu_custom_call.1} parent=47 // pred_check
          %p5688 = pneg %p194
        $region54: #{tpu_custom_call.1} parent=47 // pred_check_branch
          %5690 = sbr.rel (%p5688) target = $region56
        $region55: #{tpu_custom_call.1} parent=47 // pred_region
          %s5691 = smul.u32 8, %s24
          %s5693 = ssub.s32 8192, 8192
          %5694 = vsyncadd %s5684, %s5693
          %s5695 = smul.addr %s5691, 8
          %s5696 = smul.addr %s5695, 128
          %s5697 = scalar_lea.hbm %s7, %s5696
          %s5698 = sshll.u32 %s5687, 4
          %s5699 = int_to_ptr.vmem [resolvable:$true] %s5698
          %5704 = dma.vmem_to_hbm [thread:$0]  %s5699, 8192, %s5697, %s5684, 128, 128, 8
        $region56: #{tpu_custom_call.1} parent=47 // pred_fallthru
          _
      $region48: #{tpu_custom_call.1} parent=5 // pred_fallthru
        _
      %p5705 = scmp.le.s32.totalorder 2, %s19
      // Predicated region
      $region57: #{tpu_custom_call.1} parent=5 // pred_check
        %p5706 = pneg %p5705
      $region58: #{tpu_custom_call.1} parent=5 // pred_check_branch
        %5708 = sbr.rel (%p5706) target = $region60
      $region59: #{tpu_custom_call.1} parent=5 // pred_region
        %s5709 = ssub.s32 %s19, 2
        // Predicated region
        $region61: #{tpu_custom_call.1} parent=59 // pred_check
          %p5710 = pneg %p200
        $region62: #{tpu_custom_call.1} parent=59 // pred_check_branch
          %5712 = sbr.rel (%p5710) target = $region64
        $region63: #{tpu_custom_call.1} parent=59 // pred_region
          %s5713 = sand.u32 %s185, 1
          %s5714 = scalar_lea.sflag [#allocation6], %s5713
          %s5715 = sand.u32 %s185, 1
          %s5716 = smul.addr %s5715, 512
          %s5717 = scalar_lea.vmem [#allocation7], %s5716
          %5718 = dma.done %s5714, 8192
        $region64: #{tpu_custom_call.1} parent=59 // pred_fallthru
          _
      $region60: #{tpu_custom_call.1} parent=5 // pred_fallthru
        _
    $region6: #{tpu_custom_call.1} parent=1 // loop_footer
      %s23 = sadd.s32 1, %s19
    $region7: #{tpu_custom_call.1} parent=1 // loop_footer_branch
      %18 = sbr.rel target = $region3
    $region8: #{tpu_custom_call.1} parent=1 // loop_exit
      _
    %5719 = vsyncpa [#allocation5], 1
    %s5720 = scalar_lea.sflag [#allocation5], 1
    %5721 = vsyncpa %s5720, 1
    %5722 = vsyncpa [#allocation6], 1
    %s5723 = scalar_lea.sflag [#allocation6], 1
    %5724 = vsyncpa %s5723, 1

</llo_original>
